<compile_context>
chip_gen: v7x
topology: tpu7x:2x2x1
jax: 0.10.0
libtpu: 0.0.40
codegen_flags: <defaults>
</compile_context>

<pallas_src>
import functools

import jax
import jax.numpy as jnp
from jax.experimental import pallas as pl
from jax.experimental.pallas import tpu as pltpu

# ---------------------------------------------------------------------------
# Small, deterministic configuration (stands in for the argparse `args`).
# ---------------------------------------------------------------------------
H_IMG, W_IMG = 16, 16
FOCAL = 15.0
NEAR, FAR = 0.2, 1.0
N_RAYS = 64
N_SAMPLES = 8          # args.N_samples
N_IMPORTANCE = 8       # args.N_importance
CHUNK = 1 << 15
NETCHUNK = 1 << 16
NETDEPTH = 6           # args.netdepth (small)
NETWIDTH = 64          # args.netwidth (small)
SKIPS = (4,)           # self.skips = [4]
DIM_AUD = 16           # args.dim_aud (small)
WIN_SIZE = 16          # args.win_size
AUD_FEAT = 29
MULTIRES = 4           # -> input_ch       = 3*(1+2*4) = 27
MULTIRES_VIEWS = 2     # -> input_ch_views = 3*(1+2*2) = 15
MULTIRES_ATT = 2       # attention_embed_func
NOSMO_ITERS = 1000
PERTURB = 0.0          # deterministic stratified sampling
UNET_OUT = 64

INPUT_CH = 3 * (1 + 2 * MULTIRES)               # 27
INPUT_CH_VIEWS = 3 * (1 + 2 * MULTIRES_VIEWS)   # 15
IN_ALL = INPUT_CH + DIM_AUD                     # 43


def _round_up(x, m):
    return ((x + m - 1) // m) * m


def _pick_tile(n):
    """Large tiles, but >= 2 parallel grid steps so both v7x TCs get work."""
    n = max(n, 256)
    tile = min(512, _round_up(n, 256) // 2)
    return max(tile, 128)


# Static column offsets inside the packed FaceNeRF weight slab.
def _build_offsets():
    offs, off = {}, 0
    offs["L0e"] = off; off += INPUT_CH
    for i in range(1, NETDEPTH):
        offs[f"L{i}h"] = off; off += NETWIDTH
        if (i - 1) in SKIPS:
            offs[f"L{i}e"] = off; off += INPUT_CH
    offs["FA"] = off; off += NETWIDTH
    offs["VH"] = off; off += NETWIDTH
    offs["VE"] = off; off += INPUT_CH_VIEWS
    offs["RGB"] = off; off += NETWIDTH // 2
    return offs, off


W_OFFS, KW = _build_offsets()
SLAB_ROWS = NETWIDTH + 1                                   # 65 (fused feat+alpha head)
N_BIAS_COLS = NETDEPTH + 3
AUD_BIAS_COLS = (0,) + tuple(i for i in range(1, NETDEPTH) if (i - 1) in SKIPS)


# ---------------------------------------------------------------------------
# Host-side positional embedder (attention path only; the FaceNeRF embedding is
# fused into the Pallas kernel).
# ---------------------------------------------------------------------------
def posenc(x, n_freqs):
    outs = [x]
    for k in range(n_freqs):
        f = float(2 ** k)
        outs.append(jnp.sin(x * f))
        outs.append(jnp.cos(x * f))
    return jnp.concatenate(outs, axis=-1)


attention_embed_func = lambda x: posenc(x, MULTIRES_ATT)


# ---------------------------------------------------------------------------
# Generic row-tiled dense Pallas kernel (AudioNet stub, FaceUNet 1x1-conv stub).
# bf16 MXU operands, f32 accumulate, lane-dense (128-padded) output stores.
# ---------------------------------------------------------------------------
def _dense_kernel(x_ref, w_ref, b_ref, o_ref, *, relu):
    y = jnp.dot(x_ref[...], w_ref[...], preferred_element_type=jnp.float32)
    y = y + b_ref[...]
    if relu:
        y = jnp.maximum(y, 0.0)
    o_ref[...] = y


def pallas_dense(x, w, b, relu=False, block_m=128):
    m, k = x.shape
    n = w.shape[1]
    bm = min(block_m, _round_up(m, 8))
    m_pad = _round_up(m, bm)
    n_pad = _round_up(n, 128)
    x_p = jnp.pad(x, ((0, m_pad - m), (0, 0))).astype(jnp.bfloat16)
    w_p = jnp.pad(w, ((0, 0), (0, n_pad - n))).astype(jnp.bfloat16)
    b_p = jnp.pad(b, ((0, 0), (0, n_pad - n))).astype(jnp.float32)
    out = pl.pallas_call(
        functools.partial(_dense_kernel, relu=relu),
        out_shape=jax.ShapeDtypeStruct((m_pad, n_pad), jnp.float32),
        grid=(m_pad // bm,),
        in_specs=[pl.BlockSpec((bm, k), lambda i: (i, 0)),
                  pl.BlockSpec((k, n_pad), lambda i: (0, 0)),
                  pl.BlockSpec((1, n_pad), lambda i: (0, 0))],
        out_specs=pl.BlockSpec((bm, n_pad), lambda i: (i, 0)),
        compiler_params=pltpu.CompilerParams(dimension_semantics=("parallel",)),
    )(x_p, w_p, b_p)
    return out[:m, :n]


# ---------------------------------------------------------------------------
# FaceNeRF MLP kernel (the matmul hot path), feature-major layout.
# Activations are [features, points] with points on the 128-lane axis.
# ---------------------------------------------------------------------------
def facenerf_kernel(pd_ref, w_ref, b_ref, out_ref):
    f32, bf16 = jnp.float32, jnp.bfloat16
    w = w_ref[...]                 # [65, KW] bf16 packed weight slab
    b = b_ref[...]                 # [65, 9]  f32 packed bias slab (aud folded in)
    pd = pd_ref[...]               # [8, T]   rows 0-2 pts, 3-5 dirs
    pts = pd[0:3, :]
    dirs = pd[3:6, :]

    def embed(x, n_freq):
        # VPU frequency scaling + EUP sin/cos, packed once per tile.
        sp = jnp.concatenate([x * (2.0 ** k) for k in range(n_freq)], axis=0)
        return jnp.concatenate([x, jnp.sin(sp), jnp.cos(sp)], axis=0).astype(bf16)

    e_pts = embed(pts, MULTIRES)            # [27, T] bf16
    e_dirs = embed(dirs, MULTIRES_VIEWS)    # [15, T] bf16

    def wdot(rows, off, k, act):
        return jnp.dot(w[:rows, off:off + k], act, preferred_element_type=f32)

    def bias(rows, j):
        return b[:rows, j:j + 1]

    # layer 0 (audio contribution pre-folded into the bias column)
    h = jnp.maximum(wdot(NETWIDTH, W_OFFS["L0e"], INPUT_CH, e_pts) + bias(NETWIDTH, 0), 0.0)

    for i in range(1, NETDEPTH):
        z = wdot(NETWIDTH, W_OFFS[f"L{i}h"], NETWIDTH, h.astype(bf16))
        if (i - 1) in SKIPS:                 # skip connection: split-weight dot
            z = z + wdot(NETWIDTH, W_OFFS[f"L{i}e"], INPUT_CH, e_pts)
        h = jnp.maximum(z + bias(NETWIDTH, i), 0.0)

    # fused feature_linear + alpha_linear head (one MXU pass)
    fa = wdot(SLAB_ROWS, W_OFFS["FA"], NETWIDTH, h.astype(bf16)) + bias(SLAB_ROWS, NETDEPTH)
    feat = fa[:NETWIDTH, :]
    sigma = fa[NETWIDTH:NETWIDTH + 1, :]

    # view branch: split weights instead of concat([feature, emb_dirs])
    hv = (wdot(NETWIDTH // 2, W_OFFS["VH"], NETWIDTH, feat.astype(bf16))
          + wdot(NETWIDTH // 2, W_OFFS["VE"], INPUT_CH_VIEWS, e_dirs)
          + bias(NETWIDTH // 2, NETDEPTH + 1))
    hv = jnp.maximum(hv, 0.0)

    rgb = wdot(3, W_OFFS["RGB"], NETWIDTH // 2, hv.astype(bf16)) + bias(3, NETDEPTH + 2)

    pad = jnp.zeros((4,) + rgb.shape[1:], f32)
    out_ref[...] = jnp.concatenate([rgb, sigma, pad], axis=0)   # [8, T] lane-dense store


def facenerf_apply(fp, pts, dirs, aud):
    """pts / dirs: [N, 3] f32 (sample-major); aud: [DIM_AUD].
    Returns raw [4, N] channel-major (rows 0-2 rgb pre-sigmoid, row 3 sigma)."""
    n = pts.shape[0]
    tile = _pick_tile(n)
    n_pad = _round_up(n, tile)

    pd = jnp.zeros((8, n_pad), jnp.float32)
    pd = pd.at[0:3, :n].set(pts.T.astype(jnp.float32))
    pd = pd.at[3:6, :n].set(dirs.T.astype(jnp.float32))

    # fold the constant audio code into the bias slab
    aud_col = aud.reshape(DIM_AUD, 1).astype(jnp.float32)
    b_slab = fp["b_base"]
    for j, col in enumerate(AUD_BIAS_COLS):
        b_slab = b_slab.at[:NETWIDTH, col:col + 1].add(fp["w_aud"][j] @ aud_col)

    out = pl.pallas_call(
        facenerf_kernel,
        out_shape=jax.ShapeDtypeStruct((8, n_pad), jnp.float32),
        grid=(n_pad // tile,),
        in_specs=[pl.BlockSpec((8, tile), lambda i: (0, i)),
                  pl.BlockSpec((SLAB_ROWS, KW), lambda i: (0, 0)),
                  pl.BlockSpec((SLAB_ROWS, N_BIAS_COLS), lambda i: (0, 0))],
        out_specs=pl.BlockSpec((8, tile), lambda i: (0, i)),
        compiler_params=pltpu.CompilerParams(dimension_semantics=("parallel",)),
    )(pd, fp["w_slab"], b_slab)
    return out[:4, :n]


# ---------------------------------------------------------------------------
# raw2outputs: volumetric-rendering compositing, rays on the lane axis.
# ---------------------------------------------------------------------------
def raw2outputs_kernel(raw_ref, z_ref, d_ref, bc_ref, lm_ref, out_ref, w_ref, *, n_s):
    raw = raw_ref[...]                      # [4*S, RB]
    z = z_ref[...]                          # [S, RB]
    dists = d_ref[...]                      # [S, RB] (precomputed, incl. |rays_d|)
    bc = bc_ref[...]                        # [3, RB]
    lmask = lm_ref[...]                     # [S, S] strictly lower triangular

    sigma = raw[3 * n_s:4 * n_s, :]
    tau = (jnp.maximum(sigma, 0.0) + 1e-6) * dists          # reference raw2alpha
    alpha = 1.0 - jnp.exp(-tau)
    # Exclusive cumulative transmittance: prod_{j<i} exp(-tau_j) as one MXU
    # triangular matmul of the (non-negative) optical depths -> exp of a
    # non-positive number, NaN/Inf-proof.
    trans = jnp.exp(-jnp.dot(lmask, tau, preferred_element_type=jnp.float32))
    weights = alpha * trans                 # [S, RB]

    is_last = jax.lax.broadcasted_iota(jnp.int32, z.shape, 0) == (n_s - 1)
    chans = []
    for c in range(3):
        ch = raw[c * n_s:(c + 1) * n_s, :]
        ch = 0.5 * (jnp.tanh(0.5 * ch) + 1.0)                       # exact sigmoid
        ch = jnp.where(is_last, jnp.broadcast_to(bc[c:c + 1, :], ch.shape), ch)
        chans.append(jnp.sum(weights * ch, axis=0, keepdims=True))

    acc = jnp.sum(weights, axis=0, keepdims=True)
    depth = jnp.sum(weights * z, axis=0, keepdims=True)
    disp = 1.0 / jnp.maximum(1e-10, depth / jnp.maximum(acc, 1e-10))  # exact divides
    zero = jnp.zeros_like(acc)

    out_ref[...] = jnp.concatenate(chans + [disp, acc, depth, zero, zero], axis=0)
    w_ref[...] = weights


def raw2outputs(raw4, z_vals, rays_d, bc_rgb):
    """raw4: [4, S*R] sample-major FaceNeRF output.  Returns reference-layout maps."""
    n_rays, n_s = z_vals.shape
    if n_rays <= 256:
        rb, r_pad = n_rays, n_rays          # ray block sized to the actual batch
    else:
        rb = 256
        r_pad = _round_up(n_rays, rb)
    pad = r_pad - n_rays

    raw_2d = jnp.pad(raw4.reshape(4 * n_s, n_rays), ((0, 0), (0, pad)))
    z_sr = jnp.pad(z_vals.T, ((0, 0), (0, pad)))
    dists = jnp.concatenate(
        [z_vals[:, 1:] - z_vals[:, :-1],
         jnp.full((n_rays, 1), 1e10, z_vals.dtype)], axis=-1)
    dists = dists * jnp.linalg.norm(rays_d, axis=-1, keepdims=True)
    d_sr = jnp.pad(dists.T, ((0, 0), (0, pad)))
    bc_sr = jnp.pad(bc_rgb.T, ((0, 0), (0, pad)))

    idx = jnp.arange(n_s)
    lmask = (idx[None, :] < idx[:, None]).astype(jnp.float32)

    lane2 = lambda i: (0, i)
    out, w_sr = pl.pallas_call(
        functools.partial(raw2outputs_kernel, n_s=n_s),
        out_shape=(jax.ShapeDtypeStruct((8, r_pad), jnp.float32),
                   jax.ShapeDtypeStruct((n_s, r_pad), jnp.float32)),
        grid=(r_pad // rb,),
        in_specs=[pl.BlockSpec((4 * n_s, rb), lane2),
                  pl.BlockSpec((n_s, rb), lane2),
                  pl.BlockSpec((n_s, rb), lane2),
                  pl.BlockSpec((3, rb), lane2),
                  pl.BlockSpec((n_s, n_s), lambda i: (0, 0))],
        out_specs=(pl.BlockSpec((8, rb), lane2),
                   pl.BlockSpec((n_s, rb), lane2)),
        compiler_params=pltpu.CompilerParams(dimension_semantics=("parallel",)),
    )(raw_2d, z_sr, d_sr, bc_sr, lmask)

    rgb_map = out[0:3, :n_rays].T
    disp_map = out[3, :n_rays]
    acc_map = out[4, :n_rays]
    depth_map = out[5, :n_rays]
    weights = w_sr[:, :n_rays].T
    return rgb_map, disp_map, acc_map, weights, depth_map


# ---------------------------------------------------------------------------
# Parameter init (deterministic, synthetic) and kernel-layout preparation.
# ---------------------------------------------------------------------------
def _init_linear(key, fan_in, fan_out):
    kw, kb = jax.random.split(key)
    w = jax.random.normal(kw, (fan_in, fan_out), jnp.float32) / jnp.sqrt(float(fan_in))
    b = jax.random.normal(kb, (1, fan_out), jnp.float32) * 0.01
    return w, b


def init_facenerf_raw(key):
    """Reference-shaped FaceNeRF linears.  The embedded-input rows follow the
    frequency-grouped convention [pts(3), sin(12), cos(12), aud(16)] (a fixed
    permutation of the interleaved reference embedding; identical function
    class for the synthetic random weights used here)."""
    dims = []
    for j in range(NETDEPTH):
        if j == 0:
            fin = IN_ALL
        elif (j - 1) in SKIPS:
            fin = NETWIDTH + IN_ALL
        else:
            fin = NETWIDTH
        dims.append((fin, NETWIDTH))
    dims += [(NETWIDTH, NETWIDTH),                         # feature_linear
             (NETWIDTH, 1),                                # alpha_linear
             (NETWIDTH + INPUT_CH_VIEWS, NETWIDTH // 2),   # views_linears[0]
             (NETWIDTH // 2, 3)]                           # rgb_linear
    return [_init_linear(jax.random.fold_in(key, idx), fi, fo)
            for idx, (fi, fo) in enumerate(dims)]


def prepare_facenerf(raw):
    """Pack the reference linears into ONE bf16 weight slab [65, KW] plus ONE
    f32 bias slab [65, 9] (audio weights kept separate and folded into the
    bias slab per call).  All in-kernel access is static slicing."""
    def pad_rows(a):
        return jnp.pad(a, ((0, SLAB_ROWS - a.shape[0]), (0, 0)))

    cols, bias_cols, aud_ws = [], [], []

    w0, b0 = raw[0]
    cols.append(pad_rows(w0[:INPUT_CH].T))            # [65, 27]
    aud_ws.append(w0[INPUT_CH:IN_ALL].T)              # [64, 16]
    bias_cols.append(pad_rows(b0.T))

    for i in range(1, NETDEPTH):
        wi, bi = raw[i]
        if (i - 1) in SKIPS:                          # reference input = cat([embed+aud, h])
            cols.append(pad_rows(wi[IN_ALL:].T))      # h part   [64, 64]
            cols.append(pad_rows(wi[:INPUT_CH].T))    # embed    [64, 27]
            aud_ws.append(wi[INPUT_CH:IN_ALL].T)
        else:
            cols.append(pad_rows(wi.T))
        bias_cols.append(pad_rows(bi.T))

    w_f, b_f = raw[NETDEPTH]
    w_a, b_a = raw[NETDEPTH + 1]
    cols.append(jnp.concatenate([w_f, w_a], axis=1).T)            # FA  [65, 64]
    bias_cols.append(jnp.concatenate([b_f, b_a], axis=1).T)       # [65, 1]

    w_v, b_v = raw[NETDEPTH + 2]
    cols.append(pad_rows(w_v[:NETWIDTH].T))                       # VH  [65, 64]
    cols.append(pad_rows(w_v[NETWIDTH:].T))                       # VE  [65, 15]
    bias_cols.append(pad_rows(b_v.T))

    w_r, b_r = raw[NETDEPTH + 3]
    cols.append(pad_rows(w_r.T))                                  # RGB [65, 32]
    bias_cols.append(pad_rows(b_r.T))

    w_slab = jnp.concatenate(cols, axis=1).astype(jnp.bfloat16)
    b_base = jnp.concatenate(bias_cols, axis=1).astype(jnp.float32)
    assert int(w_slab.shape[1]) == KW
    assert int(b_base.shape[1]) == N_BIAS_COLS
    return {"w_slab": w_slab, "b_base": b_base, "w_aud": jnp.stack(aud_ws, axis=0)}


def init_params(key):
    att_e3 = 3 * (1 + 2 * MULTIRES_ATT)
    att_e4 = 4 * (1 + 2 * MULTIRES_ATT)
    return {
        "nerf_coarse": prepare_facenerf(init_facenerf_raw(jax.random.fold_in(key, 1))),
        "nerf_fine": prepare_facenerf(init_facenerf_raw(jax.random.fold_in(key, 2))),
        "aud1": _init_linear(jax.random.fold_in(key, 3), WIN_SIZE * AUD_FEAT, 64),
        "aud2": _init_linear(jax.random.fold_in(key, 4), 64, DIM_AUD),
        "unet": _init_linear(jax.random.fold_in(key, 5), att_e3 + att_e4, UNET_OUT),
    }


# ---------------------------------------------------------------------------
# Submodule stubs (definitions not present in the reference file).
# ---------------------------------------------------------------------------
def aud_net(params, aud_frame):
    # TODO(synk): AudioNet conv1d encoder definition unavailable; 2-layer MLP stub.
    x = aud_frame.reshape(1, -1)
    h = pallas_dense(x, *params["aud1"], relu=True)
    return pallas_dense(h, *params["aud2"], relu=False)[0]


def face_unet(params, rgb_vp):
    # TODO(synk): FaceUNetCNN definition unavailable; stub = 1x1 conv (per-pixel
    # linear) implemented as a row-tiled Pallas matmul over the H*W axis.
    n, h, w, c = rgb_vp.shape
    y = pallas_dense(rgb_vp.reshape(n * h * w, c), *params["unet"], relu=True)
    return y.reshape(n, h, w, -1)


# ---------------------------------------------------------------------------
# NeRF rendering pipeline (faithful to the reference forward, perturb=0 path).
# ---------------------------------------------------------------------------
def run_network(pts, viewdirs, aud_para, nerf_params, netchunk=NETCHUNK):
    # TODO(synk): gather_indices / AttentionSets / NeRFAttentionModel (CNN-feature
    # attention on projected points) are undefined in the reference; the plain
    # FaceNeRF MLP (Pallas kernel) covers the hot path.
    n_rays, n_s, _ = pts.shape
    # Sample-major flatten so the kernel output is already in [4*S, R] order.
    pts_sm = jnp.transpose(pts, (1, 0, 2)).reshape(-1, 3)
    dirs_sm = jnp.broadcast_to(viewdirs[None, :, :], (n_s, n_rays, 3)).reshape(-1, 3)
    n = pts_sm.shape[0]
    if n <= netchunk:
        return facenerf_apply(nerf_params, pts_sm, dirs_sm, aud_para)
    parts = [facenerf_apply(nerf_params, pts_sm[i:i + netchunk],
                            dirs_sm[i:i + netchunk], aud_para)
             for i in range(0, n, netchunk)]
    return jnp.concatenate(parts, axis=1)


def sample_pdf(bins, weights, n_samples, det=True):
    weights = weights + 1e-5
    pdf = weights / jnp.sum(weights, axis=-1, keepdims=True)
    cdf = jnp.cumsum(pdf, axis=-1)
    cdf = jnp.concatenate([jnp.zeros_like(cdf[..., :1]), cdf], axis=-1)
    u = jnp.linspace(0.0, 1.0, n_samples)
    u = jnp.broadcast_to(u, cdf.shape[:-1] + (n_samples,))
    inds = jax.vmap(lambda c, uu: jnp.searchsorted(c, uu, side="right"))(cdf, u)
    below = jnp.maximum(0, inds - 1)
    above = jnp.minimum(cdf.shape[-1] - 1, inds)
    cdf_b = jnp.take_along_axis(cdf, below, axis=-1)
    cdf_a = jnp.take_along_axis(cdf, above, axis=-1)
    bins_b = jnp.take_along_axis(bins, jnp.minimum(below, bins.shape[-1] - 1), axis=-1)
    bins_a = jnp.take_along_axis(bins, jnp.minimum(above, bins.shape[-1] - 1), axis=-1)
    denom = cdf_a - cdf_b
    denom = jnp.where(denom < 1e-5, jnp.ones_like(denom), denom)
    t = (u - cdf_b) / denom
    return bins_b + t * (bins_a - bins_b)


def render_rays(params, rays, bc_rgb, aud_para):
    n_rays = rays.shape[0]
    rays_o, rays_d = rays[:, 0:3], rays[:, 3:6]
    viewdirs = rays[:, -3:]
    bounds = rays[..., 6:8].reshape(-1, 1, 2)
    near, far = bounds[..., 0], bounds[..., 1]

    t_vals = jnp.linspace(0.0, 1.0, N_SAMPLES)
    z_vals = near * (1.0 - t_vals) + far * t_vals
    z_vals = jnp.broadcast_to(z_vals, (n_rays, N_SAMPLES))
    # PERTURB == 0.0 -> deterministic stratified samples (random branch unused).

    pts = rays_o[:, None, :] + rays_d[:, None, :] * z_vals[..., None]
    raw4 = run_network(pts, viewdirs, aud_para, params["nerf_coarse"])
    rgb_map, disp_map, acc_map, weights, _ = raw2outputs(raw4, z_vals, rays_d, bc_rgb)

    rgb_map_0, disp_map_0, acc_map_0 = rgb_map, disp_map, acc_map
    z_vals_mid = 0.5 * (z_vals[..., 1:] + z_vals[..., :-1])
    z_samples = sample_pdf(z_vals_mid, weights[..., 1:-1], N_IMPORTANCE,
                           det=(PERTURB == 0.0))
    z_samples = jax.lax.stop_gradient(z_samples)
    z_vals_fine = jnp.sort(jnp.concatenate([z_vals, z_samples], axis=-1), axis=-1)
    pts = rays_o[:, None, :] + rays_d[:, None, :] * z_vals_fine[..., None]
    raw4 = run_network(pts, viewdirs, aud_para, params["nerf_fine"])
    rgb_map, disp_map, acc_map, weights, _ = raw2outputs(raw4, z_vals_fine,
                                                         rays_d, bc_rgb)

    return {"rgb_map": rgb_map, "disp_map": disp_map, "acc_map": acc_map,
            "rgb0": rgb_map_0, "disp0": disp_map_0, "acc0": acc_map_0,
            "z_std": jnp.std(z_samples, axis=-1),
            "last_weight": weights[..., -1]}


def batchify_rays(params, rays, bc_rgb, aud_para, chunk=CHUNK):
    all_ret = {}
    for i in range(0, rays.shape[0], chunk):
        ret = render_rays(params, rays[i:i + chunk], bc_rgb[i:i + chunk], aud_para)
        for k in ret:
            all_ret.setdefault(k, []).append(ret[k])
    return {k: jnp.concatenate(v, axis=0) for k, v in all_ret.items()}


def _pipeline(params, rays_o, rays_d, bc_rgb, aud_frame, images, poses):
    # AudioNet (stub) runs inside the jitted path.
    aud_feature = aud_net(params, aud_frame)

    # FaceUNet features on the viewpoint-conditioned image (stub CNN).
    view_points = poses[..., 3]
    e_vp = attention_embed_func(view_points)
    bc_viewpoints = jnp.broadcast_to(
        e_vp[:, None, None], (e_vp.shape[0], images.shape[0], images.shape[1]))
    bc_viewpoints = jnp.transpose(bc_viewpoints, (2, 1, 0))   # torch.transpose(., 0, 2)
    rgb_vp = jnp.concatenate([attention_embed_func(images), bc_viewpoints], axis=-1)
    images_features = face_unet(params, rgb_vp[None, ...])

    viewdirs = rays_d / jnp.linalg.norm(rays_d, axis=-1, keepdims=True)
    viewdirs = viewdirs.reshape(-1, 3).astype(jnp.float32)
    rays_o_f = rays_o.reshape(-1, 3).astype(jnp.float32)
    rays_d_f = rays_d.reshape(-1, 3).astype(jnp.float32)
    near_c = NEAR * jnp.ones_like(rays_d_f[..., :1])
    far_c = FAR * jnp.ones_like(rays_d_f[..., :1])
    rays_p = jnp.concatenate([rays_o_f, rays_d_f, near_c, far_c, viewdirs], axis=-1)
    all_ret = batchify_rays(params, rays_p, bc_rgb, aud_feature, chunk=CHUNK)
    return all_ret, images_features


_pipeline_jit = jax.jit(_pipeline)   # the whole forward (aud/unet/render) traced once


def render_dynamic_face(params, H, W, focal, images, lms_features, poses, intrinsic,
                        render_poses=None, chunk=CHUNK, near=NEAR, far=FAR,
                        rays=None, bc_rgb=None, aud_frame=None):
    # training path: render_poses is None -> use the provided batch rays.
    rays_o, rays_d = rays
    sh = rays_d.shape

    all_ret, images_features = _pipeline_jit(params, rays_o, rays_d, bc_rgb,
                                             aud_frame, images, poses)
    # TODO(synk): images_features / lms_features feed the undefined
    # NeRFAttentionModel in the reference; unused by the plain-MLP hot path here.
    _ = (images_features, lms_features, intrinsic, render_poses)

    out = {}
    for k in all_ret:
        k_sh = list(sh[:-1]) + list(all_ret[k].shape[1:])
        out[k] = all_ret[k].reshape(k_sh)
    k_extract = ["rgb_map", "disp_map", "acc_map", "last_weight"]
    ret_list = [out[k] for k in k_extract]
    ret_dict = {k: out[k] for k in out if k not in k_extract}
    return ret_list + [ret_dict]


def network_forward(params, inputs, training=True):
    x, global_step, dataset_size = inputs
    batch_rays, target_s, bg_img, auds, raw_img, pose, landmark, index = x
    batch_rays = jnp.squeeze(batch_rays).astype(jnp.float32)
    target_s = jnp.squeeze(target_s).astype(jnp.float32)
    bg_img = jnp.squeeze(bg_img).astype(jnp.float32)
    auds = jnp.squeeze(auds).astype(jnp.float32)
    raw_img = jnp.squeeze(raw_img).astype(jnp.float32)
    pose = jnp.squeeze(pose).astype(jnp.float32)
    landmark = jnp.squeeze(landmark).astype(jnp.float32)

    if global_step >= NOSMO_ITERS:
        # TODO(synk): AudioAttNet smoothing-window branch not exercised
        # (definition unavailable in the reference file).
        raise NotImplementedError("AudioAttNet branch not implemented")
    aud_frame = auds[index]

    render_poses = None if training else pose[:3, :4]
    return render_dynamic_face(params, H_IMG, W_IMG, FOCAL, images=raw_img,
                               lms_features=landmark, poses=pose, intrinsic=None,
                               render_poses=render_poses, chunk=CHUNK, near=NEAR,
                               far=FAR, rays=(batch_rays[0], batch_rays[1]),
                               bc_rgb=bg_img, aud_frame=aud_frame)


# ---------------------------------------------------------------------------
if __name__ == "__main__":
    key = jax.random.PRNGKey(0)
    params = init_params(jax.random.fold_in(key, 100))

    ks = iter(jax.random.split(key, 16))
    rays_o = jax.random.uniform(next(ks), (N_RAYS, 3), minval=-1.0, maxval=1.0)
    rays_d = jax.random.normal(next(ks), (N_RAYS, 3))
    rays_d = rays_d / jnp.linalg.norm(rays_d, axis=-1, keepdims=True)
    batch_rays = jnp.stack([rays_o, rays_d], axis=0)[None]           # [1, 2, N_RAYS, 3]
    target_s = jax.random.uniform(next(ks), (1, N_RAYS, 3))
    bg_img = jax.random.uniform(next(ks), (1, N_RAYS, 3))
    auds = jax.random.normal(next(ks), (1, 8, WIN_SIZE, AUD_FEAT)) * 0.1
    raw_img = jax.random.uniform(next(ks), (1, H_IMG, W_IMG, 3))
    pose = jnp.eye(4, dtype=jnp.float32).at[2, 3].set(1.0)[None]     # [1, 4, 4]
    landmark = jax.random.uniform(next(ks), (1, 68, 2)) * H_IMG
    index = 3
    global_step = 0
    dataset_size = 8

    x = (batch_rays, target_s, bg_img, auds, raw_img, pose, landmark, index)
    outputs = network_forward(params, (x, global_step, dataset_size), training=True)
    rgb_map, disp_map, acc_map, last_weight, extras = outputs
    jax.block_until_ready((rgb_map, disp_map, acc_map, last_weight, extras))

    assert rgb_map.shape == (N_RAYS, 3)
    assert disp_map.shape == (N_RAYS,)
    assert acc_map.shape == (N_RAYS,)
    assert last_weight.shape == (N_RAYS,)
    assert extras["rgb0"].shape == (N_RAYS, 3)
    assert extras["z_std"].shape == (N_RAYS,)
    assert bool(jnp.all(jnp.isfinite(rgb_map)))
    print("KERNEL_OK")
</pallas_src>

<mosaic_0001>
module attributes {stable_mosaic.version = 11 : i64} {
  func.func @_dense_kernel(%arg0: i32, %arg1: memref<8x464xbf16, #tpu.memory_space<vmem>>, %arg2: memref<464x128xbf16, #tpu.memory_space<vmem>>, %arg3: memref<1x128xf32, #tpu.memory_space<vmem>>, %arg4: memref<8x128xf32, #tpu.memory_space<vmem>>) attributes {dimension_semantics = [#tpu.dimension_semantics<parallel>], iteration_bounds = array<i64: 1>, scalar_prefetch = 0 : i64, scratch_operands = 0 : i64, tpu.core_type = #tpu.core_type<tc>, window_params = [{transform_indices = @transform_0, window_bounds = array<i64: 8, 464>}, {pipeline_mode = #tpu.pipeline_mode<synchronous>, transform_indices = @transform_1, window_bounds = array<i64: 464, 128>}, {pipeline_mode = #tpu.pipeline_mode<synchronous>, transform_indices = @transform_2, window_bounds = array<i64: 1, 128>}, {transform_indices = @transform_3, window_bounds = array<i64: 8, 128>}]} {
    %c0 = arith.constant 0 : index
    %c0_0 = arith.constant 0 : index
    %0 = vector.load %arg1[%c0, %c0_0] : memref<8x464xbf16, #tpu.memory_space<vmem>>, vector<8x464xbf16>
    %c0_1 = arith.constant 0 : index
    %c0_2 = arith.constant 0 : index
    %1 = vector.load %arg2[%c0_1, %c0_2] : memref<464x128xbf16, #tpu.memory_space<vmem>>, vector<464x128xbf16>
    %cst = arith.constant dense<0.000000e+00> : vector<8x128xf32>
    %2 = tpu.matmul %0, %1, %cst {dimension_numbers = #tpu.dot_dimension_numbers<[1], [0], [0], [1], [0, 0, 1, 1], [], []>} : vector<8x464xbf16>, vector<464x128xbf16>, vector<8x128xf32> -> vector<8x128xf32>
    %c0_3 = arith.constant 0 : index
    %c0_4 = arith.constant 0 : index
    %3 = vector.load %arg3[%c0_3, %c0_4] : memref<1x128xf32, #tpu.memory_space<vmem>>, vector<1x128xf32>
    %4 = vector.broadcast %3 : vector<1x128xf32> to vector<8x128xf32>
    %5 = arith.addf %2, %4 : vector<8x128xf32>
    %cst_5 = arith.constant 0.000000e+00 : f32
    %6 = vector.broadcast %cst_5 : f32 to vector<8x128xf32>
    %7 = arith.maximumf %5, %6 : vector<8x128xf32>
    %c0_6 = arith.constant 0 : index
    %c0_7 = arith.constant 0 : index
    %8 = vector.load %arg4[%c0_6, %c0_7] : memref<8x128xf32, #tpu.memory_space<vmem>>, vector<8x128xf32>
    tpu.vector_store %arg4[%c0_6, %c0_7], %7 {strides = array<i32>} : memref<8x128xf32, #tpu.memory_space<vmem>>, vector<8x128xf32>,
    return
  }
  func.func @transform_0(%arg0: i32) -> (i32, i32) {
    %c0_i32 = arith.constant 0 : i32
    %c0_i32_0 = arith.constant 0 : i32
    return %arg0, %c0_i32 : i32, i32
  }
  func.func @transform_1(%arg0: i32) -> (i32, i32) {
    %c0_i32 = arith.constant 0 : i32
    %c0_i32_0 = arith.constant 0 : i32
    %c0_i32_1 = arith.constant 0 : i32
    return %c0_i32, %c0_i32_0 : i32, i32
  }
  func.func @transform_2(%arg0: i32) -> (i32, i32) {
    %c0_i32 = arith.constant 0 : i32
    %c0_i32_0 = arith.constant 0 : i32
    %c0_i32_1 = arith.constant 0 : i32
    return %c0_i32, %c0_i32_0 : i32, i32
  }
  func.func @transform_3(%arg0: i32) -> (i32, i32) {
    %c0_i32 = arith.constant 0 : i32
    %c0_i32_0 = arith.constant 0 : i32
    return %arg0, %c0_i32 : i32, i32
  }
}

module attributes {stable_mosaic.version = 11 : i64} {
  func.func @_dense_kernel(%arg0: i32, %arg1: memref<8x64xbf16, #tpu.memory_space<vmem>>, %arg2: memref<64x128xbf16, #tpu.memory_space<vmem>>, %arg3: memref<1x128xf32, #tpu.memory_space<vmem>>, %arg4: memref<8x128xf32, #tpu.memory_space<vmem>>) attributes {dimension_semantics = [#tpu.dimension_semantics<parallel>], iteration_bounds = array<i64: 1>, scalar_prefetch = 0 : i64, scratch_operands = 0 : i64, tpu.core_type = #tpu.core_type<tc>, window_params = [{transform_indices = @transform_0, window_bounds = array<i64: 8, 64>}, {pipeline_mode = #tpu.pipeline_mode<synchronous>, transform_indices = @transform_1, window_bounds = array<i64: 64, 128>}, {pipeline_mode = #tpu.pipeline_mode<synchronous>, transform_indices = @transform_2, window_bounds = array<i64: 1, 128>}, {transform_indices = @transform_3, window_bounds = array<i64: 8, 128>}]} {
    %c0 = arith.constant 0 : index
    %c0_0 = arith.constant 0 : index
    %0 = vector.load %arg1[%c0, %c0_0] : memref<8x64xbf16, #tpu.memory_space<vmem>>, vector<8x64xbf16>
    %c0_1 = arith.constant 0 : index
    %c0_2 = arith.constant 0 : index
    %1 = vector.load %arg2[%c0_1, %c0_2] : memref<64x128xbf16, #tpu.memory_space<vmem>>, vector<64x128xbf16>
    %cst = arith.constant dense<0.000000e+00> : vector<8x128xf32>
    %2 = tpu.matmul %0, %1, %cst {dimension_numbers = #tpu.dot_dimension_numbers<[1], [0], [0], [1], [0, 0, 1, 1], [], []>} : vector<8x64xbf16>, vector<64x128xbf16>, vector<8x128xf32> -> vector<8x128xf32>
    %c0_3 = arith.constant 0 : index
    %c0_4 = arith.constant 0 : index
    %3 = vector.load %arg3[%c0_3, %c0_4] : memref<1x128xf32, #tpu.memory_space<vmem>>, vector<1x128xf32>
    %4 = vector.broadcast %3 : vector<1x128xf32> to vector<8x128xf32>
    %5 = arith.addf %2, %4 : vector<8x128xf32>
    %c0_5 = arith.constant 0 : index
    %c0_6 = arith.constant 0 : index
    %6 = vector.load %arg4[%c0_5, %c0_6] : memref<8x128xf32, #tpu.memory_space<vmem>>, vector<8x128xf32>
    tpu.vector_store %arg4[%c0_5, %c0_6], %5 {strides = array<i32>} : memref<8x128xf32, #tpu.memory_space<vmem>>, vector<8x128xf32>,
    return
  }
  func.func @transform_0(%arg0: i32) -> (i32, i32) {
    %c0_i32 = arith.constant 0 : i32
    %c0_i32_0 = arith.constant 0 : i32
    return %arg0, %c0_i32 : i32, i32
  }
  func.func @transform_1(%arg0: i32) -> (i32, i32) {
    %c0_i32 = arith.constant 0 : i32
    %c0_i32_0 = arith.constant 0 : i32
    %c0_i32_1 = arith.constant 0 : i32
    return %c0_i32, %c0_i32_0 : i32, i32
  }
  func.func @transform_2(%arg0: i32) -> (i32, i32) {
    %c0_i32 = arith.constant 0 : i32
    %c0_i32_0 = arith.constant 0 : i32
    %c0_i32_1 = arith.constant 0 : i32
    return %c0_i32, %c0_i32_0 : i32, i32
  }
  func.func @transform_3(%arg0: i32) -> (i32, i32) {
    %c0_i32 = arith.constant 0 : i32
    %c0_i32_0 = arith.constant 0 : i32
    return %arg0, %c0_i32 : i32, i32
  }
}

module attributes {stable_mosaic.version = 11 : i64} {
  func.func @facenerf_kernel(%arg0: i32, %arg1: memref<8x256xf32, #tpu.memory_space<vmem>>, %arg2: memref<65x549xbf16, #tpu.memory_space<vmem>>, %arg3: memref<65x9xf32, #tpu.memory_space<vmem>>, %arg4: memref<8x256xf32, #tpu.memory_space<vmem>>) attributes {dimension_semantics = [#tpu.dimension_semantics<parallel>], iteration_bounds = array<i64: 2>, scalar_prefetch = 0 : i64, scratch_operands = 0 : i64, tpu.core_type = #tpu.core_type<tc>, window_params = [{transform_indices = @transform_0, window_bounds = array<i64: 8, 256>}, {pipeline_mode = #tpu.pipeline_mode<synchronous>, transform_indices = @transform_1, window_bounds = array<i64: 65, 549>}, {pipeline_mode = #tpu.pipeline_mode<synchronous>, transform_indices = @transform_2, window_bounds = array<i64: 65, 9>}, {transform_indices = @transform_3, window_bounds = array<i64: 8, 256>}]} {
    %c0 = arith.constant 0 : index
    %c0_0 = arith.constant 0 : index
    %0 = vector.load %arg2[%c0, %c0_0] : memref<65x549xbf16, #tpu.memory_space<vmem>>, vector<65x549xbf16>
    %c0_1 = arith.constant 0 : index
    %c0_2 = arith.constant 0 : index
    %1 = vector.load %arg3[%c0_1, %c0_2] : memref<65x9xf32, #tpu.memory_space<vmem>>, vector<65x9xf32>
    %c0_3 = arith.constant 0 : index
    %c0_4 = arith.constant 0 : index
    %2 = vector.load %arg1[%c0_3, %c0_4] : memref<8x256xf32, #tpu.memory_space<vmem>>, vector<8x256xf32>
    %3 = vector.extract_strided_slice %2 {offsets = [0, 0], sizes = [3, 256], strides = [1, 1]} : vector<8x256xf32> to vector<3x256xf32>
    %4 = vector.extract_strided_slice %2 {offsets = [3, 0], sizes = [3, 256], strides = [1, 1]} : vector<8x256xf32> to vector<3x256xf32>
    %cst = arith.constant 1.000000e+00 : f32
    %5 = vector.broadcast %cst : f32 to vector<3x256xf32>
    %6 = arith.mulf %3, %5 : vector<3x256xf32>
    %cst_5 = arith.constant 2.000000e+00 : f32
    %7 = vector.broadcast %cst_5 : f32 to vector<3x256xf32>
    %8 = arith.mulf %3, %7 : vector<3x256xf32>
    %cst_6 = arith.constant 4.000000e+00 : f32
    %9 = vector.broadcast %cst_6 : f32 to vector<3x256xf32>
    %10 = arith.mulf %3, %9 : vector<3x256xf32>
    %cst_7 = arith.constant 8.000000e+00 : f32
    %11 = vector.broadcast %cst_7 : f32 to vector<3x256xf32>
    %12 = arith.mulf %3, %11 : vector<3x256xf32>
    %13 = tpu.concatenate %6, %8, %10, %12 in 0 : vector<3x256xf32>, vector<3x256xf32>, vector<3x256xf32>, vector<3x256xf32> -> vector<12x256xf32>
    %14 = math.sin %13 : vector<12x256xf32>
    %15 = math.cos %13 : vector<12x256xf32>
    %16 = tpu.concatenate %3, %14, %15 in 0 : vector<3x256xf32>, vector<12x256xf32>, vector<12x256xf32> -> vector<27x256xf32>
    %17 = arith.truncf %16 : vector<27x256xf32> to vector<27x256xbf16>
    %cst_8 = arith.constant 1.000000e+00 : f32
    %18 = vector.broadcast %cst_8 : f32 to vector<3x256xf32>
    %19 = arith.mulf %4, %18 : vector<3x256xf32>
    %cst_9 = arith.constant 2.000000e+00 : f32
    %20 = vector.broadcast %cst_9 : f32 to vector<3x256xf32>
    %21 = arith.mulf %4, %20 : vector<3x256xf32>
    %22 = tpu.concatenate %19, %21 in 0 : vector<3x256xf32>, vector<3x256xf32> -> vector<6x256xf32>
    %23 = math.sin %22 : vector<6x256xf32>
    %24 = math.cos %22 : vector<6x256xf32>
    %25 = tpu.concatenate %4, %23, %24 in 0 : vector<3x256xf32>, vector<6x256xf32>, vector<6x256xf32> -> vector<15x256xf32>
    %26 = arith.truncf %25 : vector<15x256xf32> to vector<15x256xbf16>
    %27 = vector.extract_strided_slice %0 {offsets = [0, 0], sizes = [64, 27], strides = [1, 1]} : vector<65x549xbf16> to vector<64x27xbf16>
    %cst_10 = arith.constant dense<0.000000e+00> : vector<64x256xf32>
    %28 = tpu.matmul %27, %17, %cst_10 {dimension_numbers = #tpu.dot_dimension_numbers<[1], [0], [0], [1], [0, 0, 1, 1], [], []>} : vector<64x27xbf16>, vector<27x256xbf16>, vector<64x256xf32> -> vector<64x256xf32>
    %29 = vector.extract_strided_slice %1 {offsets = [0, 0], sizes = [64, 1], strides = [1, 1]} : vector<65x9xf32> to vector<64x1xf32>
    %30 = vector.broadcast %29 : vector<64x1xf32> to vector<64x256xf32>
    %31 = arith.addf %28, %30 : vector<64x256xf32>
    %cst_11 = arith.constant 0.000000e+00 : f32
    %32 = vector.broadcast %cst_11 : f32 to vector<64x256xf32>
    %33 = arith.maximumf %31, %32 : vector<64x256xf32>
    %34 = arith.truncf %33 : vector<64x256xf32> to vector<64x256xbf16>
    %35 = vector.extract_strided_slice %0 {offsets = [0, 27], sizes = [64, 64], strides = [1, 1]} : vector<65x549xbf16> to vector<64x64xbf16>
    %cst_12 = arith.constant dense<0.000000e+00> : vector<64x256xf32>
    %36 = tpu.matmul %35, %34, %cst_12 {dimension_numbers = #tpu.dot_dimension_numbers<[1], [0], [0], [1], [0, 0, 1, 1], [], []>} : vector<64x64xbf16>, vector<64x256xbf16>, vector<64x256xf32> -> vector<64x256xf32>
    %37 = vector.extract_strided_slice %1 {offsets = [0, 1], sizes = [64, 1], strides = [1, 1]} : vector<65x9xf32> to vector<64x1xf32>
    %38 = vector.broadcast %37 : vector<64x1xf32> to vector<64x256xf32>
    %39 = arith.addf %36, %38 : vector<64x256xf32>
    %cst_13 = arith.constant 0.000000e+00 : f32
    %40 = vector.broadcast %cst_13 : f32 to vector<64x256xf32>
    %41 = arith.maximumf %39, %40 : vector<64x256xf32>
    %42 = arith.truncf %41 : vector<64x256xf32> to vector<64x256xbf16>
    %43 = vector.extract_strided_slice %0 {offsets = [0, 91], sizes = [64, 64], strides = [1, 1]} : vector<65x549xbf16> to vector<64x64xbf16>
    %cst_14 = arith.constant dense<0.000000e+00> : vector<64x256xf32>
    %44 = tpu.matmul %43, %42, %cst_14 {dimension_numbers = #tpu.dot_dimension_numbers<[1], [0], [0], [1], [0, 0, 1, 1], [], []>} : vector<64x64xbf16>, vector<64x256xbf16>, vector<64x256xf32> -> vector<64x256xf32>
    %45 = vector.extract_strided_slice %1 {offsets = [0, 2], sizes = [64, 1], strides = [1, 1]} : vector<65x9xf32> to vector<64x1xf32>
    %46 = vector.broadcast %45 : vector<64x1xf32> to vector<64x256xf32>
    %47 = arith.addf %44, %46 : vector<64x256xf32>
    %cst_15 = arith.constant 0.000000e+00 : f32
    %48 = vector.broadcast %cst_15 : f32 to vector<64x256xf32>
    %49 = arith.maximumf %47, %48 : vector<64x256xf32>
    %50 = arith.truncf %49 : vector<64x256xf32> to vector<64x256xbf16>
    %51 = vector.extract_strided_slice %0 {offsets = [0, 155], sizes = [64, 64], strides = [1, 1]} : vector<65x549xbf16> to vector<64x64xbf16>
    %cst_16 = arith.constant dense<0.000000e+00> : vector<64x256xf32>
    %52 = tpu.matmul %51, %50, %cst_16 {dimension_numbers = #tpu.dot_dimension_numbers<[1], [0], [0], [1], [0, 0, 1, 1], [], []>} : vector<64x64xbf16>, vector<64x256xbf16>, vector<64x256xf32> -> vector<64x256xf32>
    %53 = vector.extract_strided_slice %1 {offsets = [0, 3], sizes = [64, 1], strides = [1, 1]} : vector<65x9xf32> to vector<64x1xf32>
    %54 = vector.broadcast %53 : vector<64x1xf32> to vector<64x256xf32>
    %55 = arith.addf %52, %54 : vector<64x256xf32>
    %cst_17 = arith.constant 0.000000e+00 : f32
    %56 = vector.broadcast %cst_17 : f32 to vector<64x256xf32>
    %57 = arith.maximumf %55, %56 : vector<64x256xf32>
    %58 = arith.truncf %57 : vector<64x256xf32> to vector<64x256xbf16>
    %59 = vector.extract_strided_slice %0 {offsets = [0, 219], sizes = [64, 64], strides = [1, 1]} : vector<65x549xbf16> to vector<64x64xbf16>
    %cst_18 = arith.constant dense<0.000000e+00> : vector<64x256xf32>
    %60 = tpu.matmul %59, %58, %cst_18 {dimension_numbers = #tpu.dot_dimension_numbers<[1], [0], [0], [1], [0, 0, 1, 1], [], []>} : vector<64x64xbf16>, vector<64x256xbf16>, vector<64x256xf32> -> vector<64x256xf32>
    %61 = vector.extract_strided_slice %1 {offsets = [0, 4], sizes = [64, 1], strides = [1, 1]} : vector<65x9xf32> to vector<64x1xf32>
    %62 = vector.broadcast %61 : vector<64x1xf32> to vector<64x256xf32>
    %63 = arith.addf %60, %62 : vector<64x256xf32>
    %cst_19 = arith.constant 0.000000e+00 : f32
    %64 = vector.broadcast %cst_19 : f32 to vector<64x256xf32>
    %65 = arith.maximumf %63, %64 : vector<64x256xf32>
    %66 = arith.truncf %65 : vector<64x256xf32> to vector<64x256xbf16>
    %67 = vector.extract_strided_slice %0 {offsets = [0, 283], sizes = [64, 64], strides = [1, 1]} : vector<65x549xbf16> to vector<64x64xbf16>
    %cst_20 = arith.constant dense<0.000000e+00> : vector<64x256xf32>
    %68 = tpu.matmul %67, %66, %cst_20 {dimension_numbers = #tpu.dot_dimension_numbers<[1], [0], [0], [1], [0, 0, 1, 1], [], []>} : vector<64x64xbf16>, vector<64x256xbf16>, vector<64x256xf32> -> vector<64x256xf32>
    %69 = vector.extract_strided_slice %0 {offsets = [0, 347], sizes = [64, 27], strides = [1, 1]} : vector<65x549xbf16> to vector<64x27xbf16>
    %cst_21 = arith.constant dense<0.000000e+00> : vector<64x256xf32>
    %70 = tpu.matmul %69, %17, %cst_21 {dimension_numbers = #tpu.dot_dimension_numbers<[1], [0], [0], [1], [0, 0, 1, 1], [], []>} : vector<64x27xbf16>, vector<27x256xbf16>, vector<64x256xf32> -> vector<64x256xf32>
    %71 = arith.addf %68, %70 : vector<64x256xf32>
    %72 = vector.extract_strided_slice %1 {offsets = [0, 5], sizes = [64, 1], strides = [1, 1]} : vector<65x9xf32> to vector<64x1xf32>
    %73 = vector.broadcast %72 : vector<64x1xf32> to vector<64x256xf32>
    %74 = arith.addf %71, %73 : vector<64x256xf32>
    %cst_22 = arith.constant 0.000000e+00 : f32
    %75 = vector.broadcast %cst_22 : f32 to vector<64x256xf32>
    %76 = arith.maximumf %74, %75 : vector<64x256xf32>
    %77 = arith.truncf %76 : vector<64x256xf32> to vector<64x256xbf16>
    %78 = vector.extract_strided_slice %0 {offsets = [0, 374], sizes = [65, 64], strides = [1, 1]} : vector<65x549xbf16> to vector<65x64xbf16>
    %cst_23 = arith.constant dense<0.000000e+00> : vector<65x256xf32>
    %79 = tpu.matmul %78, %77, %cst_23 {dimension_numbers = #tpu.dot_dimension_numbers<[1], [0], [0], [1], [0, 0, 1, 1], [], []>} : vector<65x64xbf16>, vector<64x256xbf16>, vector<65x256xf32> -> vector<65x256xf32>
    %80 = vector.extract_strided_slice %1 {offsets = [0, 6], sizes = [65, 1], strides = [1, 1]} : vector<65x9xf32> to vector<65x1xf32>
    %81 = vector.broadcast %80 : vector<65x1xf32> to vector<65x256xf32>
    %82 = arith.addf %79, %81 : vector<65x256xf32>
    %83 = vector.extract_strided_slice %82 {offsets = [0, 0], sizes = [64, 256], strides = [1, 1]} : vector<65x256xf32> to vector<64x256xf32>
    %84 = vector.extract_strided_slice %82 {offsets = [64, 0], sizes = [1, 256], strides = [1, 1]} : vector<65x256xf32> to vector<1x256xf32>
    %85 = arith.truncf %83 : vector<64x256xf32> to vector<64x256xbf16>
    %86 = vector.extract_strided_slice %0 {offsets = [0, 438], sizes = [32, 64], strides = [1, 1]} : vector<65x549xbf16> to vector<32x64xbf16>
    %cst_24 = arith.constant dense<0.000000e+00> : vector<32x256xf32>
    %87 = tpu.matmul %86, %85, %cst_24 {dimension_numbers = #tpu.dot_dimension_numbers<[1], [0], [0], [1], [0, 0, 1, 1], [], []>} : vector<32x64xbf16>, vector<64x256xbf16>, vector<32x256xf32> -> vector<32x256xf32>
    %88 = vector.extract_strided_slice %0 {offsets = [0, 502], sizes = [32, 15], strides = [1, 1]} : vector<65x549xbf16> to vector<32x15xbf16>
    %cst_25 = arith.constant dense<0.000000e+00> : vector<32x256xf32>
    %89 = tpu.matmul %88, %26, %cst_25 {dimension_numbers = #tpu.dot_dimension_numbers<[1], [0], [0], [1], [0, 0, 1, 1], [], []>} : vector<32x15xbf16>, vector<15x256xbf16>, vector<32x256xf32> -> vector<32x256xf32>
    %90 = arith.addf %87, %89 : vector<32x256xf32>
    %91 = vector.extract_strided_slice %1 {offsets = [0, 7], sizes = [32, 1], strides = [1, 1]} : vector<65x9xf32> to vector<32x1xf32>
    %92 = vector.broadcast %91 : vector<32x1xf32> to vector<32x256xf32>
    %93 = arith.addf %90, %92 : vector<32x256xf32>
    %cst_26 = arith.constant 0.000000e+00 : f32
    %94 = vector.broadcast %cst_26 : f32 to vector<32x256xf32>
    %95 = arith.maximumf %93, %94 : vector<32x256xf32>
    %96 = arith.truncf %95 : vector<32x256xf32> to vector<32x256xbf16>
    %97 = vector.extract_strided_slice %0 {offsets = [0, 517], sizes = [3, 32], strides = [1, 1]} : vector<65x549xbf16> to vector<3x32xbf16>
    %cst_27 = arith.constant dense<0.000000e+00> : vector<3x256xf32>
    %98 = tpu.matmul %97, %96, %cst_27 {dimension_numbers = #tpu.dot_dimension_numbers<[1], [0], [0], [1], [0, 0, 1, 1], [], []>} : vector<3x32xbf16>, vector<32x256xbf16>, vector<3x256xf32> -> vector<3x256xf32>
    %99 = vector.extract_strided_slice %1 {offsets = [0, 8], sizes = [3, 1], strides = [1, 1]} : vector<65x9xf32> to vector<3x1xf32>
    %100 = vector.broadcast %99 : vector<3x1xf32> to vector<3x256xf32>
    %101 = arith.addf %98, %100 : vector<3x256xf32>
    %cst_28 = arith.constant 0.000000e+00 : f32
    %102 = vector.broadcast %cst_28 : f32 to vector<4x256xf32>
    %103 = tpu.concatenate %101, %84, %102 in 0 : vector<3x256xf32>, vector<1x256xf32>, vector<4x256xf32> -> vector<8x256xf32>
    %c0_29 = arith.constant 0 : index
    %c0_30 = arith.constant 0 : index
    %104 = vector.load %arg4[%c0_29, %c0_30] : memref<8x256xf32, #tpu.memory_space<vmem>>, vector<8x256xf32>
    tpu.vector_store %arg4[%c0_29, %c0_30], %103 {strides = array<i32>} : memref<8x256xf32, #tpu.memory_space<vmem>>, vector<8x256xf32>,
    return
  }
  func.func @transform_0(%arg0: i32) -> (i32, i32) {
    %c0_i32 = arith.constant 0 : i32
    %c0_i32_0 = arith.constant 0 : i32
    return %c0_i32, %arg0 : i32, i32
  }
  func.func @transform_1(%arg0: i32) -> (i32, i32) {
    %c0_i32 = arith.constant 0 : i32
    %c0_i32_0 = arith.constant 0 : i32
    %c0_i32_1 = arith.constant 0 : i32
    return %c0_i32, %c0_i32_0 : i32, i32
  }
  func.func @transform_2(%arg0: i32) -> (i32, i32) {
    %c0_i32 = arith.constant 0 : i32
    %c0_i32_0 = arith.constant 0 : i32
    %c0_i32_1 = arith.constant 0 : i32
    return %c0_i32, %c0_i32_0 : i32, i32
  }
  func.func @transform_3(%arg0: i32) -> (i32, i32) {
    %c0_i32 = arith.constant 0 : i32
    %c0_i32_0 = arith.constant 0 : i32
    return %c0_i32, %arg0 : i32, i32
  }
}

module attributes {stable_mosaic.version = 11 : i64} {
  func.func @raw2outputs_kernel(%arg0: i32, %arg1: memref<32x64xf32, #tpu.memory_space<vmem>>, %arg2: memref<8x64xf32, #tpu.memory_space<vmem>>, %arg3: memref<8x64xf32, #tpu.memory_space<vmem>>, %arg4: memref<3x64xf32, #tpu.memory_space<vmem>>, %arg5: memref<8x8xf32, #tpu.memory_space<vmem>>, %arg6: memref<8x64xf32, #tpu.memory_space<vmem>>, %arg7: memref<8x64xf32, #tpu.memory_space<vmem>>) attributes {dimension_semantics = [#tpu.dimension_semantics<parallel>], iteration_bounds = array<i64: 1>, scalar_prefetch = 0 : i64, scratch_operands = 0 : i64, tpu.core_type = #tpu.core_type<tc>, window_params = [{transform_indices = @transform_0, window_bounds = array<i64: 32, 64>}, {transform_indices = @transform_1, window_bounds = array<i64: 8, 64>}, {transform_indices = @transform_2, window_bounds = array<i64: 8, 64>}, {transform_indices = @transform_3, window_bounds = array<i64: 3, 64>}, {pipeline_mode = #tpu.pipeline_mode<synchronous>, transform_indices = @transform_4, window_bounds = array<i64: 8, 8>}, {transform_indices = @transform_5, window_bounds = array<i64: 8, 64>}, {transform_indices = @transform_6, window_bounds = array<i64: 8, 64>}]} {
    %c0 = arith.constant 0 : index
    %c0_0 = arith.constant 0 : index
    %0 = vector.load %arg1[%c0, %c0_0] : memref<32x64xf32, #tpu.memory_space<vmem>>, vector<32x64xf32>
    %c0_1 = arith.constant 0 : index
    %c0_2 = arith.constant 0 : index
    %1 = vector.load %arg2[%c0_1, %c0_2] : memref<8x64xf32, #tpu.memory_space<vmem>>, vector<8x64xf32>
    %c0_3 = arith.constant 0 : index
    %c0_4 = arith.constant 0 : index
    %2 = vector.load %arg3[%c0_3, %c0_4] : memref<8x64xf32, #tpu.memory_space<vmem>>, vector<8x64xf32>
    %c0_5 = arith.constant 0 : index
    %c0_6 = arith.constant 0 : index
    %3 = vector.load %arg4[%c0_5, %c0_6] : memref<3x64xf32, #tpu.memory_space<vmem>>, vector<3x64xf32>
    %c0_7 = arith.constant 0 : index
    %c0_8 = arith.constant 0 : index
    %4 = vector.load %arg5[%c0_7, %c0_8] : memref<8x8xf32, #tpu.memory_space<vmem>>, vector<8x8xf32>
    %5 = vector.extract_strided_slice %0 {offsets = [24, 0], sizes = [8, 64], strides = [1, 1]} : vector<32x64xf32> to vector<8x64xf32>
    %cst = arith.constant 0.000000e+00 : f32
    %6 = vector.broadcast %cst : f32 to vector<8x64xf32>
    %7 = arith.maximumf %5, %6 : vector<8x64xf32>
    %cst_9 = arith.constant 9.99999997E-7 : f32
    %8 = vector.broadcast %cst_9 : f32 to vector<8x64xf32>
    %9 = arith.addf %7, %8 : vector<8x64xf32>
    %10 = arith.mulf %9, %2 : vector<8x64xf32>
    %cst_10 = arith.constant 0.000000e+00 : f32
    %11 = vector.broadcast %cst_10 : f32 to vector<8x64xf32>
    %12 = arith.subf %11, %10 : vector<8x64xf32>
    %13 = math.exp %12 : vector<8x64xf32>
    %cst_11 = arith.constant 1.000000e+00 : f32
    %14 = vector.broadcast %cst_11 : f32 to vector<8x64xf32>
    %15 = arith.subf %14, %13 : vector<8x64xf32>
    %cst_12 = arith.constant dense<0.000000e+00> : vector<8x64xf32>
    %16 = tpu.matmul %4, %10, %cst_12 {dimension_numbers = #tpu.dot_dimension_numbers<[1], [0], [0], [1], [0, 0, 1, 1], [], []>} : vector<8x8xf32>, vector<8x64xf32>, vector<8x64xf32> -> vector<8x64xf32>
    %cst_13 = arith.constant 0.000000e+00 : f32
    %17 = vector.broadcast %cst_13 : f32 to vector<8x64xf32>
    %18 = arith.subf %17, %16 : vector<8x64xf32>
    %19 = math.exp %18 : vector<8x64xf32>
    %20 = arith.mulf %15, %19 : vector<8x64xf32>
    %21 = tpu.iota {dimensions = array<i32: 0>} : vector<8x64xi32>
    %c7_i32 = arith.constant 7 : i32
    %22 = vector.broadcast %c7_i32 : i32 to vector<8x64xi32>
    %23 = arith.cmpi eq, %21, %22 : vector<8x64xi32>
    %24 = vector.extract_strided_slice %0 {offsets = [0, 0], sizes = [8, 64], strides = [1, 1]} : vector<32x64xf32> to vector<8x64xf32>
    %cst_14 = arith.constant 5.000000e-01 : f32
    %25 = vector.broadcast %cst_14 : f32 to vector<8x64xf32>
    %26 = arith.mulf %25, %24 : vector<8x64xf32>
    %27 = math.tanh %26 : vector<8x64xf32>
    %cst_15 = arith.constant 1.000000e+00 : f32
    %28 = vector.broadcast %cst_15 : f32 to vector<8x64xf32>
    %29 = arith.addf %27, %28 : vector<8x64xf32>
    %cst_16 = arith.constant 5.000000e-01 : f32
    %30 = vector.broadcast %cst_16 : f32 to vector<8x64xf32>
    %31 = arith.mulf %30, %29 : vector<8x64xf32>
    %32 = vector.extract_strided_slice %3 {offsets = [0, 0], sizes = [1, 64], strides = [1, 1]} : vector<3x64xf32> to vector<1x64xf32>
    %33 = vector.shape_cast %32 : vector<1x64xf32> to vector<1x64xf32>
    %34 = vector.broadcast %33 : vector<1x64xf32> to vector<8x64xf32>
    %35 = arith.select %23, %34, %31 : vector<8x64xi1>, vector<8x64xf32>
    %36 = arith.mulf %20, %35 : vector<8x64xf32>
    %cst_17 = arith.constant dense<0.000000e+00> : vector<64xf32>
    %37 = vector.multi_reduction <add>, %36, %cst_17 [0] : vector<8x64xf32> to vector<64xf32>
    %38 = vector.shape_cast %37 : vector<64xf32> to vector<1x64xf32>
    %39 = vector.extract_strided_slice %0 {offsets = [8, 0], sizes = [8, 64], strides = [1, 1]} : vector<32x64xf32> to vector<8x64xf32>
    %cst_18 = arith.constant 5.000000e-01 : f32
    %40 = vector.broadcast %cst_18 : f32 to vector<8x64xf32>
    %41 = arith.mulf %40, %39 : vector<8x64xf32>
    %42 = math.tanh %41 : vector<8x64xf32>
    %cst_19 = arith.constant 1.000000e+00 : f32
    %43 = vector.broadcast %cst_19 : f32 to vector<8x64xf32>
    %44 = arith.addf %42, %43 : vector<8x64xf32>
    %cst_20 = arith.constant 5.000000e-01 : f32
    %45 = vector.broadcast %cst_20 : f32 to vector<8x64xf32>
    %46 = arith.mulf %45, %44 : vector<8x64xf32>
    %47 = vector.extract_strided_slice %3 {offsets = [1, 0], sizes = [1, 64], strides = [1, 1]} : vector<3x64xf32> to vector<1x64xf32>
    %48 = vector.shape_cast %47 : vector<1x64xf32> to vector<1x64xf32>
    %49 = vector.broadcast %48 : vector<1x64xf32> to vector<8x64xf32>
    %50 = arith.select %23, %49, %46 : vector<8x64xi1>, vector<8x64xf32>
    %51 = arith.mulf %20, %50 : vector<8x64xf32>
    %cst_21 = arith.constant dense<0.000000e+00> : vector<64xf32>
    %52 = vector.multi_reduction <add>, %51, %cst_21 [0] : vector<8x64xf32> to vector<64xf32>
    %53 = vector.shape_cast %52 : vector<64xf32> to vector<1x64xf32>
    %54 = vector.extract_strided_slice %0 {offsets = [16, 0], sizes = [8, 64], strides = [1, 1]} : vector<32x64xf32> to vector<8x64xf32>
    %cst_22 = arith.constant 5.000000e-01 : f32
    %55 = vector.broadcast %cst_22 : f32 to vector<8x64xf32>
    %56 = arith.mulf %55, %54 : vector<8x64xf32>
    %57 = math.tanh %56 : vector<8x64xf32>
    %cst_23 = arith.constant 1.000000e+00 : f32
    %58 = vector.broadcast %cst_23 : f32 to vector<8x64xf32>
    %59 = arith.addf %57, %58 : vector<8x64xf32>
    %cst_24 = arith.constant 5.000000e-01 : f32
    %60 = vector.broadcast %cst_24 : f32 to vector<8x64xf32>
    %61 = arith.mulf %60, %59 : vector<8x64xf32>
    %62 = vector.extract_strided_slice %3 {offsets = [2, 0], sizes = [1, 64], strides = [1, 1]} : vector<3x64xf32> to vector<1x64xf32>
    %63 = vector.shape_cast %62 : vector<1x64xf32> to vector<1x64xf32>
    %64 = vector.broadcast %63 : vector<1x64xf32> to vector<8x64xf32>
    %65 = arith.select %23, %64, %61 : vector<8x64xi1>, vector<8x64xf32>
    %66 = arith.mulf %20, %65 : vector<8x64xf32>
    %cst_25 = arith.constant dense<0.000000e+00> : vector<64xf32>
    %67 = vector.multi_reduction <add>, %66, %cst_25 [0] : vector<8x64xf32> to vector<64xf32>
    %68 = vector.shape_cast %67 : vector<64xf32> to vector<1x64xf32>
    %cst_26 = arith.constant dense<0.000000e+00> : vector<64xf32>
    %69 = vector.multi_reduction <add>, %20, %cst_26 [0] : vector<8x64xf32> to vector<64xf32>
    %70 = vector.shape_cast %69 : vector<64xf32> to vector<1x64xf32>
    %71 = arith.mulf %20, %1 : vector<8x64xf32>
    %cst_27 = arith.constant dense<0.000000e+00> : vector<64xf32>
    %72 = vector.multi_reduction <add>, %71, %cst_27 [0] : vector<8x64xf32> to vector<64xf32>
    %73 = vector.shape_cast %72 : vector<64xf32> to vector<1x64xf32>
    %cst_28 = arith.constant 1.000000e-10 : f32
    %74 = vector.broadcast %cst_28 : f32 to vector<1x64xf32>
    %75 = arith.maximumf %70, %74 : vector<1x64xf32>
    %76 = arith.divf %73, %75 : vector<1x64xf32>
    %cst_29 = arith.constant 1.000000e-10 : f32
    %77 = vector.broadcast %cst_29 : f32 to vector<1x64xf32>
    %78 = arith.maximumf %77, %76 : vector<1x64xf32>
    %cst_30 = arith.constant 1.000000e+00 : f32
    %79 = vector.broadcast %cst_30 : f32 to vector<1x64xf32>
    %80 = arith.divf %79, %78 : vector<1x64xf32>
    %cst_31 = arith.constant 0.000000e+00 : f32
    %81 = vector.broadcast %cst_31 : f32 to vector<1x64xf32>
    %82 = tpu.concatenate %38, %53, %68, %80, %70, %73, %81, %81 in 0 : vector<1x64xf32>, vector<1x64xf32>, vector<1x64xf32>, vector<1x64xf32>, vector<1x64xf32>, vector<1x64xf32>, vector<1x64xf32>, vector<1x64xf32> -> vector<8x64xf32>
    %c0_32 = arith.constant 0 : index
    %c0_33 = arith.constant 0 : index
    %83 = vector.load %arg6[%c0_32, %c0_33] : memref<8x64xf32, #tpu.memory_space<vmem>>, vector<8x64xf32>
    tpu.vector_store %arg6[%c0_32, %c0_33], %82 {strides = array<i32>} : memref<8x64xf32, #tpu.memory_space<vmem>>, vector<8x64xf32>,
    %c0_34 = arith.constant 0 : index
    %c0_35 = arith.constant 0 : index
    %84 = vector.load %arg7[%c0_34, %c0_35] : memref<8x64xf32, #tpu.memory_space<vmem>>, vector<8x64xf32>
    tpu.vector_store %arg7[%c0_34, %c0_35], %20 {strides = array<i32>} : memref<8x64xf32, #tpu.memory_space<vmem>>, vector<8x64xf32>,
    return
  }
  func.func @transform_0(%arg0: i32) -> (i32, i32) {
    %c0_i32 = arith.constant 0 : i32
    %c0_i32_0 = arith.constant 0 : i32
    return %c0_i32, %arg0 : i32, i32
  }
  func.func @transform_1(%arg0: i32) -> (i32, i32) {
    %c0_i32 = arith.constant 0 : i32
    %c0_i32_0 = arith.constant 0 : i32
    return %c0_i32, %arg0 : i32, i32
  }
  func.func @transform_2(%arg0: i32) -> (i32, i32) {
    %c0_i32 = arith.constant 0 : i32
    %c0_i32_0 = arith.constant 0 : i32
    return %c0_i32, %arg0 : i32, i32
  }
  func.func @transform_3(%arg0: i32) -> (i32, i32) {
    %c0_i32 = arith.constant 0 : i32
    %c0_i32_0 = arith.constant 0 : i32
    return %c0_i32, %arg0 : i32, i32
  }
  func.func @transform_4(%arg0: i32) -> (i32, i32) {
    %c0_i32 = arith.constant 0 : i32
    %c0_i32_0 = arith.constant 0 : i32
    %c0_i32_1 = arith.constant 0 : i32
    return %c0_i32, %c0_i32_0 : i32, i32
  }
  func.func @transform_5(%arg0: i32) -> (i32, i32) {
    %c0_i32 = arith.constant 0 : i32
    %c0_i32_0 = arith.constant 0 : i32
    return %c0_i32, %arg0 : i32, i32
  }
  func.func @transform_6(%arg0: i32) -> (i32, i32) {
    %c0_i32 = arith.constant 0 : i32
    %c0_i32_0 = arith.constant 0 : i32
    return %c0_i32, %arg0 : i32, i32
  }
}

module attributes {stable_mosaic.version = 11 : i64} {
  func.func @facenerf_kernel(%arg0: i32, %arg1: memref<8x512xf32, #tpu.memory_space<vmem>>, %arg2: memref<65x549xbf16, #tpu.memory_space<vmem>>, %arg3: memref<65x9xf32, #tpu.memory_space<vmem>>, %arg4: memref<8x512xf32, #tpu.memory_space<vmem>>) attributes {dimension_semantics = [#tpu.dimension_semantics<parallel>], iteration_bounds = array<i64: 2>, scalar_prefetch = 0 : i64, scratch_operands = 0 : i64, tpu.core_type = #tpu.core_type<tc>, window_params = [{transform_indices = @transform_0, window_bounds = array<i64: 8, 512>}, {pipeline_mode = #tpu.pipeline_mode<synchronous>, transform_indices = @transform_1, window_bounds = array<i64: 65, 549>}, {pipeline_mode = #tpu.pipeline_mode<synchronous>, transform_indices = @transform_2, window_bounds = array<i64: 65, 9>}, {transform_indices = @transform_3, window_bounds = array<i64: 8, 512>}]} {
    %c0 = arith.constant 0 : index
    %c0_0 = arith.constant 0 : index
    %0 = vector.load %arg2[%c0, %c0_0] : memref<65x549xbf16, #tpu.memory_space<vmem>>, vector<65x549xbf16>
    %c0_1 = arith.constant 0 : index
    %c0_2 = arith.constant 0 : index
    %1 = vector.load %arg3[%c0_1, %c0_2] : memref<65x9xf32, #tpu.memory_space<vmem>>, vector<65x9xf32>
    %c0_3 = arith.constant 0 : index
    %c0_4 = arith.constant 0 : index
    %2 = vector.load %arg1[%c0_3, %c0_4] : memref<8x512xf32, #tpu.memory_space<vmem>>, vector<8x512xf32>
    %3 = vector.extract_strided_slice %2 {offsets = [0, 0], sizes = [3, 512], strides = [1, 1]} : vector<8x512xf32> to vector<3x512xf32>
    %4 = vector.extract_strided_slice %2 {offsets = [3, 0], sizes = [3, 512], strides = [1, 1]} : vector<8x512xf32> to vector<3x512xf32>
    %cst = arith.constant 1.000000e+00 : f32
    %5 = vector.broadcast %cst : f32 to vector<3x512xf32>
    %6 = arith.mulf %3, %5 : vector<3x512xf32>
    %cst_5 = arith.constant 2.000000e+00 : f32
    %7 = vector.broadcast %cst_5 : f32 to vector<3x512xf32>
    %8 = arith.mulf %3, %7 : vector<3x512xf32>
    %cst_6 = arith.constant 4.000000e+00 : f32
    %9 = vector.broadcast %cst_6 : f32 to vector<3x512xf32>
    %10 = arith.mulf %3, %9 : vector<3x512xf32>
    %cst_7 = arith.constant 8.000000e+00 : f32
    %11 = vector.broadcast %cst_7 : f32 to vector<3x512xf32>
    %12 = arith.mulf %3, %11 : vector<3x512xf32>
    %13 = tpu.concatenate %6, %8, %10, %12 in 0 : vector<3x512xf32>, vector<3x512xf32>, vector<3x512xf32>, vector<3x512xf32> -> vector<12x512xf32>
    %14 = math.sin %13 : vector<12x512xf32>
    %15 = math.cos %13 : vector<12x512xf32>
    %16 = tpu.concatenate %3, %14, %15 in 0 : vector<3x512xf32>, vector<12x512xf32>, vector<12x512xf32> -> vector<27x512xf32>
    %17 = arith.truncf %16 : vector<27x512xf32> to vector<27x512xbf16>
    %cst_8 = arith.constant 1.000000e+00 : f32
    %18 = vector.broadcast %cst_8 : f32 to vector<3x512xf32>
    %19 = arith.mulf %4, %18 : vector<3x512xf32>
    %cst_9 = arith.constant 2.000000e+00 : f32
    %20 = vector.broadcast %cst_9 : f32 to vector<3x512xf32>
    %21 = arith.mulf %4, %20 : vector<3x512xf32>
    %22 = tpu.concatenate %19, %21 in 0 : vector<3x512xf32>, vector<3x512xf32> -> vector<6x512xf32>
    %23 = math.sin %22 : vector<6x512xf32>
    %24 = math.cos %22 : vector<6x512xf32>
    %25 = tpu.concatenate %4, %23, %24 in 0 : vector<3x512xf32>, vector<6x512xf32>, vector<6x512xf32> -> vector<15x512xf32>
    %26 = arith.truncf %25 : vector<15x512xf32> to vector<15x512xbf16>
    %27 = vector.extract_strided_slice %0 {offsets = [0, 0], sizes = [64, 27], strides = [1, 1]} : vector<65x549xbf16> to vector<64x27xbf16>
    %cst_10 = arith.constant dense<0.000000e+00> : vector<64x512xf32>
    %28 = tpu.matmul %27, %17, %cst_10 {dimension_numbers = #tpu.dot_dimension_numbers<[1], [0], [0], [1], [0, 0, 1, 1], [], []>} : vector<64x27xbf16>, vector<27x512xbf16>, vector<64x512xf32> -> vector<64x512xf32>
    %29 = vector.extract_strided_slice %1 {offsets = [0, 0], sizes = [64, 1], strides = [1, 1]} : vector<65x9xf32> to vector<64x1xf32>
    %30 = vector.broadcast %29 : vector<64x1xf32> to vector<64x512xf32>
    %31 = arith.addf %28, %30 : vector<64x512xf32>
    %cst_11 = arith.constant 0.000000e+00 : f32
    %32 = vector.broadcast %cst_11 : f32 to vector<64x512xf32>
    %33 = arith.maximumf %31, %32 : vector<64x512xf32>
    %34 = arith.truncf %33 : vector<64x512xf32> to vector<64x512xbf16>
    %35 = vector.extract_strided_slice %0 {offsets = [0, 27], sizes = [64, 64], strides = [1, 1]} : vector<65x549xbf16> to vector<64x64xbf16>
    %cst_12 = arith.constant dense<0.000000e+00> : vector<64x512xf32>
    %36 = tpu.matmul %35, %34, %cst_12 {dimension_numbers = #tpu.dot_dimension_numbers<[1], [0], [0], [1], [0, 0, 1, 1], [], []>} : vector<64x64xbf16>, vector<64x512xbf16>, vector<64x512xf32> -> vector<64x512xf32>
    %37 = vector.extract_strided_slice %1 {offsets = [0, 1], sizes = [64, 1], strides = [1, 1]} : vector<65x9xf32> to vector<64x1xf32>
    %38 = vector.broadcast %37 : vector<64x1xf32> to vector<64x512xf32>
    %39 = arith.addf %36, %38 : vector<64x512xf32>
    %cst_13 = arith.constant 0.000000e+00 : f32
    %40 = vector.broadcast %cst_13 : f32 to vector<64x512xf32>
    %41 = arith.maximumf %39, %40 : vector<64x512xf32>
    %42 = arith.truncf %41 : vector<64x512xf32> to vector<64x512xbf16>
    %43 = vector.extract_strided_slice %0 {offsets = [0, 91], sizes = [64, 64], strides = [1, 1]} : vector<65x549xbf16> to vector<64x64xbf16>
    %cst_14 = arith.constant dense<0.000000e+00> : vector<64x512xf32>
    %44 = tpu.matmul %43, %42, %cst_14 {dimension_numbers = #tpu.dot_dimension_numbers<[1], [0], [0], [1], [0, 0, 1, 1], [], []>} : vector<64x64xbf16>, vector<64x512xbf16>, vector<64x512xf32> -> vector<64x512xf32>
    %45 = vector.extract_strided_slice %1 {offsets = [0, 2], sizes = [64, 1], strides = [1, 1]} : vector<65x9xf32> to vector<64x1xf32>
    %46 = vector.broadcast %45 : vector<64x1xf32> to vector<64x512xf32>
    %47 = arith.addf %44, %46 : vector<64x512xf32>
    %cst_15 = arith.constant 0.000000e+00 : f32
    %48 = vector.broadcast %cst_15 : f32 to vector<64x512xf32>
    %49 = arith.maximumf %47, %48 : vector<64x512xf32>
    %50 = arith.truncf %49 : vector<64x512xf32> to vector<64x512xbf16>
    %51 = vector.extract_strided_slice %0 {offsets = [0, 155], sizes = [64, 64], strides = [1, 1]} : vector<65x549xbf16> to vector<64x64xbf16>
    %cst_16 = arith.constant dense<0.000000e+00> : vector<64x512xf32>
    %52 = tpu.matmul %51, %50, %cst_16 {dimension_numbers = #tpu.dot_dimension_numbers<[1], [0], [0], [1], [0, 0, 1, 1], [], []>} : vector<64x64xbf16>, vector<64x512xbf16>, vector<64x512xf32> -> vector<64x512xf32>
    %53 = vector.extract_strided_slice %1 {offsets = [0, 3], sizes = [64, 1], strides = [1, 1]} : vector<65x9xf32> to vector<64x1xf32>
    %54 = vector.broadcast %53 : vector<64x1xf32> to vector<64x512xf32>
    %55 = arith.addf %52, %54 : vector<64x512xf32>
    %cst_17 = arith.constant 0.000000e+00 : f32
    %56 = vector.broadcast %cst_17 : f32 to vector<64x512xf32>
    %57 = arith.maximumf %55, %56 : vector<64x512xf32>
    %58 = arith.truncf %57 : vector<64x512xf32> to vector<64x512xbf16>
    %59 = vector.extract_strided_slice %0 {offsets = [0, 219], sizes = [64, 64], strides = [1, 1]} : vector<65x549xbf16> to vector<64x64xbf16>
    %cst_18 = arith.constant dense<0.000000e+00> : vector<64x512xf32>
    %60 = tpu.matmul %59, %58, %cst_18 {dimension_numbers = #tpu.dot_dimension_numbers<[1], [0], [0], [1], [0, 0, 1, 1], [], []>} : vector<64x64xbf16>, vector<64x512xbf16>, vector<64x512xf32> -> vector<64x512xf32>
    %61 = vector.extract_strided_slice %1 {offsets = [0, 4], sizes = [64, 1], strides = [1, 1]} : vector<65x9xf32> to vector<64x1xf32>
    %62 = vector.broadcast %61 : vector<64x1xf32> to vector<64x512xf32>
    %63 = arith.addf %60, %62 : vector<64x512xf32>
    %cst_19 = arith.constant 0.000000e+00 : f32
    %64 = vector.broadcast %cst_19 : f32 to vector<64x512xf32>
    %65 = arith.maximumf %63, %64 : vector<64x512xf32>
    %66 = arith.truncf %65 : vector<64x512xf32> to vector<64x512xbf16>
    %67 = vector.extract_strided_slice %0 {offsets = [0, 283], sizes = [64, 64], strides = [1, 1]} : vector<65x549xbf16> to vector<64x64xbf16>
    %cst_20 = arith.constant dense<0.000000e+00> : vector<64x512xf32>
    %68 = tpu.matmul %67, %66, %cst_20 {dimension_numbers = #tpu.dot_dimension_numbers<[1], [0], [0], [1], [0, 0, 1, 1], [], []>} : vector<64x64xbf16>, vector<64x512xbf16>, vector<64x512xf32> -> vector<64x512xf32>
    %69 = vector.extract_strided_slice %0 {offsets = [0, 347], sizes = [64, 27], strides = [1, 1]} : vector<65x549xbf16> to vector<64x27xbf16>
    %cst_21 = arith.constant dense<0.000000e+00> : vector<64x512xf32>
    %70 = tpu.matmul %69, %17, %cst_21 {dimension_numbers = #tpu.dot_dimension_numbers<[1], [0], [0], [1], [0, 0, 1, 1], [], []>} : vector<64x27xbf16>, vector<27x512xbf16>, vector<64x512xf32> -> vector<64x512xf32>
    %71 = arith.addf %68, %70 : vector<64x512xf32>
    %72 = vector.extract_strided_slice %1 {offsets = [0, 5], sizes = [64, 1], strides = [1, 1]} : vector<65x9xf32> to vector<64x1xf32>
    %73 = vector.broadcast %72 : vector<64x1xf32> to vector<64x512xf32>
    %74 = arith.addf %71, %73 : vector<64x512xf32>
    %cst_22 = arith.constant 0.000000e+00 : f32
    %75 = vector.broadcast %cst_22 : f32 to vector<64x512xf32>
    %76 = arith.maximumf %74, %75 : vector<64x512xf32>
    %77 = arith.truncf %76 : vector<64x512xf32> to vector<64x512xbf16>
    %78 = vector.extract_strided_slice %0 {offsets = [0, 374], sizes = [65, 64], strides = [1, 1]} : vector<65x549xbf16> to vector<65x64xbf16>
    %cst_23 = arith.constant dense<0.000000e+00> : vector<65x512xf32>
    %79 = tpu.matmul %78, %77, %cst_23 {dimension_numbers = #tpu.dot_dimension_numbers<[1], [0], [0], [1], [0, 0, 1, 1], [], []>} : vector<65x64xbf16>, vector<64x512xbf16>, vector<65x512xf32> -> vector<65x512xf32>
    %80 = vector.extract_strided_slice %1 {offsets = [0, 6], sizes = [65, 1], strides = [1, 1]} : vector<65x9xf32> to vector<65x1xf32>
    %81 = vector.broadcast %80 : vector<65x1xf32> to vector<65x512xf32>
    %82 = arith.addf %79, %81 : vector<65x512xf32>
    %83 = vector.extract_strided_slice %82 {offsets = [0, 0], sizes = [64, 512], strides = [1, 1]} : vector<65x512xf32> to vector<64x512xf32>
    %84 = vector.extract_strided_slice %82 {offsets = [64, 0], sizes = [1, 512], strides = [1, 1]} : vector<65x512xf32> to vector<1x512xf32>
    %85 = arith.truncf %83 : vector<64x512xf32> to vector<64x512xbf16>
    %86 = vector.extract_strided_slice %0 {offsets = [0, 438], sizes = [32, 64], strides = [1, 1]} : vector<65x549xbf16> to vector<32x64xbf16>
    %cst_24 = arith.constant dense<0.000000e+00> : vector<32x512xf32>
    %87 = tpu.matmul %86, %85, %cst_24 {dimension_numbers = #tpu.dot_dimension_numbers<[1], [0], [0], [1], [0, 0, 1, 1], [], []>} : vector<32x64xbf16>, vector<64x512xbf16>, vector<32x512xf32> -> vector<32x512xf32>
    %88 = vector.extract_strided_slice %0 {offsets = [0, 502], sizes = [32, 15], strides = [1, 1]} : vector<65x549xbf16> to vector<32x15xbf16>
    %cst_25 = arith.constant dense<0.000000e+00> : vector<32x512xf32>
    %89 = tpu.matmul %88, %26, %cst_25 {dimension_numbers = #tpu.dot_dimension_numbers<[1], [0], [0], [1], [0, 0, 1, 1], [], []>} : vector<32x15xbf16>, vector<15x512xbf16>, vector<32x512xf32> -> vector<32x512xf32>
    %90 = arith.addf %87, %89 : vector<32x512xf32>
    %91 = vector.extract_strided_slice %1 {offsets = [0, 7], sizes = [32, 1], strides = [1, 1]} : vector<65x9xf32> to vector<32x1xf32>
    %92 = vector.broadcast %91 : vector<32x1xf32> to vector<32x512xf32>
    %93 = arith.addf %90, %92 : vector<32x512xf32>
    %cst_26 = arith.constant 0.000000e+00 : f32
    %94 = vector.broadcast %cst_26 : f32 to vector<32x512xf32>
    %95 = arith.maximumf %93, %94 : vector<32x512xf32>
    %96 = arith.truncf %95 : vector<32x512xf32> to vector<32x512xbf16>
    %97 = vector.extract_strided_slice %0 {offsets = [0, 517], sizes = [3, 32], strides = [1, 1]} : vector<65x549xbf16> to vector<3x32xbf16>
    %cst_27 = arith.constant dense<0.000000e+00> : vector<3x512xf32>
    %98 = tpu.matmul %97, %96, %cst_27 {dimension_numbers = #tpu.dot_dimension_numbers<[1], [0], [0], [1], [0, 0, 1, 1], [], []>} : vector<3x32xbf16>, vector<32x512xbf16>, vector<3x512xf32> -> vector<3x512xf32>
    %99 = vector.extract_strided_slice %1 {offsets = [0, 8], sizes = [3, 1], strides = [1, 1]} : vector<65x9xf32> to vector<3x1xf32>
    %100 = vector.broadcast %99 : vector<3x1xf32> to vector<3x512xf32>
    %101 = arith.addf %98, %100 : vector<3x512xf32>
    %cst_28 = arith.constant 0.000000e+00 : f32
    %102 = vector.broadcast %cst_28 : f32 to vector<4x512xf32>
    %103 = tpu.concatenate %101, %84, %102 in 0 : vector<3x512xf32>, vector<1x512xf32>, vector<4x512xf32> -> vector<8x512xf32>
    %c0_29 = arith.constant 0 : index
    %c0_30 = arith.constant 0 : index
    %104 = vector.load %arg4[%c0_29, %c0_30] : memref<8x512xf32, #tpu.memory_space<vmem>>, vector<8x512xf32>
    tpu.vector_store %arg4[%c0_29, %c0_30], %103 {strides = array<i32>} : memref<8x512xf32, #tpu.memory_space<vmem>>, vector<8x512xf32>,
    return
  }
  func.func @transform_0(%arg0: i32) -> (i32, i32) {
    %c0_i32 = arith.constant 0 : i32
    %c0_i32_0 = arith.constant 0 : i32
    return %c0_i32, %arg0 : i32, i32
  }
  func.func @transform_1(%arg0: i32) -> (i32, i32) {
    %c0_i32 = arith.constant 0 : i32
    %c0_i32_0 = arith.constant 0 : i32
    %c0_i32_1 = arith.constant 0 : i32
    return %c0_i32, %c0_i32_0 : i32, i32
  }
  func.func @transform_2(%arg0: i32) -> (i32, i32) {
    %c0_i32 = arith.constant 0 : i32
    %c0_i32_0 = arith.constant 0 : i32
    %c0_i32_1 = arith.constant 0 : i32
    return %c0_i32, %c0_i32_0 : i32, i32
  }
  func.func @transform_3(%arg0: i32) -> (i32, i32) {
    %c0_i32 = arith.constant 0 : i32
    %c0_i32_0 = arith.constant 0 : i32
    return %c0_i32, %arg0 : i32, i32
  }
}

module attributes {stable_mosaic.version = 11 : i64} {
  func.func @raw2outputs_kernel(%arg0: i32, %arg1: memref<64x64xf32, #tpu.memory_space<vmem>>, %arg2: memref<16x64xf32, #tpu.memory_space<vmem>>, %arg3: memref<16x64xf32, #tpu.memory_space<vmem>>, %arg4: memref<3x64xf32, #tpu.memory_space<vmem>>, %arg5: memref<16x16xf32, #tpu.memory_space<vmem>>, %arg6: memref<8x64xf32, #tpu.memory_space<vmem>>, %arg7: memref<16x64xf32, #tpu.memory_space<vmem>>) attributes {dimension_semantics = [#tpu.dimension_semantics<parallel>], iteration_bounds = array<i64: 1>, scalar_prefetch = 0 : i64, scratch_operands = 0 : i64, tpu.core_type = #tpu.core_type<tc>, window_params = [{transform_indices = @transform_0, window_bounds = array<i64: 64, 64>}, {transform_indices = @transform_1, window_bounds = array<i64: 16, 64>}, {transform_indices = @transform_2, window_bounds = array<i64: 16, 64>}, {transform_indices = @transform_3, window_bounds = array<i64: 3, 64>}, {pipeline_mode = #tpu.pipeline_mode<synchronous>, transform_indices = @transform_4, window_bounds = array<i64: 16, 16>}, {transform_indices = @transform_5, window_bounds = array<i64: 8, 64>}, {transform_indices = @transform_6, window_bounds = array<i64: 16, 64>}]} {
    %c0 = arith.constant 0 : index
    %c0_0 = arith.constant 0 : index
    %0 = vector.load %arg1[%c0, %c0_0] : memref<64x64xf32, #tpu.memory_space<vmem>>, vector<64x64xf32>
    %c0_1 = arith.constant 0 : index
    %c0_2 = arith.constant 0 : index
    %1 = vector.load %arg2[%c0_1, %c0_2] : memref<16x64xf32, #tpu.memory_space<vmem>>, vector<16x64xf32>
    %c0_3 = arith.constant 0 : index
    %c0_4 = arith.constant 0 : index
    %2 = vector.load %arg3[%c0_3, %c0_4] : memref<16x64xf32, #tpu.memory_space<vmem>>, vector<16x64xf32>
    %c0_5 = arith.constant 0 : index
    %c0_6 = arith.constant 0 : index
    %3 = vector.load %arg4[%c0_5, %c0_6] : memref<3x64xf32, #tpu.memory_space<vmem>>, vector<3x64xf32>
    %c0_7 = arith.constant 0 : index
    %c0_8 = arith.constant 0 : index
    %4 = vector.load %arg5[%c0_7, %c0_8] : memref<16x16xf32, #tpu.memory_space<vmem>>, vector<16x16xf32>
    %5 = vector.extract_strided_slice %0 {offsets = [48, 0], sizes = [16, 64], strides = [1, 1]} : vector<64x64xf32> to vector<16x64xf32>
    %cst = arith.constant 0.000000e+00 : f32
    %6 = vector.broadcast %cst : f32 to vector<16x64xf32>
    %7 = arith.maximumf %5, %6 : vector<16x64xf32>
    %cst_9 = arith.constant 9.99999997E-7 : f32
    %8 = vector.broadcast %cst_9 : f32 to vector<16x64xf32>
    %9 = arith.addf %7, %8 : vector<16x64xf32>
    %10 = arith.mulf %9, %2 : vector<16x64xf32>
    %cst_10 = arith.constant 0.000000e+00 : f32
    %11 = vector.broadcast %cst_10 : f32 to vector<16x64xf32>
    %12 = arith.subf %11, %10 : vector<16x64xf32>
    %13 = math.exp %12 : vector<16x64xf32>
    %cst_11 = arith.constant 1.000000e+00 : f32
    %14 = vector.broadcast %cst_11 : f32 to vector<16x64xf32>
    %15 = arith.subf %14, %13 : vector<16x64xf32>
    %cst_12 = arith.constant dense<0.000000e+00> : vector<16x64xf32>
    %16 = tpu.matmul %4, %10, %cst_12 {dimension_numbers = #tpu.dot_dimension_numbers<[1], [0], [0], [1], [0, 0, 1, 1], [], []>} : vector<16x16xf32>, vector<16x64xf32>, vector<16x64xf32> -> vector<16x64xf32>
    %cst_13 = arith.constant 0.000000e+00 : f32
    %17 = vector.broadcast %cst_13 : f32 to vector<16x64xf32>
    %18 = arith.subf %17, %16 : vector<16x64xf32>
    %19 = math.exp %18 : vector<16x64xf32>
    %20 = arith.mulf %15, %19 : vector<16x64xf32>
    %21 = tpu.iota {dimensions = array<i32: 0>} : vector<16x64xi32>
    %c15_i32 = arith.constant 15 : i32
    %22 = vector.broadcast %c15_i32 : i32 to vector<16x64xi32>
    %23 = arith.cmpi eq, %21, %22 : vector<16x64xi32>
    %24 = vector.extract_strided_slice %0 {offsets = [0, 0], sizes = [16, 64], strides = [1, 1]} : vector<64x64xf32> to vector<16x64xf32>
    %cst_14 = arith.constant 5.000000e-01 : f32
    %25 = vector.broadcast %cst_14 : f32 to vector<16x64xf32>
    %26 = arith.mulf %25, %24 : vector<16x64xf32>
    %27 = math.tanh %26 : vector<16x64xf32>
    %cst_15 = arith.constant 1.000000e+00 : f32
    %28 = vector.broadcast %cst_15 : f32 to vector<16x64xf32>
    %29 = arith.addf %27, %28 : vector<16x64xf32>
    %cst_16 = arith.constant 5.000000e-01 : f32
    %30 = vector.broadcast %cst_16 : f32 to vector<16x64xf32>
    %31 = arith.mulf %30, %29 : vector<16x64xf32>
    %32 = vector.extract_strided_slice %3 {offsets = [0, 0], sizes = [1, 64], strides = [1, 1]} : vector<3x64xf32> to vector<1x64xf32>
    %33 = vector.shape_cast %32 : vector<1x64xf32> to vector<1x64xf32>
    %34 = vector.broadcast %33 : vector<1x64xf32> to vector<16x64xf32>
    %35 = arith.select %23, %34, %31 : vector<16x64xi1>, vector<16x64xf32>
    %36 = arith.mulf %20, %35 : vector<16x64xf32>
    %cst_17 = arith.constant dense<0.000000e+00> : vector<64xf32>
    %37 = vector.multi_reduction <add>, %36, %cst_17 [0] : vector<16x64xf32> to vector<64xf32>
    %38 = vector.shape_cast %37 : vector<64xf32> to vector<1x64xf32>
    %39 = vector.extract_strided_slice %0 {offsets = [16, 0], sizes = [16, 64], strides = [1, 1]} : vector<64x64xf32> to vector<16x64xf32>
    %cst_18 = arith.constant 5.000000e-01 : f32
    %40 = vector.broadcast %cst_18 : f32 to vector<16x64xf32>
    %41 = arith.mulf %40, %39 : vector<16x64xf32>
    %42 = math.tanh %41 : vector<16x64xf32>
    %cst_19 = arith.constant 1.000000e+00 : f32
    %43 = vector.broadcast %cst_19 : f32 to vector<16x64xf32>
    %44 = arith.addf %42, %43 : vector<16x64xf32>
    %cst_20 = arith.constant 5.000000e-01 : f32
    %45 = vector.broadcast %cst_20 : f32 to vector<16x64xf32>
    %46 = arith.mulf %45, %44 : vector<16x64xf32>
    %47 = vector.extract_strided_slice %3 {offsets = [1, 0], sizes = [1, 64], strides = [1, 1]} : vector<3x64xf32> to vector<1x64xf32>
    %48 = vector.shape_cast %47 : vector<1x64xf32> to vector<1x64xf32>
    %49 = vector.broadcast %48 : vector<1x64xf32> to vector<16x64xf32>
    %50 = arith.select %23, %49, %46 : vector<16x64xi1>, vector<16x64xf32>
    %51 = arith.mulf %20, %50 : vector<16x64xf32>
    %cst_21 = arith.constant dense<0.000000e+00> : vector<64xf32>
    %52 = vector.multi_reduction <add>, %51, %cst_21 [0] : vector<16x64xf32> to vector<64xf32>
    %53 = vector.shape_cast %52 : vector<64xf32> to vector<1x64xf32>
    %54 = vector.extract_strided_slice %0 {offsets = [32, 0], sizes = [16, 64], strides = [1, 1]} : vector<64x64xf32> to vector<16x64xf32>
    %cst_22 = arith.constant 5.000000e-01 : f32
    %55 = vector.broadcast %cst_22 : f32 to vector<16x64xf32>
    %56 = arith.mulf %55, %54 : vector<16x64xf32>
    %57 = math.tanh %56 : vector<16x64xf32>
    %cst_23 = arith.constant 1.000000e+00 : f32
    %58 = vector.broadcast %cst_23 : f32 to vector<16x64xf32>
    %59 = arith.addf %57, %58 : vector<16x64xf32>
    %cst_24 = arith.constant 5.000000e-01 : f32
    %60 = vector.broadcast %cst_24 : f32 to vector<16x64xf32>
    %61 = arith.mulf %60, %59 : vector<16x64xf32>
    %62 = vector.extract_strided_slice %3 {offsets = [2, 0], sizes = [1, 64], strides = [1, 1]} : vector<3x64xf32> to vector<1x64xf32>
    %63 = vector.shape_cast %62 : vector<1x64xf32> to vector<1x64xf32>
    %64 = vector.broadcast %63 : vector<1x64xf32> to vector<16x64xf32>
    %65 = arith.select %23, %64, %61 : vector<16x64xi1>, vector<16x64xf32>
    %66 = arith.mulf %20, %65 : vector<16x64xf32>
    %cst_25 = arith.constant dense<0.000000e+00> : vector<64xf32>
    %67 = vector.multi_reduction <add>, %66, %cst_25 [0] : vector<16x64xf32> to vector<64xf32>
    %68 = vector.shape_cast %67 : vector<64xf32> to vector<1x64xf32>
    %cst_26 = arith.constant dense<0.000000e+00> : vector<64xf32>
    %69 = vector.multi_reduction <add>, %20, %cst_26 [0] : vector<16x64xf32> to vector<64xf32>
    %70 = vector.shape_cast %69 : vector<64xf32> to vector<1x64xf32>
    %71 = arith.mulf %20, %1 : vector<16x64xf32>
    %cst_27 = arith.constant dense<0.000000e+00> : vector<64xf32>
    %72 = vector.multi_reduction <add>, %71, %cst_27 [0] : vector<16x64xf32> to vector<64xf32>
    %73 = vector.shape_cast %72 : vector<64xf32> to vector<1x64xf32>
    %cst_28 = arith.constant 1.000000e-10 : f32
    %74 = vector.broadcast %cst_28 : f32 to vector<1x64xf32>
    %75 = arith.maximumf %70, %74 : vector<1x64xf32>
    %76 = arith.divf %73, %75 : vector<1x64xf32>
    %cst_29 = arith.constant 1.000000e-10 : f32
    %77 = vector.broadcast %cst_29 : f32 to vector<1x64xf32>
    %78 = arith.maximumf %77, %76 : vector<1x64xf32>
    %cst_30 = arith.constant 1.000000e+00 : f32
    %79 = vector.broadcast %cst_30 : f32 to vector<1x64xf32>
    %80 = arith.divf %79, %78 : vector<1x64xf32>
    %cst_31 = arith.constant 0.000000e+00 : f32
    %81 = vector.broadcast %cst_31 : f32 to vector<1x64xf32>
    %82 = tpu.concatenate %38, %53, %68, %80, %70, %73, %81, %81 in 0 : vector<1x64xf32>, vector<1x64xf32>, vector<1x64xf32>, vector<1x64xf32>, vector<1x64xf32>, vector<1x64xf32>, vector<1x64xf32>, vector<1x64xf32> -> vector<8x64xf32>
    %c0_32 = arith.constant 0 : index
    %c0_33 = arith.constant 0 : index
    %83 = vector.load %arg6[%c0_32, %c0_33] : memref<8x64xf32, #tpu.memory_space<vmem>>, vector<8x64xf32>
    tpu.vector_store %arg6[%c0_32, %c0_33], %82 {strides = array<i32>} : memref<8x64xf32, #tpu.memory_space<vmem>>, vector<8x64xf32>,
    %c0_34 = arith.constant 0 : index
    %c0_35 = arith.constant 0 : index
    %84 = vector.load %arg7[%c0_34, %c0_35] : memref<16x64xf32, #tpu.memory_space<vmem>>, vector<16x64xf32>
    tpu.vector_store %arg7[%c0_34, %c0_35], %20 {strides = array<i32>} : memref<16x64xf32, #tpu.memory_space<vmem>>, vector<16x64xf32>,
    return
  }
  func.func @transform_0(%arg0: i32) -> (i32, i32) {
    %c0_i32 = arith.constant 0 : i32
    %c0_i32_0 = arith.constant 0 : i32
    return %c0_i32, %arg0 : i32, i32
  }
  func.func @transform_1(%arg0: i32) -> (i32, i32) {
    %c0_i32 = arith.constant 0 : i32
    %c0_i32_0 = arith.constant 0 : i32
    return %c0_i32, %arg0 : i32, i32
  }
  func.func @transform_2(%arg0: i32) -> (i32, i32) {
    %c0_i32 = arith.constant 0 : i32
    %c0_i32_0 = arith.constant 0 : i32
    return %c0_i32, %arg0 : i32, i32
  }
  func.func @transform_3(%arg0: i32) -> (i32, i32) {
    %c0_i32 = arith.constant 0 : i32
    %c0_i32_0 = arith.constant 0 : i32
    return %c0_i32, %arg0 : i32, i32
  }
  func.func @transform_4(%arg0: i32) -> (i32, i32) {
    %c0_i32 = arith.constant 0 : i32
    %c0_i32_0 = arith.constant 0 : i32
    %c0_i32_1 = arith.constant 0 : i32
    return %c0_i32, %c0_i32_0 : i32, i32
  }
  func.func @transform_5(%arg0: i32) -> (i32, i32) {
    %c0_i32 = arith.constant 0 : i32
    %c0_i32_0 = arith.constant 0 : i32
    return %c0_i32, %arg0 : i32, i32
  }
  func.func @transform_6(%arg0: i32) -> (i32, i32) {
    %c0_i32 = arith.constant 0 : i32
    %c0_i32_0 = arith.constant 0 : i32
    return %c0_i32, %arg0 : i32, i32
  }
}

module attributes {stable_mosaic.version = 11 : i64} {
  func.func @_dense_kernel(%arg0: i32, %arg1: memref<128x35xbf16, #tpu.memory_space<vmem>>, %arg2: memref<35x128xbf16, #tpu.memory_space<vmem>>, %arg3: memref<1x128xf32, #tpu.memory_space<vmem>>, %arg4: memref<128x128xf32, #tpu.memory_space<vmem>>) attributes {dimension_semantics = [#tpu.dimension_semantics<parallel>], iteration_bounds = array<i64: 2>, scalar_prefetch = 0 : i64, scratch_operands = 0 : i64, tpu.core_type = #tpu.core_type<tc>, window_params = [{transform_indices = @transform_0, window_bounds = array<i64: 128, 35>}, {pipeline_mode = #tpu.pipeline_mode<synchronous>, transform_indices = @transform_1, window_bounds = array<i64: 35, 128>}, {pipeline_mode = #tpu.pipeline_mode<synchronous>, transform_indices = @transform_2, window_bounds = array<i64: 1, 128>}, {transform_indices = @transform_3, window_bounds = array<i64: 128, 128>}]} {
    %c0 = arith.constant 0 : index
    %c0_0 = arith.constant 0 : index
    %0 = vector.load %arg1[%c0, %c0_0] : memref<128x35xbf16, #tpu.memory_space<vmem>>, vector<128x35xbf16>
    %c0_1 = arith.constant 0 : index
    %c0_2 = arith.constant 0 : index
    %1 = vector.load %arg2[%c0_1, %c0_2] : memref<35x128xbf16, #tpu.memory_space<vmem>>, vector<35x128xbf16>
    %cst = arith.constant dense<0.000000e+00> : vector<128x128xf32>
    %2 = tpu.matmul %0, %1, %cst {dimension_numbers = #tpu.dot_dimension_numbers<[1], [0], [0], [1], [0, 0, 1, 1], [], []>} : vector<128x35xbf16>, vector<35x128xbf16>, vector<128x128xf32> -> vector<128x128xf32>
    %c0_3 = arith.constant 0 : index
    %c0_4 = arith.constant 0 : index
    %3 = vector.load %arg3[%c0_3, %c0_4] : memref<1x128xf32, #tpu.memory_space<vmem>>, vector<1x128xf32>
    %4 = vector.broadcast %3 : vector<1x128xf32> to vector<128x128xf32>
    %5 = arith.addf %2, %4 : vector<128x128xf32>
    %cst_5 = arith.constant 0.000000e+00 : f32
    %6 = vector.broadcast %cst_5 : f32 to vector<128x128xf32>
    %7 = arith.maximumf %5, %6 : vector<128x128xf32>
    %c0_6 = arith.constant 0 : index
    %c0_7 = arith.constant 0 : index
    %8 = vector.load %arg4[%c0_6, %c0_7] : memref<128x128xf32, #tpu.memory_space<vmem>>, vector<128x128xf32>
    tpu.vector_store %arg4[%c0_6, %c0_7], %7 {strides = array<i32>} : memref<128x128xf32, #tpu.memory_space<vmem>>, vector<128x128xf32>,
    return
  }
  func.func @transform_0(%arg0: i32) -> (i32, i32) {
    %c0_i32 = arith.constant 0 : i32
    %c0_i32_0 = arith.constant 0 : i32
    return %arg0, %c0_i32 : i32, i32
  }
  func.func @transform_1(%arg0: i32) -> (i32, i32) {
    %c0_i32 = arith.constant 0 : i32
    %c0_i32_0 = arith.constant 0 : i32
    %c0_i32_1 = arith.constant 0 : i32
    return %c0_i32, %c0_i32_0 : i32, i32
  }
  func.func @transform_2(%arg0: i32) -> (i32, i32) {
    %c0_i32 = arith.constant 0 : i32
    %c0_i32_0 = arith.constant 0 : i32
    %c0_i32_1 = arith.constant 0 : i32
    return %c0_i32, %c0_i32_0 : i32, i32
  }
  func.func @transform_3(%arg0: i32) -> (i32, i32) {
    %c0_i32 = arith.constant 0 : i32
    %c0_i32_0 = arith.constant 0 : i32
    return %arg0, %c0_i32 : i32, i32
  }
}

</mosaic_0001>

<llo_original>
// kernel: _pipeline.8
$region0: #{_pipeline.8}
  #allocation0 [shape = 'u32[]', space=smem, size = 0x4, offset = 0x4, fixed_abs, tag = 'smem constant byte address 0x4 - core index']
  #allocation1 [shape = 'u32[144,128]{1,0:T(1,128)}', space=vmem, size = 0x12000, scoped, tag = 'internal scratch']
  %s0 = inlined_call_operand.vmem [shape: bf16[8,64], index: 0, kind: input, shape index: {}]
  %s1 = inlined_call_operand.vmem [shape: bf16[64,128], index: 1, kind: input, shape index: {}]
  %s2 = inlined_call_operand.vmem [shape: f32[1,128], index: 2, kind: input, shape index: {}]
  %s3 = inlined_call_operand.vmem [shape: f32[8,128], index: 3, kind: output, shape index: {}]
  %s4 = sld [smem:[#allocation0]]
  $region22: #{_pipeline.8} parent=0
    _
  %s6 = ssub.s32 1, %s4
  %s7 = scalar_select 0, %s6, %s4
  // Predicated region
  $region2: #{_pipeline.8} parent=0 // pred_check
    _
  $region3: #{_pipeline.8} parent=0 // pred_check_branch
    %9 = sbr.rel (0) target = $region5
  $region4: #{_pipeline.8} parent=0 // pred_region
    _
  $region5: #{_pipeline.8} parent=0 // pred_fallthru
    _
  // Predicated region
  $region6: #{_pipeline.8} parent=0 // pred_check
    _
  $region7: #{_pipeline.8} parent=0 // pred_check_branch
    %11 = sbr.rel (0) target = $region9
  $region8: #{_pipeline.8} parent=0 // pred_region
    _
  $region9: #{_pipeline.8} parent=0 // pred_fallthru
    _
  // Predicated region
  $region10: #{_pipeline.8} parent=0 // pred_check
    _
  $region11: #{_pipeline.8} parent=0 // pred_check_branch
    %13 = sbr.rel (0) target = $region13
  $region12: #{_pipeline.8} parent=0 // pred_region
    _
  $region13: #{_pipeline.8} parent=0 // pred_fallthru
    _
  %v15 = vld [vmem:[%s0] sm:$0xf]
  %v16 = vld [vmem:[%s1] sm:$0xf]
  %v17 = vld [vmem:[%s1 + $0x4] sm:$0xf]
  %v18 = vld [vmem:[%s1 + $0x8] sm:$0xf]
  %v19 = vld [vmem:[%s1 + $0xc] sm:$0xf]
  %v20 = vld [vmem:[%s1 + $0x10] sm:$0xf]
  %v21 = vld [vmem:[%s1 + $0x14] sm:$0xf]
  %v22 = vld [vmem:[%s1 + $0x18] sm:$0xf]
  %v23 = vld [vmem:[%s1 + $0x1c] sm:$0xf]
  %v24 = vld [vmem:[%s2] sm:$0x1]
  %v26 = vlaneseq
  %v27 = vshrl.u32 %v26, 7
  %v28 = vsub.s32 0, %v27
  %v29 = vrot.slane %v24, %v28
  %v39 = vunpack.c.l.b16 %v16
  %v40 = vunpack.c.l.b16 %v17
  %v41 = vunpack.c.l.b16 %v18
  %v42 = vunpack.c.l.b16 %v19
  %v43 = vunpack.c.l.b16 %v20
  %v44 = vunpack.c.l.b16 %v21
  %v45 = vunpack.c.l.b16 %v22
  %v46 = vunpack.c.l.b16 %v23
  %v47 = vpack.c.b16 %v40, %v39
  %v48 = vpack.c.b16 %v42, %v41
  %v49 = vpack.c.b16 %v44, %v43
  %v50 = vpack.c.b16 %v46, %v45
  %vm55 = vcmask 523264
  %v57 = vsel %vm55, %v15, 0
  %59 = vmatprep.subr.bf16.mxu0 0
  %60 = vmatpush1.bf16.msra.mxu0 %v47
  %61 = vmatprep.subr.bf16.mxu0 0
  %62 = vmatpush1.bf16.msra.mxu0 %v48
  %63 = vmatprep.subr.bf16.mxu0 0
  %64 = vmatpush1.bf16.msra.mxu0 %v49
  %65 = vmatprep.subr.bf16.mxu0 0
  %66 = vmatpush1.bf16.msra.mxu0 %v50
  %67 = vmatprep.subr.bf16.mxu0 0
  %68 = vmatpush1.bf16.msra.mxu0 0
  %69 = vmatprep.subr.bf16.mxu0 0
  %70 = vmatpush1.bf16.msra.mxu0 0
  %71 = vmatprep.subr.bf16.mxu0 0
  %72 = vmatpush1.bf16.msra.mxu0 0
  %73 = vmatprep.subr.bf16.mxu0 0
  %74 = vmatpush1.bf16.msra.mxu0 0
  %75 = vmatprep.subr.bf16.mxu0 0
  %76 = vmatpush1.bf16.msra.mxu0 0
  %77 = vmatprep.subr.bf16.mxu0 0
  %78 = vmatpush1.bf16.msra.mxu0 0
  %79 = vmatprep.subr.bf16.mxu0 0
  %80 = vmatpush1.bf16.msra.mxu0 0
  %81 = vmatprep.subr.bf16.mxu0 0
  %82 = vmatpush1.bf16.msra.mxu0 0
  %83 = vmatprep.subr.bf16.mxu0 0
  %84 = vmatpush1.bf16.msra.mxu0 0
  %85 = vmatprep.subr.bf16.mxu0 0
  %86 = vmatpush1.bf16.msra.mxu0 0
  %87 = vmatprep.subr.bf16.mxu0 0
  %88 = vmatpush1.bf16.msra.mxu0 0
  %89 = vmatprep.subr.bf16.mxu0 0
  %90 = vmatpush1.bf16.msra.mxu0 0
  %91 = vmatprep.mubr.bf16.mxu0 0
  %92 = vmatmul.mubr.bf16.gmra.mrb[0].mxu0 %v57
  %v93 = vpop.f32.mrb[0].mxu0
  %v94 = vadd.f32 %v29, %v93
  %v95 = vpop.f32.mrb[0].mxu0
  %v96 = vpop.f32.mrb[0].mxu0
  %v97 = vpop.f32.mrb[0].mxu0
  %98 = vdwg.mxu0
  %99 = vst [vmem:[%s3] sm:$0xff] %v94
  // Predicated region
  $region14: #{_pipeline.8} parent=0 // pred_check
    _
  $region15: #{_pipeline.8} parent=0 // pred_check_branch
    %101 = sbr.rel (0) target = $region17
  $region16: #{_pipeline.8} parent=0 // pred_region
    _
  $region17: #{_pipeline.8} parent=0 // pred_fallthru
    _
  // Predicated region
  $region18: #{_pipeline.8} parent=0 // pred_check
    _
  $region19: #{_pipeline.8} parent=0 // pred_check_branch
    %103 = sbr.rel (0) target = $region21
  $region20: #{_pipeline.8} parent=0 // pred_region
    _
  $region21: #{_pipeline.8} parent=0 // pred_fallthru
    _

// kernel: _pipeline.7
$region0: #{_pipeline.7}
  #allocation0 [shape = 'u32[]', space=smem, size = 0x4, offset = 0x4, fixed_abs, tag = 'smem constant byte address 0x4 - core index']
  #allocation1 [shape = 'u32[144,128]{1,0:T(1,128)}', space=vmem, size = 0x12000, scoped, tag = 'internal scratch']
  %s0 = inlined_call_operand.vmem [shape: bf16[8,464], index: 0, kind: input, shape index: {}]
  %s1 = inlined_call_operand.vmem [shape: bf16[464,128], index: 1, kind: input, shape index: {}]
  %s2 = inlined_call_operand.vmem [shape: f32[1,128], index: 2, kind: input, shape index: {}]
  %s3 = inlined_call_operand.vmem [shape: f32[8,128], index: 3, kind: output, shape index: {}]
  %s4 = sld [smem:[#allocation0]]
  $region22: #{_pipeline.7} parent=0
    _
  %s6 = ssub.s32 1, %s4
  %s7 = scalar_select 0, %s6, %s4
  // Predicated region
  $region2: #{_pipeline.7} parent=0 // pred_check
    _
  $region3: #{_pipeline.7} parent=0 // pred_check_branch
    %9 = sbr.rel (0) target = $region5
  $region4: #{_pipeline.7} parent=0 // pred_region
    _
  $region5: #{_pipeline.7} parent=0 // pred_fallthru
    _
  // Predicated region
  $region6: #{_pipeline.7} parent=0 // pred_check
    _
  $region7: #{_pipeline.7} parent=0 // pred_check_branch
    %11 = sbr.rel (0) target = $region9
  $region8: #{_pipeline.7} parent=0 // pred_region
    _
  $region9: #{_pipeline.7} parent=0 // pred_fallthru
    _
  // Predicated region
  $region10: #{_pipeline.7} parent=0 // pred_check
    _
  $region11: #{_pipeline.7} parent=0 // pred_check_branch
    %13 = sbr.rel (0) target = $region13
  $region12: #{_pipeline.7} parent=0 // pred_region
    _
  $region13: #{_pipeline.7} parent=0 // pred_fallthru
    _
  %v15 = vld [vmem:[%s0] sm:$0xff]
  %v16 = vld [vmem:[%s0 + $0x8] sm:$0xff]
  %v17 = vld [vmem:[%s1] sm:$0xf]
  %v18 = vld [vmem:[%s1 + $0x4] sm:$0xf]
  %v19 = vld [vmem:[%s1 + $0x8] sm:$0xf]
  %v20 = vld [vmem:[%s1 + $0xc] sm:$0xf]
  %v21 = vld [vmem:[%s1 + $0x10] sm:$0xf]
  %v22 = vld [vmem:[%s1 + $0x14] sm:$0xf]
  %v23 = vld [vmem:[%s1 + $0x18] sm:$0xf]
  %v24 = vld [vmem:[%s1 + $0x1c] sm:$0xf]
  %v25 = vld [vmem:[%s1 + $0x20] sm:$0xf]
  %v26 = vld [vmem:[%s1 + $0x24] sm:$0xf]
  %v27 = vld [vmem:[%s1 + $0x28] sm:$0xf]
  %v28 = vld [vmem:[%s1 + $0x2c] sm:$0xf]
  %v29 = vld [vmem:[%s1 + $0x30] sm:$0xf]
  %v30 = vld [vmem:[%s1 + $0x34] sm:$0xf]
  %v31 = vld [vmem:[%s1 + $0x38] sm:$0xf]
  %v32 = vld [vmem:[%s1 + $0x3c] sm:$0xf]
  %v33 = vld [vmem:[%s1 + $0x40] sm:$0xf]
  %v34 = vld [vmem:[%s1 + $0x44] sm:$0xf]
  %v35 = vld [vmem:[%s1 + $0x48] sm:$0xf]
  %v36 = vld [vmem:[%s1 + $0x4c] sm:$0xf]
  %v37 = vld [vmem:[%s1 + $0x50] sm:$0xf]
  %v38 = vld [vmem:[%s1 + $0x54] sm:$0xf]
  %v39 = vld [vmem:[%s1 + $0x58] sm:$0xf]
  %v40 = vld [vmem:[%s1 + $0x5c] sm:$0xf]
  %v41 = vld [vmem:[%s1 + $0x60] sm:$0xf]
  %v42 = vld [vmem:[%s1 + $0x64] sm:$0xf]
  %v43 = vld [vmem:[%s1 + $0x68] sm:$0xf]
  %v44 = vld [vmem:[%s1 + $0x6c] sm:$0xf]
  %v45 = vld [vmem:[%s1 + $0x70] sm:$0xf]
  %v46 = vld [vmem:[%s1 + $0x74] sm:$0xf]
  %v47 = vld [vmem:[%s1 + $0x78] sm:$0xf]
  %v48 = vld [vmem:[%s1 + $0x7c] sm:$0xf]
  %v49 = vld [vmem:[%s1 + $0x80] sm:$0xf]
  %v50 = vld [vmem:[%s1 + $0x84] sm:$0xf]
  %v51 = vld [vmem:[%s1 + $0x88] sm:$0xf]
  %v52 = vld [vmem:[%s1 + $0x8c] sm:$0xf]
  %v53 = vld [vmem:[%s1 + $0x90] sm:$0xf]
  %v54 = vld [vmem:[%s1 + $0x94] sm:$0xf]
  %v55 = vld [vmem:[%s1 + $0x98] sm:$0xf]
  %v56 = vld [vmem:[%s1 + $0x9c] sm:$0xf]
  %v57 = vld [vmem:[%s1 + $0xa0] sm:$0xf]
  %v58 = vld [vmem:[%s1 + $0xa4] sm:$0xf]
  %v59 = vld [vmem:[%s1 + $0xa8] sm:$0xf]
  %v60 = vld [vmem:[%s1 + $0xac] sm:$0xf]
  %v61 = vld [vmem:[%s1 + $0xb0] sm:$0xf]
  %v62 = vld [vmem:[%s1 + $0xb4] sm:$0xf]
  %v63 = vld [vmem:[%s1 + $0xb8] sm:$0xf]
  %v64 = vld [vmem:[%s1 + $0xbc] sm:$0xf]
  %v65 = vld [vmem:[%s1 + $0xc0] sm:$0xf]
  %v66 = vld [vmem:[%s1 + $0xc4] sm:$0xf]
  %v67 = vld [vmem:[%s1 + $0xc8] sm:$0xf]
  %v68 = vld [vmem:[%s1 + $0xcc] sm:$0xf]
  %v69 = vld [vmem:[%s1 + $0xd0] sm:$0xf]
  %v70 = vld [vmem:[%s1 + $0xd4] sm:$0xf]
  %v71 = vld [vmem:[%s1 + $0xd8] sm:$0xf]
  %v72 = vld [vmem:[%s1 + $0xdc] sm:$0xf]
  %v73 = vld [vmem:[%s1 + $0xe0] sm:$0xf]
  %v74 = vld [vmem:[%s1 + $0xe4] sm:$0xf]
  %v75 = vld [vmem:[%s2] sm:$0x1]
  %v77 = vlaneseq
  %v78 = vshrl.u32 %v77, 7
  %v79 = vsub.s32 0, %v78
  %v80 = vrot.slane %v75, %v79
  %v84 = vunpack.c.l.b16 %v15
  %v85 = vunpack.c.h.b16 %v15
  %v86 = vunpack.c.l.b16 %v16
  %v87 = vunpack.c.h.b16 %v16
  %v88 = vpack.c.b16 %v84, %v84
  %v89 = vpack.c.b16 %v85, %v85
  %v90 = vpack.c.b16 %v86, %v86
  %v91 = vpack.c.b16 %v87, %v87
  %v153 = vunpack.c.l.b16 %v17
  %v154 = vunpack.c.l.b16 %v18
  %v155 = vunpack.c.l.b16 %v19
  %v156 = vunpack.c.l.b16 %v20
  %v157 = vunpack.c.l.b16 %v21
  %v158 = vunpack.c.l.b16 %v22
  %v159 = vunpack.c.l.b16 %v23
  %v160 = vunpack.c.l.b16 %v24
  %v161 = vunpack.c.l.b16 %v25
  %v162 = vunpack.c.l.b16 %v26
  %v163 = vunpack.c.l.b16 %v27
  %v164 = vunpack.c.l.b16 %v28
  %v165 = vunpack.c.l.b16 %v29
  %v166 = vunpack.c.l.b16 %v30
  %v167 = vunpack.c.l.b16 %v31
  %v168 = vunpack.c.l.b16 %v32
  %v169 = vunpack.c.l.b16 %v33
  %v170 = vunpack.c.l.b16 %v34
  %v171 = vunpack.c.l.b16 %v35
  %v172 = vunpack.c.l.b16 %v36
  %v173 = vunpack.c.l.b16 %v37
  %v174 = vunpack.c.l.b16 %v38
  %v175 = vunpack.c.l.b16 %v39
  %v176 = vunpack.c.l.b16 %v40
  %v177 = vunpack.c.l.b16 %v41
  %v178 = vunpack.c.l.b16 %v42
  %v179 = vunpack.c.l.b16 %v43
  %v180 = vunpack.c.l.b16 %v44
  %v181 = vunpack.c.l.b16 %v45
  %v182 = vunpack.c.l.b16 %v46
  %v183 = vunpack.c.l.b16 %v47
  %v184 = vunpack.c.l.b16 %v48
  %v185 = vunpack.c.l.b16 %v49
  %v186 = vunpack.c.l.b16 %v50
  %v187 = vunpack.c.l.b16 %v51
  %v188 = vunpack.c.l.b16 %v52
  %v189 = vunpack.c.l.b16 %v53
  %v190 = vunpack.c.l.b16 %v54
  %v191 = vunpack.c.l.b16 %v55
  %v192 = vunpack.c.l.b16 %v56
  %v193 = vunpack.c.l.b16 %v57
  %v194 = vunpack.c.l.b16 %v58
  %v195 = vunpack.c.l.b16 %v59
  %v196 = vunpack.c.l.b16 %v60
  %v197 = vunpack.c.l.b16 %v61
  %v198 = vunpack.c.l.b16 %v62
  %v199 = vunpack.c.l.b16 %v63
  %v200 = vunpack.c.l.b16 %v64
  %v201 = vunpack.c.l.b16 %v65
  %v202 = vunpack.c.l.b16 %v66
  %v203 = vunpack.c.l.b16 %v67
  %v204 = vunpack.c.l.b16 %v68
  %v205 = vunpack.c.l.b16 %v69
  %v206 = vunpack.c.l.b16 %v70
  %v207 = vunpack.c.l.b16 %v71
  %v208 = vunpack.c.l.b16 %v72
  %v209 = vunpack.c.l.b16 %v73
  %v210 = vunpack.c.l.b16 %v74
  %v211 = vpack.c.b16 %v154, %v153
  %v212 = vpack.c.b16 %v156, %v155
  %v213 = vpack.c.b16 %v158, %v157
  %v214 = vpack.c.b16 %v160, %v159
  %v215 = vpack.c.b16 %v162, %v161
  %v216 = vpack.c.b16 %v164, %v163
  %v217 = vpack.c.b16 %v166, %v165
  %v218 = vpack.c.b16 %v168, %v167
  %v219 = vpack.c.b16 %v170, %v169
  %v220 = vpack.c.b16 %v172, %v171
  %v221 = vpack.c.b16 %v174, %v173
  %v222 = vpack.c.b16 %v176, %v175
  %v223 = vpack.c.b16 %v178, %v177
  %v224 = vpack.c.b16 %v180, %v179
  %v225 = vpack.c.b16 %v182, %v181
  %v226 = vpack.c.b16 %v184, %v183
  %v227 = vpack.c.b16 %v186, %v185
  %v228 = vpack.c.b16 %v188, %v187
  %v229 = vpack.c.b16 %v190, %v189
  %v230 = vpack.c.b16 %v192, %v191
  %v231 = vpack.c.b16 %v194, %v193
  %v232 = vpack.c.b16 %v196, %v195
  %v233 = vpack.c.b16 %v198, %v197
  %v234 = vpack.c.b16 %v200, %v199
  %v235 = vpack.c.b16 %v202, %v201
  %v236 = vpack.c.b16 %v204, %v203
  %v237 = vpack.c.b16 %v206, %v205
  %v238 = vpack.c.b16 %v208, %v207
  %v239 = vpack.c.b16 %v210, %v209
  %vm269 = vcmask 654336
  %v271 = vsel %vm269, %v91, 0
  %273 = vmatprep.subr.bf16.mxu0 0
  %274 = vmatpush1.bf16.msra.mxu0 %v211
  %275 = vmatprep.subr.bf16.mxu0 0
  %276 = vmatpush1.bf16.msra.mxu0 %v212
  %277 = vmatprep.subr.bf16.mxu0 0
  %278 = vmatpush1.bf16.msra.mxu0 %v213
  %279 = vmatprep.subr.bf16.mxu0 0
  %280 = vmatpush1.bf16.msra.mxu0 %v214
  %281 = vmatprep.subr.bf16.mxu0 0
  %282 = vmatpush1.bf16.msra.mxu0 %v215
  %283 = vmatprep.subr.bf16.mxu0 0
  %284 = vmatpush1.bf16.msra.mxu0 %v216
  %285 = vmatprep.subr.bf16.mxu0 0
  %286 = vmatpush1.bf16.msra.mxu0 %v217
  %287 = vmatprep.subr.bf16.mxu0 0
  %288 = vmatpush1.bf16.msra.mxu0 %v218
  %289 = vmatprep.subr.bf16.mxu0 0
  %290 = vmatpush1.bf16.msra.mxu0 %v219
  %291 = vmatprep.subr.bf16.mxu0 0
  %292 = vmatpush1.bf16.msra.mxu0 %v220
  %293 = vmatprep.subr.bf16.mxu0 0
  %294 = vmatpush1.bf16.msra.mxu0 %v221
  %295 = vmatprep.subr.bf16.mxu0 0
  %296 = vmatpush1.bf16.msra.mxu0 %v222
  %297 = vmatprep.subr.bf16.mxu0 0
  %298 = vmatpush1.bf16.msra.mxu0 %v223
  %299 = vmatprep.subr.bf16.mxu0 0
  %300 = vmatpush1.bf16.msra.mxu0 %v224
  %301 = vmatprep.subr.bf16.mxu0 0
  %302 = vmatpush1.bf16.msra.mxu0 %v225
  %303 = vmatprep.subr.bf16.mxu0 0
  %304 = vmatpush1.bf16.msra.mxu0 %v226
  %305 = vmatprep.mubr.bf16.mxu0 %v89
  %306 = vmatmul.mubr.bf16.gmra.mrb[0].mxu0 %v88
  %v307 = vpop.f32.mrb[0].mxu0
  %v308 = vadd.f32 %v80, %v307
  %v309 = vpop.f32.mrb[0].mxu0
  %v310 = vpop.f32.mrb[0].mxu0
  %v311 = vpop.f32.mrb[0].mxu0
  %312 = vdwg.mxu0
  %313 = vmatprep.subr.bf16.mxu0 0
  %314 = vmatpush1.bf16.msra.mxu0 %v227
  %315 = vmatprep.subr.bf16.mxu0 0
  %316 = vmatpush1.bf16.msra.mxu0 %v228
  %317 = vmatprep.subr.bf16.mxu0 0
  %318 = vmatpush1.bf16.msra.mxu0 %v229
  %319 = vmatprep.subr.bf16.mxu0 0
  %320 = vmatpush1.bf16.msra.mxu0 %v230
  %321 = vmatprep.subr.bf16.mxu0 0
  %322 = vmatpush1.bf16.msra.mxu0 %v231
  %323 = vmatprep.subr.bf16.mxu0 0
  %324 = vmatpush1.bf16.msra.mxu0 %v232
  %325 = vmatprep.subr.bf16.mxu0 0
  %326 = vmatpush1.bf16.msra.mxu0 %v233
  %327 = vmatprep.subr.bf16.mxu0 0
  %328 = vmatpush1.bf16.msra.mxu0 %v234
  %329 = vmatprep.subr.bf16.mxu0 0
  %330 = vmatpush1.bf16.msra.mxu0 %v235
  %331 = vmatprep.subr.bf16.mxu0 0
  %332 = vmatpush1.bf16.msra.mxu0 %v236
  %333 = vmatprep.subr.bf16.mxu0 0
  %334 = vmatpush1.bf16.msra.mxu0 %v237
  %335 = vmatprep.subr.bf16.mxu0 0
  %336 = vmatpush1.bf16.msra.mxu0 %v238
  %337 = vmatprep.subr.bf16.mxu0 0
  %338 = vmatpush1.bf16.msra.mxu0 %v239
  %339 = vmatprep.subr.bf16.mxu0 0
  %340 = vmatpush1.bf16.msra.mxu0 0
  %341 = vmatprep.subr.bf16.mxu0 0
  %342 = vmatpush1.bf16.msra.mxu0 0
  %343 = vmatprep.subr.bf16.mxu0 0
  %344 = vmatpush1.bf16.msra.mxu0 0
  %345 = vmatprep.mubr.bf16.mxu0 %v271
  %346 = vmatmul.mubr.bf16.gmra.mrb[0].mxu0 %v90
  %v347 = vpop.f32.mrb[0].mxu0
  %v348 = vadd.f32 %v308, %v347
  %v349 = vpop.f32.mrb[0].mxu0
  %v350 = vpop.f32.mrb[0].mxu0
  %v351 = vpop.f32.mrb[0].mxu0
  %352 = vdwg.mxu0
  %v353 = vmax.f32 %v348, 0.0
  %354 = vst [vmem:[%s3] sm:$0xff] %v353
  // Predicated region
  $region14: #{_pipeline.7} parent=0 // pred_check
    _
  $region15: #{_pipeline.7} parent=0 // pred_check_branch
    %356 = sbr.rel (0) target = $region17
  $region16: #{_pipeline.7} parent=0 // pred_region
    _
  $region17: #{_pipeline.7} parent=0 // pred_fallthru
    _
  // Predicated region
  $region18: #{_pipeline.7} parent=0 // pred_check
    _
  $region19: #{_pipeline.7} parent=0 // pred_check_branch
    %358 = sbr.rel (0) target = $region21
  $region20: #{_pipeline.7} parent=0 // pred_region
    _
  $region21: #{_pipeline.7} parent=0 // pred_fallthru
    _

// kernel: custom-call.10
$region0: #{custom-call.10}
  %s0 = inlined_call_operand.vmem [shape: u32[64,8], index: 0, kind: output, shape index: {}]

// kernel: squeeze.6
$region0: #{squeeze.6}
  %s0 = inlined_call_operand.vmem [shape: f32[512], index: 0, kind: input, shape index: {}]
  %s1 = inlined_call_operand.vmem [shape: f32[64,8], index: 1, kind: output, shape index: {}]
  $region1: #{squeeze.6} parent=0
    #allocation0 [shape = 'u8[4096]{0}', space=vmem, size = 0x1000, scoped, tag = 'scoped mem for input reshape']
    %s3 = sshllo.u32 0, 4
    %v4 = vld [vmem:[%s0] sm:%s3]
    %5 = vst [vmem:[#allocation0] sm:%s3] %v4
    %v6 = vld [vmem:[#allocation0] sm:$0xf]
    %vm7 = vcmask 64512
    %8 = vst.msk [vmem:[%s1] ss:$16 sm:$0x3] %vm7, %v6
    %9 = vst.msk [vmem:[%s1] ss:$16 sm:$0xc] %vm7, %v6
    %v10 = vld [vmem:[#allocation0] sm:$0xf]
    %11 = vrot.lane.b32.xlu0 %v10, 120
    %v12 = vpop.permute.xlu0 %11
    %vm13 = vcmask 64512
    %s14 = scalar_lea.vmem %s1, 1
    %15 = vst.msk [vmem:[%s14] ss:$16 sm:$0x3] %vm13, %v12
    %s16 = scalar_lea.vmem %s1, 1
    %17 = vst.msk [vmem:[%s16] ss:$16 sm:$0xc] %vm13, %v12
    %v18 = vld [vmem:[#allocation0] sm:$0xf]
    %19 = vrot.lane.b32.xlu0 %v18, 112
    %v20 = vpop.permute.xlu0 %19
    %vm21 = vcmask 64512
    %s22 = scalar_lea.vmem %s1, 2
    %23 = vst.msk [vmem:[%s22] ss:$16 sm:$0x3] %vm21, %v20
    %s24 = scalar_lea.vmem %s1, 2
    %25 = vst.msk [vmem:[%s24] ss:$16 sm:$0xc] %vm21, %v20
    %v26 = vld [vmem:[#allocation0] sm:$0xf]
    %27 = vrot.lane.b32.xlu0 %v26, 104
    %v28 = vpop.permute.xlu0 %27
    %vm29 = vcmask 64512
    %s30 = scalar_lea.vmem %s1, 3
    %31 = vst.msk [vmem:[%s30] ss:$16 sm:$0x3] %vm29, %v28
    %s32 = scalar_lea.vmem %s1, 3
    %33 = vst.msk [vmem:[%s32] ss:$16 sm:$0xc] %vm29, %v28
    %v34 = vld [vmem:[#allocation0] sm:$0xf]
    %35 = vrot.lane.b32.xlu0 %v34, 96
    %v36 = vpop.permute.xlu0 %35
    %vm37 = vcmask 64512
    %s38 = scalar_lea.vmem %s1, 4
    %39 = vst.msk [vmem:[%s38] ss:$16 sm:$0x3] %vm37, %v36
    %s40 = scalar_lea.vmem %s1, 4
    %41 = vst.msk [vmem:[%s40] ss:$16 sm:$0xc] %vm37, %v36
    %v42 = vld [vmem:[#allocation0] sm:$0xf]
    %43 = vrot.lane.b32.xlu0 %v42, 88
    %v44 = vpop.permute.xlu0 %43
    %vm45 = vcmask 64512
    %s46 = scalar_lea.vmem %s1, 5
    %47 = vst.msk [vmem:[%s46] ss:$16 sm:$0x3] %vm45, %v44
    %s48 = scalar_lea.vmem %s1, 5
    %49 = vst.msk [vmem:[%s48] ss:$16 sm:$0xc] %vm45, %v44
    %v50 = vld [vmem:[#allocation0] sm:$0xf]
    %51 = vrot.lane.b32.xlu0 %v50, 80
    %v52 = vpop.permute.xlu0 %51
    %vm53 = vcmask 64512
    %s54 = scalar_lea.vmem %s1, 6
    %55 = vst.msk [vmem:[%s54] ss:$16 sm:$0x3] %vm53, %v52
    %s56 = scalar_lea.vmem %s1, 6
    %57 = vst.msk [vmem:[%s56] ss:$16 sm:$0xc] %vm53, %v52
    %v58 = vld [vmem:[#allocation0] sm:$0xf]
    %59 = vrot.lane.b32.xlu0 %v58, 72
    %v60 = vpop.permute.xlu0 %59
    %vm61 = vcmask 64512
    %s62 = scalar_lea.vmem %s1, 7
    %63 = vst.msk [vmem:[%s62] ss:$16 sm:$0x3] %vm61, %v60
    %s64 = scalar_lea.vmem %s1, 7
    %65 = vst.msk [vmem:[%s64] ss:$16 sm:$0xc] %vm61, %v60
    %v66 = vld [vmem:[#allocation0] sm:$0xf]
    %67 = vrot.lane.b32.xlu0 %v66, 64
    %v68 = vpop.permute.xlu0 %67
    %vm69 = vcmask 64512
    %s70 = scalar_lea.vmem %s1, 8
    %71 = vst.msk [vmem:[%s70] ss:$16 sm:$0x3] %vm69, %v68
    %s72 = scalar_lea.vmem %s1, 8
    %73 = vst.msk [vmem:[%s72] ss:$16 sm:$0xc] %vm69, %v68
    %v74 = vld [vmem:[#allocation0] sm:$0xf]
    %75 = vrot.lane.b32.xlu0 %v74, 56
    %v76 = vpop.permute.xlu0 %75
    %vm77 = vcmask 64512
    %s78 = scalar_lea.vmem %s1, 9
    %79 = vst.msk [vmem:[%s78] ss:$16 sm:$0x3] %vm77, %v76
    %s80 = scalar_lea.vmem %s1, 9
    %81 = vst.msk [vmem:[%s80] ss:$16 sm:$0xc] %vm77, %v76
    %v82 = vld [vmem:[#allocation0] sm:$0xf]
    %83 = vrot.lane.b32.xlu0 %v82, 48
    %v84 = vpop.permute.xlu0 %83
    %vm85 = vcmask 64512
    %s86 = scalar_lea.vmem %s1, 10
    %87 = vst.msk [vmem:[%s86] ss:$16 sm:$0x3] %vm85, %v84
    %s88 = scalar_lea.vmem %s1, 10
    %89 = vst.msk [vmem:[%s88] ss:$16 sm:$0xc] %vm85, %v84
    %v90 = vld [vmem:[#allocation0] sm:$0xf]
    %91 = vrot.lane.b32.xlu0 %v90, 40
    %v92 = vpop.permute.xlu0 %91
    %vm93 = vcmask 64512
    %s94 = scalar_lea.vmem %s1, 11
    %95 = vst.msk [vmem:[%s94] ss:$16 sm:$0x3] %vm93, %v92
    %s96 = scalar_lea.vmem %s1, 11
    %97 = vst.msk [vmem:[%s96] ss:$16 sm:$0xc] %vm93, %v92
    %v98 = vld [vmem:[#allocation0] sm:$0xf]
    %99 = vrot.lane.b32.xlu0 %v98, 32
    %v100 = vpop.permute.xlu0 %99
    %vm101 = vcmask 64512
    %s102 = scalar_lea.vmem %s1, 12
    %103 = vst.msk [vmem:[%s102] ss:$16 sm:$0x3] %vm101, %v100
    %s104 = scalar_lea.vmem %s1, 12
    %105 = vst.msk [vmem:[%s104] ss:$16 sm:$0xc] %vm101, %v100
    %v106 = vld [vmem:[#allocation0] sm:$0xf]
    %107 = vrot.lane.b32.xlu0 %v106, 24
    %v108 = vpop.permute.xlu0 %107
    %vm109 = vcmask 64512
    %s110 = scalar_lea.vmem %s1, 13
    %111 = vst.msk [vmem:[%s110] ss:$16 sm:$0x3] %vm109, %v108
    %s112 = scalar_lea.vmem %s1, 13
    %113 = vst.msk [vmem:[%s112] ss:$16 sm:$0xc] %vm109, %v108
    %v114 = vld [vmem:[#allocation0] sm:$0xf]
    %115 = vrot.lane.b32.xlu0 %v114, 16
    %v116 = vpop.permute.xlu0 %115
    %vm117 = vcmask 64512
    %s118 = scalar_lea.vmem %s1, 14
    %119 = vst.msk [vmem:[%s118] ss:$16 sm:$0x3] %vm117, %v116
    %s120 = scalar_lea.vmem %s1, 14
    %121 = vst.msk [vmem:[%s120] ss:$16 sm:$0xc] %vm117, %v116
    %v122 = vld [vmem:[#allocation0] sm:$0xf]
    %123 = vrot.lane.b32.xlu0 %v122, 8
    %v124 = vpop.permute.xlu0 %123
    %vm125 = vcmask 64512
    %s126 = scalar_lea.vmem %s1, 15
    %127 = vst.msk [vmem:[%s126] ss:$16 sm:$0x3] %vm125, %v124
    %s128 = scalar_lea.vmem %s1, 15
    %129 = vst.msk [vmem:[%s128] ss:$16 sm:$0xc] %vm125, %v124

// kernel: _pipeline.11
$region0: #{_pipeline.11}
  #allocation0 [shape = 'u32[]', space=smem, size = 0x4, offset = 0x4, fixed_abs, tag = 'smem constant byte address 0x4 - core index']
  #allocation1 [shape = 'u32[144,128]{1,0:T(1,128)}', space=vmem, size = 0x12000, scoped, tag = 'internal scratch']
  %s0 = inlined_call_operand.vmem [shape: f32[32,64], index: 0, kind: input, shape index: {}]
  %s1 = inlined_call_operand.vmem [shape: f32[8,64], index: 1, kind: input, shape index: {}]
  %s2 = inlined_call_operand.vmem [shape: f32[8,64], index: 2, kind: input, shape index: {}]
  %s3 = inlined_call_operand.vmem [shape: f32[3,64], index: 3, kind: input, shape index: {}]
  %s4 = inlined_call_operand.vmem [shape: f32[8,8], index: 4, kind: input, shape index: {}]
  %s5 = inlined_call_operand.vmem [shape: f32[8,64], index: 5, kind: output, shape index: {0}]
  %s6 = inlined_call_operand.vmem [shape: f32[8,64], index: 6, kind: output, shape index: {1}]
  %7 = xla_tuple %s5, %s6
  %s8 = sld [smem:[#allocation0]]
  $region38: #{_pipeline.11} parent=0
    _
  %s10 = ssub.s32 1, %s8
  %s11 = scalar_select 0, %s10, %s8
  // Predicated region
  $region2: #{_pipeline.11} parent=0 // pred_check
    _
  $region3: #{_pipeline.11} parent=0 // pred_check_branch
    %13 = sbr.rel (0) target = $region5
  $region4: #{_pipeline.11} parent=0 // pred_region
    _
  $region5: #{_pipeline.11} parent=0 // pred_fallthru
    _
  // Predicated region
  $region6: #{_pipeline.11} parent=0 // pred_check
    _
  $region7: #{_pipeline.11} parent=0 // pred_check_branch
    %15 = sbr.rel (0) target = $region9
  $region8: #{_pipeline.11} parent=0 // pred_region
    _
  $region9: #{_pipeline.11} parent=0 // pred_fallthru
    _
  // Predicated region
  $region10: #{_pipeline.11} parent=0 // pred_check
    _
  $region11: #{_pipeline.11} parent=0 // pred_check_branch
    %17 = sbr.rel (0) target = $region13
  $region12: #{_pipeline.11} parent=0 // pred_region
    _
  $region13: #{_pipeline.11} parent=0 // pred_fallthru
    _
  // Predicated region
  $region14: #{_pipeline.11} parent=0 // pred_check
    _
  $region15: #{_pipeline.11} parent=0 // pred_check_branch
    %19 = sbr.rel (0) target = $region17
  $region16: #{_pipeline.11} parent=0 // pred_region
    _
  $region17: #{_pipeline.11} parent=0 // pred_fallthru
    _
  // Predicated region
  $region18: #{_pipeline.11} parent=0 // pred_check
    _
  $region19: #{_pipeline.11} parent=0 // pred_check_branch
    %21 = sbr.rel (0) target = $region21
  $region20: #{_pipeline.11} parent=0 // pred_region
    _
  $region21: #{_pipeline.11} parent=0 // pred_fallthru
    _
  %v22 = vld [vmem:[%s0] sm:$0xff]
  %v23 = vld [vmem:[%s0 + $0x8] sm:$0xff]
  %v24 = vld [vmem:[%s0 + $0x10] sm:$0xff]
  %v25 = vld [vmem:[%s0 + $0x18] sm:$0xff]
  %v26 = vld [vmem:[%s1] sm:$0xff]
  %v27 = vld [vmem:[%s2] sm:$0xff]
  %v28 = vld [vmem:[%s3] sm:$0x7]
  %v29 = vld [vmem:[%s4] sm:$0xff]
  %v30 = vmax.f32 %v25, 0.0
  %v31 = vadd.f32 %v30, 1e-06
  %v32 = vmul.f32 %v31, %v27
  %v33 = vsub.f32 0.0, %v32
  %v34 = vmul.f32 %v33, 1.442695
  %v35 = vpow.pop %v34
  %v36 = vsub.f32 1.0, %v35
  %vm37 = vcmask 64512
  %v39 = vsel %vm37, %v29, 0
  %41 = vmatprep.subr.mxu0 0.0
  %42 = vmatpush1.msra.mxu0 %v32
  %43 = vmatprep.subr.mxu0 0.0
  %44 = vmatpush1.msra.mxu0 0.0
  %45 = vmatprep.subr.mxu0 0.0
  %46 = vmatpush1.msra.mxu0 0.0
  %47 = vmatprep.subr.mxu0 0.0
  %48 = vmatpush1.msra.mxu0 0.0
  %49 = vmatprep.subr.mxu0 0.0
  %50 = vmatpush1.msra.mxu0 0.0
  %51 = vmatprep.subr.mxu0 0.0
  %52 = vmatpush1.msra.mxu0 0.0
  %53 = vmatprep.subr.mxu0 0.0
  %54 = vmatpush1.msra.mxu0 0.0
  %55 = vmatprep.subr.mxu0 0.0
  %56 = vmatpush1.msra.mxu0 0.0
  %57 = vmatprep.subr.mxu0 0.0
  %58 = vmatpush1.msra.mxu0 0.0
  %59 = vmatprep.subr.mxu0 0.0
  %60 = vmatpush1.msra.mxu0 0.0
  %61 = vmatprep.subr.mxu0 0.0
  %62 = vmatpush1.msra.mxu0 0.0
  %63 = vmatprep.subr.mxu0 0.0
  %64 = vmatpush1.msra.mxu0 0.0
  %65 = vmatprep.subr.mxu0 0.0
  %66 = vmatpush1.msra.mxu0 0.0
  %67 = vmatprep.subr.mxu0 0.0
  %68 = vmatpush1.msra.mxu0 0.0
  %69 = vmatprep.subr.mxu0 0.0
  %70 = vmatpush1.msra.mxu0 0.0
  %71 = vmatprep.subr.mxu0 0.0
  %72 = vmatpush1.msra.mxu0 0.0
  %73 = vmatprep.subr.mxu0 0.0
  %74 = vmatpush1.msra.mxu0 0.0
  %75 = vmatprep.subr.mxu0 0.0
  %76 = vmatpush1.msra.mxu0 0.0
  %77 = vmatprep.subr.mxu0 0.0
  %78 = vmatpush1.msra.mxu0 0.0
  %79 = vmatprep.subr.mxu0 0.0
  %80 = vmatpush1.msra.mxu0 0.0
  %81 = vmatprep.subr.mxu0 0.0
  %82 = vmatpush1.msra.mxu0 0.0
  %83 = vmatprep.subr.mxu0 0.0
  %84 = vmatpush1.msra.mxu0 0.0
  %85 = vmatprep.subr.mxu0 0.0
  %86 = vmatpush1.msra.mxu0 0.0
  %87 = vmatprep.subr.mxu0 0.0
  %88 = vmatpush1.msra.mxu0 0.0
  %89 = vmatprep.subr.mxu0 0.0
  %90 = vmatpush1.msra.mxu0 0.0
  %91 = vmatprep.subr.mxu0 0.0
  %92 = vmatpush1.msra.mxu0 0.0
  %93 = vmatprep.subr.mxu0 0.0
  %94 = vmatpush1.msra.mxu0 0.0
  %95 = vmatprep.subr.mxu0 0.0
  %96 = vmatpush1.msra.mxu0 0.0
  %97 = vmatprep.subr.mxu0 0.0
  %98 = vmatpush1.msra.mxu0 0.0
  %99 = vmatprep.subr.mxu0 0.0
  %100 = vmatpush1.msra.mxu0 0.0
  %101 = vmatprep.subr.mxu0 0.0
  %102 = vmatpush1.msra.mxu0 0.0
  %103 = vmatprep.subr.mxu0 0.0
  %104 = vmatpush1.msra.mxu0 0.0
  %105 = vmatprep.mubr.f32.mxu0 0.0
  %106 = vmatmul.mubr.f32.gmra.mrb[0].mxu0 %v39
  %v107 = vpop.f32.mrb[0].mxu0
  %v108 = vadd.f32 0.0, %v107
  %v109 = vpop.f32.mrb[0].mxu0
  %110 = vdwg.mxu0
  %v111 = vsub.f32 0.0, %v108
  %v112 = vmul.f32 %v111, 1.442695
  %v113 = vpow.pop %v112
  %v114 = vmul.f32 %v36, %v113
  %v115 = vlaneseq
  %v116 = vshrl.u32 %v115, 7
  %vm117 = vcmp.eq.s32.totalorder %v116, 7
  %v118 = vmul.f32 %v22, 0.5
  %v119 = vtanh.pop %v118
  %v120 = vadd.f32 %v119, 1.0
  %v121 = vmul.f32 %v120, 0.5
  %v122 = vlaneseq
  %v123 = vshrl.u32 %v122, 7
  %v124 = vsub.s32 0, %v123
  %v125 = vrot.slane %v28, %v124
  %v126 = vsel %vm117, %v125, %v121
  %v127 = vmul.f32 %v114, %v126
  %vm128 = vcmask 523264
  %v129 = vsel %vm128, %v127, 0.0
  %v130 = vrot.slane %v129, 4
  %v131 = vadd.f32 %v129, %v130
  %v132 = vrot.slane %v131, 2
  %v133 = vadd.f32 %v131, %v132
  %v134 = vrot.slane %v133, 1
  %v135 = vadd.f32 %v133, %v134
  %v136 = vmul.f32 %v23, 0.5
  %v137 = vtanh.pop %v136
  %v138 = vadd.f32 %v137, 1.0
  %v139 = vmul.f32 %v138, 0.5
  %v140 = vlaneseq
  %v141 = vshrl.u32 %v140, 7
  %v142 = vsub.s32 1, %v141
  %v143 = vrot.slane %v28, %v142
  %v144 = vsel %vm117, %v143, %v139
  %v145 = vmul.f32 %v114, %v144
  %v146 = vsel %vm128, %v145, 0.0
  %v147 = vrot.slane %v146, 4
  %v148 = vadd.f32 %v146, %v147
  %v149 = vrot.slane %v148, 2
  %v150 = vadd.f32 %v148, %v149
  %v151 = vrot.slane %v150, 1
  %v152 = vadd.f32 %v150, %v151
  %v153 = vmul.f32 %v24, 0.5
  %v154 = vtanh.pop %v153
  %v155 = vadd.f32 %v154, 1.0
  %v156 = vmul.f32 %v155, 0.5
  %v157 = vlaneseq
  %v158 = vshrl.u32 %v157, 7
  %v159 = vsub.s32 2, %v158
  %v160 = vrot.slane %v28, %v159
  %v161 = vsel %vm117, %v160, %v156
  %v162 = vmul.f32 %v114, %v161
  %v163 = vsel %vm128, %v162, 0.0
  %v164 = vrot.slane %v163, 4
  %v165 = vadd.f32 %v163, %v164
  %v166 = vrot.slane %v165, 2
  %v167 = vadd.f32 %v165, %v166
  %v168 = vrot.slane %v167, 1
  %v169 = vadd.f32 %v167, %v168
  %v170 = vsel %vm128, %v114, 0.0
  %v171 = vrot.slane %v170, 4
  %v172 = vadd.f32 %v170, %v171
  %v173 = vrot.slane %v172, 2
  %v174 = vadd.f32 %v172, %v173
  %v175 = vrot.slane %v174, 1
  %v176 = vadd.f32 %v174, %v175
  %v177 = vmul.f32 %v114, %v26
  %v178 = vsel %vm128, %v177, 0.0
  %v179 = vrot.slane %v178, 4
  %v180 = vadd.f32 %v178, %v179
  %v181 = vrot.slane %v180, 2
  %v182 = vadd.f32 %v180, %v181
  %v183 = vrot.slane %v182, 1
  %v184 = vadd.f32 %v182, %v183
  %v185 = vmax.f32 %v176, 1e-10
  %v186 = vrcp.pop %v185
  %v187 = vmul.f32 %v184, %v186
  %v188 = vmax.f32 %v187, 1e-10
  %v189 = vrcp.pop %v188
  %v190 = vmul.f32 1.0, %v189
  %vm191 = vcmask 1040384
  %v192 = vsel %vm191, %v135, %v152
  %vm193 = vcmask 1041408
  %v194 = vsel %vm193, %v192, %v169
  %vm195 = vcmask 1042432
  %v196 = vsel %vm195, %v194, %v190
  %vm197 = vcmask 1043456
  %v198 = vsel %vm197, %v196, %v176
  %vm199 = vcmask 1044480
  %v200 = vsel %vm199, %v198, %v184
  %vm201 = vcmask 1045504
  %v202 = vsel %vm201, %v200, 0.0
  %vm203 = vcmask 1046528
  %v204 = vsel %vm203, %v202, 0.0
  %205 = vst.msk [vmem:[%s5] sm:$0xff] %vm128, %v204
  %206 = vst.msk [vmem:[%s6] sm:$0xff] %vm128, %v114
  // Predicated region
  $region22: #{_pipeline.11} parent=0 // pred_check
    _
  $region23: #{_pipeline.11} parent=0 // pred_check_branch
    %208 = sbr.rel (0) target = $region25
  $region24: #{_pipeline.11} parent=0 // pred_region
    _
  $region25: #{_pipeline.11} parent=0 // pred_fallthru
    _
  // Predicated region
  $region26: #{_pipeline.11} parent=0 // pred_check
    _
  $region27: #{_pipeline.11} parent=0 // pred_check_branch
    %210 = sbr.rel (0) target = $region29
  $region28: #{_pipeline.11} parent=0 // pred_region
    _
  $region29: #{_pipeline.11} parent=0 // pred_fallthru
    _
  // Predicated region
  $region30: #{_pipeline.11} parent=0 // pred_check
    _
  $region31: #{_pipeline.11} parent=0 // pred_check_branch
    %212 = sbr.rel (0) target = $region33
  $region32: #{_pipeline.11} parent=0 // pred_region
    _
  $region33: #{_pipeline.11} parent=0 // pred_fallthru
    _
  // Predicated region
  $region34: #{_pipeline.11} parent=0 // pred_check
    _
  $region35: #{_pipeline.11} parent=0 // pred_check_branch
    %214 = sbr.rel (0) target = $region37
  $region36: #{_pipeline.11} parent=0 // pred_region
    _
  $region37: #{_pipeline.11} parent=0 // pred_fallthru
    _

// kernel: _pipeline.10
$region0: #{_pipeline.10}
  #allocation0 [shape = 'u32[]', space=smem, size = 0x4, offset = 0x4, fixed_abs, tag = 'smem constant byte address 0x4 - core index']
  #allocation1 [shape = 'u32[144,128]{1,0:T(1,128)}', space=vmem, size = 0x12000, scoped, tag = 'internal scratch']
  %s0 = inlined_call_operand.vmem [shape: f32[8,512], index: 0, kind: input, shape index: {}]
  %s1 = inlined_call_operand.vmem [shape: bf16[65,549], index: 1, kind: input, shape index: {}]
  %s2 = inlined_call_operand.vmem [shape: f32[65,9], index: 2, kind: input, shape index: {}]
  %s3 = inlined_call_operand.vmem [shape: f32[8,512], index: 3, kind: output, shape index: {}]
  %s4 = sld [smem:[#allocation0]]
  $region45: #{_pipeline.10} parent=0
    _
  %s6 = ssub.s32 1, %s4
  %s7 = scalar_select 0, %s6, %s4
  loop: start=0, step=1, limit=4
  $region2: #{_pipeline.10} parent=0 // loop_pre_header
    _
  $region3: #{_pipeline.10} parent=0 // loop_header
    %s9 = sphi 0, %s13
    %p10 = scmp.ge.s32.totalorder %s9, 4
    %s19 = sphi 0, %s21
    %s22 = sphi 0, %s19
    %s23 = sphi 0, %s22
    %s39 = sphi 0, %s23
    %s43 = sphi 0, %s43
    %s45 = sphi 0, %s43
    %s46 = sphi 0, %s45
    %s60 = sphi 0, %s46
    %s64 = sphi 0, %s64
    %s66 = sphi 0, %s64
    %s67 = sphi 0, %s66
    %s81 = sphi 0, %s67
    %s87 = sphi 0, %s89
    %s90 = sphi 0, %s87
    %s91 = sphi 0, %s90
    %s107 = sphi 0, %s91
  $region4: #{_pipeline.10} parent=0 // loop_header_branch
    %12 = sbr.rel (%p10) target = $region8
  $region5: #{_pipeline.10} parent=0 // loop_body
    %s14 = ssub.s32 %s9, 1
    %s15 = ssub.s32 %s9, 2
    %s16 = sadd.s32 %s9, 1
    %s17 = ssub.s32 %s9, %s16
    %p18 = scmp.eq.s32.totalorder %s17, 0
    %s20 = sadd.s32 %s19, 1
    %s21 = scalar_select %p18, %s19, %s20
    %p24 = pneg %p18
    %p25 = scmp.eq.s32.totalorder %s9, 1
    %p26 = por %p24, %p25
    %p27 = scmp.ne.s32.totalorder %s19, %s22
    %p28 = scmp.eq.s32.totalorder %s9, 0
    %p29 = por %p27, %p28
    %p30 = scmp.ne.s32.totalorder %s19, %s22
    %p31 = scmp.eq.s32.totalorder %s14, 1
    %p32 = por %p30, %p31
    %p33 = scmp.ne.s32.totalorder %s22, %s23
    %p34 = scmp.eq.s32.totalorder %s14, 0
    %p35 = por %p33, %p34
    %p36 = scmp.ne.s32.totalorder %s22, %s23
    %p37 = scmp.eq.s32.totalorder %s15, 1
    %p38 = por %p36, %p37
    %p40 = scmp.ne.s32.totalorder %s23, %s39
    %p41 = scmp.eq.s32.totalorder %s15, 0
    %p42 = por %p40, %p41
    %s44 = sadd.s32 %s43, 1
    %p47 = scmp.eq.s32.totalorder %s9, 1
    %p48 = scmp.ne.s32.totalorder %s43, %s45
    %p49 = scmp.eq.s32.totalorder %s9, 0
    %p50 = por %p48, %p49
    %p51 = scmp.ne.s32.totalorder %s43, %s45
    %p52 = scmp.eq.s32.totalorder %s14, 1
    %p53 = por %p51, %p52
    %p54 = scmp.ne.s32.totalorder %s45, %s46
    %p55 = scmp.eq.s32.totalorder %s14, 0
    %p56 = por %p54, %p55
    %p57 = scmp.ne.s32.totalorder %s45, %s46
    %p58 = scmp.eq.s32.totalorder %s15, 1
    %p59 = por %p57, %p58
    %p61 = scmp.ne.s32.totalorder %s46, %s60
    %p62 = scmp.eq.s32.totalorder %s15, 0
    %p63 = por %p61, %p62
    %s65 = sadd.s32 %s64, 1
    %p68 = scmp.eq.s32.totalorder %s9, 1
    %p69 = scmp.ne.s32.totalorder %s64, %s66
    %p70 = scmp.eq.s32.totalorder %s9, 0
    %p71 = por %p69, %p70
    %p72 = scmp.ne.s32.totalorder %s64, %s66
    %p73 = scmp.eq.s32.totalorder %s14, 1
    %p74 = por %p72, %p73
    %p75 = scmp.ne.s32.totalorder %s66, %s67
    %p76 = scmp.eq.s32.totalorder %s14, 0
    %p77 = por %p75, %p76
    %p78 = scmp.ne.s32.totalorder %s66, %s67
    %p79 = scmp.eq.s32.totalorder %s15, 1
    %p80 = por %p78, %p79
    %p82 = scmp.ne.s32.totalorder %s67, %s81
    %p83 = scmp.eq.s32.totalorder %s15, 0
    %p84 = por %p82, %p83
    %s85 = ssub.s32 %s9, %s16
    %p86 = scmp.eq.s32.totalorder %s85, 0
    %s88 = sadd.s32 %s87, 1
    %s89 = scalar_select %p86, %s87, %s88
    %p92 = pneg %p86
    %p93 = scmp.eq.s32.totalorder %s9, 1
    %p94 = por %p92, %p93
    %p95 = scmp.ne.s32.totalorder %s87, %s90
    %p96 = scmp.eq.s32.totalorder %s9, 0
    %p97 = por %p95, %p96
    %p98 = scmp.ne.s32.totalorder %s87, %s90
    %p99 = scmp.eq.s32.totalorder %s14, 1
    %p100 = por %p98, %p99
    %p101 = scmp.ne.s32.totalorder %s90, %s91
    %p102 = scmp.eq.s32.totalorder %s14, 0
    %p103 = por %p101, %p102
    %p104 = scmp.ne.s32.totalorder %s90, %s91
    %p105 = scmp.eq.s32.totalorder %s15, 1
    %p106 = por %p104, %p105
    %p108 = scmp.ne.s32.totalorder %s91, %s107
    %p109 = scmp.eq.s32.totalorder %s15, 0
    %p110 = por %p108, %p109
    %p111 = scmp.le.s32.totalorder 1, %s9
    %p112 = scmp.lt.s32.totalorder %s9, 3
    %p113 = pnand %p111, %p112
    %p114 = pneg %p113
    // Predicated region
    $region9: #{_pipeline.10} parent=5 // pred_check
      _
    $region10: #{_pipeline.10} parent=5 // pred_check_branch
      %116 = sbr.rel (%p113) target = $region12
    $region11: #{_pipeline.10} parent=5 // pred_region
      %s117 = ssub.s32 %s9, 1
      // Predicated region
      $region13: #{_pipeline.10} parent=11 // pred_check
        %p118 = pneg %p56
      $region14: #{_pipeline.10} parent=11 // pred_check_branch
        %120 = sbr.rel (%p118) target = $region16
      $region15: #{_pipeline.10} parent=11 // pred_region
        _
      $region16: #{_pipeline.10} parent=11 // pred_fallthru
        _
      // Predicated region
      $region17: #{_pipeline.10} parent=11 // pred_check
        %p121 = pneg %p77
      $region18: #{_pipeline.10} parent=11 // pred_check_branch
        %123 = sbr.rel (%p121) target = $region20
      $region19: #{_pipeline.10} parent=11 // pred_region
        _
      $region20: #{_pipeline.10} parent=11 // pred_fallthru
        _
    $region12: #{_pipeline.10} parent=5 // pred_fallthru
      _
    %p124 = scmp.lt.s32.totalorder %s9, 2
    // Predicated region
    $region21: #{_pipeline.10} parent=5 // pred_check
      %p125 = pneg %p124
    $region22: #{_pipeline.10} parent=5 // pred_check_branch
      %127 = sbr.rel (%p125) target = $region24
    $region23: #{_pipeline.10} parent=5 // pred_region
      // Predicated region
      $region25: #{_pipeline.10} parent=23 // pred_check
        %p128 = pneg %p29
      $region26: #{_pipeline.10} parent=23 // pred_check_branch
        %130 = sbr.rel (%p128) target = $region28
      $region27: #{_pipeline.10} parent=23 // pred_region
        %s131 = smul.u32 2, %s9
        %p132 = scmp.lt.s32.totalorder %s131, 3
        %s133 = scalar_select %p132, %s131, 3
        %s134 = smul.addr %s133, 8
        %s135 = scalar_lea.vmem %s0, %s134
        %s136 = smul.u32 2, %s9
      $region28: #{_pipeline.10} parent=23 // pred_fallthru
        _
    $region24: #{_pipeline.10} parent=5 // pred_fallthru
      _
    %p137 = scmp.le.s32.totalorder 1, %s9
    %p138 = scmp.lt.s32.totalorder %s9, 3
    %p139 = pnand %p137, %p138
    %p140 = pneg %p139
    // Predicated region
    $region29: #{_pipeline.10} parent=5 // pred_check
      _
    $region30: #{_pipeline.10} parent=5 // pred_check_branch
      %142 = sbr.rel (%p139) target = $region32
    $region31: #{_pipeline.10} parent=5 // pred_region
      %s143 = ssub.s32 %s9, 1
      %s144 = smul.u32 2, %s14
      %p145 = scmp.lt.s32.totalorder %s144, 3
      %s146 = scalar_select %p145, %s144, 3
      %s147 = smul.addr %s146, 8
      %s148 = scalar_lea.vmem %s0, %s147
      %p149 = pneg %p35
      %p150 = pneg %p32
      %p151 = pneg %p56
      %p152 = pneg %p53
      %p153 = pneg %p77
      %p154 = pneg %p74
      %p155 = pneg %p103
      %p156 = pneg %p100
      %s157 = smul.u32 2, %s14
      %p158 = scmp.lt.s32.totalorder %s157, 3
      %s159 = scalar_select %p158, %s157, 3
      %s160 = smul.addr %s159, 8
      %s161 = scalar_lea.vmem %s3, %s160
      %s162 = smul.u32 2, %s14
      %p163 = scmp.lt.s32.totalorder %s162, 3
      %s164 = scalar_select %p163, %s162, 3
      %s165 = smul.addr %s164, 8
      %s166 = scalar_lea.vmem %s0, %s165
      %s167 = smul.u32 2, %s14
      %s168 = smul.u32 2, %s14
      %p169 = scmp.lt.s32.totalorder %s168, 3
      %s170 = scalar_select %p169, %s168, 3
      %s171 = smul.addr %s170, 8
      %s172 = scalar_lea.vmem %s3, %s171
      %s173 = smul.u32 2, %s14
      %v175 = vld [vmem:[%s1] sm:$0xff]
      %v176 = vld [vmem:[%s1 + $0x8] sm:$0xff]
      %v177 = vld [vmem:[%s1 + $0x10] sm:$0xf]
      %v178 = vld [vmem:[%s1 + $0x14] sm:$0xff]
      %v179 = vld [vmem:[%s1 + $0x1c] sm:$0xff]
      %v180 = vld [vmem:[%s1 + $0x24] sm:$0xf]
      %v181 = vld [vmem:[%s1 + $0x28] sm:$0xff]
      %v182 = vld [vmem:[%s1 + $0x30] sm:$0xff]
      %v183 = vld [vmem:[%s1 + $0x38] sm:$0xf]
      %v184 = vld [vmem:[%s1 + $0x3c] sm:$0xff]
      %v185 = vld [vmem:[%s1 + $0x44] sm:$0xff]
      %v186 = vld [vmem:[%s1 + $0x4c] sm:$0xf]
      %v187 = vld [vmem:[%s1 + $0x50] sm:$0xff]
      %v188 = vld [vmem:[%s1 + $0x58] sm:$0xff]
      %v189 = vld [vmem:[%s1 + $0x64] sm:$0xff]
      %v190 = vld [vmem:[%s1 + $0x6c] sm:$0xff]
      %v191 = vld [vmem:[%s1 + $0x78] sm:$0xff]
      %v192 = vld [vmem:[%s1 + $0x80] sm:$0xff]
      %v193 = vld [vmem:[%s1 + $0x8c] sm:$0xff]
      %v194 = vld [vmem:[%s1 + $0x94] sm:$0xff]
      %v195 = vld [vmem:[%s1 + $0xa8] sm:$0x11]
      %v196 = vld [vmem:[%s2] sm:$0xff]
      %v197 = vld [vmem:[%s2 + $0x8] sm:$0xff]
      %v198 = vld [vmem:[%s2 + $0x10] sm:$0xff]
      %v199 = vld [vmem:[%s2 + $0x18] sm:$0xff]
      %v200 = vld [vmem:[%s2 + $0x20] sm:$0xff]
      %v201 = vld [vmem:[%s2 + $0x28] sm:$0xff]
      %v202 = vld [vmem:[%s2 + $0x30] sm:$0xff]
      %v203 = vld [vmem:[%s2 + $0x38] sm:$0xff]
      %v204 = vld [vmem:[%s2 + $0x40] sm:$0x1]
      %v205 = vld [vmem:[%s166] sm:$0xff]
      %v206 = vld [vmem:[%s166 + $0x8] sm:$0xff]
      %v207 = vmul.f32 %v205, 2.0
      %v208 = vmul.f32 %v206, 2.0
      %v209 = vmul.f32 %v205, 4.0
      %v210 = vmul.f32 %v206, 4.0
      %v211 = vmul.f32 %v205, 8.0
      %v212 = vmul.f32 %v206, 8.0
      %v215 = vrot.slane %v207, 5
      %v216 = vrot.slane %v208, 5
      %v221 = vrot.slane %v209, 2
      %v222 = vrot.slane %v210, 2
      %v227 = vrot.slane %v211, 7
      %v228 = vrot.slane %v212, 7
      %vm231 = vcmask 1042432
      %v232 = vsel %vm231, %v205, %v215
      %v233 = vsel %vm231, %v206, %v216
      %vm234 = vcmask 1045504
      %v235 = vsel %vm234, %v232, %v221
      %v236 = vsel %vm234, %v233, %v222
      %vm237 = vcmask 1040384
      %v238 = vsel %vm237, %v221, %v227
      %v239 = vsel %vm237, %v222, %v228
      %v240 = vand.u32 2147483647, %v235
      %vm241 = vcmp.le.f32.partialorder %v240, 0.7853982
      %vm242 = vcmp.lt.s32.totalorder %v235, 0
      %v243 = vand.u32 %v235, 2139095040
      %v244 = vshrl.u32 %v243, 23
      %v245 = vsub.s32 %v244, 127
      %v246 = vand.u32 2147483647, %v235
      %v247 = vand.u32 %v246, 8388607
      %v248 = vor.u32 %v247, 8388608
      %v249 = vsub.s32 0, %v248
      %v250 = vadd.s32 %v245, 1
      %vm251 = vcmp.gt.s32.totalorder %v250, 0
      %v252 = vsel %vm251, %v250, 0
      %v253 = vshrl.u32 %v252, 5
      %v254 = vand.u32 %v252, 31
      %v255 = vsub.s32 32, %v254
      %v256 = vshrl.u32 683565275, %v255
      %v257 = vshll.u32 683565275, %v254
      %v258 = vshrl.u32 2475754826, %v255
      %v259 = vor.u32 %v257, %v258
      %v260 = vshll.u32 2475754826, %v254
      %v261 = vshrl.u32 2131351028, %v255
      %v262 = vor.u32 %v260, %v261
      %v263 = vshll.u32 2131351028, %v254
      %v264 = vshrl.u32 2102212464, %v255
      %v265 = vor.u32 %v263, %v264
      %v266 = vshll.u32 2102212464, %v254
      %v267 = vshrl.u32 920167782, %v255
      %v268 = vor.u32 %v266, %v267
      %v269 = vshll.u32 920167782, %v254
      %v270 = vshrl.u32 1326507024, %v255
      %v271 = vor.u32 %v269, %v270
      %vm272 = vcmp.lt.s32.totalorder %v253, 1
      %vm273 = vcmp.lt.s32.totalorder %v253, 2
      %vm274 = vcmp.lt.s32.totalorder %v253, 3
      %vm275 = vcmp.lt.s32.totalorder %v253, 4
      %v276 = vsel %vm272, %v256, %v259
      %v277 = vsel %vm275, %v265, 2102212464
      %v278 = vsel %vm274, %v262, %v277
      %v279 = vsel %vm273, %v276, %v278
      %v280 = vsel %vm272, %v259, %v262
      %v281 = vsel %vm275, %v268, 920167782
      %v282 = vsel %vm274, %v265, %v281
      %v283 = vsel %vm273, %v280, %v282
      %v284 = vsel %vm272, %v262, %v265
      %v285 = vsel %vm275, %v271, 1326507024
      %v286 = vsel %vm274, %v268, %v285
      %v287 = vsel %vm273, %v284, %v286
      %v288 = vshll.u32 %v248, 8
      %v289 = vmul.u32.u64.compose %v288, %v287
      %v290 = vextract.low.u32 %v289
      %v291 = vextract.high.u32 %v289
      %v292 = vmul.u32.u64.compose %v288, %v283
      %v293 = vextract.low.u32 %v292
      %v294 = vextract.high.u32 %v292
      %v295 = vmul.u32 %v288, %v279
      %v296 = vadd.s32 %v291, %v293
      %vm297 = vc.u32 %v291, %v293
      %v298 = vadd.s32 %v294, 1
      %v299 = vsel %vm297, %v298, %v294
      %v300 = vadd.s32 %v295, %v299
      %v301 = vadd.s32 %v300, 536870912
      %v302 = vshrl.u32 %v301, 30
      %v303 = vshll.u32 %v302, 30
      %v304 = vsub.s32 %v300, %v303
      %vm305 = vcmp.lt.s32.totalorder %v304, 0
      %v306 = vsub.s32 0, %v304
      %v307 = vsel %vm305, %v306, %v304
      %v308 = vclz %v307
      %v309 = vsub.s32 %v308, 2
      %vm310 = vcmp.gt.s32.totalorder 0, %v309
      %v311 = vsel %vm310, 0, %v309
      %v312 = vsub.s32 32, %v311
      %v313 = vshll.u32 %v304, %v311
      %v314 = vshrl.u32 %v296, %v312
      %v315 = vor.u32 %v313, %v314
      %v316 = vsub.s32 4294967266, %v311
      %v317 = vadd.s32 %v316, 127
      %v318 = vshll.u32 %v317, 23
      %v319 = vor.u32 4788187, %v318
      %v320 = vand.u32 2147483647, %v319
      %v322 = vcvt.s32.f32 %v315
      %v323 = vmul.f32 %v322, %v320
      %v324 = vxor.u32 %v323, 2147483648
      %v325 = vsel %vm242, %v324, %v323
      %v326 = vsub.s32 4, %v302
      %v327 = vsel %vm242, %v326, %v302
      %v328 = vsel %vm241, %v235, %v325
      %v329 = vsel %vm241, 0, %v327
      %v330 = vcosq.f32.pop %v328
      %v331 = vsinq.f32.pop %v328
      %vm332 = vweird.f32 %v235
      %v333 = vadd.s32 %v329, 3
      %v334 = vand.u32 %v333, 3
      %vm335 = vcmp.lt.s32.totalorder %v334, 2
      %vm336 = vcmp.eq.s32.totalorder %v334, 0
      %v337 = vxor.u32 %v331, 2147483648
      %v338 = vsel %vm336, %v330, %v337
      %vm339 = vcmp.eq.s32.totalorder %v334, 2
      %v340 = vxor.u32 %v330, 2147483648
      %v341 = vsel %vm339, %v340, %v331
      %v342 = vsel %vm335, %v338, %v341
      %v343 = vsel %vm332, nan, %v342
      %v344 = vand.u32 2147483647, %v236
      %vm345 = vcmp.le.f32.partialorder %v344, 0.7853982
      %vm346 = vcmp.lt.s32.totalorder %v236, 0
      %v347 = vand.u32 %v236, 2139095040
      %v348 = vshrl.u32 %v347, 23
      %v349 = vsub.s32 %v348, 127
      %v350 = vand.u32 2147483647, %v236
      %v351 = vand.u32 %v350, 8388607
      %v352 = vor.u32 %v351, 8388608
      %v353 = vsub.s32 0, %v352
      %v354 = vadd.s32 %v349, 1
      %vm355 = vcmp.gt.s32.totalorder %v354, 0
      %v356 = vsel %vm355, %v354, 0
      %v357 = vshrl.u32 %v356, 5
      %v358 = vand.u32 %v356, 31
      %v359 = vsub.s32 32, %v358
      %v360 = vshrl.u32 683565275, %v359
      %v361 = vshll.u32 683565275, %v358
      %v362 = vshrl.u32 2475754826, %v359
      %v363 = vor.u32 %v361, %v362
      %v364 = vshll.u32 2475754826, %v358
      %v365 = vshrl.u32 2131351028, %v359
      %v366 = vor.u32 %v364, %v365
      %v367 = vshll.u32 2131351028, %v358
      %v368 = vshrl.u32 2102212464, %v359
      %v369 = vor.u32 %v367, %v368
      %v370 = vshll.u32 2102212464, %v358
      %v371 = vshrl.u32 920167782, %v359
      %v372 = vor.u32 %v370, %v371
      %v373 = vshll.u32 920167782, %v358
      %v374 = vshrl.u32 1326507024, %v359
      %v375 = vor.u32 %v373, %v374
      %vm376 = vcmp.lt.s32.totalorder %v357, 1
      %vm377 = vcmp.lt.s32.totalorder %v357, 2
      %vm378 = vcmp.lt.s32.totalorder %v357, 3
      %vm379 = vcmp.lt.s32.totalorder %v357, 4
      %v380 = vsel %vm376, %v360, %v363
      %v381 = vsel %vm379, %v369, 2102212464
      %v382 = vsel %vm378, %v366, %v381
      %v383 = vsel %vm377, %v380, %v382
      %v384 = vsel %vm376, %v363, %v366
      %v385 = vsel %vm379, %v372, 920167782
      %v386 = vsel %vm378, %v369, %v385
      %v387 = vsel %vm377, %v384, %v386
      %v388 = vsel %vm376, %v366, %v369
      %v389 = vsel %vm379, %v375, 1326507024
      %v390 = vsel %vm378, %v372, %v389
      %v391 = vsel %vm377, %v388, %v390
      %v392 = vshll.u32 %v352, 8
      %v393 = vmul.u32.u64.compose %v392, %v391
      %v394 = vextract.low.u32 %v393
      %v395 = vextract.high.u32 %v393
      %v396 = vmul.u32.u64.compose %v392, %v387
      %v397 = vextract.low.u32 %v396
      %v398 = vextract.high.u32 %v396
      %v399 = vmul.u32 %v392, %v383
      %v400 = vadd.s32 %v395, %v397
      %vm401 = vc.u32 %v395, %v397
      %v402 = vadd.s32 %v398, 1
      %v403 = vsel %vm401, %v402, %v398
      %v404 = vadd.s32 %v399, %v403
      %v405 = vadd.s32 %v404, 536870912
      %v406 = vshrl.u32 %v405, 30
      %v407 = vshll.u32 %v406, 30
      %v408 = vsub.s32 %v404, %v407
      %vm409 = vcmp.lt.s32.totalorder %v408, 0
      %v410 = vsub.s32 0, %v408
      %v411 = vsel %vm409, %v410, %v408
      %v412 = vclz %v411
      %v413 = vsub.s32 %v412, 2
      %vm414 = vcmp.gt.s32.totalorder 0, %v413
      %v415 = vsel %vm414, 0, %v413
      %v416 = vsub.s32 32, %v415
      %v417 = vshll.u32 %v408, %v415
      %v418 = vshrl.u32 %v400, %v416
      %v419 = vor.u32 %v417, %v418
      %v420 = vsub.s32 4294967266, %v415
      %v421 = vadd.s32 %v420, 127
      %v422 = vshll.u32 %v421, 23
      %v423 = vor.u32 4788187, %v422
      %v424 = vand.u32 2147483647, %v423
      %v426 = vcvt.s32.f32 %v419
      %v427 = vmul.f32 %v426, %v424
      %v428 = vxor.u32 %v427, 2147483648
      %v429 = vsel %vm346, %v428, %v427
      %v430 = vsub.s32 4, %v406
      %v431 = vsel %vm346, %v430, %v406
      %v432 = vsel %vm345, %v236, %v429
      %v433 = vsel %vm345, 0, %v431
      %v434 = vcosq.f32.pop %v432
      %v435 = vsinq.f32.pop %v432
      %vm436 = vweird.f32 %v236
      %v437 = vadd.s32 %v433, 3
      %v438 = vand.u32 %v437, 3
      %vm439 = vcmp.lt.s32.totalorder %v438, 2
      %vm440 = vcmp.eq.s32.totalorder %v438, 0
      %v441 = vxor.u32 %v435, 2147483648
      %v442 = vsel %vm440, %v434, %v441
      %vm443 = vcmp.eq.s32.totalorder %v438, 2
      %v444 = vxor.u32 %v434, 2147483648
      %v445 = vsel %vm443, %v444, %v435
      %v446 = vsel %vm439, %v442, %v445
      %v447 = vsel %vm436, nan, %v446
      %v448 = vand.u32 2147483647, %v238
      %vm449 = vcmp.le.f32.partialorder %v448, 0.7853982
      %vm450 = vcmp.lt.s32.totalorder %v238, 0
      %v451 = vand.u32 %v238, 2139095040
      %v452 = vshrl.u32 %v451, 23
      %v453 = vsub.s32 %v452, 127
      %v454 = vand.u32 2147483647, %v238
      %v455 = vand.u32 %v454, 8388607
      %v456 = vor.u32 %v455, 8388608
      %v457 = vsub.s32 0, %v456
      %v458 = vadd.s32 %v453, 1
      %vm459 = vcmp.gt.s32.totalorder %v458, 0
      %v460 = vsel %vm459, %v458, 0
      %v461 = vshrl.u32 %v460, 5
      %v462 = vand.u32 %v460, 31
      %v463 = vsub.s32 32, %v462
      %v464 = vshrl.u32 683565275, %v463
      %v465 = vshll.u32 683565275, %v462
      %v466 = vshrl.u32 2475754826, %v463
      %v467 = vor.u32 %v465, %v466
      %v468 = vshll.u32 2475754826, %v462
      %v469 = vshrl.u32 2131351028, %v463
      %v470 = vor.u32 %v468, %v469
      %v471 = vshll.u32 2131351028, %v462
      %v472 = vshrl.u32 2102212464, %v463
      %v473 = vor.u32 %v471, %v472
      %v474 = vshll.u32 2102212464, %v462
      %v475 = vshrl.u32 920167782, %v463
      %v476 = vor.u32 %v474, %v475
      %v477 = vshll.u32 920167782, %v462
      %v478 = vshrl.u32 1326507024, %v463
      %v479 = vor.u32 %v477, %v478
      %vm480 = vcmp.lt.s32.totalorder %v461, 1
      %vm481 = vcmp.lt.s32.totalorder %v461, 2
      %vm482 = vcmp.lt.s32.totalorder %v461, 3
      %vm483 = vcmp.lt.s32.totalorder %v461, 4
      %v484 = vsel %vm480, %v464, %v467
      %v485 = vsel %vm483, %v473, 2102212464
      %v486 = vsel %vm482, %v470, %v485
      %v487 = vsel %vm481, %v484, %v486
      %v488 = vsel %vm480, %v467, %v470
      %v489 = vsel %vm483, %v476, 920167782
      %v490 = vsel %vm482, %v473, %v489
      %v491 = vsel %vm481, %v488, %v490
      %v492 = vsel %vm480, %v470, %v473
      %v493 = vsel %vm483, %v479, 1326507024
      %v494 = vsel %vm482, %v476, %v493
      %v495 = vsel %vm481, %v492, %v494
      %v496 = vshll.u32 %v456, 8
      %v497 = vmul.u32.u64.compose %v496, %v495
      %v498 = vextract.low.u32 %v497
      %v499 = vextract.high.u32 %v497
      %v500 = vmul.u32.u64.compose %v496, %v491
      %v501 = vextract.low.u32 %v500
      %v502 = vextract.high.u32 %v500
      %v503 = vmul.u32 %v496, %v487
      %v504 = vadd.s32 %v499, %v501
      %vm505 = vc.u32 %v499, %v501
      %v506 = vadd.s32 %v502, 1
      %v507 = vsel %vm505, %v506, %v502
      %v508 = vadd.s32 %v503, %v507
      %v509 = vadd.s32 %v508, 536870912
      %v510 = vshrl.u32 %v509, 30
      %v511 = vshll.u32 %v510, 30
      %v512 = vsub.s32 %v508, %v511
      %vm513 = vcmp.lt.s32.totalorder %v512, 0
      %v514 = vsub.s32 0, %v512
      %v515 = vsel %vm513, %v514, %v512
      %v516 = vclz %v515
      %v517 = vsub.s32 %v516, 2
      %vm518 = vcmp.gt.s32.totalorder 0, %v517
      %v519 = vsel %vm518, 0, %v517
      %v520 = vsub.s32 32, %v519
      %v521 = vshll.u32 %v512, %v519
      %v522 = vshrl.u32 %v504, %v520
      %v523 = vor.u32 %v521, %v522
      %v524 = vsub.s32 4294967266, %v519
      %v525 = vadd.s32 %v524, 127
      %v526 = vshll.u32 %v525, 23
      %v527 = vor.u32 4788187, %v526
      %v528 = vand.u32 2147483647, %v527
      %v530 = vcvt.s32.f32 %v523
      %v531 = vmul.f32 %v530, %v528
      %v532 = vxor.u32 %v531, 2147483648
      %v533 = vsel %vm450, %v532, %v531
      %v534 = vsub.s32 4, %v510
      %v535 = vsel %vm450, %v534, %v510
      %v536 = vsel %vm449, %v238, %v533
      %v537 = vsel %vm449, 0, %v535
      %v538 = vcosq.f32.pop %v536
      %v539 = vsinq.f32.pop %v536
      %vm540 = vweird.f32 %v238
      %v541 = vadd.s32 %v537, 3
      %v542 = vand.u32 %v541, 3
      %vm543 = vcmp.lt.s32.totalorder %v542, 2
      %vm544 = vcmp.eq.s32.totalorder %v542, 0
      %v545 = vxor.u32 %v539, 2147483648
      %v546 = vsel %vm544, %v538, %v545
      %vm547 = vcmp.eq.s32.totalorder %v542, 2
      %v548 = vxor.u32 %v538, 2147483648
      %v549 = vsel %vm547, %v548, %v539
      %v550 = vsel %vm543, %v546, %v549
      %v551 = vsel %vm540, nan, %v550
      %v552 = vand.u32 2147483647, %v239
      %vm553 = vcmp.le.f32.partialorder %v552, 0.7853982
      %vm554 = vcmp.lt.s32.totalorder %v239, 0
      %v555 = vand.u32 %v239, 2139095040
      %v556 = vshrl.u32 %v555, 23
      %v557 = vsub.s32 %v556, 127
      %v558 = vand.u32 2147483647, %v239
      %v559 = vand.u32 %v558, 8388607
      %v560 = vor.u32 %v559, 8388608
      %v561 = vsub.s32 0, %v560
      %v562 = vadd.s32 %v557, 1
      %vm563 = vcmp.gt.s32.totalorder %v562, 0
      %v564 = vsel %vm563, %v562, 0
      %v565 = vshrl.u32 %v564, 5
      %v566 = vand.u32 %v564, 31
      %v567 = vsub.s32 32, %v566
      %v568 = vshrl.u32 683565275, %v567
      %v569 = vshll.u32 683565275, %v566
      %v570 = vshrl.u32 2475754826, %v567
      %v571 = vor.u32 %v569, %v570
      %v572 = vshll.u32 2475754826, %v566
      %v573 = vshrl.u32 2131351028, %v567
      %v574 = vor.u32 %v572, %v573
      %v575 = vshll.u32 2131351028, %v566
      %v576 = vshrl.u32 2102212464, %v567
      %v577 = vor.u32 %v575, %v576
      %v578 = vshll.u32 2102212464, %v566
      %v579 = vshrl.u32 920167782, %v567
      %v580 = vor.u32 %v578, %v579
      %v581 = vshll.u32 920167782, %v566
      %v582 = vshrl.u32 1326507024, %v567
      %v583 = vor.u32 %v581, %v582
      %vm584 = vcmp.lt.s32.totalorder %v565, 1
      %vm585 = vcmp.lt.s32.totalorder %v565, 2
      %vm586 = vcmp.lt.s32.totalorder %v565, 3
      %vm587 = vcmp.lt.s32.totalorder %v565, 4
      %v588 = vsel %vm584, %v568, %v571
      %v589 = vsel %vm587, %v577, 2102212464
      %v590 = vsel %vm586, %v574, %v589
      %v591 = vsel %vm585, %v588, %v590
      %v592 = vsel %vm584, %v571, %v574
      %v593 = vsel %vm587, %v580, 920167782
      %v594 = vsel %vm586, %v577, %v593
      %v595 = vsel %vm585, %v592, %v594
      %v596 = vsel %vm584, %v574, %v577
      %v597 = vsel %vm587, %v583, 1326507024
      %v598 = vsel %vm586, %v580, %v597
      %v599 = vsel %vm585, %v596, %v598
      %v600 = vshll.u32 %v560, 8
      %v601 = vmul.u32.u64.compose %v600, %v599
      %v602 = vextract.low.u32 %v601
      %v603 = vextract.high.u32 %v601
      %v604 = vmul.u32.u64.compose %v600, %v595
      %v605 = vextract.low.u32 %v604
      %v606 = vextract.high.u32 %v604
      %v607 = vmul.u32 %v600, %v591
      %v608 = vadd.s32 %v603, %v605
      %vm609 = vc.u32 %v603, %v605
      %v610 = vadd.s32 %v606, 1
      %v611 = vsel %vm609, %v610, %v606
      %v612 = vadd.s32 %v607, %v611
      %v613 = vadd.s32 %v612, 536870912
      %v614 = vshrl.u32 %v613, 30
      %v615 = vshll.u32 %v614, 30
      %v616 = vsub.s32 %v612, %v615
      %vm617 = vcmp.lt.s32.totalorder %v616, 0
      %v618 = vsub.s32 0, %v616
      %v619 = vsel %vm617, %v618, %v616
      %v620 = vclz %v619
      %v621 = vsub.s32 %v620, 2
      %vm622 = vcmp.gt.s32.totalorder 0, %v621
      %v623 = vsel %vm622, 0, %v621
      %v624 = vsub.s32 32, %v623
      %v625 = vshll.u32 %v616, %v623
      %v626 = vshrl.u32 %v608, %v624
      %v627 = vor.u32 %v625, %v626
      %v628 = vsub.s32 4294967266, %v623
      %v629 = vadd.s32 %v628, 127
      %v630 = vshll.u32 %v629, 23
      %v631 = vor.u32 4788187, %v630
      %v632 = vand.u32 2147483647, %v631
      %v634 = vcvt.s32.f32 %v627
      %v635 = vmul.f32 %v634, %v632
      %v636 = vxor.u32 %v635, 2147483648
      %v637 = vsel %vm554, %v636, %v635
      %v638 = vsub.s32 4, %v614
      %v639 = vsel %vm554, %v638, %v614
      %v640 = vsel %vm553, %v239, %v637
      %v641 = vsel %vm553, 0, %v639
      %v642 = vcosq.f32.pop %v640
      %v643 = vsinq.f32.pop %v640
      %vm644 = vweird.f32 %v239
      %v645 = vadd.s32 %v641, 3
      %v646 = vand.u32 %v645, 3
      %vm647 = vcmp.lt.s32.totalorder %v646, 2
      %vm648 = vcmp.eq.s32.totalorder %v646, 0
      %v649 = vxor.u32 %v643, 2147483648
      %v650 = vsel %vm648, %v642, %v649
      %vm651 = vcmp.eq.s32.totalorder %v646, 2
      %v652 = vxor.u32 %v642, 2147483648
      %v653 = vsel %vm651, %v652, %v643
      %v654 = vsel %vm647, %v650, %v653
      %v655 = vsel %vm644, nan, %v654
      %v656 = vand.u32 2147483647, %v235
      %vm657 = vcmp.le.f32.partialorder %v656, 0.7853982
      %vm658 = vcmp.lt.s32.totalorder %v235, 0
      %v659 = vand.u32 %v235, 2139095040
      %v660 = vshrl.u32 %v659, 23
      %v661 = vsub.s32 %v660, 127
      %v662 = vand.u32 2147483647, %v235
      %v663 = vand.u32 %v662, 8388607
      %v664 = vor.u32 %v663, 8388608
      %v665 = vsub.s32 0, %v664
      %v666 = vadd.s32 %v661, 1
      %vm667 = vcmp.gt.s32.totalorder %v666, 0
      %v668 = vsel %vm667, %v666, 0
      %v669 = vshrl.u32 %v668, 5
      %v670 = vand.u32 %v668, 31
      %v671 = vsub.s32 32, %v670
      %v672 = vshrl.u32 683565275, %v671
      %v673 = vshll.u32 683565275, %v670
      %v674 = vshrl.u32 2475754826, %v671
      %v675 = vor.u32 %v673, %v674
      %v676 = vshll.u32 2475754826, %v670
      %v677 = vshrl.u32 2131351028, %v671
      %v678 = vor.u32 %v676, %v677
      %v679 = vshll.u32 2131351028, %v670
      %v680 = vshrl.u32 2102212464, %v671
      %v681 = vor.u32 %v679, %v680
      %v682 = vshll.u32 2102212464, %v670
      %v683 = vshrl.u32 920167782, %v671
      %v684 = vor.u32 %v682, %v683
      %v685 = vshll.u32 920167782, %v670
      %v686 = vshrl.u32 1326507024, %v671
      %v687 = vor.u32 %v685, %v686
      %vm688 = vcmp.lt.s32.totalorder %v669, 1
      %vm689 = vcmp.lt.s32.totalorder %v669, 2
      %vm690 = vcmp.lt.s32.totalorder %v669, 3
      %vm691 = vcmp.lt.s32.totalorder %v669, 4
      %v692 = vsel %vm688, %v672, %v675
      %v693 = vsel %vm691, %v681, 2102212464
      %v694 = vsel %vm690, %v678, %v693
      %v695 = vsel %vm689, %v692, %v694
      %v696 = vsel %vm688, %v675, %v678
      %v697 = vsel %vm691, %v684, 920167782
      %v698 = vsel %vm690, %v681, %v697
      %v699 = vsel %vm689, %v696, %v698
      %v700 = vsel %vm688, %v678, %v681
      %v701 = vsel %vm691, %v687, 1326507024
      %v702 = vsel %vm690, %v684, %v701
      %v703 = vsel %vm689, %v700, %v702
      %v704 = vshll.u32 %v664, 8
      %v705 = vmul.u32.u64.compose %v704, %v703
      %v706 = vextract.low.u32 %v705
      %v707 = vextract.high.u32 %v705
      %v708 = vmul.u32.u64.compose %v704, %v699
      %v709 = vextract.low.u32 %v708
      %v710 = vextract.high.u32 %v708
      %v711 = vmul.u32 %v704, %v695
      %v712 = vadd.s32 %v707, %v709
      %vm713 = vc.u32 %v707, %v709
      %v714 = vadd.s32 %v710, 1
      %v715 = vsel %vm713, %v714, %v710
      %v716 = vadd.s32 %v711, %v715
      %v717 = vadd.s32 %v716, 536870912
      %v718 = vshrl.u32 %v717, 30
      %v719 = vshll.u32 %v718, 30
      %v720 = vsub.s32 %v716, %v719
      %vm721 = vcmp.lt.s32.totalorder %v720, 0
      %v722 = vsub.s32 0, %v720
      %v723 = vsel %vm721, %v722, %v720
      %v724 = vclz %v723
      %v725 = vsub.s32 %v724, 2
      %vm726 = vcmp.gt.s32.totalorder 0, %v725
      %v727 = vsel %vm726, 0, %v725
      %v728 = vsub.s32 32, %v727
      %v729 = vshll.u32 %v720, %v727
      %v730 = vshrl.u32 %v712, %v728
      %v731 = vor.u32 %v729, %v730
      %v732 = vsub.s32 4294967266, %v727
      %v733 = vadd.s32 %v732, 127
      %v734 = vshll.u32 %v733, 23
      %v735 = vor.u32 4788187, %v734
      %v736 = vand.u32 2147483647, %v735
      %v738 = vcvt.s32.f32 %v731
      %v739 = vmul.f32 %v738, %v736
      %v740 = vxor.u32 %v739, 2147483648
      %v741 = vsel %vm658, %v740, %v739
      %v742 = vsub.s32 4, %v718
      %v743 = vsel %vm658, %v742, %v718
      %v744 = vsel %vm657, %v235, %v741
      %v745 = vsel %vm657, 0, %v743
      %v746 = vcosq.f32.pop %v744
      %v747 = vsinq.f32.pop %v744
      %vm748 = vweird.f32 %v235
      %v749 = vand.u32 %v745, 3
      %vm750 = vcmp.lt.s32.totalorder %v749, 2
      %vm751 = vcmp.eq.s32.totalorder %v749, 0
      %v752 = vxor.u32 %v747, 2147483648
      %v753 = vsel %vm751, %v746, %v752
      %vm754 = vcmp.eq.s32.totalorder %v749, 2
      %v755 = vxor.u32 %v746, 2147483648
      %v756 = vsel %vm754, %v755, %v747
      %v757 = vsel %vm750, %v753, %v756
      %v758 = vsel %vm748, nan, %v757
      %v759 = vand.u32 2147483647, %v236
      %vm760 = vcmp.le.f32.partialorder %v759, 0.7853982
      %vm761 = vcmp.lt.s32.totalorder %v236, 0
      %v762 = vand.u32 %v236, 2139095040
      %v763 = vshrl.u32 %v762, 23
      %v764 = vsub.s32 %v763, 127
      %v765 = vand.u32 2147483647, %v236
      %v766 = vand.u32 %v765, 8388607
      %v767 = vor.u32 %v766, 8388608
      %v768 = vsub.s32 0, %v767
      %v769 = vadd.s32 %v764, 1
      %vm770 = vcmp.gt.s32.totalorder %v769, 0
      %v771 = vsel %vm770, %v769, 0
      %v772 = vshrl.u32 %v771, 5
      %v773 = vand.u32 %v771, 31
      %v774 = vsub.s32 32, %v773
      %v775 = vshrl.u32 683565275, %v774
      %v776 = vshll.u32 683565275, %v773
      %v777 = vshrl.u32 2475754826, %v774
      %v778 = vor.u32 %v776, %v777
      %v779 = vshll.u32 2475754826, %v773
      %v780 = vshrl.u32 2131351028, %v774
      %v781 = vor.u32 %v779, %v780
      %v782 = vshll.u32 2131351028, %v773
      %v783 = vshrl.u32 2102212464, %v774
      %v784 = vor.u32 %v782, %v783
      %v785 = vshll.u32 2102212464, %v773
      %v786 = vshrl.u32 920167782, %v774
      %v787 = vor.u32 %v785, %v786
      %v788 = vshll.u32 920167782, %v773
      %v789 = vshrl.u32 1326507024, %v774
      %v790 = vor.u32 %v788, %v789
      %vm791 = vcmp.lt.s32.totalorder %v772, 1
      %vm792 = vcmp.lt.s32.totalorder %v772, 2
      %vm793 = vcmp.lt.s32.totalorder %v772, 3
      %vm794 = vcmp.lt.s32.totalorder %v772, 4
      %v795 = vsel %vm791, %v775, %v778
      %v796 = vsel %vm794, %v784, 2102212464
      %v797 = vsel %vm793, %v781, %v796
      %v798 = vsel %vm792, %v795, %v797
      %v799 = vsel %vm791, %v778, %v781
      %v800 = vsel %vm794, %v787, 920167782
      %v801 = vsel %vm793, %v784, %v800
      %v802 = vsel %vm792, %v799, %v801
      %v803 = vsel %vm791, %v781, %v784
      %v804 = vsel %vm794, %v790, 1326507024
      %v805 = vsel %vm793, %v787, %v804
      %v806 = vsel %vm792, %v803, %v805
      %v807 = vshll.u32 %v767, 8
      %v808 = vmul.u32.u64.compose %v807, %v806
      %v809 = vextract.low.u32 %v808
      %v810 = vextract.high.u32 %v808
      %v811 = vmul.u32.u64.compose %v807, %v802
      %v812 = vextract.low.u32 %v811
      %v813 = vextract.high.u32 %v811
      %v814 = vmul.u32 %v807, %v798
      %v815 = vadd.s32 %v810, %v812
      %vm816 = vc.u32 %v810, %v812
      %v817 = vadd.s32 %v813, 1
      %v818 = vsel %vm816, %v817, %v813
      %v819 = vadd.s32 %v814, %v818
      %v820 = vadd.s32 %v819, 536870912
      %v821 = vshrl.u32 %v820, 30
      %v822 = vshll.u32 %v821, 30
      %v823 = vsub.s32 %v819, %v822
      %vm824 = vcmp.lt.s32.totalorder %v823, 0
      %v825 = vsub.s32 0, %v823
      %v826 = vsel %vm824, %v825, %v823
      %v827 = vclz %v826
      %v828 = vsub.s32 %v827, 2
      %vm829 = vcmp.gt.s32.totalorder 0, %v828
      %v830 = vsel %vm829, 0, %v828
      %v831 = vsub.s32 32, %v830
      %v832 = vshll.u32 %v823, %v830
      %v833 = vshrl.u32 %v815, %v831
      %v834 = vor.u32 %v832, %v833
      %v835 = vsub.s32 4294967266, %v830
      %v836 = vadd.s32 %v835, 127
      %v837 = vshll.u32 %v836, 23
      %v838 = vor.u32 4788187, %v837
      %v839 = vand.u32 2147483647, %v838
      %v841 = vcvt.s32.f32 %v834
      %v842 = vmul.f32 %v841, %v839
      %v843 = vxor.u32 %v842, 2147483648
      %v844 = vsel %vm761, %v843, %v842
      %v845 = vsub.s32 4, %v821
      %v846 = vsel %vm761, %v845, %v821
      %v847 = vsel %vm760, %v236, %v844
      %v848 = vsel %vm760, 0, %v846
      %v849 = vcosq.f32.pop %v847
      %v850 = vsinq.f32.pop %v847
      %vm851 = vweird.f32 %v236
      %v852 = vand.u32 %v848, 3
      %vm853 = vcmp.lt.s32.totalorder %v852, 2
      %vm854 = vcmp.eq.s32.totalorder %v852, 0
      %v855 = vxor.u32 %v850, 2147483648
      %v856 = vsel %vm854, %v849, %v855
      %vm857 = vcmp.eq.s32.totalorder %v852, 2
      %v858 = vxor.u32 %v849, 2147483648
      %v859 = vsel %vm857, %v858, %v850
      %v860 = vsel %vm853, %v856, %v859
      %v861 = vsel %vm851, nan, %v860
      %v862 = vand.u32 2147483647, %v238
      %vm863 = vcmp.le.f32.partialorder %v862, 0.7853982
      %vm864 = vcmp.lt.s32.totalorder %v238, 0
      %v865 = vand.u32 %v238, 2139095040
      %v866 = vshrl.u32 %v865, 23
      %v867 = vsub.s32 %v866, 127
      %v868 = vand.u32 2147483647, %v238
      %v869 = vand.u32 %v868, 8388607
      %v870 = vor.u32 %v869, 8388608
      %v871 = vsub.s32 0, %v870
      %v872 = vadd.s32 %v867, 1
      %vm873 = vcmp.gt.s32.totalorder %v872, 0
      %v874 = vsel %vm873, %v872, 0
      %v875 = vshrl.u32 %v874, 5
      %v876 = vand.u32 %v874, 31
      %v877 = vsub.s32 32, %v876
      %v878 = vshrl.u32 683565275, %v877
      %v879 = vshll.u32 683565275, %v876
      %v880 = vshrl.u32 2475754826, %v877
      %v881 = vor.u32 %v879, %v880
      %v882 = vshll.u32 2475754826, %v876
      %v883 = vshrl.u32 2131351028, %v877
      %v884 = vor.u32 %v882, %v883
      %v885 = vshll.u32 2131351028, %v876
      %v886 = vshrl.u32 2102212464, %v877
      %v887 = vor.u32 %v885, %v886
      %v888 = vshll.u32 2102212464, %v876
      %v889 = vshrl.u32 920167782, %v877
      %v890 = vor.u32 %v888, %v889
      %v891 = vshll.u32 920167782, %v876
      %v892 = vshrl.u32 1326507024, %v877
      %v893 = vor.u32 %v891, %v892
      %vm894 = vcmp.lt.s32.totalorder %v875, 1
      %vm895 = vcmp.lt.s32.totalorder %v875, 2
      %vm896 = vcmp.lt.s32.totalorder %v875, 3
      %vm897 = vcmp.lt.s32.totalorder %v875, 4
      %v898 = vsel %vm894, %v878, %v881
      %v899 = vsel %vm897, %v887, 2102212464
      %v900 = vsel %vm896, %v884, %v899
      %v901 = vsel %vm895, %v898, %v900
      %v902 = vsel %vm894, %v881, %v884
      %v903 = vsel %vm897, %v890, 920167782
      %v904 = vsel %vm896, %v887, %v903
      %v905 = vsel %vm895, %v902, %v904
      %v906 = vsel %vm894, %v884, %v887
      %v907 = vsel %vm897, %v893, 1326507024
      %v908 = vsel %vm896, %v890, %v907
      %v909 = vsel %vm895, %v906, %v908
      %v910 = vshll.u32 %v870, 8
      %v911 = vmul.u32.u64.compose %v910, %v909
      %v912 = vextract.low.u32 %v911
      %v913 = vextract.high.u32 %v911
      %v914 = vmul.u32.u64.compose %v910, %v905
      %v915 = vextract.low.u32 %v914
      %v916 = vextract.high.u32 %v914
      %v917 = vmul.u32 %v910, %v901
      %v918 = vadd.s32 %v913, %v915
      %vm919 = vc.u32 %v913, %v915
      %v920 = vadd.s32 %v916, 1
      %v921 = vsel %vm919, %v920, %v916
      %v922 = vadd.s32 %v917, %v921
      %v923 = vadd.s32 %v922, 536870912
      %v924 = vshrl.u32 %v923, 30
      %v925 = vshll.u32 %v924, 30
      %v926 = vsub.s32 %v922, %v925
      %vm927 = vcmp.lt.s32.totalorder %v926, 0
      %v928 = vsub.s32 0, %v926
      %v929 = vsel %vm927, %v928, %v926
      %v930 = vclz %v929
      %v931 = vsub.s32 %v930, 2
      %vm932 = vcmp.gt.s32.totalorder 0, %v931
      %v933 = vsel %vm932, 0, %v931
      %v934 = vsub.s32 32, %v933
      %v935 = vshll.u32 %v926, %v933
      %v936 = vshrl.u32 %v918, %v934
      %v937 = vor.u32 %v935, %v936
      %v938 = vsub.s32 4294967266, %v933
      %v939 = vadd.s32 %v938, 127
      %v940 = vshll.u32 %v939, 23
      %v941 = vor.u32 4788187, %v940
      %v942 = vand.u32 2147483647, %v941
      %v944 = vcvt.s32.f32 %v937
      %v945 = vmul.f32 %v944, %v942
      %v946 = vxor.u32 %v945, 2147483648
      %v947 = vsel %vm864, %v946, %v945
      %v948 = vsub.s32 4, %v924
      %v949 = vsel %vm864, %v948, %v924
      %v950 = vsel %vm863, %v238, %v947
      %v951 = vsel %vm863, 0, %v949
      %v952 = vcosq.f32.pop %v950
      %v953 = vsinq.f32.pop %v950
      %vm954 = vweird.f32 %v238
      %v955 = vand.u32 %v951, 3
      %vm956 = vcmp.lt.s32.totalorder %v955, 2
      %vm957 = vcmp.eq.s32.totalorder %v955, 0
      %v958 = vxor.u32 %v953, 2147483648
      %v959 = vsel %vm957, %v952, %v958
      %vm960 = vcmp.eq.s32.totalorder %v955, 2
      %v961 = vxor.u32 %v952, 2147483648
      %v962 = vsel %vm960, %v961, %v953
      %v963 = vsel %vm956, %v959, %v962
      %v964 = vsel %vm954, nan, %v963
      %v965 = vand.u32 2147483647, %v239
      %vm966 = vcmp.le.f32.partialorder %v965, 0.7853982
      %vm967 = vcmp.lt.s32.totalorder %v239, 0
      %v968 = vand.u32 %v239, 2139095040
      %v969 = vshrl.u32 %v968, 23
      %v970 = vsub.s32 %v969, 127
      %v971 = vand.u32 2147483647, %v239
      %v972 = vand.u32 %v971, 8388607
      %v973 = vor.u32 %v972, 8388608
      %v974 = vsub.s32 0, %v973
      %v975 = vadd.s32 %v970, 1
      %vm976 = vcmp.gt.s32.totalorder %v975, 0
      %v977 = vsel %vm976, %v975, 0
      %v978 = vshrl.u32 %v977, 5
      %v979 = vand.u32 %v977, 31
      %v980 = vsub.s32 32, %v979
      %v981 = vshrl.u32 683565275, %v980
      %v982 = vshll.u32 683565275, %v979
      %v983 = vshrl.u32 2475754826, %v980
      %v984 = vor.u32 %v982, %v983
      %v985 = vshll.u32 2475754826, %v979
      %v986 = vshrl.u32 2131351028, %v980
      %v987 = vor.u32 %v985, %v986
      %v988 = vshll.u32 2131351028, %v979
      %v989 = vshrl.u32 2102212464, %v980
      %v990 = vor.u32 %v988, %v989
      %v991 = vshll.u32 2102212464, %v979
      %v992 = vshrl.u32 920167782, %v980
      %v993 = vor.u32 %v991, %v992
      %v994 = vshll.u32 920167782, %v979
      %v995 = vshrl.u32 1326507024, %v980
      %v996 = vor.u32 %v994, %v995
      %vm997 = vcmp.lt.s32.totalorder %v978, 1
      %vm998 = vcmp.lt.s32.totalorder %v978, 2
      %vm999 = vcmp.lt.s32.totalorder %v978, 3
      %vm1000 = vcmp.lt.s32.totalorder %v978, 4
      %v1001 = vsel %vm997, %v981, %v984
      %v1002 = vsel %vm1000, %v990, 2102212464
      %v1003 = vsel %vm999, %v987, %v1002
      %v1004 = vsel %vm998, %v1001, %v1003
      %v1005 = vsel %vm997, %v984, %v987
      %v1006 = vsel %vm1000, %v993, 920167782
      %v1007 = vsel %vm999, %v990, %v1006
      %v1008 = vsel %vm998, %v1005, %v1007
      %v1009 = vsel %vm997, %v987, %v990
      %v1010 = vsel %vm1000, %v996, 1326507024
      %v1011 = vsel %vm999, %v993, %v1010
      %v1012 = vsel %vm998, %v1009, %v1011
      %v1013 = vshll.u32 %v973, 8
      %v1014 = vmul.u32.u64.compose %v1013, %v1012
      %v1015 = vextract.low.u32 %v1014
      %v1016 = vextract.high.u32 %v1014
      %v1017 = vmul.u32.u64.compose %v1013, %v1008
      %v1018 = vextract.low.u32 %v1017
      %v1019 = vextract.high.u32 %v1017
      %v1020 = vmul.u32 %v1013, %v1004
      %v1021 = vadd.s32 %v1016, %v1018
      %vm1022 = vc.u32 %v1016, %v1018
      %v1023 = vadd.s32 %v1019, 1
      %v1024 = vsel %vm1022, %v1023, %v1019
      %v1025 = vadd.s32 %v1020, %v1024
      %v1026 = vadd.s32 %v1025, 536870912
      %v1027 = vshrl.u32 %v1026, 30
      %v1028 = vshll.u32 %v1027, 30
      %v1029 = vsub.s32 %v1025, %v1028
      %vm1030 = vcmp.lt.s32.totalorder %v1029, 0
      %v1031 = vsub.s32 0, %v1029
      %v1032 = vsel %vm1030, %v1031, %v1029
      %v1033 = vclz %v1032
      %v1034 = vsub.s32 %v1033, 2
      %vm1035 = vcmp.gt.s32.totalorder 0, %v1034
      %v1036 = vsel %vm1035, 0, %v1034
      %v1037 = vsub.s32 32, %v1036
      %v1038 = vshll.u32 %v1029, %v1036
      %v1039 = vshrl.u32 %v1021, %v1037
      %v1040 = vor.u32 %v1038, %v1039
      %v1041 = vsub.s32 4294967266, %v1036
      %v1042 = vadd.s32 %v1041, 127
      %v1043 = vshll.u32 %v1042, 23
      %v1044 = vor.u32 4788187, %v1043
      %v1045 = vand.u32 2147483647, %v1044
      %v1047 = vcvt.s32.f32 %v1040
      %v1048 = vmul.f32 %v1047, %v1045
      %v1049 = vxor.u32 %v1048, 2147483648
      %v1050 = vsel %vm967, %v1049, %v1048
      %v1051 = vsub.s32 4, %v1027
      %v1052 = vsel %vm967, %v1051, %v1027
      %v1053 = vsel %vm966, %v239, %v1050
      %v1054 = vsel %vm966, 0, %v1052
      %v1055 = vcosq.f32.pop %v1053
      %v1056 = vsinq.f32.pop %v1053
      %vm1057 = vweird.f32 %v239
      %v1058 = vand.u32 %v1054, 3
      %vm1059 = vcmp.lt.s32.totalorder %v1058, 2
      %vm1060 = vcmp.eq.s32.totalorder %v1058, 0
      %v1061 = vxor.u32 %v1056, 2147483648
      %v1062 = vsel %vm1060, %v1055, %v1061
      %vm1063 = vcmp.eq.s32.totalorder %v1058, 2
      %v1064 = vxor.u32 %v1055, 2147483648
      %v1065 = vsel %vm1063, %v1064, %v1056
      %v1066 = vsel %vm1059, %v1062, %v1065
      %v1067 = vsel %vm1057, nan, %v1066
      %v1072 = vrot.slane %v343, 5
      %v1073 = vrot.slane %v447, 5
      %v1074 = vrot.slane %v551, 5
      %v1075 = vsel %vm231, %v1072, %v1074
      %v1076 = vrot.slane %v655, 5
      %v1077 = vsel %vm231, %v1073, %v1076
      %vm1086 = vcmask 1046528
      %v1087 = vrot.slane %v758, 1
      %v1088 = vrot.slane %v861, 1
      %v1089 = vrot.slane %v964, 1
      %v1090 = vsel %vm1086, %v1087, %v1089
      %v1091 = vrot.slane %v1067, 1
      %v1092 = vsel %vm1086, %v1088, %v1091
      %v1099 = vsel %vm231, %v205, %v1072
      %v1100 = vsel %vm231, %v206, %v1073
      %v1101 = vsel %vm1086, %v1075, %v1087
      %v1102 = vsel %vm1086, %v1077, %v1088
      %v1103 = vpack.c.bf16 %v1101, %v1099
      %v1104 = vpack.c.bf16 %v1102, %v1100
      %v1105 = vpack.c.bf16 %v1089, %v1090
      %v1106 = vpack.c.bf16 %v1091, %v1092
      %v1109 = vrot.slane %v205, 3
      %v1110 = vrot.slane %v206, 3
      %v1113 = vsel %vm231, %v1109, %v207
      %v1114 = vsel %vm231, %v1110, %v208
      %v1115 = vand.u32 2147483647, %v1113
      %vm1116 = vcmp.le.f32.partialorder %v1115, 0.7853982
      %vm1117 = vcmp.lt.s32.totalorder %v1113, 0
      %v1118 = vand.u32 %v1113, 2139095040
      %v1119 = vshrl.u32 %v1118, 23
      %v1120 = vsub.s32 %v1119, 127
      %v1121 = vand.u32 2147483647, %v1113
      %v1122 = vand.u32 %v1121, 8388607
      %v1123 = vor.u32 %v1122, 8388608
      %v1124 = vsub.s32 0, %v1123
      %v1125 = vadd.s32 %v1120, 1
      %vm1126 = vcmp.gt.s32.totalorder %v1125, 0
      %v1127 = vsel %vm1126, %v1125, 0
      %v1128 = vshrl.u32 %v1127, 5
      %v1129 = vand.u32 %v1127, 31
      %v1130 = vsub.s32 32, %v1129
      %v1131 = vshrl.u32 683565275, %v1130
      %v1132 = vshll.u32 683565275, %v1129
      %v1133 = vshrl.u32 2475754826, %v1130
      %v1134 = vor.u32 %v1132, %v1133
      %v1135 = vshll.u32 2475754826, %v1129
      %v1136 = vshrl.u32 2131351028, %v1130
      %v1137 = vor.u32 %v1135, %v1136
      %v1138 = vshll.u32 2131351028, %v1129
      %v1139 = vshrl.u32 2102212464, %v1130
      %v1140 = vor.u32 %v1138, %v1139
      %v1141 = vshll.u32 2102212464, %v1129
      %v1142 = vshrl.u32 920167782, %v1130
      %v1143 = vor.u32 %v1141, %v1142
      %v1144 = vshll.u32 920167782, %v1129
      %v1145 = vshrl.u32 1326507024, %v1130
      %v1146 = vor.u32 %v1144, %v1145
      %vm1147 = vcmp.lt.s32.totalorder %v1128, 1
      %vm1148 = vcmp.lt.s32.totalorder %v1128, 2
      %vm1149 = vcmp.lt.s32.totalorder %v1128, 3
      %vm1150 = vcmp.lt.s32.totalorder %v1128, 4
      %v1151 = vsel %vm1147, %v1131, %v1134
      %v1152 = vsel %vm1150, %v1140, 2102212464
      %v1153 = vsel %vm1149, %v1137, %v1152
      %v1154 = vsel %vm1148, %v1151, %v1153
      %v1155 = vsel %vm1147, %v1134, %v1137
      %v1156 = vsel %vm1150, %v1143, 920167782
      %v1157 = vsel %vm1149, %v1140, %v1156
      %v1158 = vsel %vm1148, %v1155, %v1157
      %v1159 = vsel %vm1147, %v1137, %v1140
      %v1160 = vsel %vm1150, %v1146, 1326507024
      %v1161 = vsel %vm1149, %v1143, %v1160
      %v1162 = vsel %vm1148, %v1159, %v1161
      %v1163 = vshll.u32 %v1123, 8
      %v1164 = vmul.u32.u64.compose %v1163, %v1162
      %v1165 = vextract.low.u32 %v1164
      %v1166 = vextract.high.u32 %v1164
      %v1167 = vmul.u32.u64.compose %v1163, %v1158
      %v1168 = vextract.low.u32 %v1167
      %v1169 = vextract.high.u32 %v1167
      %v1170 = vmul.u32 %v1163, %v1154
      %v1171 = vadd.s32 %v1166, %v1168
      %vm1172 = vc.u32 %v1166, %v1168
      %v1173 = vadd.s32 %v1169, 1
      %v1174 = vsel %vm1172, %v1173, %v1169
      %v1175 = vadd.s32 %v1170, %v1174
      %v1176 = vadd.s32 %v1175, 536870912
      %v1177 = vshrl.u32 %v1176, 30
      %v1178 = vshll.u32 %v1177, 30
      %v1179 = vsub.s32 %v1175, %v1178
      %vm1180 = vcmp.lt.s32.totalorder %v1179, 0
      %v1181 = vsub.s32 0, %v1179
      %v1182 = vsel %vm1180, %v1181, %v1179
      %v1183 = vclz %v1182
      %v1184 = vsub.s32 %v1183, 2
      %vm1185 = vcmp.gt.s32.totalorder 0, %v1184
      %v1186 = vsel %vm1185, 0, %v1184
      %v1187 = vsub.s32 32, %v1186
      %v1188 = vshll.u32 %v1179, %v1186
      %v1189 = vshrl.u32 %v1171, %v1187
      %v1190 = vor.u32 %v1188, %v1189
      %v1191 = vsub.s32 4294967266, %v1186
      %v1192 = vadd.s32 %v1191, 127
      %v1193 = vshll.u32 %v1192, 23
      %v1194 = vor.u32 4788187, %v1193
      %v1195 = vand.u32 2147483647, %v1194
      %v1197 = vcvt.s32.f32 %v1190
      %v1198 = vmul.f32 %v1197, %v1195
      %v1199 = vxor.u32 %v1198, 2147483648
      %v1200 = vsel %vm1117, %v1199, %v1198
      %v1201 = vsub.s32 4, %v1177
      %v1202 = vsel %vm1117, %v1201, %v1177
      %v1203 = vsel %vm1116, %v1113, %v1200
      %v1204 = vsel %vm1116, 0, %v1202
      %v1205 = vcosq.f32.pop %v1203
      %v1206 = vsinq.f32.pop %v1203
      %vm1207 = vweird.f32 %v1113
      %v1208 = vadd.s32 %v1204, 3
      %v1209 = vand.u32 %v1208, 3
      %vm1210 = vcmp.lt.s32.totalorder %v1209, 2
      %vm1211 = vcmp.eq.s32.totalorder %v1209, 0
      %v1212 = vxor.u32 %v1206, 2147483648
      %v1213 = vsel %vm1211, %v1205, %v1212
      %vm1214 = vcmp.eq.s32.totalorder %v1209, 2
      %v1215 = vxor.u32 %v1205, 2147483648
      %v1216 = vsel %vm1214, %v1215, %v1206
      %v1217 = vsel %vm1210, %v1213, %v1216
      %v1218 = vsel %vm1207, nan, %v1217
      %v1219 = vand.u32 2147483647, %v1114
      %vm1220 = vcmp.le.f32.partialorder %v1219, 0.7853982
      %vm1221 = vcmp.lt.s32.totalorder %v1114, 0
      %v1222 = vand.u32 %v1114, 2139095040
      %v1223 = vshrl.u32 %v1222, 23
      %v1224 = vsub.s32 %v1223, 127
      %v1225 = vand.u32 2147483647, %v1114
      %v1226 = vand.u32 %v1225, 8388607
      %v1227 = vor.u32 %v1226, 8388608
      %v1228 = vsub.s32 0, %v1227
      %v1229 = vadd.s32 %v1224, 1
      %vm1230 = vcmp.gt.s32.totalorder %v1229, 0
      %v1231 = vsel %vm1230, %v1229, 0
      %v1232 = vshrl.u32 %v1231, 5
      %v1233 = vand.u32 %v1231, 31
      %v1234 = vsub.s32 32, %v1233
      %v1235 = vshrl.u32 683565275, %v1234
      %v1236 = vshll.u32 683565275, %v1233
      %v1237 = vshrl.u32 2475754826, %v1234
      %v1238 = vor.u32 %v1236, %v1237
      %v1239 = vshll.u32 2475754826, %v1233
      %v1240 = vshrl.u32 2131351028, %v1234
      %v1241 = vor.u32 %v1239, %v1240
      %v1242 = vshll.u32 2131351028, %v1233
      %v1243 = vshrl.u32 2102212464, %v1234
      %v1244 = vor.u32 %v1242, %v1243
      %v1245 = vshll.u32 2102212464, %v1233
      %v1246 = vshrl.u32 920167782, %v1234
      %v1247 = vor.u32 %v1245, %v1246
      %v1248 = vshll.u32 920167782, %v1233
      %v1249 = vshrl.u32 1326507024, %v1234
      %v1250 = vor.u32 %v1248, %v1249
      %vm1251 = vcmp.lt.s32.totalorder %v1232, 1
      %vm1252 = vcmp.lt.s32.totalorder %v1232, 2
      %vm1253 = vcmp.lt.s32.totalorder %v1232, 3
      %vm1254 = vcmp.lt.s32.totalorder %v1232, 4
      %v1255 = vsel %vm1251, %v1235, %v1238
      %v1256 = vsel %vm1254, %v1244, 2102212464
      %v1257 = vsel %vm1253, %v1241, %v1256
      %v1258 = vsel %vm1252, %v1255, %v1257
      %v1259 = vsel %vm1251, %v1238, %v1241
      %v1260 = vsel %vm1254, %v1247, 920167782
      %v1261 = vsel %vm1253, %v1244, %v1260
      %v1262 = vsel %vm1252, %v1259, %v1261
      %v1263 = vsel %vm1251, %v1241, %v1244
      %v1264 = vsel %vm1254, %v1250, 1326507024
      %v1265 = vsel %vm1253, %v1247, %v1264
      %v1266 = vsel %vm1252, %v1263, %v1265
      %v1267 = vshll.u32 %v1227, 8
      %v1268 = vmul.u32.u64.compose %v1267, %v1266
      %v1269 = vextract.low.u32 %v1268
      %v1270 = vextract.high.u32 %v1268
      %v1271 = vmul.u32.u64.compose %v1267, %v1262
      %v1272 = vextract.low.u32 %v1271
      %v1273 = vextract.high.u32 %v1271
      %v1274 = vmul.u32 %v1267, %v1258
      %v1275 = vadd.s32 %v1270, %v1272
      %vm1276 = vc.u32 %v1270, %v1272
      %v1277 = vadd.s32 %v1273, 1
      %v1278 = vsel %vm1276, %v1277, %v1273
      %v1279 = vadd.s32 %v1274, %v1278
      %v1280 = vadd.s32 %v1279, 536870912
      %v1281 = vshrl.u32 %v1280, 30
      %v1282 = vshll.u32 %v1281, 30
      %v1283 = vsub.s32 %v1279, %v1282
      %vm1284 = vcmp.lt.s32.totalorder %v1283, 0
      %v1285 = vsub.s32 0, %v1283
      %v1286 = vsel %vm1284, %v1285, %v1283
      %v1287 = vclz %v1286
      %v1288 = vsub.s32 %v1287, 2
      %vm1289 = vcmp.gt.s32.totalorder 0, %v1288
      %v1290 = vsel %vm1289, 0, %v1288
      %v1291 = vsub.s32 32, %v1290
      %v1292 = vshll.u32 %v1283, %v1290
      %v1293 = vshrl.u32 %v1275, %v1291
      %v1294 = vor.u32 %v1292, %v1293
      %v1295 = vsub.s32 4294967266, %v1290
      %v1296 = vadd.s32 %v1295, 127
      %v1297 = vshll.u32 %v1296, 23
      %v1298 = vor.u32 4788187, %v1297
      %v1299 = vand.u32 2147483647, %v1298
      %v1301 = vcvt.s32.f32 %v1294
      %v1302 = vmul.f32 %v1301, %v1299
      %v1303 = vxor.u32 %v1302, 2147483648
      %v1304 = vsel %vm1221, %v1303, %v1302
      %v1305 = vsub.s32 4, %v1281
      %v1306 = vsel %vm1221, %v1305, %v1281
      %v1307 = vsel %vm1220, %v1114, %v1304
      %v1308 = vsel %vm1220, 0, %v1306
      %v1309 = vcosq.f32.pop %v1307
      %v1310 = vsinq.f32.pop %v1307
      %vm1311 = vweird.f32 %v1114
      %v1312 = vadd.s32 %v1308, 3
      %v1313 = vand.u32 %v1312, 3
      %vm1314 = vcmp.lt.s32.totalorder %v1313, 2
      %vm1315 = vcmp.eq.s32.totalorder %v1313, 0
      %v1316 = vxor.u32 %v1310, 2147483648
      %v1317 = vsel %vm1315, %v1309, %v1316
      %vm1318 = vcmp.eq.s32.totalorder %v1313, 2
      %v1319 = vxor.u32 %v1309, 2147483648
      %v1320 = vsel %vm1318, %v1319, %v1310
      %v1321 = vsel %vm1314, %v1317, %v1320
      %v1322 = vsel %vm1311, nan, %v1321
      %v1323 = vand.u32 2147483647, %v1113
      %vm1324 = vcmp.le.f32.partialorder %v1323, 0.7853982
      %vm1325 = vcmp.lt.s32.totalorder %v1113, 0
      %v1326 = vand.u32 %v1113, 2139095040
      %v1327 = vshrl.u32 %v1326, 23
      %v1328 = vsub.s32 %v1327, 127
      %v1329 = vand.u32 2147483647, %v1113
      %v1330 = vand.u32 %v1329, 8388607
      %v1331 = vor.u32 %v1330, 8388608
      %v1332 = vsub.s32 0, %v1331
      %v1333 = vadd.s32 %v1328, 1
      %vm1334 = vcmp.gt.s32.totalorder %v1333, 0
      %v1335 = vsel %vm1334, %v1333, 0
      %v1336 = vshrl.u32 %v1335, 5
      %v1337 = vand.u32 %v1335, 31
      %v1338 = vsub.s32 32, %v1337
      %v1339 = vshrl.u32 683565275, %v1338
      %v1340 = vshll.u32 683565275, %v1337
      %v1341 = vshrl.u32 2475754826, %v1338
      %v1342 = vor.u32 %v1340, %v1341
      %v1343 = vshll.u32 2475754826, %v1337
      %v1344 = vshrl.u32 2131351028, %v1338
      %v1345 = vor.u32 %v1343, %v1344
      %v1346 = vshll.u32 2131351028, %v1337
      %v1347 = vshrl.u32 2102212464, %v1338
      %v1348 = vor.u32 %v1346, %v1347
      %v1349 = vshll.u32 2102212464, %v1337
      %v1350 = vshrl.u32 920167782, %v1338
      %v1351 = vor.u32 %v1349, %v1350
      %v1352 = vshll.u32 920167782, %v1337
      %v1353 = vshrl.u32 1326507024, %v1338
      %v1354 = vor.u32 %v1352, %v1353
      %vm1355 = vcmp.lt.s32.totalorder %v1336, 1
      %vm1356 = vcmp.lt.s32.totalorder %v1336, 2
      %vm1357 = vcmp.lt.s32.totalorder %v1336, 3
      %vm1358 = vcmp.lt.s32.totalorder %v1336, 4
      %v1359 = vsel %vm1355, %v1339, %v1342
      %v1360 = vsel %vm1358, %v1348, 2102212464
      %v1361 = vsel %vm1357, %v1345, %v1360
      %v1362 = vsel %vm1356, %v1359, %v1361
      %v1363 = vsel %vm1355, %v1342, %v1345
      %v1364 = vsel %vm1358, %v1351, 920167782
      %v1365 = vsel %vm1357, %v1348, %v1364
      %v1366 = vsel %vm1356, %v1363, %v1365
      %v1367 = vsel %vm1355, %v1345, %v1348
      %v1368 = vsel %vm1358, %v1354, 1326507024
      %v1369 = vsel %vm1357, %v1351, %v1368
      %v1370 = vsel %vm1356, %v1367, %v1369
      %v1371 = vshll.u32 %v1331, 8
      %v1372 = vmul.u32.u64.compose %v1371, %v1370
      %v1373 = vextract.low.u32 %v1372
      %v1374 = vextract.high.u32 %v1372
      %v1375 = vmul.u32.u64.compose %v1371, %v1366
      %v1376 = vextract.low.u32 %v1375
      %v1377 = vextract.high.u32 %v1375
      %v1378 = vmul.u32 %v1371, %v1362
      %v1379 = vadd.s32 %v1374, %v1376
      %vm1380 = vc.u32 %v1374, %v1376
      %v1381 = vadd.s32 %v1377, 1
      %v1382 = vsel %vm1380, %v1381, %v1377
      %v1383 = vadd.s32 %v1378, %v1382
      %v1384 = vadd.s32 %v1383, 536870912
      %v1385 = vshrl.u32 %v1384, 30
      %v1386 = vshll.u32 %v1385, 30
      %v1387 = vsub.s32 %v1383, %v1386
      %vm1388 = vcmp.lt.s32.totalorder %v1387, 0
      %v1389 = vsub.s32 0, %v1387
      %v1390 = vsel %vm1388, %v1389, %v1387
      %v1391 = vclz %v1390
      %v1392 = vsub.s32 %v1391, 2
      %vm1393 = vcmp.gt.s32.totalorder 0, %v1392
      %v1394 = vsel %vm1393, 0, %v1392
      %v1395 = vsub.s32 32, %v1394
      %v1396 = vshll.u32 %v1387, %v1394
      %v1397 = vshrl.u32 %v1379, %v1395
      %v1398 = vor.u32 %v1396, %v1397
      %v1399 = vsub.s32 4294967266, %v1394
      %v1400 = vadd.s32 %v1399, 127
      %v1401 = vshll.u32 %v1400, 23
      %v1402 = vor.u32 4788187, %v1401
      %v1403 = vand.u32 2147483647, %v1402
      %v1405 = vcvt.s32.f32 %v1398
      %v1406 = vmul.f32 %v1405, %v1403
      %v1407 = vxor.u32 %v1406, 2147483648
      %v1408 = vsel %vm1325, %v1407, %v1406
      %v1409 = vsub.s32 4, %v1385
      %v1410 = vsel %vm1325, %v1409, %v1385
      %v1411 = vsel %vm1324, %v1113, %v1408
      %v1412 = vsel %vm1324, 0, %v1410
      %v1413 = vcosq.f32.pop %v1411
      %v1414 = vsinq.f32.pop %v1411
      %vm1415 = vweird.f32 %v1113
      %v1416 = vand.u32 %v1412, 3
      %vm1417 = vcmp.lt.s32.totalorder %v1416, 2
      %vm1418 = vcmp.eq.s32.totalorder %v1416, 0
      %v1419 = vxor.u32 %v1414, 2147483648
      %v1420 = vsel %vm1418, %v1413, %v1419
      %vm1421 = vcmp.eq.s32.totalorder %v1416, 2
      %v1422 = vxor.u32 %v1413, 2147483648
      %v1423 = vsel %vm1421, %v1422, %v1414
      %v1424 = vsel %vm1417, %v1420, %v1423
      %v1425 = vsel %vm1415, nan, %v1424
      %v1426 = vand.u32 2147483647, %v1114
      %vm1427 = vcmp.le.f32.partialorder %v1426, 0.7853982
      %vm1428 = vcmp.lt.s32.totalorder %v1114, 0
      %v1429 = vand.u32 %v1114, 2139095040
      %v1430 = vshrl.u32 %v1429, 23
      %v1431 = vsub.s32 %v1430, 127
      %v1432 = vand.u32 2147483647, %v1114
      %v1433 = vand.u32 %v1432, 8388607
      %v1434 = vor.u32 %v1433, 8388608
      %v1435 = vsub.s32 0, %v1434
      %v1436 = vadd.s32 %v1431, 1
      %vm1437 = vcmp.gt.s32.totalorder %v1436, 0
      %v1438 = vsel %vm1437, %v1436, 0
      %v1439 = vshrl.u32 %v1438, 5
      %v1440 = vand.u32 %v1438, 31
      %v1441 = vsub.s32 32, %v1440
      %v1442 = vshrl.u32 683565275, %v1441
      %v1443 = vshll.u32 683565275, %v1440
      %v1444 = vshrl.u32 2475754826, %v1441
      %v1445 = vor.u32 %v1443, %v1444
      %v1446 = vshll.u32 2475754826, %v1440
      %v1447 = vshrl.u32 2131351028, %v1441
      %v1448 = vor.u32 %v1446, %v1447
      %v1449 = vshll.u32 2131351028, %v1440
      %v1450 = vshrl.u32 2102212464, %v1441
      %v1451 = vor.u32 %v1449, %v1450
      %v1452 = vshll.u32 2102212464, %v1440
      %v1453 = vshrl.u32 920167782, %v1441
      %v1454 = vor.u32 %v1452, %v1453
      %v1455 = vshll.u32 920167782, %v1440
      %v1456 = vshrl.u32 1326507024, %v1441
      %v1457 = vor.u32 %v1455, %v1456
      %vm1458 = vcmp.lt.s32.totalorder %v1439, 1
      %vm1459 = vcmp.lt.s32.totalorder %v1439, 2
      %vm1460 = vcmp.lt.s32.totalorder %v1439, 3
      %vm1461 = vcmp.lt.s32.totalorder %v1439, 4
      %v1462 = vsel %vm1458, %v1442, %v1445
      %v1463 = vsel %vm1461, %v1451, 2102212464
      %v1464 = vsel %vm1460, %v1448, %v1463
      %v1465 = vsel %vm1459, %v1462, %v1464
      %v1466 = vsel %vm1458, %v1445, %v1448
      %v1467 = vsel %vm1461, %v1454, 920167782
      %v1468 = vsel %vm1460, %v1451, %v1467
      %v1469 = vsel %vm1459, %v1466, %v1468
      %v1470 = vsel %vm1458, %v1448, %v1451
      %v1471 = vsel %vm1461, %v1457, 1326507024
      %v1472 = vsel %vm1460, %v1454, %v1471
      %v1473 = vsel %vm1459, %v1470, %v1472
      %v1474 = vshll.u32 %v1434, 8
      %v1475 = vmul.u32.u64.compose %v1474, %v1473
      %v1476 = vextract.low.u32 %v1475
      %v1477 = vextract.high.u32 %v1475
      %v1478 = vmul.u32.u64.compose %v1474, %v1469
      %v1479 = vextract.low.u32 %v1478
      %v1480 = vextract.high.u32 %v1478
      %v1481 = vmul.u32 %v1474, %v1465
      %v1482 = vadd.s32 %v1477, %v1479
      %vm1483 = vc.u32 %v1477, %v1479
      %v1484 = vadd.s32 %v1480, 1
      %v1485 = vsel %vm1483, %v1484, %v1480
      %v1486 = vadd.s32 %v1481, %v1485
      %v1487 = vadd.s32 %v1486, 536870912
      %v1488 = vshrl.u32 %v1487, 30
      %v1489 = vshll.u32 %v1488, 30
      %v1490 = vsub.s32 %v1486, %v1489
      %vm1491 = vcmp.lt.s32.totalorder %v1490, 0
      %v1492 = vsub.s32 0, %v1490
      %v1493 = vsel %vm1491, %v1492, %v1490
      %v1494 = vclz %v1493
      %v1495 = vsub.s32 %v1494, 2
      %vm1496 = vcmp.gt.s32.totalorder 0, %v1495
      %v1497 = vsel %vm1496, 0, %v1495
      %v1498 = vsub.s32 32, %v1497
      %v1499 = vshll.u32 %v1490, %v1497
      %v1500 = vshrl.u32 %v1482, %v1498
      %v1501 = vor.u32 %v1499, %v1500
      %v1502 = vsub.s32 4294967266, %v1497
      %v1503 = vadd.s32 %v1502, 127
      %v1504 = vshll.u32 %v1503, 23
      %v1505 = vor.u32 4788187, %v1504
      %v1506 = vand.u32 2147483647, %v1505
      %v1508 = vcvt.s32.f32 %v1501
      %v1509 = vmul.f32 %v1508, %v1506
      %v1510 = vxor.u32 %v1509, 2147483648
      %v1511 = vsel %vm1428, %v1510, %v1509
      %v1512 = vsub.s32 4, %v1488
      %v1513 = vsel %vm1428, %v1512, %v1488
      %v1514 = vsel %vm1427, %v1114, %v1511
      %v1515 = vsel %vm1427, 0, %v1513
      %v1516 = vcosq.f32.pop %v1514
      %v1517 = vsinq.f32.pop %v1514
      %vm1518 = vweird.f32 %v1114
      %v1519 = vand.u32 %v1515, 3
      %vm1520 = vcmp.lt.s32.totalorder %v1519, 2
      %vm1521 = vcmp.eq.s32.totalorder %v1519, 0
      %v1522 = vxor.u32 %v1517, 2147483648
      %v1523 = vsel %vm1521, %v1516, %v1522
      %vm1524 = vcmp.eq.s32.totalorder %v1519, 2
      %v1525 = vxor.u32 %v1516, 2147483648
      %v1526 = vsel %vm1524, %v1525, %v1517
      %v1527 = vsel %vm1520, %v1523, %v1526
      %v1528 = vsel %vm1518, nan, %v1527
      %v1531 = vrot.slane %v1218, 5
      %v1532 = vrot.slane %v1322, 5
      %v1537 = vrot.slane %v1425, 7
      %v1538 = vrot.slane %v1528, 7
      %v1541 = vsel %vm231, %v1109, %v1531
      %v1542 = vsel %vm231, %v1110, %v1532
      %v1543 = vsel %vm237, %v1531, %v1537
      %v1544 = vsel %vm237, %v1532, %v1538
      %v1545 = vpack.c.bf16 %v1543, %v1541
      %v1546 = vpack.c.bf16 %v1544, %v1542
      %1548 = vset.pattern.permute.xlu0 0
      %1549 = vperm.xlu0 %1548, %v196
      %v1550 = vpop.permute.xlu0 %1549
      %1553 = vset.pattern.permute.xlu0 0
      %1554 = vperm.xlu0 %1553, %v197
      %v1555 = vpop.permute.xlu0 %1554
      %1558 = vset.pattern.permute.xlu0 0
      %1559 = vperm.xlu0 %1558, %v198
      %v1560 = vpop.permute.xlu0 %1559
      %1563 = vset.pattern.permute.xlu0 0
      %1564 = vperm.xlu0 %1563, %v199
      %v1565 = vpop.permute.xlu0 %1564
      %1568 = vset.pattern.permute.xlu0 0
      %1569 = vperm.xlu0 %1568, %v200
      %v1570 = vpop.permute.xlu0 %1569
      %1573 = vset.pattern.permute.xlu0 0
      %1574 = vperm.xlu0 %1573, %v201
      %v1575 = vpop.permute.xlu0 %1574
      %1578 = vset.pattern.permute.xlu0 0
      %1579 = vperm.xlu0 %1578, %v202
      %v1580 = vpop.permute.xlu0 %1579
      %1583 = vset.pattern.permute.xlu0 0
      %1584 = vperm.xlu0 %1583, %v203
      %v1585 = vpop.permute.xlu0 %1584
      %v1595 = vunpack.c.l.b16 %v175
      %v1596 = vunpack.c.l.b16 %v178
      %v1597 = vunpack.c.l.b16 %v181
      %v1598 = vunpack.c.l.b16 %v184
      %v1599 = vunpack.c.l.b16 %v187
      %v1600 = vunpack.c.l.b16 %v189
      %v1601 = vunpack.c.l.b16 %v191
      %v1602 = vunpack.c.l.b16 %v193
      %v1603 = vpack.c.b16 %v1596, %v1595
      %v1604 = vpack.c.b16 %v1598, %v1597
      %v1605 = vpack.c.b16 %v1600, %v1599
      %v1606 = vpack.c.b16 %v1602, %v1601
      %vm1607 = vcmask 220160
      %v1609 = vsel %vm1607, %v1603, 0
      %v1612 = vsel %vm1607, %v1604, 0
      %v1615 = vsel %vm1607, %v1605, 0
      %v1618 = vsel %vm1607, %v1606, 0
      %vm1620 = vcmask 1044480
      %v1621 = vsel %vm1620, 4294967295, 65535
      %v1622 = vsel %vm234, %v1621, 0
      %v1624 = vand.u32 %v1105, %v1622
      %v1627 = vand.u32 %v1106, %v1622
      %1629 = vmatprep.subr.bf16.mxu0 %v1104
      %1630 = vmatpush1.bf16.msra.mxu0 %v1103
      %1631 = vmatprep.subr.bf16.mxu0 %v1627
      %1632 = vmatpush1.bf16.msra.mxu0 %v1624
      %1633 = vmatprep.subr.bf16.mxu0 0
      %1634 = vmatpush1.bf16.msra.mxu0 0
      %1635 = vmatprep.subr.bf16.mxu0 0
      %1636 = vmatpush1.bf16.msra.mxu0 0
      %1637 = vmatprep.subr.bf16.mxu0 0
      %1638 = vmatpush1.bf16.msra.mxu0 0
      %1639 = vmatprep.subr.bf16.mxu0 0
      %1640 = vmatpush1.bf16.msra.mxu0 0
      %1641 = vmatprep.subr.bf16.mxu0 0
      %1642 = vmatpush1.bf16.msra.mxu0 0
      %1643 = vmatprep.subr.bf16.mxu0 0
      %1644 = vmatpush1.bf16.msra.mxu0 0
      %1645 = vmatprep.subr.bf16.mxu0 0
      %1646 = vmatpush1.bf16.msra.mxu0 0
      %1647 = vmatprep.subr.bf16.mxu0 0
      %1648 = vmatpush1.bf16.msra.mxu0 0
      %1649 = vmatprep.subr.bf16.mxu0 0
      %1650 = vmatpush1.bf16.msra.mxu0 0
      %1651 = vmatprep.subr.bf16.mxu0 0
      %1652 = vmatpush1.bf16.msra.mxu0 0
      %1653 = vmatprep.subr.bf16.mxu0 0
      %1654 = vmatpush1.bf16.msra.mxu0 0
      %1655 = vmatprep.subr.bf16.mxu0 0
      %1656 = vmatpush1.bf16.msra.mxu0 0
      %1657 = vmatprep.subr.bf16.mxu0 0
      %1658 = vmatpush1.bf16.msra.mxu0 0
      %1659 = vmatprep.subr.bf16.mxu0 0
      %1660 = vmatpush1.bf16.msra.mxu0 0
      %1661 = vmatprep.mubr.bf16.mxu0 0
      %1662 = vmatmul.mubr.bf16.gmra.mrb[0].mxu0 %v1609
      %v1663 = vpop.f32.mrb[0].mxu0
      %v1664 = vadd.f32 %v1550, %v1663
      %v1665 = vpop.f32.mrb[0].mxu0
      %v1666 = vadd.f32 %v1550, %v1665
      %v1667 = vpop.f32.mrb[0].mxu0
      %v1668 = vadd.f32 %v1555, %v1667
      %v1669 = vpop.f32.mrb[0].mxu0
      %v1670 = vadd.f32 %v1555, %v1669
      %1671 = vmatprep.mubr.bf16.mxu0 0
      %1672 = vmatmul.mubr.bf16.gmra.mrb[0].mxu0 %v1612
      %v1673 = vpop.f32.mrb[0].mxu0
      %v1674 = vadd.f32 %v1560, %v1673
      %v1675 = vpop.f32.mrb[0].mxu0
      %v1676 = vadd.f32 %v1560, %v1675
      %v1677 = vpop.f32.mrb[0].mxu0
      %v1678 = vadd.f32 %v1565, %v1677
      %v1679 = vpop.f32.mrb[0].mxu0
      %v1680 = vadd.f32 %v1565, %v1679
      %1681 = vmatprep.mubr.bf16.mxu0 0
      %1682 = vmatmul.mubr.bf16.gmra.mrb[0].mxu0 %v1615
      %v1683 = vpop.f32.mrb[0].mxu0
      %v1684 = vadd.f32 %v1570, %v1683
      %v1685 = vpop.f32.mrb[0].mxu0
      %v1686 = vadd.f32 %v1570, %v1685
      %v1687 = vpop.f32.mrb[0].mxu0
      %v1688 = vadd.f32 %v1575, %v1687
      %v1689 = vpop.f32.mrb[0].mxu0
      %v1690 = vadd.f32 %v1575, %v1689
      %1691 = vmatprep.mubr.bf16.mxu0 0
      %1692 = vmatmul.mubr.bf16.gmra.mrb[0].mxu0 %v1618
      %v1693 = vpop.f32.mrb[0].mxu0
      %v1694 = vadd.f32 %v1580, %v1693
      %v1695 = vpop.f32.mrb[0].mxu0
      %v1696 = vadd.f32 %v1580, %v1695
      %v1697 = vpop.f32.mrb[0].mxu0
      %v1698 = vadd.f32 %v1585, %v1697
      %v1699 = vpop.f32.mrb[0].mxu0
      %v1700 = vadd.f32 %v1585, %v1699
      %1701 = vdwg.mxu0
      %v1702 = vmax.f32 %v1664, 0.0
      %v1703 = vmax.f32 %v1666, 0.0
      %v1704 = vmax.f32 %v1668, 0.0
      %v1705 = vmax.f32 %v1670, 0.0
      %v1706 = vmax.f32 %v1674, 0.0
      %v1707 = vmax.f32 %v1676, 0.0
      %v1708 = vmax.f32 %v1678, 0.0
      %v1709 = vmax.f32 %v1680, 0.0
      %v1710 = vmax.f32 %v1684, 0.0
      %v1711 = vmax.f32 %v1686, 0.0
      %v1712 = vmax.f32 %v1688, 0.0
      %v1713 = vmax.f32 %v1690, 0.0
      %v1714 = vmax.f32 %v1694, 0.0
      %v1715 = vmax.f32 %v1696, 0.0
      %v1716 = vmax.f32 %v1698, 0.0
      %v1717 = vmax.f32 %v1700, 0.0
      %v1718 = vpack.c.bf16 %v1704, %v1702
      %v1719 = vpack.c.bf16 %v1705, %v1703
      %v1720 = vpack.c.bf16 %v1708, %v1706
      %v1721 = vpack.c.bf16 %v1709, %v1707
      %v1722 = vpack.c.bf16 %v1712, %v1710
      %v1723 = vpack.c.bf16 %v1713, %v1711
      %v1724 = vpack.c.bf16 %v1716, %v1714
      %v1725 = vpack.c.bf16 %v1717, %v1715
      %1726 = vset.pattern.permute.xlu0 1
      %1727 = vperm.xlu0 %1726, %v196
      %v1728 = vpop.permute.xlu0 %1727
      %1730 = vset.pattern.permute.xlu0 1
      %1731 = vperm.xlu0 %1730, %v197
      %v1732 = vpop.permute.xlu0 %1731
      %1734 = vset.pattern.permute.xlu0 1
      %1735 = vperm.xlu0 %1734, %v198
      %v1736 = vpop.permute.xlu0 %1735
      %1738 = vset.pattern.permute.xlu0 1
      %1739 = vperm.xlu0 %1738, %v199
      %v1740 = vpop.permute.xlu0 %1739
      %1742 = vset.pattern.permute.xlu0 1
      %1743 = vperm.xlu0 %1742, %v200
      %v1744 = vpop.permute.xlu0 %1743
      %1746 = vset.pattern.permute.xlu0 1
      %1747 = vperm.xlu0 %1746, %v201
      %v1748 = vpop.permute.xlu0 %1747
      %1750 = vset.pattern.permute.xlu0 1
      %1751 = vperm.xlu0 %1750, %v202
      %v1752 = vpop.permute.xlu0 %1751
      %1754 = vset.pattern.permute.xlu0 1
      %1755 = vperm.xlu0 %1754, %v203
      %v1756 = vpop.permute.xlu0 %1755
      %1758 = vrot.lane.b32.xlu0 %v1603, 101
      %v1759 = vpop.permute.xlu0 %1758
      %1760 = vrot.lane.b32.xlu0 %v1604, 101
      %v1761 = vpop.permute.xlu0 %1760
      %1762 = vrot.lane.b32.xlu0 %v1605, 101
      %v1763 = vpop.permute.xlu0 %1762
      %1764 = vrot.lane.b32.xlu0 %v1606, 101
      %v1765 = vpop.permute.xlu0 %1764
      %vm1766 = vcmask 523264
      %v1768 = vsel %vm1766, %v1759, 0
      %v1771 = vsel %vm1766, %v1761, 0
      %v1774 = vsel %vm1766, %v1763, 0
      %v1777 = vsel %vm1766, %v1765, 0
      %1779 = vmatprep.subr.bf16.mxu0 %v1719
      %1780 = vmatpush1.bf16.msra.mxu0 %v1718
      %1781 = vmatprep.subr.bf16.mxu0 %v1721
      %1782 = vmatpush1.bf16.msra.mxu0 %v1720
      %1783 = vmatprep.subr.bf16.mxu0 %v1723
      %1784 = vmatpush1.bf16.msra.mxu0 %v1722
      %1785 = vmatprep.subr.bf16.mxu0 %v1725
      %1786 = vmatpush1.bf16.msra.mxu0 %v1724
      %1787 = vmatprep.subr.bf16.mxu0 0
      %1788 = vmatpush1.bf16.msra.mxu0 0
      %1789 = vmatprep.subr.bf16.mxu0 0
      %1790 = vmatpush1.bf16.msra.mxu0 0
      %1791 = vmatprep.subr.bf16.mxu0 0
      %1792 = vmatpush1.bf16.msra.mxu0 0
      %1793 = vmatprep.subr.bf16.mxu0 0
      %1794 = vmatpush1.bf16.msra.mxu0 0
      %1795 = vmatprep.subr.bf16.mxu0 0
      %1796 = vmatpush1.bf16.msra.mxu0 0
      %1797 = vmatprep.subr.bf16.mxu0 0
      %1798 = vmatpush1.bf16.msra.mxu0 0
      %1799 = vmatprep.subr.bf16.mxu0 0
      %1800 = vmatpush1.bf16.msra.mxu0 0
      %1801 = vmatprep.subr.bf16.mxu0 0
      %1802 = vmatpush1.bf16.msra.mxu0 0
      %1803 = vmatprep.subr.bf16.mxu0 0
      %1804 = vmatpush1.bf16.msra.mxu0 0
      %1805 = vmatprep.subr.bf16.mxu0 0
      %1806 = vmatpush1.bf16.msra.mxu0 0
      %1807 = vmatprep.subr.bf16.mxu0 0
      %1808 = vmatpush1.bf16.msra.mxu0 0
      %1809 = vmatprep.subr.bf16.mxu0 0
      %1810 = vmatpush1.bf16.msra.mxu0 0
      %1811 = vmatprep.mubr.bf16.mxu0 0
      %1812 = vmatmul.mubr.bf16.gmra.mrb[0].mxu0 %v1768
      %v1813 = vpop.f32.mrb[0].mxu0
      %v1814 = vadd.f32 %v1728, %v1813
      %v1815 = vpop.f32.mrb[0].mxu0
      %v1816 = vadd.f32 %v1728, %v1815
      %v1817 = vpop.f32.mrb[0].mxu0
      %v1818 = vadd.f32 %v1732, %v1817
      %v1819 = vpop.f32.mrb[0].mxu0
      %v1820 = vadd.f32 %v1732, %v1819
      %1821 = vmatprep.mubr.bf16.mxu0 0
      %1822 = vmatmul.mubr.bf16.gmra.mrb[0].mxu0 %v1771
      %v1823 = vpop.f32.mrb[0].mxu0
      %v1824 = vadd.f32 %v1736, %v1823
      %v1825 = vpop.f32.mrb[0].mxu0
      %v1826 = vadd.f32 %v1736, %v1825
      %v1827 = vpop.f32.mrb[0].mxu0
      %v1828 = vadd.f32 %v1740, %v1827
      %v1829 = vpop.f32.mrb[0].mxu0
      %v1830 = vadd.f32 %v1740, %v1829
      %1831 = vmatprep.mubr.bf16.mxu0 0
      %1832 = vmatmul.mubr.bf16.gmra.mrb[0].mxu0 %v1774
      %v1833 = vpop.f32.mrb[0].mxu0
      %v1834 = vadd.f32 %v1744, %v1833
      %v1835 = vpop.f32.mrb[0].mxu0
      %v1836 = vadd.f32 %v1744, %v1835
      %v1837 = vpop.f32.mrb[0].mxu0
      %v1838 = vadd.f32 %v1748, %v1837
      %v1839 = vpop.f32.mrb[0].mxu0
      %v1840 = vadd.f32 %v1748, %v1839
      %1841 = vmatprep.mubr.bf16.mxu0 0
      %1842 = vmatmul.mubr.bf16.gmra.mrb[0].mxu0 %v1777
      %v1843 = vpop.f32.mrb[0].mxu0
      %v1844 = vadd.f32 %v1752, %v1843
      %v1845 = vpop.f32.mrb[0].mxu0
      %v1846 = vadd.f32 %v1752, %v1845
      %v1847 = vpop.f32.mrb[0].mxu0
      %v1848 = vadd.f32 %v1756, %v1847
      %v1849 = vpop.f32.mrb[0].mxu0
      %v1850 = vadd.f32 %v1756, %v1849
      %1851 = vdwg.mxu0
      %v1852 = vmax.f32 %v1814, 0.0
      %v1853 = vmax.f32 %v1816, 0.0
      %v1854 = vmax.f32 %v1818, 0.0
      %v1855 = vmax.f32 %v1820, 0.0
      %v1856 = vmax.f32 %v1824, 0.0
      %v1857 = vmax.f32 %v1826, 0.0
      %v1858 = vmax.f32 %v1828, 0.0
      %v1859 = vmax.f32 %v1830, 0.0
      %v1860 = vmax.f32 %v1834, 0.0
      %v1861 = vmax.f32 %v1836, 0.0
      %v1862 = vmax.f32 %v1838, 0.0
      %v1863 = vmax.f32 %v1840, 0.0
      %v1864 = vmax.f32 %v1844, 0.0
      %v1865 = vmax.f32 %v1846, 0.0
      %v1866 = vmax.f32 %v1848, 0.0
      %v1867 = vmax.f32 %v1850, 0.0
      %v1868 = vpack.c.bf16 %v1854, %v1852
      %v1869 = vpack.c.bf16 %v1855, %v1853
      %v1870 = vpack.c.bf16 %v1858, %v1856
      %v1871 = vpack.c.bf16 %v1859, %v1857
      %v1872 = vpack.c.bf16 %v1862, %v1860
      %v1873 = vpack.c.bf16 %v1863, %v1861
      %v1874 = vpack.c.bf16 %v1866, %v1864
      %v1875 = vpack.c.bf16 %v1867, %v1865
      %1876 = vset.pattern.permute.xlu0 2
      %1877 = vperm.xlu0 %1876, %v196
      %v1878 = vpop.permute.xlu0 %1877
      %1880 = vset.pattern.permute.xlu0 2
      %1881 = vperm.xlu0 %1880, %v197
      %v1882 = vpop.permute.xlu0 %1881
      %1884 = vset.pattern.permute.xlu0 2
      %1885 = vperm.xlu0 %1884, %v198
      %v1886 = vpop.permute.xlu0 %1885
      %1888 = vset.pattern.permute.xlu0 2
      %1889 = vperm.xlu0 %1888, %v199
      %v1890 = vpop.permute.xlu0 %1889
      %1892 = vset.pattern.permute.xlu0 2
      %1893 = vperm.xlu0 %1892, %v200
      %v1894 = vpop.permute.xlu0 %1893
      %1896 = vset.pattern.permute.xlu0 2
      %1897 = vperm.xlu0 %1896, %v201
      %v1898 = vpop.permute.xlu0 %1897
      %1900 = vset.pattern.permute.xlu0 2
      %1901 = vperm.xlu0 %1900, %v202
      %v1902 = vpop.permute.xlu0 %1901
      %1904 = vset.pattern.permute.xlu0 2
      %1905 = vperm.xlu0 %1904, %v203
      %v1906 = vpop.permute.xlu0 %1905
      %v1908 = vunpack.c.h.b16 %v175
      %v1909 = vunpack.c.h.b16 %v178
      %v1910 = vunpack.c.h.b16 %v181
      %v1911 = vunpack.c.h.b16 %v184
      %v1912 = vunpack.c.h.b16 %v187
      %v1913 = vunpack.c.h.b16 %v189
      %v1914 = vunpack.c.h.b16 %v191
      %v1915 = vunpack.c.h.b16 %v193
      %v1916 = vpack.c.b16 %v1909, %v1908
      %v1917 = vpack.c.b16 %v1911, %v1910
      %v1918 = vpack.c.b16 %v1913, %v1912
      %v1919 = vpack.c.b16 %v1915, %v1914
      %1920 = vrot.lane.b32.xlu0 %v1603, 37
      %v1921 = vpop.permute.xlu0 %1920
      %1922 = vrot.lane.b32.xlu0 %v1916, 37
      %v1923 = vpop.permute.xlu0 %1922
      %1924 = vrot.lane.b32.xlu0 %v1604, 37
      %v1925 = vpop.permute.xlu0 %1924
      %1926 = vrot.lane.b32.xlu0 %v1917, 37
      %v1927 = vpop.permute.xlu0 %1926
      %1928 = vrot.lane.b32.xlu0 %v1605, 37
      %v1929 = vpop.permute.xlu0 %1928
      %1930 = vrot.lane.b32.xlu0 %v1918, 37
      %v1931 = vpop.permute.xlu0 %1930
      %1932 = vrot.lane.b32.xlu0 %v1606, 37
      %v1933 = vpop.permute.xlu0 %1932
      %1934 = vrot.lane.b32.xlu0 %v1919, 37
      %v1935 = vpop.permute.xlu0 %1934
      %vm1936 = vcmask 302080
      %v1937 = vsel %vm1936, %v1921, %v1923
      %v1938 = vsel %vm1936, %v1925, %v1927
      %v1939 = vsel %vm1936, %v1929, %v1931
      %v1940 = vsel %vm1936, %v1933, %v1935
      %v1942 = vsel %vm1766, %v1937, 0
      %v1945 = vsel %vm1766, %v1938, 0
      %v1948 = vsel %vm1766, %v1939, 0
      %v1951 = vsel %vm1766, %v1940, 0
      %1953 = vmatprep.subr.bf16.mxu0 %v1869
      %1954 = vmatpush1.bf16.msra.mxu0 %v1868
      %1955 = vmatprep.subr.bf16.mxu0 %v1871
      %1956 = vmatpush1.bf16.msra.mxu0 %v1870
      %1957 = vmatprep.subr.bf16.mxu0 %v1873
      %1958 = vmatpush1.bf16.msra.mxu0 %v1872
      %1959 = vmatprep.subr.bf16.mxu0 %v1875
      %1960 = vmatpush1.bf16.msra.mxu0 %v1874
      %1961 = vmatprep.subr.bf16.mxu0 0
      %1962 = vmatpush1.bf16.msra.mxu0 0
      %1963 = vmatprep.subr.bf16.mxu0 0
      %1964 = vmatpush1.bf16.msra.mxu0 0
      %1965 = vmatprep.subr.bf16.mxu0 0
      %1966 = vmatpush1.bf16.msra.mxu0 0
      %1967 = vmatprep.subr.bf16.mxu0 0
      %1968 = vmatpush1.bf16.msra.mxu0 0
      %1969 = vmatprep.subr.bf16.mxu0 0
      %1970 = vmatpush1.bf16.msra.mxu0 0
      %1971 = vmatprep.subr.bf16.mxu0 0
      %1972 = vmatpush1.bf16.msra.mxu0 0
      %1973 = vmatprep.subr.bf16.mxu0 0
      %1974 = vmatpush1.bf16.msra.mxu0 0
      %1975 = vmatprep.subr.bf16.mxu0 0
      %1976 = vmatpush1.bf16.msra.mxu0 0
      %1977 = vmatprep.subr.bf16.mxu0 0
      %1978 = vmatpush1.bf16.msra.mxu0 0
      %1979 = vmatprep.subr.bf16.mxu0 0
      %1980 = vmatpush1.bf16.msra.mxu0 0
      %1981 = vmatprep.subr.bf16.mxu0 0
      %1982 = vmatpush1.bf16.msra.mxu0 0
      %1983 = vmatprep.subr.bf16.mxu0 0
      %1984 = vmatpush1.bf16.msra.mxu0 0
      %1985 = vmatprep.mubr.bf16.mxu0 0
      %1986 = vmatmul.mubr.bf16.gmra.mrb[0].mxu0 %v1942
      %v1987 = vpop.f32.mrb[0].mxu0
      %v1988 = vadd.f32 %v1878, %v1987
      %v1989 = vpop.f32.mrb[0].mxu0
      %v1990 = vadd.f32 %v1878, %v1989
      %v1991 = vpop.f32.mrb[0].mxu0
      %v1992 = vadd.f32 %v1882, %v1991
      %v1993 = vpop.f32.mrb[0].mxu0
      %v1994 = vadd.f32 %v1882, %v1993
      %1995 = vmatprep.mubr.bf16.mxu0 0
      %1996 = vmatmul.mubr.bf16.gmra.mrb[0].mxu0 %v1945
      %v1997 = vpop.f32.mrb[0].mxu0
      %v1998 = vadd.f32 %v1886, %v1997
      %v1999 = vpop.f32.mrb[0].mxu0
      %v2000 = vadd.f32 %v1886, %v1999
      %v2001 = vpop.f32.mrb[0].mxu0
      %v2002 = vadd.f32 %v1890, %v2001
      %v2003 = vpop.f32.mrb[0].mxu0
      %v2004 = vadd.f32 %v1890, %v2003
      %2005 = vmatprep.mubr.bf16.mxu0 0
      %2006 = vmatmul.mubr.bf16.gmra.mrb[0].mxu0 %v1948
      %v2007 = vpop.f32.mrb[0].mxu0
      %v2008 = vadd.f32 %v1894, %v2007
      %v2009 = vpop.f32.mrb[0].mxu0
      %v2010 = vadd.f32 %v1894, %v2009
      %v2011 = vpop.f32.mrb[0].mxu0
      %v2012 = vadd.f32 %v1898, %v2011
      %v2013 = vpop.f32.mrb[0].mxu0
      %v2014 = vadd.f32 %v1898, %v2013
      %2015 = vmatprep.mubr.bf16.mxu0 0
      %2016 = vmatmul.mubr.bf16.gmra.mrb[0].mxu0 %v1951
      %v2017 = vpop.f32.mrb[0].mxu0
      %v2018 = vadd.f32 %v1902, %v2017
      %v2019 = vpop.f32.mrb[0].mxu0
      %v2020 = vadd.f32 %v1902, %v2019
      %v2021 = vpop.f32.mrb[0].mxu0
      %v2022 = vadd.f32 %v1906, %v2021
      %v2023 = vpop.f32.mrb[0].mxu0
      %v2024 = vadd.f32 %v1906, %v2023
      %2025 = vdwg.mxu0
      %v2026 = vmax.f32 %v1988, 0.0
      %v2027 = vmax.f32 %v1990, 0.0
      %v2028 = vmax.f32 %v1992, 0.0
      %v2029 = vmax.f32 %v1994, 0.0
      %v2030 = vmax.f32 %v1998, 0.0
      %v2031 = vmax.f32 %v2000, 0.0
      %v2032 = vmax.f32 %v2002, 0.0
      %v2033 = vmax.f32 %v2004, 0.0
      %v2034 = vmax.f32 %v2008, 0.0
      %v2035 = vmax.f32 %v2010, 0.0
      %v2036 = vmax.f32 %v2012, 0.0
      %v2037 = vmax.f32 %v2014, 0.0
      %v2038 = vmax.f32 %v2018, 0.0
      %v2039 = vmax.f32 %v2020, 0.0
      %v2040 = vmax.f32 %v2022, 0.0
      %v2041 = vmax.f32 %v2024, 0.0
      %v2042 = vpack.c.bf16 %v2028, %v2026
      %v2043 = vpack.c.bf16 %v2029, %v2027
      %v2044 = vpack.c.bf16 %v2032, %v2030
      %v2045 = vpack.c.bf16 %v2033, %v2031
      %v2046 = vpack.c.bf16 %v2036, %v2034
      %v2047 = vpack.c.bf16 %v2037, %v2035
      %v2048 = vpack.c.bf16 %v2040, %v2038
      %v2049 = vpack.c.bf16 %v2041, %v2039
      %2050 = vset.pattern.permute.xlu0 3
      %2051 = vperm.xlu0 %2050, %v196
      %v2052 = vpop.permute.xlu0 %2051
      %2054 = vset.pattern.permute.xlu0 3
      %2055 = vperm.xlu0 %2054, %v197
      %v2056 = vpop.permute.xlu0 %2055
      %2058 = vset.pattern.permute.xlu0 3
      %2059 = vperm.xlu0 %2058, %v198
      %v2060 = vpop.permute.xlu0 %2059
      %2062 = vset.pattern.permute.xlu0 3
      %2063 = vperm.xlu0 %2062, %v199
      %v2064 = vpop.permute.xlu0 %2063
      %2066 = vset.pattern.permute.xlu0 3
      %2067 = vperm.xlu0 %2066, %v200
      %v2068 = vpop.permute.xlu0 %2067
      %2070 = vset.pattern.permute.xlu0 3
      %2071 = vperm.xlu0 %2070, %v201
      %v2072 = vpop.permute.xlu0 %2071
      %2074 = vset.pattern.permute.xlu0 3
      %2075 = vperm.xlu0 %2074, %v202
      %v2076 = vpop.permute.xlu0 %2075
      %2078 = vset.pattern.permute.xlu0 3
      %2079 = vperm.xlu0 %2078, %v203
      %v2080 = vpop.permute.xlu0 %2079
      %2082 = vrot.lane.b32.xlu0 %v1916, 101
      %v2083 = vpop.permute.xlu0 %2082
      %2084 = vrot.lane.b32.xlu0 %v1917, 101
      %v2085 = vpop.permute.xlu0 %2084
      %2086 = vrot.lane.b32.xlu0 %v1918, 101
      %v2087 = vpop.permute.xlu0 %2086
      %2088 = vrot.lane.b32.xlu0 %v1919, 101
      %v2089 = vpop.permute.xlu0 %2088
      %v2091 = vsel %vm1766, %v2083, 0
      %v2094 = vsel %vm1766, %v2085, 0
      %v2097 = vsel %vm1766, %v2087, 0
      %v2100 = vsel %vm1766, %v2089, 0
      %2102 = vmatprep.subr.bf16.mxu0 %v2043
      %2103 = vmatpush1.bf16.msra.mxu0 %v2042
      %2104 = vmatprep.subr.bf16.mxu0 %v2045
      %2105 = vmatpush1.bf16.msra.mxu0 %v2044
      %2106 = vmatprep.subr.bf16.mxu0 %v2047
      %2107 = vmatpush1.bf16.msra.mxu0 %v2046
      %2108 = vmatprep.subr.bf16.mxu0 %v2049
      %2109 = vmatpush1.bf16.msra.mxu0 %v2048
      %2110 = vmatprep.subr.bf16.mxu0 0
      %2111 = vmatpush1.bf16.msra.mxu0 0
      %2112 = vmatprep.subr.bf16.mxu0 0
      %2113 = vmatpush1.bf16.msra.mxu0 0
      %2114 = vmatprep.subr.bf16.mxu0 0
      %2115 = vmatpush1.bf16.msra.mxu0 0
      %2116 = vmatprep.subr.bf16.mxu0 0
      %2117 = vmatpush1.bf16.msra.mxu0 0
      %2118 = vmatprep.subr.bf16.mxu0 0
      %2119 = vmatpush1.bf16.msra.mxu0 0
      %2120 = vmatprep.subr.bf16.mxu0 0
      %2121 = vmatpush1.bf16.msra.mxu0 0
      %2122 = vmatprep.subr.bf16.mxu0 0
      %2123 = vmatpush1.bf16.msra.mxu0 0
      %2124 = vmatprep.subr.bf16.mxu0 0
      %2125 = vmatpush1.bf16.msra.mxu0 0
      %2126 = vmatprep.subr.bf16.mxu0 0
      %2127 = vmatpush1.bf16.msra.mxu0 0
      %2128 = vmatprep.subr.bf16.mxu0 0
      %2129 = vmatpush1.bf16.msra.mxu0 0
      %2130 = vmatprep.subr.bf16.mxu0 0
      %2131 = vmatpush1.bf16.msra.mxu0 0
      %2132 = vmatprep.subr.bf16.mxu0 0
      %2133 = vmatpush1.bf16.msra.mxu0 0
      %2134 = vmatprep.mubr.bf16.mxu0 0
      %2135 = vmatmul.mubr.bf16.gmra.mrb[0].mxu0 %v2091
      %v2136 = vpop.f32.mrb[0].mxu0
      %v2137 = vadd.f32 %v2052, %v2136
      %v2138 = vpop.f32.mrb[0].mxu0
      %v2139 = vadd.f32 %v2052, %v2138
      %v2140 = vpop.f32.mrb[0].mxu0
      %v2141 = vadd.f32 %v2056, %v2140
      %v2142 = vpop.f32.mrb[0].mxu0
      %v2143 = vadd.f32 %v2056, %v2142
      %2144 = vmatprep.mubr.bf16.mxu0 0
      %2145 = vmatmul.mubr.bf16.gmra.mrb[0].mxu0 %v2094
      %v2146 = vpop.f32.mrb[0].mxu0
      %v2147 = vadd.f32 %v2060, %v2146
      %v2148 = vpop.f32.mrb[0].mxu0
      %v2149 = vadd.f32 %v2060, %v2148
      %v2150 = vpop.f32.mrb[0].mxu0
      %v2151 = vadd.f32 %v2064, %v2150
      %v2152 = vpop.f32.mrb[0].mxu0
      %v2153 = vadd.f32 %v2064, %v2152
      %2154 = vmatprep.mubr.bf16.mxu0 0
      %2155 = vmatmul.mubr.bf16.gmra.mrb[0].mxu0 %v2097
      %v2156 = vpop.f32.mrb[0].mxu0
      %v2157 = vadd.f32 %v2068, %v2156
      %v2158 = vpop.f32.mrb[0].mxu0
      %v2159 = vadd.f32 %v2068, %v2158
      %v2160 = vpop.f32.mrb[0].mxu0
      %v2161 = vadd.f32 %v2072, %v2160
      %v2162 = vpop.f32.mrb[0].mxu0
      %v2163 = vadd.f32 %v2072, %v2162
      %2164 = vmatprep.mubr.bf16.mxu0 0
      %2165 = vmatmul.mubr.bf16.gmra.mrb[0].mxu0 %v2100
      %v2166 = vpop.f32.mrb[0].mxu0
      %v2167 = vadd.f32 %v2076, %v2166
      %v2168 = vpop.f32.mrb[0].mxu0
      %v2169 = vadd.f32 %v2076, %v2168
      %v2170 = vpop.f32.mrb[0].mxu0
      %v2171 = vadd.f32 %v2080, %v2170
      %v2172 = vpop.f32.mrb[0].mxu0
      %v2173 = vadd.f32 %v2080, %v2172
      %2174 = vdwg.mxu0
      %v2175 = vmax.f32 %v2137, 0.0
      %v2176 = vmax.f32 %v2139, 0.0
      %v2177 = vmax.f32 %v2141, 0.0
      %v2178 = vmax.f32 %v2143, 0.0
      %v2179 = vmax.f32 %v2147, 0.0
      %v2180 = vmax.f32 %v2149, 0.0
      %v2181 = vmax.f32 %v2151, 0.0
      %v2182 = vmax.f32 %v2153, 0.0
      %v2183 = vmax.f32 %v2157, 0.0
      %v2184 = vmax.f32 %v2159, 0.0
      %v2185 = vmax.f32 %v2161, 0.0
      %v2186 = vmax.f32 %v2163, 0.0
      %v2187 = vmax.f32 %v2167, 0.0
      %v2188 = vmax.f32 %v2169, 0.0
      %v2189 = vmax.f32 %v2171, 0.0
      %v2190 = vmax.f32 %v2173, 0.0
      %v2191 = vpack.c.bf16 %v2177, %v2175
      %v2192 = vpack.c.bf16 %v2178, %v2176
      %v2193 = vpack.c.bf16 %v2181, %v2179
      %v2194 = vpack.c.bf16 %v2182, %v2180
      %v2195 = vpack.c.bf16 %v2185, %v2183
      %v2196 = vpack.c.bf16 %v2186, %v2184
      %v2197 = vpack.c.bf16 %v2189, %v2187
      %v2198 = vpack.c.bf16 %v2190, %v2188
      %2199 = vset.pattern.permute.xlu0 4
      %2200 = vperm.xlu0 %2199, %v196
      %v2201 = vpop.permute.xlu0 %2200
      %2203 = vset.pattern.permute.xlu0 4
      %2204 = vperm.xlu0 %2203, %v197
      %v2205 = vpop.permute.xlu0 %2204
      %2207 = vset.pattern.permute.xlu0 4
      %2208 = vperm.xlu0 %2207, %v198
      %v2209 = vpop.permute.xlu0 %2208
      %2211 = vset.pattern.permute.xlu0 4
      %2212 = vperm.xlu0 %2211, %v199
      %v2213 = vpop.permute.xlu0 %2212
      %2215 = vset.pattern.permute.xlu0 4
      %2216 = vperm.xlu0 %2215, %v200
      %v2217 = vpop.permute.xlu0 %2216
      %2219 = vset.pattern.permute.xlu0 4
      %2220 = vperm.xlu0 %2219, %v201
      %v2221 = vpop.permute.xlu0 %2220
      %2223 = vset.pattern.permute.xlu0 4
      %2224 = vperm.xlu0 %2223, %v202
      %v2225 = vpop.permute.xlu0 %2224
      %2227 = vset.pattern.permute.xlu0 4
      %2228 = vperm.xlu0 %2227, %v203
      %v2229 = vpop.permute.xlu0 %2228
      %v2239 = vunpack.c.l.b16 %v176
      %v2240 = vunpack.c.l.b16 %v179
      %v2241 = vunpack.c.l.b16 %v182
      %v2242 = vunpack.c.l.b16 %v185
      %v2243 = vunpack.c.l.b16 %v188
      %v2244 = vunpack.c.l.b16 %v190
      %v2245 = vunpack.c.l.b16 %v192
      %v2246 = vunpack.c.l.b16 %v194
      %v2247 = vpack.c.b16 %v2240, %v2239
      %v2248 = vpack.c.b16 %v2242, %v2241
      %v2249 = vpack.c.b16 %v2244, %v2243
      %v2250 = vpack.c.b16 %v2246, %v2245
      %2251 = vrot.lane.b32.xlu0 %v2247, 37
      %v2252 = vpop.permute.xlu0 %2251
      %2253 = vrot.lane.b32.xlu0 %v2248, 37
      %v2254 = vpop.permute.xlu0 %2253
      %2255 = vrot.lane.b32.xlu0 %v2249, 37
      %v2256 = vpop.permute.xlu0 %2255
      %2257 = vrot.lane.b32.xlu0 %v2250, 37
      %v2258 = vpop.permute.xlu0 %2257
      %v2259 = vsel %vm1936, %v1923, %v2252
      %v2260 = vsel %vm1936, %v1927, %v2254
      %v2261 = vsel %vm1936, %v1931, %v2256
      %v2262 = vsel %vm1936, %v1935, %v2258
      %v2264 = vsel %vm1766, %v2259, 0
      %v2267 = vsel %vm1766, %v2260, 0
      %v2270 = vsel %vm1766, %v2261, 0
      %v2273 = vsel %vm1766, %v2262, 0
      %2275 = vmatprep.subr.bf16.mxu0 %v2192
      %2276 = vmatpush1.bf16.msra.mxu0 %v2191
      %2277 = vmatprep.subr.bf16.mxu0 %v2194
      %2278 = vmatpush1.bf16.msra.mxu0 %v2193
      %2279 = vmatprep.subr.bf16.mxu0 %v2196
      %2280 = vmatpush1.bf16.msra.mxu0 %v2195
      %2281 = vmatprep.subr.bf16.mxu0 %v2198
      %2282 = vmatpush1.bf16.msra.mxu0 %v2197
      %2283 = vmatprep.subr.bf16.mxu0 0
      %2284 = vmatpush1.bf16.msra.mxu0 0
      %2285 = vmatprep.subr.bf16.mxu0 0
      %2286 = vmatpush1.bf16.msra.mxu0 0
      %2287 = vmatprep.subr.bf16.mxu0 0
      %2288 = vmatpush1.bf16.msra.mxu0 0
      %2289 = vmatprep.subr.bf16.mxu0 0
      %2290 = vmatpush1.bf16.msra.mxu0 0
      %2291 = vmatprep.subr.bf16.mxu0 0
      %2292 = vmatpush1.bf16.msra.mxu0 0
      %2293 = vmatprep.subr.bf16.mxu0 0
      %2294 = vmatpush1.bf16.msra.mxu0 0
      %2295 = vmatprep.subr.bf16.mxu0 0
      %2296 = vmatpush1.bf16.msra.mxu0 0
      %2297 = vmatprep.subr.bf16.mxu0 0
      %2298 = vmatpush1.bf16.msra.mxu0 0
      %2299 = vmatprep.subr.bf16.mxu0 0
      %2300 = vmatpush1.bf16.msra.mxu0 0
      %2301 = vmatprep.subr.bf16.mxu0 0
      %2302 = vmatpush1.bf16.msra.mxu0 0
      %2303 = vmatprep.subr.bf16.mxu0 0
      %2304 = vmatpush1.bf16.msra.mxu0 0
      %2305 = vmatprep.subr.bf16.mxu0 0
      %2306 = vmatpush1.bf16.msra.mxu0 0
      %2307 = vmatprep.mubr.bf16.mxu0 0
      %2308 = vmatmul.mubr.bf16.gmra.mrb[0].mxu0 %v2264
      %v2309 = vpop.f32.mrb[0].mxu0
      %v2310 = vadd.f32 %v2201, %v2309
      %v2311 = vpop.f32.mrb[0].mxu0
      %v2312 = vadd.f32 %v2201, %v2311
      %v2313 = vpop.f32.mrb[0].mxu0
      %v2314 = vadd.f32 %v2205, %v2313
      %v2315 = vpop.f32.mrb[0].mxu0
      %v2316 = vadd.f32 %v2205, %v2315
      %2317 = vmatprep.mubr.bf16.mxu0 0
      %2318 = vmatmul.mubr.bf16.gmra.mrb[0].mxu0 %v2267
      %v2319 = vpop.f32.mrb[0].mxu0
      %v2320 = vadd.f32 %v2209, %v2319
      %v2321 = vpop.f32.mrb[0].mxu0
      %v2322 = vadd.f32 %v2209, %v2321
      %v2323 = vpop.f32.mrb[0].mxu0
      %v2324 = vadd.f32 %v2213, %v2323
      %v2325 = vpop.f32.mrb[0].mxu0
      %v2326 = vadd.f32 %v2213, %v2325
      %2327 = vmatprep.mubr.bf16.mxu0 0
      %2328 = vmatmul.mubr.bf16.gmra.mrb[0].mxu0 %v2270
      %v2329 = vpop.f32.mrb[0].mxu0
      %v2330 = vadd.f32 %v2217, %v2329
      %v2331 = vpop.f32.mrb[0].mxu0
      %v2332 = vadd.f32 %v2217, %v2331
      %v2333 = vpop.f32.mrb[0].mxu0
      %v2334 = vadd.f32 %v2221, %v2333
      %v2335 = vpop.f32.mrb[0].mxu0
      %v2336 = vadd.f32 %v2221, %v2335
      %2337 = vmatprep.mubr.bf16.mxu0 0
      %2338 = vmatmul.mubr.bf16.gmra.mrb[0].mxu0 %v2273
      %v2339 = vpop.f32.mrb[0].mxu0
      %v2340 = vadd.f32 %v2225, %v2339
      %v2341 = vpop.f32.mrb[0].mxu0
      %v2342 = vadd.f32 %v2225, %v2341
      %v2343 = vpop.f32.mrb[0].mxu0
      %v2344 = vadd.f32 %v2229, %v2343
      %v2345 = vpop.f32.mrb[0].mxu0
      %v2346 = vadd.f32 %v2229, %v2345
      %2347 = vdwg.mxu0
      %v2348 = vmax.f32 %v2310, 0.0
      %v2349 = vmax.f32 %v2312, 0.0
      %v2350 = vmax.f32 %v2314, 0.0
      %v2351 = vmax.f32 %v2316, 0.0
      %v2352 = vmax.f32 %v2320, 0.0
      %v2353 = vmax.f32 %v2322, 0.0
      %v2354 = vmax.f32 %v2324, 0.0
      %v2355 = vmax.f32 %v2326, 0.0
      %v2356 = vmax.f32 %v2330, 0.0
      %v2357 = vmax.f32 %v2332, 0.0
      %v2358 = vmax.f32 %v2334, 0.0
      %v2359 = vmax.f32 %v2336, 0.0
      %v2360 = vmax.f32 %v2340, 0.0
      %v2361 = vmax.f32 %v2342, 0.0
      %v2362 = vmax.f32 %v2344, 0.0
      %v2363 = vmax.f32 %v2346, 0.0
      %v2364 = vpack.c.bf16 %v2350, %v2348
      %v2365 = vpack.c.bf16 %v2351, %v2349
      %v2366 = vpack.c.bf16 %v2354, %v2352
      %v2367 = vpack.c.bf16 %v2355, %v2353
      %v2368 = vpack.c.bf16 %v2358, %v2356
      %v2369 = vpack.c.bf16 %v2359, %v2357
      %v2370 = vpack.c.bf16 %v2362, %v2360
      %v2371 = vpack.c.bf16 %v2363, %v2361
      %v2373 = vsel %vm1607, %v2252, 0
      %v2376 = vsel %vm1607, %v2254, 0
      %v2379 = vsel %vm1607, %v2256, 0
      %v2382 = vsel %vm1607, %v2258, 0
      %2384 = vmatprep.subr.bf16.mxu0 %v1104
      %2385 = vmatpush1.bf16.msra.mxu0 %v1103
      %2386 = vmatprep.subr.bf16.mxu0 %v1627
      %2387 = vmatpush1.bf16.msra.mxu0 %v1624
      %2388 = vmatprep.subr.bf16.mxu0 0
      %2389 = vmatpush1.bf16.msra.mxu0 0
      %2390 = vmatprep.subr.bf16.mxu0 0
      %2391 = vmatpush1.bf16.msra.mxu0 0
      %2392 = vmatprep.subr.bf16.mxu0 0
      %2393 = vmatpush1.bf16.msra.mxu0 0
      %2394 = vmatprep.subr.bf16.mxu0 0
      %2395 = vmatpush1.bf16.msra.mxu0 0
      %2396 = vmatprep.subr.bf16.mxu0 0
      %2397 = vmatpush1.bf16.msra.mxu0 0
      %2398 = vmatprep.subr.bf16.mxu0 0
      %2399 = vmatpush1.bf16.msra.mxu0 0
      %2400 = vmatprep.subr.bf16.mxu0 0
      %2401 = vmatpush1.bf16.msra.mxu0 0
      %2402 = vmatprep.subr.bf16.mxu0 0
      %2403 = vmatpush1.bf16.msra.mxu0 0
      %2404 = vmatprep.subr.bf16.mxu0 0
      %2405 = vmatpush1.bf16.msra.mxu0 0
      %2406 = vmatprep.subr.bf16.mxu0 0
      %2407 = vmatpush1.bf16.msra.mxu0 0
      %2408 = vmatprep.subr.bf16.mxu0 0
      %2409 = vmatpush1.bf16.msra.mxu0 0
      %2410 = vmatprep.subr.bf16.mxu0 0
      %2411 = vmatpush1.bf16.msra.mxu0 0
      %2412 = vmatprep.subr.bf16.mxu0 0
      %2413 = vmatpush1.bf16.msra.mxu0 0
      %2414 = vmatprep.subr.bf16.mxu0 0
      %2415 = vmatpush1.bf16.msra.mxu0 0
      %2416 = vmatprep.mubr.bf16.mxu0 0
      %2417 = vmatmul.mubr.bf16.gmra.mrb[0].mxu0 %v2373
      %v2418 = vpop.f32.mrb[0].mxu0
      %v2419 = vadd.f32 0.0, %v2418
      %v2420 = vpop.f32.mrb[0].mxu0
      %v2421 = vadd.f32 0.0, %v2420
      %v2422 = vpop.f32.mrb[0].mxu0
      %v2423 = vadd.f32 0.0, %v2422
      %v2424 = vpop.f32.mrb[0].mxu0
      %v2425 = vadd.f32 0.0, %v2424
      %2426 = vmatprep.mubr.bf16.mxu0 0
      %2427 = vmatmul.mubr.bf16.gmra.mrb[0].mxu0 %v2376
      %v2428 = vpop.f32.mrb[0].mxu0
      %v2429 = vadd.f32 0.0, %v2428
      %v2430 = vpop.f32.mrb[0].mxu0
      %v2431 = vadd.f32 0.0, %v2430
      %v2432 = vpop.f32.mrb[0].mxu0
      %v2433 = vadd.f32 0.0, %v2432
      %v2434 = vpop.f32.mrb[0].mxu0
      %v2435 = vadd.f32 0.0, %v2434
      %2436 = vmatprep.mubr.bf16.mxu0 0
      %2437 = vmatmul.mubr.bf16.gmra.mrb[0].mxu0 %v2379
      %v2438 = vpop.f32.mrb[0].mxu0
      %v2439 = vadd.f32 0.0, %v2438
      %v2440 = vpop.f32.mrb[0].mxu0
      %v2441 = vadd.f32 0.0, %v2440
      %v2442 = vpop.f32.mrb[0].mxu0
      %v2443 = vadd.f32 0.0, %v2442
      %v2444 = vpop.f32.mrb[0].mxu0
      %v2445 = vadd.f32 0.0, %v2444
      %2446 = vmatprep.mubr.bf16.mxu0 0
      %2447 = vmatmul.mubr.bf16.gmra.mrb[0].mxu0 %v2382
      %v2448 = vpop.f32.mrb[0].mxu0
      %v2449 = vadd.f32 0.0, %v2448
      %v2450 = vpop.f32.mrb[0].mxu0
      %v2451 = vadd.f32 0.0, %v2450
      %v2452 = vpop.f32.mrb[0].mxu0
      %v2453 = vadd.f32 0.0, %v2452
      %v2454 = vpop.f32.mrb[0].mxu0
      %v2455 = vadd.f32 0.0, %v2454
      %2456 = vdwg.mxu0
      %2457 = vrot.lane.b32.xlu0 %v2247, 101
      %v2458 = vpop.permute.xlu0 %2457
      %2459 = vrot.lane.b32.xlu0 %v2248, 101
      %v2460 = vpop.permute.xlu0 %2459
      %2461 = vrot.lane.b32.xlu0 %v2249, 101
      %v2462 = vpop.permute.xlu0 %2461
      %2463 = vrot.lane.b32.xlu0 %v2250, 101
      %v2464 = vpop.permute.xlu0 %2463
      %v2466 = vsel %vm1766, %v2458, 0
      %v2469 = vsel %vm1766, %v2460, 0
      %v2472 = vsel %vm1766, %v2462, 0
      %v2475 = vsel %vm1766, %v2464, 0
      %2477 = vmatprep.subr.bf16.mxu0 %v2365
      %2478 = vmatpush1.bf16.msra.mxu0 %v2364
      %2479 = vmatprep.subr.bf16.mxu0 %v2367
      %2480 = vmatpush1.bf16.msra.mxu0 %v2366
      %2481 = vmatprep.subr.bf16.mxu0 %v2369
      %2482 = vmatpush1.bf16.msra.mxu0 %v2368
      %2483 = vmatprep.subr.bf16.mxu0 %v2371
      %2484 = vmatpush1.bf16.msra.mxu0 %v2370
      %2485 = vmatprep.subr.bf16.mxu0 0
      %2486 = vmatpush1.bf16.msra.mxu0 0
      %2487 = vmatprep.subr.bf16.mxu0 0
      %2488 = vmatpush1.bf16.msra.mxu0 0
      %2489 = vmatprep.subr.bf16.mxu0 0
      %2490 = vmatpush1.bf16.msra.mxu0 0
      %2491 = vmatprep.subr.bf16.mxu0 0
      %2492 = vmatpush1.bf16.msra.mxu0 0
      %2493 = vmatprep.subr.bf16.mxu0 0
      %2494 = vmatpush1.bf16.msra.mxu0 0
      %2495 = vmatprep.subr.bf16.mxu0 0
      %2496 = vmatpush1.bf16.msra.mxu0 0
      %2497 = vmatprep.subr.bf16.mxu0 0
      %2498 = vmatpush1.bf16.msra.mxu0 0
      %2499 = vmatprep.subr.bf16.mxu0 0
      %2500 = vmatpush1.bf16.msra.mxu0 0
      %2501 = vmatprep.subr.bf16.mxu0 0
      %2502 = vmatpush1.bf16.msra.mxu0 0
      %2503 = vmatprep.subr.bf16.mxu0 0
      %2504 = vmatpush1.bf16.msra.mxu0 0
      %2505 = vmatprep.subr.bf16.mxu0 0
      %2506 = vmatpush1.bf16.msra.mxu0 0
      %2507 = vmatprep.subr.bf16.mxu0 0
      %2508 = vmatpush1.bf16.msra.mxu0 0
      %2509 = vmatprep.mubr.bf16.mxu0 0
      %2510 = vmatmul.mubr.bf16.gmra.mrb[0].mxu0 %v2466
      %v2511 = vpop.f32.mrb[0].mxu0
      %v2512 = vadd.f32 %v2419, %v2511
      %v2513 = vpop.f32.mrb[0].mxu0
      %v2514 = vadd.f32 %v2421, %v2513
      %v2515 = vpop.f32.mrb[0].mxu0
      %v2516 = vadd.f32 %v2423, %v2515
      %v2517 = vpop.f32.mrb[0].mxu0
      %v2518 = vadd.f32 %v2425, %v2517
      %2519 = vmatprep.mubr.bf16.mxu0 0
      %2520 = vmatmul.mubr.bf16.gmra.mrb[0].mxu0 %v2469
      %v2521 = vpop.f32.mrb[0].mxu0
      %v2522 = vadd.f32 %v2429, %v2521
      %v2523 = vpop.f32.mrb[0].mxu0
      %v2524 = vadd.f32 %v2431, %v2523
      %v2525 = vpop.f32.mrb[0].mxu0
      %v2526 = vadd.f32 %v2433, %v2525
      %v2527 = vpop.f32.mrb[0].mxu0
      %v2528 = vadd.f32 %v2435, %v2527
      %2529 = vmatprep.mubr.bf16.mxu0 0
      %2530 = vmatmul.mubr.bf16.gmra.mrb[0].mxu0 %v2472
      %v2531 = vpop.f32.mrb[0].mxu0
      %v2532 = vadd.f32 %v2439, %v2531
      %v2533 = vpop.f32.mrb[0].mxu0
      %v2534 = vadd.f32 %v2441, %v2533
      %v2535 = vpop.f32.mrb[0].mxu0
      %v2536 = vadd.f32 %v2443, %v2535
      %v2537 = vpop.f32.mrb[0].mxu0
      %v2538 = vadd.f32 %v2445, %v2537
      %2539 = vmatprep.mubr.bf16.mxu0 0
      %2540 = vmatmul.mubr.bf16.gmra.mrb[0].mxu0 %v2475
      %v2541 = vpop.f32.mrb[0].mxu0
      %v2542 = vadd.f32 %v2449, %v2541
      %v2543 = vpop.f32.mrb[0].mxu0
      %v2544 = vadd.f32 %v2451, %v2543
      %v2545 = vpop.f32.mrb[0].mxu0
      %v2546 = vadd.f32 %v2453, %v2545
      %v2547 = vpop.f32.mrb[0].mxu0
      %v2548 = vadd.f32 %v2455, %v2547
      %2549 = vdwg.mxu0
      %2550 = vset.pattern.permute.xlu0 5
      %2551 = vperm.xlu0 %2550, %v196
      %v2552 = vpop.permute.xlu0 %2551
      %2554 = vset.pattern.permute.xlu0 5
      %2555 = vperm.xlu0 %2554, %v197
      %v2556 = vpop.permute.xlu0 %2555
      %2558 = vset.pattern.permute.xlu0 5
      %2559 = vperm.xlu0 %2558, %v198
      %v2560 = vpop.permute.xlu0 %2559
      %2562 = vset.pattern.permute.xlu0 5
      %2563 = vperm.xlu0 %2562, %v199
      %v2564 = vpop.permute.xlu0 %2563
      %2566 = vset.pattern.permute.xlu0 5
      %2567 = vperm.xlu0 %2566, %v200
      %v2568 = vpop.permute.xlu0 %2567
      %2570 = vset.pattern.permute.xlu0 5
      %2571 = vperm.xlu0 %2570, %v201
      %v2572 = vpop.permute.xlu0 %2571
      %2574 = vset.pattern.permute.xlu0 5
      %2575 = vperm.xlu0 %2574, %v202
      %v2576 = vpop.permute.xlu0 %2575
      %2578 = vset.pattern.permute.xlu0 5
      %2579 = vperm.xlu0 %2578, %v203
      %v2580 = vpop.permute.xlu0 %2579
      %v2582 = vadd.f32 %v2512, %v2552
      %v2583 = vadd.f32 %v2514, %v2552
      %v2584 = vadd.f32 %v2516, %v2556
      %v2585 = vadd.f32 %v2518, %v2556
      %v2586 = vadd.f32 %v2522, %v2560
      %v2587 = vadd.f32 %v2524, %v2560
      %v2588 = vadd.f32 %v2526, %v2564
      %v2589 = vadd.f32 %v2528, %v2564
      %v2590 = vadd.f32 %v2532, %v2568
      %v2591 = vadd.f32 %v2534, %v2568
      %v2592 = vadd.f32 %v2536, %v2572
      %v2593 = vadd.f32 %v2538, %v2572
      %v2594 = vadd.f32 %v2542, %v2576
      %v2595 = vadd.f32 %v2544, %v2576
      %v2596 = vadd.f32 %v2546, %v2580
      %v2597 = vadd.f32 %v2548, %v2580
      %v2598 = vmax.f32 %v2582, 0.0
      %v2599 = vmax.f32 %v2583, 0.0
      %v2600 = vmax.f32 %v2584, 0.0
      %v2601 = vmax.f32 %v2585, 0.0
      %v2602 = vmax.f32 %v2586, 0.0
      %v2603 = vmax.f32 %v2587, 0.0
      %v2604 = vmax.f32 %v2588, 0.0
      %v2605 = vmax.f32 %v2589, 0.0
      %v2606 = vmax.f32 %v2590, 0.0
      %v2607 = vmax.f32 %v2591, 0.0
      %v2608 = vmax.f32 %v2592, 0.0
      %v2609 = vmax.f32 %v2593, 0.0
      %v2610 = vmax.f32 %v2594, 0.0
      %v2611 = vmax.f32 %v2595, 0.0
      %v2612 = vmax.f32 %v2596, 0.0
      %v2613 = vmax.f32 %v2597, 0.0
      %v2614 = vpack.c.bf16 %v2600, %v2598
      %v2615 = vpack.c.bf16 %v2601, %v2599
      %v2616 = vpack.c.bf16 %v2604, %v2602
      %v2617 = vpack.c.bf16 %v2605, %v2603
      %v2618 = vpack.c.bf16 %v2608, %v2606
      %v2619 = vpack.c.bf16 %v2609, %v2607
      %v2620 = vpack.c.bf16 %v2612, %v2610
      %v2621 = vpack.c.bf16 %v2613, %v2611
      %2622 = vset.pattern.permute.xlu0 6
      %2623 = vperm.xlu0 %2622, %v196
      %v2624 = vpop.permute.xlu0 %2623
      %2626 = vset.pattern.permute.xlu0 6
      %2627 = vperm.xlu0 %2626, %v197
      %v2628 = vpop.permute.xlu0 %2627
      %2630 = vset.pattern.permute.xlu0 6
      %2631 = vperm.xlu0 %2630, %v198
      %v2632 = vpop.permute.xlu0 %2631
      %2634 = vset.pattern.permute.xlu0 6
      %2635 = vperm.xlu0 %2634, %v199
      %v2636 = vpop.permute.xlu0 %2635
      %2638 = vset.pattern.permute.xlu0 6
      %2639 = vperm.xlu0 %2638, %v200
      %v2640 = vpop.permute.xlu0 %2639
      %2642 = vset.pattern.permute.xlu0 6
      %2643 = vperm.xlu0 %2642, %v201
      %v2644 = vpop.permute.xlu0 %2643
      %2646 = vset.pattern.permute.xlu0 6
      %2647 = vperm.xlu0 %2646, %v202
      %v2648 = vpop.permute.xlu0 %2647
      %2650 = vset.pattern.permute.xlu0 6
      %2651 = vperm.xlu0 %2650, %v203
      %v2652 = vpop.permute.xlu0 %2651
      %2655 = vset.pattern.permute.xlu0 6
      %2656 = vperm.xlu0 %2655, %v204
      %v2657 = vpop.permute.xlu0 %2656
      %v2660 = vunpack.c.h.b16 %v176
      %v2661 = vunpack.c.h.b16 %v179
      %v2662 = vunpack.c.h.b16 %v182
      %v2663 = vunpack.c.h.b16 %v185
      %v2664 = vunpack.c.h.b16 %v188
      %v2665 = vunpack.c.h.b16 %v190
      %v2666 = vunpack.c.h.b16 %v192
      %v2667 = vunpack.c.h.b16 %v194
      %v2668 = vunpack.c.l.b16 %v195
      %v2669 = vunpack.c.h.b16 %v195
      %v2670 = vpack.c.b16 %v2661, %v2660
      %v2671 = vpack.c.b16 %v2663, %v2662
      %v2672 = vpack.c.b16 %v2665, %v2664
      %v2673 = vpack.c.b16 %v2667, %v2666
      %v2674 = vpack.c.b16 %v2668, %v2668
      %v2675 = vpack.c.b16 %v2669, %v2669
      %2676 = vrot.lane.b32.xlu0 %v2247, 10
      %v2677 = vpop.permute.xlu0 %2676
      %2678 = vrot.lane.b32.xlu0 %v2670, 10
      %v2679 = vpop.permute.xlu0 %2678
      %2680 = vrot.lane.b32.xlu0 %v2248, 10
      %v2681 = vpop.permute.xlu0 %2680
      %2682 = vrot.lane.b32.xlu0 %v2671, 10
      %v2683 = vpop.permute.xlu0 %2682
      %2684 = vrot.lane.b32.xlu0 %v2249, 10
      %v2685 = vpop.permute.xlu0 %2684
      %2686 = vrot.lane.b32.xlu0 %v2672, 10
      %v2687 = vpop.permute.xlu0 %2686
      %2688 = vrot.lane.b32.xlu0 %v2250, 10
      %v2689 = vpop.permute.xlu0 %2688
      %2690 = vrot.lane.b32.xlu0 %v2673, 10
      %v2691 = vpop.permute.xlu0 %2690
      %2692 = vrot.lane.b32.xlu0 %v2674, 10
      %v2693 = vpop.permute.xlu0 %2692
      %2694 = vrot.lane.b32.xlu0 %v2675, 10
      %v2695 = vpop.permute.xlu0 %2694
      %vm2696 = vcmask 80896
      %v2697 = vsel %vm2696, %v2677, %v2679
      %v2698 = vsel %vm2696, %v2681, %v2683
      %v2699 = vsel %vm2696, %v2685, %v2687
      %v2700 = vsel %vm2696, %v2689, %v2691
      %v2701 = vsel %vm2696, %v2693, %v2695
      %v2703 = vsel %vm1766, %v2697, 0
      %v2706 = vsel %vm1766, %v2698, 0
      %v2709 = vsel %vm1766, %v2699, 0
      %v2712 = vsel %vm1766, %v2700, 0
      %v2715 = vsel %vm1766, %v2701, 0
      %2717 = vmatprep.subr.bf16.mxu0 %v2615
      %2718 = vmatpush1.bf16.msra.mxu0 %v2614
      %2719 = vmatprep.subr.bf16.mxu0 %v2617
      %2720 = vmatpush1.bf16.msra.mxu0 %v2616
      %2721 = vmatprep.subr.bf16.mxu0 %v2619
      %2722 = vmatpush1.bf16.msra.mxu0 %v2618
      %2723 = vmatprep.subr.bf16.mxu0 %v2621
      %2724 = vmatpush1.bf16.msra.mxu0 %v2620
      %2725 = vmatprep.subr.bf16.mxu0 0
      %2726 = vmatpush1.bf16.msra.mxu0 0
      %2727 = vmatprep.subr.bf16.mxu0 0
      %2728 = vmatpush1.bf16.msra.mxu0 0
      %2729 = vmatprep.subr.bf16.mxu0 0
      %2730 = vmatpush1.bf16.msra.mxu0 0
      %2731 = vmatprep.subr.bf16.mxu0 0
      %2732 = vmatpush1.bf16.msra.mxu0 0
      %2733 = vmatprep.subr.bf16.mxu0 0
      %2734 = vmatpush1.bf16.msra.mxu0 0
      %2735 = vmatprep.subr.bf16.mxu0 0
      %2736 = vmatpush1.bf16.msra.mxu0 0
      %2737 = vmatprep.subr.bf16.mxu0 0
      %2738 = vmatpush1.bf16.msra.mxu0 0
      %2739 = vmatprep.subr.bf16.mxu0 0
      %2740 = vmatpush1.bf16.msra.mxu0 0
      %2741 = vmatprep.subr.bf16.mxu0 0
      %2742 = vmatpush1.bf16.msra.mxu0 0
      %2743 = vmatprep.subr.bf16.mxu0 0
      %2744 = vmatpush1.bf16.msra.mxu0 0
      %2745 = vmatprep.subr.bf16.mxu0 0
      %2746 = vmatpush1.bf16.msra.mxu0 0
      %2747 = vmatprep.subr.bf16.mxu0 0
      %2748 = vmatpush1.bf16.msra.mxu0 0
      %2749 = vmatprep.mubr.bf16.mxu0 0
      %2750 = vmatmul.mubr.bf16.gmra.mrb[0].mxu0 %v2703
      %v2751 = vpop.f32.mrb[0].mxu0
      %v2752 = vadd.f32 %v2624, %v2751
      %v2753 = vpop.f32.mrb[0].mxu0
      %v2754 = vadd.f32 %v2624, %v2753
      %v2755 = vpop.f32.mrb[0].mxu0
      %v2756 = vadd.f32 %v2628, %v2755
      %v2757 = vpop.f32.mrb[0].mxu0
      %v2758 = vadd.f32 %v2628, %v2757
      %2759 = vmatprep.mubr.bf16.mxu0 0
      %2760 = vmatmul.mubr.bf16.gmra.mrb[0].mxu0 %v2706
      %v2761 = vpop.f32.mrb[0].mxu0
      %v2762 = vadd.f32 %v2632, %v2761
      %v2763 = vpop.f32.mrb[0].mxu0
      %v2764 = vadd.f32 %v2632, %v2763
      %v2765 = vpop.f32.mrb[0].mxu0
      %v2766 = vadd.f32 %v2636, %v2765
      %v2767 = vpop.f32.mrb[0].mxu0
      %v2768 = vadd.f32 %v2636, %v2767
      %2769 = vmatprep.mubr.bf16.mxu0 0
      %2770 = vmatmul.mubr.bf16.gmra.mrb[0].mxu0 %v2709
      %v2771 = vpop.f32.mrb[0].mxu0
      %v2772 = vadd.f32 %v2640, %v2771
      %v2773 = vpop.f32.mrb[0].mxu0
      %v2774 = vadd.f32 %v2640, %v2773
      %v2775 = vpop.f32.mrb[0].mxu0
      %v2776 = vadd.f32 %v2644, %v2775
      %v2777 = vpop.f32.mrb[0].mxu0
      %v2778 = vadd.f32 %v2644, %v2777
      %2779 = vmatprep.mubr.bf16.mxu0 0
      %2780 = vmatmul.mubr.bf16.gmra.mrb[0].mxu0 %v2712
      %v2781 = vpop.f32.mrb[0].mxu0
      %v2782 = vadd.f32 %v2648, %v2781
      %v2783 = vpop.f32.mrb[0].mxu0
      %v2784 = vadd.f32 %v2648, %v2783
      %v2785 = vpop.f32.mrb[0].mxu0
      %v2786 = vadd.f32 %v2652, %v2785
      %v2787 = vpop.f32.mrb[0].mxu0
      %v2788 = vadd.f32 %v2652, %v2787
      %2789 = vmatprep.mubr.bf16.mxu0 0
      %2790 = vmatmul.mubr.bf16.gmra.mrb[0].mxu0 %v2715
      %v2791 = vpop.f32.mrb[0].mxu0
      %v2792 = vadd.f32 %v2657, %v2791
      %v2793 = vpop.f32.mrb[0].mxu0
      %v2794 = vadd.f32 %v2657, %v2793
      %v2795 = vpop.f32.mrb[0].mxu0
      %v2796 = vpop.f32.mrb[0].mxu0
      %2797 = vdwg.mxu0
      %v2798 = vpack.c.bf16 %v2756, %v2752
      %v2799 = vpack.c.bf16 %v2758, %v2754
      %v2800 = vpack.c.bf16 %v2766, %v2762
      %v2801 = vpack.c.bf16 %v2768, %v2764
      %v2802 = vpack.c.bf16 %v2776, %v2772
      %v2803 = vpack.c.bf16 %v2778, %v2774
      %v2804 = vpack.c.bf16 %v2786, %v2782
      %v2805 = vpack.c.bf16 %v2788, %v2784
      %v2810 = vunpack.c.l.b16 %v177
      %v2811 = vunpack.c.l.b16 %v180
      %v2812 = vunpack.c.l.b16 %v183
      %v2813 = vunpack.c.l.b16 %v186
      %v2814 = vpack.c.b16 %v2811, %v2810
      %v2815 = vpack.c.b16 %v2813, %v2812
      %2816 = vrot.lane.b32.xlu0 %v2814, 10
      %v2817 = vpop.permute.xlu0 %2816
      %2818 = vrot.lane.b32.xlu0 %v2815, 10
      %v2819 = vpop.permute.xlu0 %2818
      %v2820 = vsel %vm2696, %v2679, %v2817
      %v2821 = vsel %vm2696, %v2683, %v2819
      %vm2822 = vcmask 121856
      %v2824 = vsel %vm2822, %v2820, 0
      %v2827 = vsel %vm2822, %v2821, 0
      %vm2829 = vcmask 1047552
      %v2830 = vsel %vm1086, 4294967295, 65535
      %v2831 = vsel %vm2829, %v2830, 0
      %v2833 = vand.u32 %v1545, %v2831
      %v2836 = vand.u32 %v1546, %v2831
      %2838 = vmatprep.subr.bf16.mxu0 %v2836
      %2839 = vmatpush1.bf16.msra.mxu0 %v2833
      %2840 = vmatprep.subr.bf16.mxu0 0
      %2841 = vmatpush1.bf16.msra.mxu0 0
      %2842 = vmatprep.subr.bf16.mxu0 0
      %2843 = vmatpush1.bf16.msra.mxu0 0
      %2844 = vmatprep.subr.bf16.mxu0 0
      %2845 = vmatpush1.bf16.msra.mxu0 0
      %2846 = vmatprep.subr.bf16.mxu0 0
      %2847 = vmatpush1.bf16.msra.mxu0 0
      %2848 = vmatprep.subr.bf16.mxu0 0
      %2849 = vmatpush1.bf16.msra.mxu0 0
      %2850 = vmatprep.subr.bf16.mxu0 0
      %2851 = vmatpush1.bf16.msra.mxu0 0
      %2852 = vmatprep.subr.bf16.mxu0 0
      %2853 = vmatpush1.bf16.msra.mxu0 0
      %2854 = vmatprep.subr.bf16.mxu0 0
      %2855 = vmatpush1.bf16.msra.mxu0 0
      %2856 = vmatprep.subr.bf16.mxu0 0
      %2857 = vmatpush1.bf16.msra.mxu0 0
      %2858 = vmatprep.subr.bf16.mxu0 0
      %2859 = vmatpush1.bf16.msra.mxu0 0
      %2860 = vmatprep.subr.bf16.mxu0 0
      %2861 = vmatpush1.bf16.msra.mxu0 0
      %2862 = vmatprep.subr.bf16.mxu0 0
      %2863 = vmatpush1.bf16.msra.mxu0 0
      %2864 = vmatprep.subr.bf16.mxu0 0
      %2865 = vmatpush1.bf16.msra.mxu0 0
      %2866 = vmatprep.subr.bf16.mxu0 0
      %2867 = vmatpush1.bf16.msra.mxu0 0
      %2868 = vmatprep.subr.bf16.mxu0 0
      %2869 = vmatpush1.bf16.msra.mxu0 0
      %2870 = vmatprep.mubr.bf16.mxu0 0
      %2871 = vmatmul.mubr.bf16.gmra.mrb[0].mxu0 %v2824
      %v2872 = vpop.f32.mrb[0].mxu0
      %v2873 = vadd.f32 0.0, %v2872
      %v2874 = vpop.f32.mrb[0].mxu0
      %v2875 = vadd.f32 0.0, %v2874
      %v2876 = vpop.f32.mrb[0].mxu0
      %v2877 = vadd.f32 0.0, %v2876
      %v2878 = vpop.f32.mrb[0].mxu0
      %v2879 = vadd.f32 0.0, %v2878
      %2880 = vmatprep.mubr.bf16.mxu0 0
      %2881 = vmatmul.mubr.bf16.gmra.mrb[0].mxu0 %v2827
      %v2882 = vpop.f32.mrb[0].mxu0
      %v2883 = vadd.f32 0.0, %v2882
      %v2884 = vpop.f32.mrb[0].mxu0
      %v2885 = vadd.f32 0.0, %v2884
      %v2886 = vpop.f32.mrb[0].mxu0
      %v2887 = vadd.f32 0.0, %v2886
      %v2888 = vpop.f32.mrb[0].mxu0
      %v2889 = vadd.f32 0.0, %v2888
      %2890 = vdwg.mxu0
      %2891 = vrot.lane.b32.xlu0 %v2670, 74
      %v2892 = vpop.permute.xlu0 %2891
      %2893 = vrot.lane.b32.xlu0 %v2671, 74
      %v2894 = vpop.permute.xlu0 %2893
      %v2896 = vsel %vm1766, %v2892, 0
      %v2899 = vsel %vm1766, %v2894, 0
      %2901 = vmatprep.subr.bf16.mxu0 %v2799
      %2902 = vmatpush1.bf16.msra.mxu0 %v2798
      %2903 = vmatprep.subr.bf16.mxu0 %v2801
      %2904 = vmatpush1.bf16.msra.mxu0 %v2800
      %2905 = vmatprep.subr.bf16.mxu0 %v2803
      %2906 = vmatpush1.bf16.msra.mxu0 %v2802
      %2907 = vmatprep.subr.bf16.mxu0 %v2805
      %2908 = vmatpush1.bf16.msra.mxu0 %v2804
      %2909 = vmatprep.subr.bf16.mxu0 0
      %2910 = vmatpush1.bf16.msra.mxu0 0
      %2911 = vmatprep.subr.bf16.mxu0 0
      %2912 = vmatpush1.bf16.msra.mxu0 0
      %2913 = vmatprep.subr.bf16.mxu0 0
      %2914 = vmatpush1.bf16.msra.mxu0 0
      %2915 = vmatprep.subr.bf16.mxu0 0
      %2916 = vmatpush1.bf16.msra.mxu0 0
      %2917 = vmatprep.subr.bf16.mxu0 0
      %2918 = vmatpush1.bf16.msra.mxu0 0
      %2919 = vmatprep.subr.bf16.mxu0 0
      %2920 = vmatpush1.bf16.msra.mxu0 0
      %2921 = vmatprep.subr.bf16.mxu0 0
      %2922 = vmatpush1.bf16.msra.mxu0 0
      %2923 = vmatprep.subr.bf16.mxu0 0
      %2924 = vmatpush1.bf16.msra.mxu0 0
      %2925 = vmatprep.subr.bf16.mxu0 0
      %2926 = vmatpush1.bf16.msra.mxu0 0
      %2927 = vmatprep.subr.bf16.mxu0 0
      %2928 = vmatpush1.bf16.msra.mxu0 0
      %2929 = vmatprep.subr.bf16.mxu0 0
      %2930 = vmatpush1.bf16.msra.mxu0 0
      %2931 = vmatprep.subr.bf16.mxu0 0
      %2932 = vmatpush1.bf16.msra.mxu0 0
      %2933 = vmatprep.mubr.bf16.mxu0 0
      %2934 = vmatmul.mubr.bf16.gmra.mrb[0].mxu0 %v2896
      %v2935 = vpop.f32.mrb[0].mxu0
      %v2936 = vadd.f32 %v2873, %v2935
      %v2937 = vpop.f32.mrb[0].mxu0
      %v2938 = vadd.f32 %v2875, %v2937
      %v2939 = vpop.f32.mrb[0].mxu0
      %v2940 = vadd.f32 %v2877, %v2939
      %v2941 = vpop.f32.mrb[0].mxu0
      %v2942 = vadd.f32 %v2879, %v2941
      %2943 = vmatprep.mubr.bf16.mxu0 0
      %2944 = vmatmul.mubr.bf16.gmra.mrb[0].mxu0 %v2899
      %v2945 = vpop.f32.mrb[0].mxu0
      %v2946 = vadd.f32 %v2883, %v2945
      %v2947 = vpop.f32.mrb[0].mxu0
      %v2948 = vadd.f32 %v2885, %v2947
      %v2949 = vpop.f32.mrb[0].mxu0
      %v2950 = vadd.f32 %v2887, %v2949
      %v2951 = vpop.f32.mrb[0].mxu0
      %v2952 = vadd.f32 %v2889, %v2951
      %2953 = vdwg.mxu0
      %2954 = vset.pattern.permute.xlu0 7
      %2955 = vperm.xlu0 %2954, %v196
      %v2956 = vpop.permute.xlu0 %2955
      %2958 = vset.pattern.permute.xlu0 7
      %2959 = vperm.xlu0 %2958, %v197
      %v2960 = vpop.permute.xlu0 %2959
      %2962 = vset.pattern.permute.xlu0 7
      %2963 = vperm.xlu0 %2962, %v198
      %v2964 = vpop.permute.xlu0 %2963
      %2966 = vset.pattern.permute.xlu0 7
      %2967 = vperm.xlu0 %2966, %v199
      %v2968 = vpop.permute.xlu0 %2967
      %v2970 = vadd.f32 %v2936, %v2956
      %v2971 = vadd.f32 %v2938, %v2956
      %v2972 = vadd.f32 %v2940, %v2960
      %v2973 = vadd.f32 %v2942, %v2960
      %v2974 = vadd.f32 %v2946, %v2964
      %v2975 = vadd.f32 %v2948, %v2964
      %v2976 = vadd.f32 %v2950, %v2968
      %v2977 = vadd.f32 %v2952, %v2968
      %v2978 = vmax.f32 %v2970, 0.0
      %v2979 = vmax.f32 %v2971, 0.0
      %v2980 = vmax.f32 %v2972, 0.0
      %v2981 = vmax.f32 %v2973, 0.0
      %v2982 = vmax.f32 %v2974, 0.0
      %v2983 = vmax.f32 %v2975, 0.0
      %v2984 = vmax.f32 %v2976, 0.0
      %v2985 = vmax.f32 %v2977, 0.0
      %v2986 = vpack.c.bf16 %v2980, %v2978
      %v2987 = vpack.c.bf16 %v2981, %v2979
      %v2988 = vpack.c.bf16 %v2984, %v2982
      %v2989 = vpack.c.bf16 %v2985, %v2983
      %2990 = vset.pattern.permute.xlu0 8
      %2991 = vperm.xlu0 %2990, %v196
      %v2992 = vpop.permute.xlu0 %2991
      %v2994 = vpack.c.b16 %v2810, %v2810
      %2995 = vrot.lane.b32.xlu0 %v2994, 123
      %v2996 = vpop.permute.xlu0 %2995
      %vm2997 = vcmask 261120
      %v2999 = vsel %vm2997, %v2996, 0
      %3001 = vmatprep.subr.bf16.mxu0 %v2987
      %3002 = vmatpush1.bf16.msra.mxu0 %v2986
      %3003 = vmatprep.subr.bf16.mxu0 %v2989
      %3004 = vmatpush1.bf16.msra.mxu0 %v2988
      %3005 = vmatprep.subr.bf16.mxu0 0
      %3006 = vmatpush1.bf16.msra.mxu0 0
      %3007 = vmatprep.subr.bf16.mxu0 0
      %3008 = vmatpush1.bf16.msra.mxu0 0
      %3009 = vmatprep.subr.bf16.mxu0 0
      %3010 = vmatpush1.bf16.msra.mxu0 0
      %3011 = vmatprep.subr.bf16.mxu0 0
      %3012 = vmatpush1.bf16.msra.mxu0 0
      %3013 = vmatprep.subr.bf16.mxu0 0
      %3014 = vmatpush1.bf16.msra.mxu0 0
      %3015 = vmatprep.subr.bf16.mxu0 0
      %3016 = vmatpush1.bf16.msra.mxu0 0
      %3017 = vmatprep.subr.bf16.mxu0 0
      %3018 = vmatpush1.bf16.msra.mxu0 0
      %3019 = vmatprep.subr.bf16.mxu0 0
      %3020 = vmatpush1.bf16.msra.mxu0 0
      %3021 = vmatprep.subr.bf16.mxu0 0
      %3022 = vmatpush1.bf16.msra.mxu0 0
      %3023 = vmatprep.subr.bf16.mxu0 0
      %3024 = vmatpush1.bf16.msra.mxu0 0
      %3025 = vmatprep.subr.bf16.mxu0 0
      %3026 = vmatpush1.bf16.msra.mxu0 0
      %3027 = vmatprep.subr.bf16.mxu0 0
      %3028 = vmatpush1.bf16.msra.mxu0 0
      %3029 = vmatprep.subr.bf16.mxu0 0
      %3030 = vmatpush1.bf16.msra.mxu0 0
      %3031 = vmatprep.subr.bf16.mxu0 0
      %3032 = vmatpush1.bf16.msra.mxu0 0
      %3033 = vmatprep.mubr.bf16.mxu0 0
      %3034 = vmatmul.mubr.bf16.gmra.mrb[0].mxu0 %v2999
      %v3035 = vpop.f32.mrb[0].mxu0
      %v3036 = vadd.f32 %v2992, %v3035
      %v3037 = vpop.f32.mrb[0].mxu0
      %v3038 = vadd.f32 %v2992, %v3037
      %v3039 = vpop.f32.mrb[0].mxu0
      %v3040 = vpop.f32.mrb[0].mxu0
      %3041 = vdwg.mxu0
      %v3044 = vrot.slane %v2792, 5
      %v3045 = vrot.slane %v2794, 5
      %v3048 = vsel %vm231, %v3036, %v3044
      %v3049 = vsel %vm231, %v3038, %v3045
      %vm3050 = vcmask 1043456
      %v3051 = vsel %vm3050, %v3048, 0.0
      %v3052 = vsel %vm3050, %v3049, 0.0
      %3053 = vst [vmem:[%s172] sm:$0xff] %v3051
      %3054 = vst [vmem:[%s172 + $0x8] sm:$0xff] %v3052
      %s3055 = smul.u32 2, %s14
      %p3056 = scmp.lt.s32.totalorder %s3055, 3
      %s3057 = scalar_select %p3056, %s3055, 3
      %s3058 = smul.addr %s3057, 8
      %s3059 = scalar_lea.vmem %s3, %s3058
      // Predicated region
      $region33: #{_pipeline.10} parent=31 // pred_check
        %p3060 = pneg %p100
      $region34: #{_pipeline.10} parent=31 // pred_check_branch
        %3062 = sbr.rel (%p3060) target = $region36
      $region35: #{_pipeline.10} parent=31 // pred_region
        %s3063 = smul.u32 2, %s14
      $region36: #{_pipeline.10} parent=31 // pred_fallthru
        _
    $region32: #{_pipeline.10} parent=5 // pred_fallthru
      _
    %p3064 = scmp.le.s32.totalorder 2, %s9
    // Predicated region
    $region37: #{_pipeline.10} parent=5 // pred_check
      %p3065 = pneg %p3064
    $region38: #{_pipeline.10} parent=5 // pred_check_branch
      %3067 = sbr.rel (%p3065) target = $region40
    $region39: #{_pipeline.10} parent=5 // pred_region
      %s3068 = ssub.s32 %s9, 2
      // Predicated region
      $region41: #{_pipeline.10} parent=39 // pred_check
        %p3069 = pneg %p106
      $region42: #{_pipeline.10} parent=39 // pred_check_branch
        %3071 = sbr.rel (%p3069) target = $region44
      $region43: #{_pipeline.10} parent=39 // pred_region
        %s3072 = smul.u32 2, %s15
        %p3073 = scmp.lt.s32.totalorder %s3072, 3
        %s3074 = scalar_select %p3073, %s3072, 3
        %s3075 = smul.addr %s3074, 8
        %s3076 = scalar_lea.vmem %s3, %s3075
      $region44: #{_pipeline.10} parent=39 // pred_fallthru
        _
    $region40: #{_pipeline.10} parent=5 // pred_fallthru
      _
  $region6: #{_pipeline.10} parent=0 // loop_footer
    %s13 = sadd.s32 1, %s9
  $region7: #{_pipeline.10} parent=0 // loop_footer_branch
    %8 = sbr.rel target = $region3
  $region8: #{_pipeline.10} parent=0 // loop_exit
    _

// kernel: _pipeline.13
$region0: #{_pipeline.13}
  #allocation0 [shape = 'u32[]', space=smem, size = 0x4, offset = 0x4, fixed_abs, tag = 'smem constant byte address 0x4 - core index']
  #allocation1 [shape = 'u32[144,128]{1,0:T(1,128)}', space=vmem, size = 0x12000, scoped, tag = 'internal scratch']
  %s0 = inlined_call_operand.vmem [shape: f32[64,64], index: 0, kind: input, shape index: {}]
  %s1 = inlined_call_operand.vmem [shape: f32[16,64], index: 1, kind: input, shape index: {}]
  %s2 = inlined_call_operand.vmem [shape: f32[16,64], index: 2, kind: input, shape index: {}]
  %s3 = inlined_call_operand.vmem [shape: f32[3,64], index: 3, kind: input, shape index: {}]
  %s4 = inlined_call_operand.vmem [shape: f32[16,16], index: 4, kind: input, shape index: {}]
  %s5 = inlined_call_operand.vmem [shape: f32[8,64], index: 5, kind: output, shape index: {0}]
  %s6 = inlined_call_operand.vmem [shape: f32[16,64], index: 6, kind: output, shape index: {1}]
  %7 = xla_tuple %s5, %s6
  %s8 = sld [smem:[#allocation0]]
  $region38: #{_pipeline.13} parent=0
    _
  %s10 = ssub.s32 1, %s8
  %s11 = scalar_select 0, %s10, %s8
  // Predicated region
  $region2: #{_pipeline.13} parent=0 // pred_check
    _
  $region3: #{_pipeline.13} parent=0 // pred_check_branch
    %13 = sbr.rel (0) target = $region5
  $region4: #{_pipeline.13} parent=0 // pred_region
    _
  $region5: #{_pipeline.13} parent=0 // pred_fallthru
    _
  // Predicated region
  $region6: #{_pipeline.13} parent=0 // pred_check
    _
  $region7: #{_pipeline.13} parent=0 // pred_check_branch
    %15 = sbr.rel (0) target = $region9
  $region8: #{_pipeline.13} parent=0 // pred_region
    _
  $region9: #{_pipeline.13} parent=0 // pred_fallthru
    _
  // Predicated region
  $region10: #{_pipeline.13} parent=0 // pred_check
    _
  $region11: #{_pipeline.13} parent=0 // pred_check_branch
    %17 = sbr.rel (0) target = $region13
  $region12: #{_pipeline.13} parent=0 // pred_region
    _
  $region13: #{_pipeline.13} parent=0 // pred_fallthru
    _
  // Predicated region
  $region14: #{_pipeline.13} parent=0 // pred_check
    _
  $region15: #{_pipeline.13} parent=0 // pred_check_branch
    %19 = sbr.rel (0) target = $region17
  $region16: #{_pipeline.13} parent=0 // pred_region
    _
  $region17: #{_pipeline.13} parent=0 // pred_fallthru
    _
  // Predicated region
  $region18: #{_pipeline.13} parent=0 // pred_check
    _
  $region19: #{_pipeline.13} parent=0 // pred_check_branch
    %21 = sbr.rel (0) target = $region21
  $region20: #{_pipeline.13} parent=0 // pred_region
    _
  $region21: #{_pipeline.13} parent=0 // pred_fallthru
    _
  %v22 = vld [vmem:[%s0] sm:$0xff]
  %v23 = vld [vmem:[%s0 + $0x8] sm:$0xff]
  %v24 = vld [vmem:[%s0 + $0x10] sm:$0xff]
  %v25 = vld [vmem:[%s0 + $0x18] sm:$0xff]
  %v26 = vld [vmem:[%s0 + $0x20] sm:$0xff]
  %v27 = vld [vmem:[%s0 + $0x28] sm:$0xff]
  %v28 = vld [vmem:[%s0 + $0x30] sm:$0xff]
  %v29 = vld [vmem:[%s0 + $0x38] sm:$0xff]
  %v30 = vld [vmem:[%s1] sm:$0xff]
  %v31 = vld [vmem:[%s1 + $0x8] sm:$0xff]
  %v32 = vld [vmem:[%s2] sm:$0xff]
  %v33 = vld [vmem:[%s2 + $0x8] sm:$0xff]
  %v34 = vld [vmem:[%s3] sm:$0x7]
  %v35 = vld [vmem:[%s4] sm:$0xff]
  %v36 = vld [vmem:[%s4 + $0x8] sm:$0xff]
  %v37 = vmax.f32 %v28, 0.0
  %v38 = vmax.f32 %v29, 0.0
  %v39 = vadd.f32 %v37, 1e-06
  %v40 = vadd.f32 %v38, 1e-06
  %v41 = vmul.f32 %v39, %v32
  %v42 = vmul.f32 %v40, %v33
  %v43 = vsub.f32 0.0, %v41
  %v44 = vsub.f32 0.0, %v42
  %v45 = vmul.f32 %v43, 1.442695
  %v46 = vpow.pop %v45
  %v47 = vmul.f32 %v44, 1.442695
  %v48 = vpow.pop %v47
  %v49 = vsub.f32 1.0, %v46
  %v50 = vsub.f32 1.0, %v48
  %vm51 = vcmask 130048
  %v53 = vsel %vm51, %v35, 0
  %v56 = vsel %vm51, %v36, 0
  %58 = vmatprep.subr.mxu0 0.0
  %59 = vmatpush1.msra.mxu0 %v41
  %60 = vmatprep.subr.mxu0 0.0
  %61 = vmatpush1.msra.mxu0 %v42
  %62 = vmatprep.subr.mxu0 0.0
  %63 = vmatpush1.msra.mxu0 0.0
  %64 = vmatprep.subr.mxu0 0.0
  %65 = vmatpush1.msra.mxu0 0.0
  %66 = vmatprep.subr.mxu0 0.0
  %67 = vmatpush1.msra.mxu0 0.0
  %68 = vmatprep.subr.mxu0 0.0
  %69 = vmatpush1.msra.mxu0 0.0
  %70 = vmatprep.subr.mxu0 0.0
  %71 = vmatpush1.msra.mxu0 0.0
  %72 = vmatprep.subr.mxu0 0.0
  %73 = vmatpush1.msra.mxu0 0.0
  %74 = vmatprep.subr.mxu0 0.0
  %75 = vmatpush1.msra.mxu0 0.0
  %76 = vmatprep.subr.mxu0 0.0
  %77 = vmatpush1.msra.mxu0 0.0
  %78 = vmatprep.subr.mxu0 0.0
  %79 = vmatpush1.msra.mxu0 0.0
  %80 = vmatprep.subr.mxu0 0.0
  %81 = vmatpush1.msra.mxu0 0.0
  %82 = vmatprep.subr.mxu0 0.0
  %83 = vmatpush1.msra.mxu0 0.0
  %84 = vmatprep.subr.mxu0 0.0
  %85 = vmatpush1.msra.mxu0 0.0
  %86 = vmatprep.subr.mxu0 0.0
  %87 = vmatpush1.msra.mxu0 0.0
  %88 = vmatprep.subr.mxu0 0.0
  %89 = vmatpush1.msra.mxu0 0.0
  %90 = vmatprep.subr.mxu0 0.0
  %91 = vmatpush1.msra.mxu0 0.0
  %92 = vmatprep.subr.mxu0 0.0
  %93 = vmatpush1.msra.mxu0 0.0
  %94 = vmatprep.subr.mxu0 0.0
  %95 = vmatpush1.msra.mxu0 0.0
  %96 = vmatprep.subr.mxu0 0.0
  %97 = vmatpush1.msra.mxu0 0.0
  %98 = vmatprep.subr.mxu0 0.0
  %99 = vmatpush1.msra.mxu0 0.0
  %100 = vmatprep.subr.mxu0 0.0
  %101 = vmatpush1.msra.mxu0 0.0
  %102 = vmatprep.subr.mxu0 0.0
  %103 = vmatpush1.msra.mxu0 0.0
  %104 = vmatprep.subr.mxu0 0.0
  %105 = vmatpush1.msra.mxu0 0.0
  %106 = vmatprep.subr.mxu0 0.0
  %107 = vmatpush1.msra.mxu0 0.0
  %108 = vmatprep.subr.mxu0 0.0
  %109 = vmatpush1.msra.mxu0 0.0
  %110 = vmatprep.subr.mxu0 0.0
  %111 = vmatpush1.msra.mxu0 0.0
  %112 = vmatprep.subr.mxu0 0.0
  %113 = vmatpush1.msra.mxu0 0.0
  %114 = vmatprep.subr.mxu0 0.0
  %115 = vmatpush1.msra.mxu0 0.0
  %116 = vmatprep.subr.mxu0 0.0
  %117 = vmatpush1.msra.mxu0 0.0
  %118 = vmatprep.subr.mxu0 0.0
  %119 = vmatpush1.msra.mxu0 0.0
  %120 = vmatprep.subr.mxu0 0.0
  %121 = vmatpush1.msra.mxu0 0.0
  %122 = vmatprep.mubr.f32.mxu0 0.0
  %123 = vmatmul.mubr.f32.gmra.mrb[0].mxu0 %v53
  %v124 = vpop.f32.mrb[0].mxu0
  %v125 = vadd.f32 0.0, %v124
  %v126 = vpop.f32.mrb[0].mxu0
  %127 = vmatprep.mubr.f32.mxu0 0.0
  %128 = vmatmul.mubr.f32.gmra.mrb[0].mxu0 %v56
  %v129 = vpop.f32.mrb[0].mxu0
  %v130 = vadd.f32 0.0, %v129
  %v131 = vpop.f32.mrb[0].mxu0
  %132 = vdwg.mxu0
  %v133 = vsub.f32 0.0, %v125
  %v134 = vsub.f32 0.0, %v130
  %v135 = vmul.f32 %v133, 1.442695
  %v136 = vpow.pop %v135
  %v137 = vmul.f32 %v134, 1.442695
  %v138 = vpow.pop %v137
  %v139 = vmul.f32 %v49, %v136
  %v140 = vmul.f32 %v50, %v138
  %v141 = vlaneseq
  %v142 = vshrl.u32 %v141, 7
  %v143 = vadd.s32 %v142, 8
  %vm144 = vcmp.eq.s32.totalorder %v142, 15
  %vm145 = vcmp.eq.s32.totalorder %v143, 15
  %v146 = vmul.f32 %v22, 0.5
  %v147 = vmul.f32 %v23, 0.5
  %v148 = vtanh.pop %v146
  %v149 = vtanh.pop %v147
  %v150 = vadd.f32 %v148, 1.0
  %v151 = vadd.f32 %v149, 1.0
  %v152 = vmul.f32 %v150, 0.5
  %v153 = vmul.f32 %v151, 0.5
  %v154 = vlaneseq
  %v155 = vshrl.u32 %v154, 7
  %v156 = vsub.s32 0, %v155
  %v157 = vrot.slane %v34, %v156
  %v158 = vsel %vm144, %v157, %v152
  %v159 = vsel %vm145, %v157, %v153
  %v160 = vmul.f32 %v139, %v158
  %v161 = vmul.f32 %v140, %v159
  %vm162 = vcmask 523264
  %v163 = vsel %vm162, %v160, 0.0
  %v164 = vsel %vm162, %v161, 0.0
  %v165 = vadd.f32 %v163, %v164
  %v166 = vrot.slane %v165, 4
  %v167 = vadd.f32 %v165, %v166
  %v168 = vrot.slane %v167, 2
  %v169 = vadd.f32 %v167, %v168
  %v170 = vrot.slane %v169, 1
  %v171 = vadd.f32 %v169, %v170
  %v172 = vmul.f32 %v24, 0.5
  %v173 = vmul.f32 %v25, 0.5
  %v174 = vtanh.pop %v172
  %v175 = vtanh.pop %v173
  %v176 = vadd.f32 %v174, 1.0
  %v177 = vadd.f32 %v175, 1.0
  %v178 = vmul.f32 %v176, 0.5
  %v179 = vmul.f32 %v177, 0.5
  %v180 = vlaneseq
  %v181 = vshrl.u32 %v180, 7
  %v182 = vsub.s32 1, %v181
  %v183 = vrot.slane %v34, %v182
  %v184 = vsel %vm144, %v183, %v178
  %v185 = vsel %vm145, %v183, %v179
  %v186 = vmul.f32 %v139, %v184
  %v187 = vmul.f32 %v140, %v185
  %v188 = vsel %vm162, %v186, 0.0
  %v189 = vsel %vm162, %v187, 0.0
  %v190 = vadd.f32 %v188, %v189
  %v191 = vrot.slane %v190, 4
  %v192 = vadd.f32 %v190, %v191
  %v193 = vrot.slane %v192, 2
  %v194 = vadd.f32 %v192, %v193
  %v195 = vrot.slane %v194, 1
  %v196 = vadd.f32 %v194, %v195
  %v197 = vmul.f32 %v26, 0.5
  %v198 = vmul.f32 %v27, 0.5
  %v199 = vtanh.pop %v197
  %v200 = vtanh.pop %v198
  %v201 = vadd.f32 %v199, 1.0
  %v202 = vadd.f32 %v200, 1.0
  %v203 = vmul.f32 %v201, 0.5
  %v204 = vmul.f32 %v202, 0.5
  %v205 = vlaneseq
  %v206 = vshrl.u32 %v205, 7
  %v207 = vsub.s32 2, %v206
  %v208 = vrot.slane %v34, %v207
  %v209 = vsel %vm144, %v208, %v203
  %v210 = vsel %vm145, %v208, %v204
  %v211 = vmul.f32 %v139, %v209
  %v212 = vmul.f32 %v140, %v210
  %v213 = vsel %vm162, %v211, 0.0
  %v214 = vsel %vm162, %v212, 0.0
  %v215 = vadd.f32 %v213, %v214
  %v216 = vrot.slane %v215, 4
  %v217 = vadd.f32 %v215, %v216
  %v218 = vrot.slane %v217, 2
  %v219 = vadd.f32 %v217, %v218
  %v220 = vrot.slane %v219, 1
  %v221 = vadd.f32 %v219, %v220
  %v222 = vsel %vm162, %v139, 0.0
  %v223 = vsel %vm162, %v140, 0.0
  %v224 = vadd.f32 %v222, %v223
  %v225 = vrot.slane %v224, 4
  %v226 = vadd.f32 %v224, %v225
  %v227 = vrot.slane %v226, 2
  %v228 = vadd.f32 %v226, %v227
  %v229 = vrot.slane %v228, 1
  %v230 = vadd.f32 %v228, %v229
  %v231 = vmul.f32 %v139, %v30
  %v232 = vmul.f32 %v140, %v31
  %v233 = vsel %vm162, %v231, 0.0
  %v234 = vsel %vm162, %v232, 0.0
  %v235 = vadd.f32 %v233, %v234
  %v236 = vrot.slane %v235, 4
  %v237 = vadd.f32 %v235, %v236
  %v238 = vrot.slane %v237, 2
  %v239 = vadd.f32 %v237, %v238
  %v240 = vrot.slane %v239, 1
  %v241 = vadd.f32 %v239, %v240
  %v242 = vmax.f32 %v230, 1e-10
  %v243 = vrcp.pop %v242
  %v244 = vmul.f32 %v241, %v243
  %v245 = vmax.f32 %v244, 1e-10
  %v246 = vrcp.pop %v245
  %v247 = vmul.f32 1.0, %v246
  %vm248 = vcmask 1040384
  %v249 = vsel %vm248, %v171, %v196
  %vm250 = vcmask 1041408
  %v251 = vsel %vm250, %v249, %v221
  %vm252 = vcmask 1042432
  %v253 = vsel %vm252, %v251, %v247
  %vm254 = vcmask 1043456
  %v255 = vsel %vm254, %v253, %v230
  %vm256 = vcmask 1044480
  %v257 = vsel %vm256, %v255, %v241
  %vm258 = vcmask 1045504
  %v259 = vsel %vm258, %v257, 0.0
  %vm260 = vcmask 1046528
  %v261 = vsel %vm260, %v259, 0.0
  %262 = vst.msk [vmem:[%s5] sm:$0xff] %vm162, %v261
  %263 = vst.msk [vmem:[%s6] sm:$0xff] %vm162, %v139
  %264 = vst.msk [vmem:[%s6 + $0x8] sm:$0xff] %vm162, %v140
  // Predicated region
  $region22: #{_pipeline.13} parent=0 // pred_check
    _
  $region23: #{_pipeline.13} parent=0 // pred_check_branch
    %266 = sbr.rel (0) target = $region25
  $region24: #{_pipeline.13} parent=0 // pred_region
    _
  $region25: #{_pipeline.13} parent=0 // pred_fallthru
    _
  // Predicated region
  $region26: #{_pipeline.13} parent=0 // pred_check
    _
  $region27: #{_pipeline.13} parent=0 // pred_check_branch
    %268 = sbr.rel (0) target = $region29
  $region28: #{_pipeline.13} parent=0 // pred_region
    _
  $region29: #{_pipeline.13} parent=0 // pred_fallthru
    _
  // Predicated region
  $region30: #{_pipeline.13} parent=0 // pred_check
    _
  $region31: #{_pipeline.13} parent=0 // pred_check_branch
    %270 = sbr.rel (0) target = $region33
  $region32: #{_pipeline.13} parent=0 // pred_region
    _
  $region33: #{_pipeline.13} parent=0 // pred_fallthru
    _
  // Predicated region
  $region34: #{_pipeline.13} parent=0 // pred_check
    _
  $region35: #{_pipeline.13} parent=0 // pred_check_branch
    %272 = sbr.rel (0) target = $region37
  $region36: #{_pipeline.13} parent=0 // pred_region
    _
  $region37: #{_pipeline.13} parent=0 // pred_fallthru
    _

// kernel: _pipeline.12
$region0: #{_pipeline.12}
  #allocation0 [shape = 'u32[]', space=smem, size = 0x4, offset = 0x4, fixed_abs, tag = 'smem constant byte address 0x4 - core index']
  #allocation1 [shape = 'u32[144,128]{1,0:T(1,128)}', space=vmem, size = 0x12000, scoped, tag = 'internal scratch']
  %s0 = inlined_call_operand.vmem [shape: f32[8,1024], index: 0, kind: input, shape index: {}]
  %s1 = inlined_call_operand.vmem [shape: bf16[65,549], index: 1, kind: input, shape index: {}]
  %s2 = inlined_call_operand.vmem [shape: f32[65,9], index: 2, kind: input, shape index: {}]
  %s3 = inlined_call_operand.vmem [shape: f32[8,1024], index: 3, kind: output, shape index: {}]
  %s4 = sld [smem:[#allocation0]]
  $region45: #{_pipeline.12} parent=0
    _
  %s6 = ssub.s32 1, %s4
  %s7 = scalar_select 0, %s6, %s4
  loop: start=0, step=1, limit=4
  $region2: #{_pipeline.12} parent=0 // loop_pre_header
    _
  $region3: #{_pipeline.12} parent=0 // loop_header
    %s9 = sphi 0, %s13
    %p10 = scmp.ge.s32.totalorder %s9, 4
    %s19 = sphi 0, %s21
    %s22 = sphi 0, %s19
    %s23 = sphi 0, %s22
    %s39 = sphi 0, %s23
    %s43 = sphi 0, %s43
    %s45 = sphi 0, %s43
    %s46 = sphi 0, %s45
    %s60 = sphi 0, %s46
    %s64 = sphi 0, %s64
    %s66 = sphi 0, %s64
    %s67 = sphi 0, %s66
    %s81 = sphi 0, %s67
    %s87 = sphi 0, %s89
    %s90 = sphi 0, %s87
    %s91 = sphi 0, %s90
    %s107 = sphi 0, %s91
  $region4: #{_pipeline.12} parent=0 // loop_header_branch
    %12 = sbr.rel (%p10) target = $region8
  $region5: #{_pipeline.12} parent=0 // loop_body
    %s14 = ssub.s32 %s9, 1
    %s15 = ssub.s32 %s9, 2
    %s16 = sadd.s32 %s9, 1
    %s17 = ssub.s32 %s9, %s16
    %p18 = scmp.eq.s32.totalorder %s17, 0
    %s20 = sadd.s32 %s19, 1
    %s21 = scalar_select %p18, %s19, %s20
    %p24 = pneg %p18
    %p25 = scmp.eq.s32.totalorder %s9, 1
    %p26 = por %p24, %p25
    %p27 = scmp.ne.s32.totalorder %s19, %s22
    %p28 = scmp.eq.s32.totalorder %s9, 0
    %p29 = por %p27, %p28
    %p30 = scmp.ne.s32.totalorder %s19, %s22
    %p31 = scmp.eq.s32.totalorder %s14, 1
    %p32 = por %p30, %p31
    %p33 = scmp.ne.s32.totalorder %s22, %s23
    %p34 = scmp.eq.s32.totalorder %s14, 0
    %p35 = por %p33, %p34
    %p36 = scmp.ne.s32.totalorder %s22, %s23
    %p37 = scmp.eq.s32.totalorder %s15, 1
    %p38 = por %p36, %p37
    %p40 = scmp.ne.s32.totalorder %s23, %s39
    %p41 = scmp.eq.s32.totalorder %s15, 0
    %p42 = por %p40, %p41
    %s44 = sadd.s32 %s43, 1
    %p47 = scmp.eq.s32.totalorder %s9, 1
    %p48 = scmp.ne.s32.totalorder %s43, %s45
    %p49 = scmp.eq.s32.totalorder %s9, 0
    %p50 = por %p48, %p49
    %p51 = scmp.ne.s32.totalorder %s43, %s45
    %p52 = scmp.eq.s32.totalorder %s14, 1
    %p53 = por %p51, %p52
    %p54 = scmp.ne.s32.totalorder %s45, %s46
    %p55 = scmp.eq.s32.totalorder %s14, 0
    %p56 = por %p54, %p55
    %p57 = scmp.ne.s32.totalorder %s45, %s46
    %p58 = scmp.eq.s32.totalorder %s15, 1
    %p59 = por %p57, %p58
    %p61 = scmp.ne.s32.totalorder %s46, %s60
    %p62 = scmp.eq.s32.totalorder %s15, 0
    %p63 = por %p61, %p62
    %s65 = sadd.s32 %s64, 1
    %p68 = scmp.eq.s32.totalorder %s9, 1
    %p69 = scmp.ne.s32.totalorder %s64, %s66
    %p70 = scmp.eq.s32.totalorder %s9, 0
    %p71 = por %p69, %p70
    %p72 = scmp.ne.s32.totalorder %s64, %s66
    %p73 = scmp.eq.s32.totalorder %s14, 1
    %p74 = por %p72, %p73
    %p75 = scmp.ne.s32.totalorder %s66, %s67
    %p76 = scmp.eq.s32.totalorder %s14, 0
    %p77 = por %p75, %p76
    %p78 = scmp.ne.s32.totalorder %s66, %s67
    %p79 = scmp.eq.s32.totalorder %s15, 1
    %p80 = por %p78, %p79
    %p82 = scmp.ne.s32.totalorder %s67, %s81
    %p83 = scmp.eq.s32.totalorder %s15, 0
    %p84 = por %p82, %p83
    %s85 = ssub.s32 %s9, %s16
    %p86 = scmp.eq.s32.totalorder %s85, 0
    %s88 = sadd.s32 %s87, 1
    %s89 = scalar_select %p86, %s87, %s88
    %p92 = pneg %p86
    %p93 = scmp.eq.s32.totalorder %s9, 1
    %p94 = por %p92, %p93
    %p95 = scmp.ne.s32.totalorder %s87, %s90
    %p96 = scmp.eq.s32.totalorder %s9, 0
    %p97 = por %p95, %p96
    %p98 = scmp.ne.s32.totalorder %s87, %s90
    %p99 = scmp.eq.s32.totalorder %s14, 1
    %p100 = por %p98, %p99
    %p101 = scmp.ne.s32.totalorder %s90, %s91
    %p102 = scmp.eq.s32.totalorder %s14, 0
    %p103 = por %p101, %p102
    %p104 = scmp.ne.s32.totalorder %s90, %s91
    %p105 = scmp.eq.s32.totalorder %s15, 1
    %p106 = por %p104, %p105
    %p108 = scmp.ne.s32.totalorder %s91, %s107
    %p109 = scmp.eq.s32.totalorder %s15, 0
    %p110 = por %p108, %p109
    %p111 = scmp.le.s32.totalorder 1, %s9
    %p112 = scmp.lt.s32.totalorder %s9, 3
    %p113 = pnand %p111, %p112
    %p114 = pneg %p113
    // Predicated region
    $region9: #{_pipeline.12} parent=5 // pred_check
      _
    $region10: #{_pipeline.12} parent=5 // pred_check_branch
      %116 = sbr.rel (%p113) target = $region12
    $region11: #{_pipeline.12} parent=5 // pred_region
      %s117 = ssub.s32 %s9, 1
      // Predicated region
      $region13: #{_pipeline.12} parent=11 // pred_check
        %p118 = pneg %p56
      $region14: #{_pipeline.12} parent=11 // pred_check_branch
        %120 = sbr.rel (%p118) target = $region16
      $region15: #{_pipeline.12} parent=11 // pred_region
        _
      $region16: #{_pipeline.12} parent=11 // pred_fallthru
        _
      // Predicated region
      $region17: #{_pipeline.12} parent=11 // pred_check
        %p121 = pneg %p77
      $region18: #{_pipeline.12} parent=11 // pred_check_branch
        %123 = sbr.rel (%p121) target = $region20
      $region19: #{_pipeline.12} parent=11 // pred_region
        _
      $region20: #{_pipeline.12} parent=11 // pred_fallthru
        _
    $region12: #{_pipeline.12} parent=5 // pred_fallthru
      _
    %p124 = scmp.lt.s32.totalorder %s9, 2
    // Predicated region
    $region21: #{_pipeline.12} parent=5 // pred_check
      %p125 = pneg %p124
    $region22: #{_pipeline.12} parent=5 // pred_check_branch
      %127 = sbr.rel (%p125) target = $region24
    $region23: #{_pipeline.12} parent=5 // pred_region
      // Predicated region
      $region25: #{_pipeline.12} parent=23 // pred_check
        %p128 = pneg %p29
      $region26: #{_pipeline.12} parent=23 // pred_check_branch
        %130 = sbr.rel (%p128) target = $region28
      $region27: #{_pipeline.12} parent=23 // pred_region
        %s131 = smul.u32 4, %s9
        %p132 = scmp.lt.s32.totalorder %s131, 7
        %s133 = scalar_select %p132, %s131, 7
        %s134 = smul.addr %s133, 8
        %s135 = scalar_lea.vmem %s0, %s134
        %s136 = smul.u32 4, %s9
      $region28: #{_pipeline.12} parent=23 // pred_fallthru
        _
    $region24: #{_pipeline.12} parent=5 // pred_fallthru
      _
    %p137 = scmp.le.s32.totalorder 1, %s9
    %p138 = scmp.lt.s32.totalorder %s9, 3
    %p139 = pnand %p137, %p138
    %p140 = pneg %p139
    // Predicated region
    $region29: #{_pipeline.12} parent=5 // pred_check
      _
    $region30: #{_pipeline.12} parent=5 // pred_check_branch
      %142 = sbr.rel (%p139) target = $region32
    $region31: #{_pipeline.12} parent=5 // pred_region
      %s143 = ssub.s32 %s9, 1
      %s144 = smul.u32 4, %s14
      %p145 = scmp.lt.s32.totalorder %s144, 7
      %s146 = scalar_select %p145, %s144, 7
      %s147 = smul.addr %s146, 8
      %s148 = scalar_lea.vmem %s0, %s147
      %p149 = pneg %p35
      %p150 = pneg %p32
      %p151 = pneg %p56
      %p152 = pneg %p53
      %p153 = pneg %p77
      %p154 = pneg %p74
      %p155 = pneg %p103
      %p156 = pneg %p100
      %s157 = smul.u32 4, %s14
      %p158 = scmp.lt.s32.totalorder %s157, 7
      %s159 = scalar_select %p158, %s157, 7
      %s160 = smul.addr %s159, 8
      %s161 = scalar_lea.vmem %s3, %s160
      %s162 = smul.u32 4, %s14
      %p163 = scmp.lt.s32.totalorder %s162, 7
      %s164 = scalar_select %p163, %s162, 7
      %s165 = smul.addr %s164, 8
      %s166 = scalar_lea.vmem %s0, %s165
      %s167 = smul.u32 4, %s14
      %s168 = smul.u32 4, %s14
      %p169 = scmp.lt.s32.totalorder %s168, 7
      %s170 = scalar_select %p169, %s168, 7
      %s171 = smul.addr %s170, 8
      %s172 = scalar_lea.vmem %s3, %s171
      %s173 = smul.u32 4, %s14
      %v175 = vld [vmem:[%s1] sm:$0xff]
      %v176 = vld [vmem:[%s1 + $0x8] sm:$0xff]
      %v177 = vld [vmem:[%s1 + $0x10] sm:$0xf]
      %v178 = vld [vmem:[%s1 + $0x14] sm:$0xff]
      %v179 = vld [vmem:[%s1 + $0x1c] sm:$0xff]
      %v180 = vld [vmem:[%s1 + $0x24] sm:$0xf]
      %v181 = vld [vmem:[%s1 + $0x28] sm:$0xff]
      %v182 = vld [vmem:[%s1 + $0x30] sm:$0xff]
      %v183 = vld [vmem:[%s1 + $0x38] sm:$0xf]
      %v184 = vld [vmem:[%s1 + $0x3c] sm:$0xff]
      %v185 = vld [vmem:[%s1 + $0x44] sm:$0xff]
      %v186 = vld [vmem:[%s1 + $0x4c] sm:$0xf]
      %v187 = vld [vmem:[%s1 + $0x50] sm:$0xff]
      %v188 = vld [vmem:[%s1 + $0x58] sm:$0xff]
      %v189 = vld [vmem:[%s1 + $0x64] sm:$0xff]
      %v190 = vld [vmem:[%s1 + $0x6c] sm:$0xff]
      %v191 = vld [vmem:[%s1 + $0x78] sm:$0xff]
      %v192 = vld [vmem:[%s1 + $0x80] sm:$0xff]
      %v193 = vld [vmem:[%s1 + $0x8c] sm:$0xff]
      %v194 = vld [vmem:[%s1 + $0x94] sm:$0xff]
      %v195 = vld [vmem:[%s1 + $0xa8] sm:$0x11]
      %v196 = vld [vmem:[%s2] sm:$0xff]
      %v197 = vld [vmem:[%s2 + $0x8] sm:$0xff]
      %v198 = vld [vmem:[%s2 + $0x10] sm:$0xff]
      %v199 = vld [vmem:[%s2 + $0x18] sm:$0xff]
      %v200 = vld [vmem:[%s2 + $0x20] sm:$0xff]
      %v201 = vld [vmem:[%s2 + $0x28] sm:$0xff]
      %v202 = vld [vmem:[%s2 + $0x30] sm:$0xff]
      %v203 = vld [vmem:[%s2 + $0x38] sm:$0xff]
      %v204 = vld [vmem:[%s2 + $0x40] sm:$0x1]
      %v205 = vld [vmem:[%s166] sm:$0xff]
      %v206 = vld [vmem:[%s166 + $0x8] sm:$0xff]
      %v207 = vld [vmem:[%s166 + $0x10] sm:$0xff]
      %v208 = vld [vmem:[%s166 + $0x18] sm:$0xff]
      %v209 = vmul.f32 %v205, 2.0
      %v210 = vmul.f32 %v206, 2.0
      %v211 = vmul.f32 %v207, 2.0
      %v212 = vmul.f32 %v208, 2.0
      %v213 = vmul.f32 %v205, 4.0
      %v214 = vmul.f32 %v206, 4.0
      %v215 = vmul.f32 %v207, 4.0
      %v216 = vmul.f32 %v208, 4.0
      %v217 = vmul.f32 %v205, 8.0
      %v218 = vmul.f32 %v206, 8.0
      %v219 = vmul.f32 %v207, 8.0
      %v220 = vmul.f32 %v208, 8.0
      %v225 = vrot.slane %v209, 5
      %v226 = vrot.slane %v210, 5
      %v227 = vrot.slane %v211, 5
      %v228 = vrot.slane %v212, 5
      %v237 = vrot.slane %v213, 2
      %v238 = vrot.slane %v214, 2
      %v239 = vrot.slane %v215, 2
      %v240 = vrot.slane %v216, 2
      %v249 = vrot.slane %v217, 7
      %v250 = vrot.slane %v218, 7
      %v251 = vrot.slane %v219, 7
      %v252 = vrot.slane %v220, 7
      %vm257 = vcmask 1042432
      %v258 = vsel %vm257, %v205, %v225
      %v259 = vsel %vm257, %v206, %v226
      %v260 = vsel %vm257, %v207, %v227
      %v261 = vsel %vm257, %v208, %v228
      %vm262 = vcmask 1045504
      %v263 = vsel %vm262, %v258, %v237
      %v264 = vsel %vm262, %v259, %v238
      %v265 = vsel %vm262, %v260, %v239
      %v266 = vsel %vm262, %v261, %v240
      %vm267 = vcmask 1040384
      %v268 = vsel %vm267, %v237, %v249
      %v269 = vsel %vm267, %v238, %v250
      %v270 = vsel %vm267, %v239, %v251
      %v271 = vsel %vm267, %v240, %v252
      %v272 = vand.u32 2147483647, %v263
      %vm273 = vcmp.le.f32.partialorder %v272, 0.7853982
      %vm274 = vcmp.lt.s32.totalorder %v263, 0
      %v275 = vand.u32 %v263, 2139095040
      %v276 = vshrl.u32 %v275, 23
      %v277 = vsub.s32 %v276, 127
      %v278 = vand.u32 2147483647, %v263
      %v279 = vand.u32 %v278, 8388607
      %v280 = vor.u32 %v279, 8388608
      %v281 = vsub.s32 0, %v280
      %v282 = vadd.s32 %v277, 1
      %vm283 = vcmp.gt.s32.totalorder %v282, 0
      %v284 = vsel %vm283, %v282, 0
      %v285 = vshrl.u32 %v284, 5
      %v286 = vand.u32 %v284, 31
      %v287 = vsub.s32 32, %v286
      %v288 = vshrl.u32 683565275, %v287
      %v289 = vshll.u32 683565275, %v286
      %v290 = vshrl.u32 2475754826, %v287
      %v291 = vor.u32 %v289, %v290
      %v292 = vshll.u32 2475754826, %v286
      %v293 = vshrl.u32 2131351028, %v287
      %v294 = vor.u32 %v292, %v293
      %v295 = vshll.u32 2131351028, %v286
      %v296 = vshrl.u32 2102212464, %v287
      %v297 = vor.u32 %v295, %v296
      %v298 = vshll.u32 2102212464, %v286
      %v299 = vshrl.u32 920167782, %v287
      %v300 = vor.u32 %v298, %v299
      %v301 = vshll.u32 920167782, %v286
      %v302 = vshrl.u32 1326507024, %v287
      %v303 = vor.u32 %v301, %v302
      %vm304 = vcmp.lt.s32.totalorder %v285, 1
      %vm305 = vcmp.lt.s32.totalorder %v285, 2
      %vm306 = vcmp.lt.s32.totalorder %v285, 3
      %vm307 = vcmp.lt.s32.totalorder %v285, 4
      %v308 = vsel %vm304, %v288, %v291
      %v309 = vsel %vm307, %v297, 2102212464
      %v310 = vsel %vm306, %v294, %v309
      %v311 = vsel %vm305, %v308, %v310
      %v312 = vsel %vm304, %v291, %v294
      %v313 = vsel %vm307, %v300, 920167782
      %v314 = vsel %vm306, %v297, %v313
      %v315 = vsel %vm305, %v312, %v314
      %v316 = vsel %vm304, %v294, %v297
      %v317 = vsel %vm307, %v303, 1326507024
      %v318 = vsel %vm306, %v300, %v317
      %v319 = vsel %vm305, %v316, %v318
      %v320 = vshll.u32 %v280, 8
      %v321 = vmul.u32.u64.compose %v320, %v319
      %v322 = vextract.low.u32 %v321
      %v323 = vextract.high.u32 %v321
      %v324 = vmul.u32.u64.compose %v320, %v315
      %v325 = vextract.low.u32 %v324
      %v326 = vextract.high.u32 %v324
      %v327 = vmul.u32 %v320, %v311
      %v328 = vadd.s32 %v323, %v325
      %vm329 = vc.u32 %v323, %v325
      %v330 = vadd.s32 %v326, 1
      %v331 = vsel %vm329, %v330, %v326
      %v332 = vadd.s32 %v327, %v331
      %v333 = vadd.s32 %v332, 536870912
      %v334 = vshrl.u32 %v333, 30
      %v335 = vshll.u32 %v334, 30
      %v336 = vsub.s32 %v332, %v335
      %vm337 = vcmp.lt.s32.totalorder %v336, 0
      %v338 = vsub.s32 0, %v336
      %v339 = vsel %vm337, %v338, %v336
      %v340 = vclz %v339
      %v341 = vsub.s32 %v340, 2
      %vm342 = vcmp.gt.s32.totalorder 0, %v341
      %v343 = vsel %vm342, 0, %v341
      %v344 = vsub.s32 32, %v343
      %v345 = vshll.u32 %v336, %v343
      %v346 = vshrl.u32 %v328, %v344
      %v347 = vor.u32 %v345, %v346
      %v348 = vsub.s32 4294967266, %v343
      %v349 = vadd.s32 %v348, 127
      %v350 = vshll.u32 %v349, 23
      %v351 = vor.u32 4788187, %v350
      %v352 = vand.u32 2147483647, %v351
      %v354 = vcvt.s32.f32 %v347
      %v355 = vmul.f32 %v354, %v352
      %v356 = vxor.u32 %v355, 2147483648
      %v357 = vsel %vm274, %v356, %v355
      %v358 = vsub.s32 4, %v334
      %v359 = vsel %vm274, %v358, %v334
      %v360 = vsel %vm273, %v263, %v357
      %v361 = vsel %vm273, 0, %v359
      %v362 = vcosq.f32.pop %v360
      %v363 = vsinq.f32.pop %v360
      %vm364 = vweird.f32 %v263
      %v365 = vadd.s32 %v361, 3
      %v366 = vand.u32 %v365, 3
      %vm367 = vcmp.lt.s32.totalorder %v366, 2
      %vm368 = vcmp.eq.s32.totalorder %v366, 0
      %v369 = vxor.u32 %v363, 2147483648
      %v370 = vsel %vm368, %v362, %v369
      %vm371 = vcmp.eq.s32.totalorder %v366, 2
      %v372 = vxor.u32 %v362, 2147483648
      %v373 = vsel %vm371, %v372, %v363
      %v374 = vsel %vm367, %v370, %v373
      %v375 = vsel %vm364, nan, %v374
      %v376 = vand.u32 2147483647, %v264
      %vm377 = vcmp.le.f32.partialorder %v376, 0.7853982
      %vm378 = vcmp.lt.s32.totalorder %v264, 0
      %v379 = vand.u32 %v264, 2139095040
      %v380 = vshrl.u32 %v379, 23
      %v381 = vsub.s32 %v380, 127
      %v382 = vand.u32 2147483647, %v264
      %v383 = vand.u32 %v382, 8388607
      %v384 = vor.u32 %v383, 8388608
      %v385 = vsub.s32 0, %v384
      %v386 = vadd.s32 %v381, 1
      %vm387 = vcmp.gt.s32.totalorder %v386, 0
      %v388 = vsel %vm387, %v386, 0
      %v389 = vshrl.u32 %v388, 5
      %v390 = vand.u32 %v388, 31
      %v391 = vsub.s32 32, %v390
      %v392 = vshrl.u32 683565275, %v391
      %v393 = vshll.u32 683565275, %v390
      %v394 = vshrl.u32 2475754826, %v391
      %v395 = vor.u32 %v393, %v394
      %v396 = vshll.u32 2475754826, %v390
      %v397 = vshrl.u32 2131351028, %v391
      %v398 = vor.u32 %v396, %v397
      %v399 = vshll.u32 2131351028, %v390
      %v400 = vshrl.u32 2102212464, %v391
      %v401 = vor.u32 %v399, %v400
      %v402 = vshll.u32 2102212464, %v390
      %v403 = vshrl.u32 920167782, %v391
      %v404 = vor.u32 %v402, %v403
      %v405 = vshll.u32 920167782, %v390
      %v406 = vshrl.u32 1326507024, %v391
      %v407 = vor.u32 %v405, %v406
      %vm408 = vcmp.lt.s32.totalorder %v389, 1
      %vm409 = vcmp.lt.s32.totalorder %v389, 2
      %vm410 = vcmp.lt.s32.totalorder %v389, 3
      %vm411 = vcmp.lt.s32.totalorder %v389, 4
      %v412 = vsel %vm408, %v392, %v395
      %v413 = vsel %vm411, %v401, 2102212464
      %v414 = vsel %vm410, %v398, %v413
      %v415 = vsel %vm409, %v412, %v414
      %v416 = vsel %vm408, %v395, %v398
      %v417 = vsel %vm411, %v404, 920167782
      %v418 = vsel %vm410, %v401, %v417
      %v419 = vsel %vm409, %v416, %v418
      %v420 = vsel %vm408, %v398, %v401
      %v421 = vsel %vm411, %v407, 1326507024
      %v422 = vsel %vm410, %v404, %v421
      %v423 = vsel %vm409, %v420, %v422
      %v424 = vshll.u32 %v384, 8
      %v425 = vmul.u32.u64.compose %v424, %v423
      %v426 = vextract.low.u32 %v425
      %v427 = vextract.high.u32 %v425
      %v428 = vmul.u32.u64.compose %v424, %v419
      %v429 = vextract.low.u32 %v428
      %v430 = vextract.high.u32 %v428
      %v431 = vmul.u32 %v424, %v415
      %v432 = vadd.s32 %v427, %v429
      %vm433 = vc.u32 %v427, %v429
      %v434 = vadd.s32 %v430, 1
      %v435 = vsel %vm433, %v434, %v430
      %v436 = vadd.s32 %v431, %v435
      %v437 = vadd.s32 %v436, 536870912
      %v438 = vshrl.u32 %v437, 30
      %v439 = vshll.u32 %v438, 30
      %v440 = vsub.s32 %v436, %v439
      %vm441 = vcmp.lt.s32.totalorder %v440, 0
      %v442 = vsub.s32 0, %v440
      %v443 = vsel %vm441, %v442, %v440
      %v444 = vclz %v443
      %v445 = vsub.s32 %v444, 2
      %vm446 = vcmp.gt.s32.totalorder 0, %v445
      %v447 = vsel %vm446, 0, %v445
      %v448 = vsub.s32 32, %v447
      %v449 = vshll.u32 %v440, %v447
      %v450 = vshrl.u32 %v432, %v448
      %v451 = vor.u32 %v449, %v450
      %v452 = vsub.s32 4294967266, %v447
      %v453 = vadd.s32 %v452, 127
      %v454 = vshll.u32 %v453, 23
      %v455 = vor.u32 4788187, %v454
      %v456 = vand.u32 2147483647, %v455
      %v458 = vcvt.s32.f32 %v451
      %v459 = vmul.f32 %v458, %v456
      %v460 = vxor.u32 %v459, 2147483648
      %v461 = vsel %vm378, %v460, %v459
      %v462 = vsub.s32 4, %v438
      %v463 = vsel %vm378, %v462, %v438
      %v464 = vsel %vm377, %v264, %v461
      %v465 = vsel %vm377, 0, %v463
      %v466 = vcosq.f32.pop %v464
      %v467 = vsinq.f32.pop %v464
      %vm468 = vweird.f32 %v264
      %v469 = vadd.s32 %v465, 3
      %v470 = vand.u32 %v469, 3
      %vm471 = vcmp.lt.s32.totalorder %v470, 2
      %vm472 = vcmp.eq.s32.totalorder %v470, 0
      %v473 = vxor.u32 %v467, 2147483648
      %v474 = vsel %vm472, %v466, %v473
      %vm475 = vcmp.eq.s32.totalorder %v470, 2
      %v476 = vxor.u32 %v466, 2147483648
      %v477 = vsel %vm475, %v476, %v467
      %v478 = vsel %vm471, %v474, %v477
      %v479 = vsel %vm468, nan, %v478
      %v480 = vand.u32 2147483647, %v265
      %vm481 = vcmp.le.f32.partialorder %v480, 0.7853982
      %vm482 = vcmp.lt.s32.totalorder %v265, 0
      %v483 = vand.u32 %v265, 2139095040
      %v484 = vshrl.u32 %v483, 23
      %v485 = vsub.s32 %v484, 127
      %v486 = vand.u32 2147483647, %v265
      %v487 = vand.u32 %v486, 8388607
      %v488 = vor.u32 %v487, 8388608
      %v489 = vsub.s32 0, %v488
      %v490 = vadd.s32 %v485, 1
      %vm491 = vcmp.gt.s32.totalorder %v490, 0
      %v492 = vsel %vm491, %v490, 0
      %v493 = vshrl.u32 %v492, 5
      %v494 = vand.u32 %v492, 31
      %v495 = vsub.s32 32, %v494
      %v496 = vshrl.u32 683565275, %v495
      %v497 = vshll.u32 683565275, %v494
      %v498 = vshrl.u32 2475754826, %v495
      %v499 = vor.u32 %v497, %v498
      %v500 = vshll.u32 2475754826, %v494
      %v501 = vshrl.u32 2131351028, %v495
      %v502 = vor.u32 %v500, %v501
      %v503 = vshll.u32 2131351028, %v494
      %v504 = vshrl.u32 2102212464, %v495
      %v505 = vor.u32 %v503, %v504
      %v506 = vshll.u32 2102212464, %v494
      %v507 = vshrl.u32 920167782, %v495
      %v508 = vor.u32 %v506, %v507
      %v509 = vshll.u32 920167782, %v494
      %v510 = vshrl.u32 1326507024, %v495
      %v511 = vor.u32 %v509, %v510
      %vm512 = vcmp.lt.s32.totalorder %v493, 1
      %vm513 = vcmp.lt.s32.totalorder %v493, 2
      %vm514 = vcmp.lt.s32.totalorder %v493, 3
      %vm515 = vcmp.lt.s32.totalorder %v493, 4
      %v516 = vsel %vm512, %v496, %v499
      %v517 = vsel %vm515, %v505, 2102212464
      %v518 = vsel %vm514, %v502, %v517
      %v519 = vsel %vm513, %v516, %v518
      %v520 = vsel %vm512, %v499, %v502
      %v521 = vsel %vm515, %v508, 920167782
      %v522 = vsel %vm514, %v505, %v521
      %v523 = vsel %vm513, %v520, %v522
      %v524 = vsel %vm512, %v502, %v505
      %v525 = vsel %vm515, %v511, 1326507024
      %v526 = vsel %vm514, %v508, %v525
      %v527 = vsel %vm513, %v524, %v526
      %v528 = vshll.u32 %v488, 8
      %v529 = vmul.u32.u64.compose %v528, %v527
      %v530 = vextract.low.u32 %v529
      %v531 = vextract.high.u32 %v529
      %v532 = vmul.u32.u64.compose %v528, %v523
      %v533 = vextract.low.u32 %v532
      %v534 = vextract.high.u32 %v532
      %v535 = vmul.u32 %v528, %v519
      %v536 = vadd.s32 %v531, %v533
      %vm537 = vc.u32 %v531, %v533
      %v538 = vadd.s32 %v534, 1
      %v539 = vsel %vm537, %v538, %v534
      %v540 = vadd.s32 %v535, %v539
      %v541 = vadd.s32 %v540, 536870912
      %v542 = vshrl.u32 %v541, 30
      %v543 = vshll.u32 %v542, 30
      %v544 = vsub.s32 %v540, %v543
      %vm545 = vcmp.lt.s32.totalorder %v544, 0
      %v546 = vsub.s32 0, %v544
      %v547 = vsel %vm545, %v546, %v544
      %v548 = vclz %v547
      %v549 = vsub.s32 %v548, 2
      %vm550 = vcmp.gt.s32.totalorder 0, %v549
      %v551 = vsel %vm550, 0, %v549
      %v552 = vsub.s32 32, %v551
      %v553 = vshll.u32 %v544, %v551
      %v554 = vshrl.u32 %v536, %v552
      %v555 = vor.u32 %v553, %v554
      %v556 = vsub.s32 4294967266, %v551
      %v557 = vadd.s32 %v556, 127
      %v558 = vshll.u32 %v557, 23
      %v559 = vor.u32 4788187, %v558
      %v560 = vand.u32 2147483647, %v559
      %v562 = vcvt.s32.f32 %v555
      %v563 = vmul.f32 %v562, %v560
      %v564 = vxor.u32 %v563, 2147483648
      %v565 = vsel %vm482, %v564, %v563
      %v566 = vsub.s32 4, %v542
      %v567 = vsel %vm482, %v566, %v542
      %v568 = vsel %vm481, %v265, %v565
      %v569 = vsel %vm481, 0, %v567
      %v570 = vcosq.f32.pop %v568
      %v571 = vsinq.f32.pop %v568
      %vm572 = vweird.f32 %v265
      %v573 = vadd.s32 %v569, 3
      %v574 = vand.u32 %v573, 3
      %vm575 = vcmp.lt.s32.totalorder %v574, 2
      %vm576 = vcmp.eq.s32.totalorder %v574, 0
      %v577 = vxor.u32 %v571, 2147483648
      %v578 = vsel %vm576, %v570, %v577
      %vm579 = vcmp.eq.s32.totalorder %v574, 2
      %v580 = vxor.u32 %v570, 2147483648
      %v581 = vsel %vm579, %v580, %v571
      %v582 = vsel %vm575, %v578, %v581
      %v583 = vsel %vm572, nan, %v582
      %v584 = vand.u32 2147483647, %v266
      %vm585 = vcmp.le.f32.partialorder %v584, 0.7853982
      %vm586 = vcmp.lt.s32.totalorder %v266, 0
      %v587 = vand.u32 %v266, 2139095040
      %v588 = vshrl.u32 %v587, 23
      %v589 = vsub.s32 %v588, 127
      %v590 = vand.u32 2147483647, %v266
      %v591 = vand.u32 %v590, 8388607
      %v592 = vor.u32 %v591, 8388608
      %v593 = vsub.s32 0, %v592
      %v594 = vadd.s32 %v589, 1
      %vm595 = vcmp.gt.s32.totalorder %v594, 0
      %v596 = vsel %vm595, %v594, 0
      %v597 = vshrl.u32 %v596, 5
      %v598 = vand.u32 %v596, 31
      %v599 = vsub.s32 32, %v598
      %v600 = vshrl.u32 683565275, %v599
      %v601 = vshll.u32 683565275, %v598
      %v602 = vshrl.u32 2475754826, %v599
      %v603 = vor.u32 %v601, %v602
      %v604 = vshll.u32 2475754826, %v598
      %v605 = vshrl.u32 2131351028, %v599
      %v606 = vor.u32 %v604, %v605
      %v607 = vshll.u32 2131351028, %v598
      %v608 = vshrl.u32 2102212464, %v599
      %v609 = vor.u32 %v607, %v608
      %v610 = vshll.u32 2102212464, %v598
      %v611 = vshrl.u32 920167782, %v599
      %v612 = vor.u32 %v610, %v611
      %v613 = vshll.u32 920167782, %v598
      %v614 = vshrl.u32 1326507024, %v599
      %v615 = vor.u32 %v613, %v614
      %vm616 = vcmp.lt.s32.totalorder %v597, 1
      %vm617 = vcmp.lt.s32.totalorder %v597, 2
      %vm618 = vcmp.lt.s32.totalorder %v597, 3
      %vm619 = vcmp.lt.s32.totalorder %v597, 4
      %v620 = vsel %vm616, %v600, %v603
      %v621 = vsel %vm619, %v609, 2102212464
      %v622 = vsel %vm618, %v606, %v621
      %v623 = vsel %vm617, %v620, %v622
      %v624 = vsel %vm616, %v603, %v606
      %v625 = vsel %vm619, %v612, 920167782
      %v626 = vsel %vm618, %v609, %v625
      %v627 = vsel %vm617, %v624, %v626
      %v628 = vsel %vm616, %v606, %v609
      %v629 = vsel %vm619, %v615, 1326507024
      %v630 = vsel %vm618, %v612, %v629
      %v631 = vsel %vm617, %v628, %v630
      %v632 = vshll.u32 %v592, 8
      %v633 = vmul.u32.u64.compose %v632, %v631
      %v634 = vextract.low.u32 %v633
      %v635 = vextract.high.u32 %v633
      %v636 = vmul.u32.u64.compose %v632, %v627
      %v637 = vextract.low.u32 %v636
      %v638 = vextract.high.u32 %v636
      %v639 = vmul.u32 %v632, %v623
      %v640 = vadd.s32 %v635, %v637
      %vm641 = vc.u32 %v635, %v637
      %v642 = vadd.s32 %v638, 1
      %v643 = vsel %vm641, %v642, %v638
      %v644 = vadd.s32 %v639, %v643
      %v645 = vadd.s32 %v644, 536870912
      %v646 = vshrl.u32 %v645, 30
      %v647 = vshll.u32 %v646, 30
      %v648 = vsub.s32 %v644, %v647
      %vm649 = vcmp.lt.s32.totalorder %v648, 0
      %v650 = vsub.s32 0, %v648
      %v651 = vsel %vm649, %v650, %v648
      %v652 = vclz %v651
      %v653 = vsub.s32 %v652, 2
      %vm654 = vcmp.gt.s32.totalorder 0, %v653
      %v655 = vsel %vm654, 0, %v653
      %v656 = vsub.s32 32, %v655
      %v657 = vshll.u32 %v648, %v655
      %v658 = vshrl.u32 %v640, %v656
      %v659 = vor.u32 %v657, %v658
      %v660 = vsub.s32 4294967266, %v655
      %v661 = vadd.s32 %v660, 127
      %v662 = vshll.u32 %v661, 23
      %v663 = vor.u32 4788187, %v662
      %v664 = vand.u32 2147483647, %v663
      %v666 = vcvt.s32.f32 %v659
      %v667 = vmul.f32 %v666, %v664
      %v668 = vxor.u32 %v667, 2147483648
      %v669 = vsel %vm586, %v668, %v667
      %v670 = vsub.s32 4, %v646
      %v671 = vsel %vm586, %v670, %v646
      %v672 = vsel %vm585, %v266, %v669
      %v673 = vsel %vm585, 0, %v671
      %v674 = vcosq.f32.pop %v672
      %v675 = vsinq.f32.pop %v672
      %vm676 = vweird.f32 %v266
      %v677 = vadd.s32 %v673, 3
      %v678 = vand.u32 %v677, 3
      %vm679 = vcmp.lt.s32.totalorder %v678, 2
      %vm680 = vcmp.eq.s32.totalorder %v678, 0
      %v681 = vxor.u32 %v675, 2147483648
      %v682 = vsel %vm680, %v674, %v681
      %vm683 = vcmp.eq.s32.totalorder %v678, 2
      %v684 = vxor.u32 %v674, 2147483648
      %v685 = vsel %vm683, %v684, %v675
      %v686 = vsel %vm679, %v682, %v685
      %v687 = vsel %vm676, nan, %v686
      %v688 = vand.u32 2147483647, %v268
      %vm689 = vcmp.le.f32.partialorder %v688, 0.7853982
      %vm690 = vcmp.lt.s32.totalorder %v268, 0
      %v691 = vand.u32 %v268, 2139095040
      %v692 = vshrl.u32 %v691, 23
      %v693 = vsub.s32 %v692, 127
      %v694 = vand.u32 2147483647, %v268
      %v695 = vand.u32 %v694, 8388607
      %v696 = vor.u32 %v695, 8388608
      %v697 = vsub.s32 0, %v696
      %v698 = vadd.s32 %v693, 1
      %vm699 = vcmp.gt.s32.totalorder %v698, 0
      %v700 = vsel %vm699, %v698, 0
      %v701 = vshrl.u32 %v700, 5
      %v702 = vand.u32 %v700, 31
      %v703 = vsub.s32 32, %v702
      %v704 = vshrl.u32 683565275, %v703
      %v705 = vshll.u32 683565275, %v702
      %v706 = vshrl.u32 2475754826, %v703
      %v707 = vor.u32 %v705, %v706
      %v708 = vshll.u32 2475754826, %v702
      %v709 = vshrl.u32 2131351028, %v703
      %v710 = vor.u32 %v708, %v709
      %v711 = vshll.u32 2131351028, %v702
      %v712 = vshrl.u32 2102212464, %v703
      %v713 = vor.u32 %v711, %v712
      %v714 = vshll.u32 2102212464, %v702
      %v715 = vshrl.u32 920167782, %v703
      %v716 = vor.u32 %v714, %v715
      %v717 = vshll.u32 920167782, %v702
      %v718 = vshrl.u32 1326507024, %v703
      %v719 = vor.u32 %v717, %v718
      %vm720 = vcmp.lt.s32.totalorder %v701, 1
      %vm721 = vcmp.lt.s32.totalorder %v701, 2
      %vm722 = vcmp.lt.s32.totalorder %v701, 3
      %vm723 = vcmp.lt.s32.totalorder %v701, 4
      %v724 = vsel %vm720, %v704, %v707
      %v725 = vsel %vm723, %v713, 2102212464
      %v726 = vsel %vm722, %v710, %v725
      %v727 = vsel %vm721, %v724, %v726
      %v728 = vsel %vm720, %v707, %v710
      %v729 = vsel %vm723, %v716, 920167782
      %v730 = vsel %vm722, %v713, %v729
      %v731 = vsel %vm721, %v728, %v730
      %v732 = vsel %vm720, %v710, %v713
      %v733 = vsel %vm723, %v719, 1326507024
      %v734 = vsel %vm722, %v716, %v733
      %v735 = vsel %vm721, %v732, %v734
      %v736 = vshll.u32 %v696, 8
      %v737 = vmul.u32.u64.compose %v736, %v735
      %v738 = vextract.low.u32 %v737
      %v739 = vextract.high.u32 %v737
      %v740 = vmul.u32.u64.compose %v736, %v731
      %v741 = vextract.low.u32 %v740
      %v742 = vextract.high.u32 %v740
      %v743 = vmul.u32 %v736, %v727
      %v744 = vadd.s32 %v739, %v741
      %vm745 = vc.u32 %v739, %v741
      %v746 = vadd.s32 %v742, 1
      %v747 = vsel %vm745, %v746, %v742
      %v748 = vadd.s32 %v743, %v747
      %v749 = vadd.s32 %v748, 536870912
      %v750 = vshrl.u32 %v749, 30
      %v751 = vshll.u32 %v750, 30
      %v752 = vsub.s32 %v748, %v751
      %vm753 = vcmp.lt.s32.totalorder %v752, 0
      %v754 = vsub.s32 0, %v752
      %v755 = vsel %vm753, %v754, %v752
      %v756 = vclz %v755
      %v757 = vsub.s32 %v756, 2
      %vm758 = vcmp.gt.s32.totalorder 0, %v757
      %v759 = vsel %vm758, 0, %v757
      %v760 = vsub.s32 32, %v759
      %v761 = vshll.u32 %v752, %v759
      %v762 = vshrl.u32 %v744, %v760
      %v763 = vor.u32 %v761, %v762
      %v764 = vsub.s32 4294967266, %v759
      %v765 = vadd.s32 %v764, 127
      %v766 = vshll.u32 %v765, 23
      %v767 = vor.u32 4788187, %v766
      %v768 = vand.u32 2147483647, %v767
      %v770 = vcvt.s32.f32 %v763
      %v771 = vmul.f32 %v770, %v768
      %v772 = vxor.u32 %v771, 2147483648
      %v773 = vsel %vm690, %v772, %v771
      %v774 = vsub.s32 4, %v750
      %v775 = vsel %vm690, %v774, %v750
      %v776 = vsel %vm689, %v268, %v773
      %v777 = vsel %vm689, 0, %v775
      %v778 = vcosq.f32.pop %v776
      %v779 = vsinq.f32.pop %v776
      %vm780 = vweird.f32 %v268
      %v781 = vadd.s32 %v777, 3
      %v782 = vand.u32 %v781, 3
      %vm783 = vcmp.lt.s32.totalorder %v782, 2
      %vm784 = vcmp.eq.s32.totalorder %v782, 0
      %v785 = vxor.u32 %v779, 2147483648
      %v786 = vsel %vm784, %v778, %v785
      %vm787 = vcmp.eq.s32.totalorder %v782, 2
      %v788 = vxor.u32 %v778, 2147483648
      %v789 = vsel %vm787, %v788, %v779
      %v790 = vsel %vm783, %v786, %v789
      %v791 = vsel %vm780, nan, %v790
      %v792 = vand.u32 2147483647, %v269
      %vm793 = vcmp.le.f32.partialorder %v792, 0.7853982
      %vm794 = vcmp.lt.s32.totalorder %v269, 0
      %v795 = vand.u32 %v269, 2139095040
      %v796 = vshrl.u32 %v795, 23
      %v797 = vsub.s32 %v796, 127
      %v798 = vand.u32 2147483647, %v269
      %v799 = vand.u32 %v798, 8388607
      %v800 = vor.u32 %v799, 8388608
      %v801 = vsub.s32 0, %v800
      %v802 = vadd.s32 %v797, 1
      %vm803 = vcmp.gt.s32.totalorder %v802, 0
      %v804 = vsel %vm803, %v802, 0
      %v805 = vshrl.u32 %v804, 5
      %v806 = vand.u32 %v804, 31
      %v807 = vsub.s32 32, %v806
      %v808 = vshrl.u32 683565275, %v807
      %v809 = vshll.u32 683565275, %v806
      %v810 = vshrl.u32 2475754826, %v807
      %v811 = vor.u32 %v809, %v810
      %v812 = vshll.u32 2475754826, %v806
      %v813 = vshrl.u32 2131351028, %v807
      %v814 = vor.u32 %v812, %v813
      %v815 = vshll.u32 2131351028, %v806
      %v816 = vshrl.u32 2102212464, %v807
      %v817 = vor.u32 %v815, %v816
      %v818 = vshll.u32 2102212464, %v806
      %v819 = vshrl.u32 920167782, %v807
      %v820 = vor.u32 %v818, %v819
      %v821 = vshll.u32 920167782, %v806
      %v822 = vshrl.u32 1326507024, %v807
      %v823 = vor.u32 %v821, %v822
      %vm824 = vcmp.lt.s32.totalorder %v805, 1
      %vm825 = vcmp.lt.s32.totalorder %v805, 2
      %vm826 = vcmp.lt.s32.totalorder %v805, 3
      %vm827 = vcmp.lt.s32.totalorder %v805, 4
      %v828 = vsel %vm824, %v808, %v811
      %v829 = vsel %vm827, %v817, 2102212464
      %v830 = vsel %vm826, %v814, %v829
      %v831 = vsel %vm825, %v828, %v830
      %v832 = vsel %vm824, %v811, %v814
      %v833 = vsel %vm827, %v820, 920167782
      %v834 = vsel %vm826, %v817, %v833
      %v835 = vsel %vm825, %v832, %v834
      %v836 = vsel %vm824, %v814, %v817
      %v837 = vsel %vm827, %v823, 1326507024
      %v838 = vsel %vm826, %v820, %v837
      %v839 = vsel %vm825, %v836, %v838
      %v840 = vshll.u32 %v800, 8
      %v841 = vmul.u32.u64.compose %v840, %v839
      %v842 = vextract.low.u32 %v841
      %v843 = vextract.high.u32 %v841
      %v844 = vmul.u32.u64.compose %v840, %v835
      %v845 = vextract.low.u32 %v844
      %v846 = vextract.high.u32 %v844
      %v847 = vmul.u32 %v840, %v831
      %v848 = vadd.s32 %v843, %v845
      %vm849 = vc.u32 %v843, %v845
      %v850 = vadd.s32 %v846, 1
      %v851 = vsel %vm849, %v850, %v846
      %v852 = vadd.s32 %v847, %v851
      %v853 = vadd.s32 %v852, 536870912
      %v854 = vshrl.u32 %v853, 30
      %v855 = vshll.u32 %v854, 30
      %v856 = vsub.s32 %v852, %v855
      %vm857 = vcmp.lt.s32.totalorder %v856, 0
      %v858 = vsub.s32 0, %v856
      %v859 = vsel %vm857, %v858, %v856
      %v860 = vclz %v859
      %v861 = vsub.s32 %v860, 2
      %vm862 = vcmp.gt.s32.totalorder 0, %v861
      %v863 = vsel %vm862, 0, %v861
      %v864 = vsub.s32 32, %v863
      %v865 = vshll.u32 %v856, %v863
      %v866 = vshrl.u32 %v848, %v864
      %v867 = vor.u32 %v865, %v866
      %v868 = vsub.s32 4294967266, %v863
      %v869 = vadd.s32 %v868, 127
      %v870 = vshll.u32 %v869, 23
      %v871 = vor.u32 4788187, %v870
      %v872 = vand.u32 2147483647, %v871
      %v874 = vcvt.s32.f32 %v867
      %v875 = vmul.f32 %v874, %v872
      %v876 = vxor.u32 %v875, 2147483648
      %v877 = vsel %vm794, %v876, %v875
      %v878 = vsub.s32 4, %v854
      %v879 = vsel %vm794, %v878, %v854
      %v880 = vsel %vm793, %v269, %v877
      %v881 = vsel %vm793, 0, %v879
      %v882 = vcosq.f32.pop %v880
      %v883 = vsinq.f32.pop %v880
      %vm884 = vweird.f32 %v269
      %v885 = vadd.s32 %v881, 3
      %v886 = vand.u32 %v885, 3
      %vm887 = vcmp.lt.s32.totalorder %v886, 2
      %vm888 = vcmp.eq.s32.totalorder %v886, 0
      %v889 = vxor.u32 %v883, 2147483648
      %v890 = vsel %vm888, %v882, %v889
      %vm891 = vcmp.eq.s32.totalorder %v886, 2
      %v892 = vxor.u32 %v882, 2147483648
      %v893 = vsel %vm891, %v892, %v883
      %v894 = vsel %vm887, %v890, %v893
      %v895 = vsel %vm884, nan, %v894
      %v896 = vand.u32 2147483647, %v270
      %vm897 = vcmp.le.f32.partialorder %v896, 0.7853982
      %vm898 = vcmp.lt.s32.totalorder %v270, 0
      %v899 = vand.u32 %v270, 2139095040
      %v900 = vshrl.u32 %v899, 23
      %v901 = vsub.s32 %v900, 127
      %v902 = vand.u32 2147483647, %v270
      %v903 = vand.u32 %v902, 8388607
      %v904 = vor.u32 %v903, 8388608
      %v905 = vsub.s32 0, %v904
      %v906 = vadd.s32 %v901, 1
      %vm907 = vcmp.gt.s32.totalorder %v906, 0
      %v908 = vsel %vm907, %v906, 0
      %v909 = vshrl.u32 %v908, 5
      %v910 = vand.u32 %v908, 31
      %v911 = vsub.s32 32, %v910
      %v912 = vshrl.u32 683565275, %v911
      %v913 = vshll.u32 683565275, %v910
      %v914 = vshrl.u32 2475754826, %v911
      %v915 = vor.u32 %v913, %v914
      %v916 = vshll.u32 2475754826, %v910
      %v917 = vshrl.u32 2131351028, %v911
      %v918 = vor.u32 %v916, %v917
      %v919 = vshll.u32 2131351028, %v910
      %v920 = vshrl.u32 2102212464, %v911
      %v921 = vor.u32 %v919, %v920
      %v922 = vshll.u32 2102212464, %v910
      %v923 = vshrl.u32 920167782, %v911
      %v924 = vor.u32 %v922, %v923
      %v925 = vshll.u32 920167782, %v910
      %v926 = vshrl.u32 1326507024, %v911
      %v927 = vor.u32 %v925, %v926
      %vm928 = vcmp.lt.s32.totalorder %v909, 1
      %vm929 = vcmp.lt.s32.totalorder %v909, 2
      %vm930 = vcmp.lt.s32.totalorder %v909, 3
      %vm931 = vcmp.lt.s32.totalorder %v909, 4
      %v932 = vsel %vm928, %v912, %v915
      %v933 = vsel %vm931, %v921, 2102212464
      %v934 = vsel %vm930, %v918, %v933
      %v935 = vsel %vm929, %v932, %v934
      %v936 = vsel %vm928, %v915, %v918
      %v937 = vsel %vm931, %v924, 920167782
      %v938 = vsel %vm930, %v921, %v937
      %v939 = vsel %vm929, %v936, %v938
      %v940 = vsel %vm928, %v918, %v921
      %v941 = vsel %vm931, %v927, 1326507024
      %v942 = vsel %vm930, %v924, %v941
      %v943 = vsel %vm929, %v940, %v942
      %v944 = vshll.u32 %v904, 8
      %v945 = vmul.u32.u64.compose %v944, %v943
      %v946 = vextract.low.u32 %v945
      %v947 = vextract.high.u32 %v945
      %v948 = vmul.u32.u64.compose %v944, %v939
      %v949 = vextract.low.u32 %v948
      %v950 = vextract.high.u32 %v948
      %v951 = vmul.u32 %v944, %v935
      %v952 = vadd.s32 %v947, %v949
      %vm953 = vc.u32 %v947, %v949
      %v954 = vadd.s32 %v950, 1
      %v955 = vsel %vm953, %v954, %v950
      %v956 = vadd.s32 %v951, %v955
      %v957 = vadd.s32 %v956, 536870912
      %v958 = vshrl.u32 %v957, 30
      %v959 = vshll.u32 %v958, 30
      %v960 = vsub.s32 %v956, %v959
      %vm961 = vcmp.lt.s32.totalorder %v960, 0
      %v962 = vsub.s32 0, %v960
      %v963 = vsel %vm961, %v962, %v960
      %v964 = vclz %v963
      %v965 = vsub.s32 %v964, 2
      %vm966 = vcmp.gt.s32.totalorder 0, %v965
      %v967 = vsel %vm966, 0, %v965
      %v968 = vsub.s32 32, %v967
      %v969 = vshll.u32 %v960, %v967
      %v970 = vshrl.u32 %v952, %v968
      %v971 = vor.u32 %v969, %v970
      %v972 = vsub.s32 4294967266, %v967
      %v973 = vadd.s32 %v972, 127
      %v974 = vshll.u32 %v973, 23
      %v975 = vor.u32 4788187, %v974
      %v976 = vand.u32 2147483647, %v975
      %v978 = vcvt.s32.f32 %v971
      %v979 = vmul.f32 %v978, %v976
      %v980 = vxor.u32 %v979, 2147483648
      %v981 = vsel %vm898, %v980, %v979
      %v982 = vsub.s32 4, %v958
      %v983 = vsel %vm898, %v982, %v958
      %v984 = vsel %vm897, %v270, %v981
      %v985 = vsel %vm897, 0, %v983
      %v986 = vcosq.f32.pop %v984
      %v987 = vsinq.f32.pop %v984
      %vm988 = vweird.f32 %v270
      %v989 = vadd.s32 %v985, 3
      %v990 = vand.u32 %v989, 3
      %vm991 = vcmp.lt.s32.totalorder %v990, 2
      %vm992 = vcmp.eq.s32.totalorder %v990, 0
      %v993 = vxor.u32 %v987, 2147483648
      %v994 = vsel %vm992, %v986, %v993
      %vm995 = vcmp.eq.s32.totalorder %v990, 2
      %v996 = vxor.u32 %v986, 2147483648
      %v997 = vsel %vm995, %v996, %v987
      %v998 = vsel %vm991, %v994, %v997
      %v999 = vsel %vm988, nan, %v998
      %v1000 = vand.u32 2147483647, %v271
      %vm1001 = vcmp.le.f32.partialorder %v1000, 0.7853982
      %vm1002 = vcmp.lt.s32.totalorder %v271, 0
      %v1003 = vand.u32 %v271, 2139095040
      %v1004 = vshrl.u32 %v1003, 23
      %v1005 = vsub.s32 %v1004, 127
      %v1006 = vand.u32 2147483647, %v271
      %v1007 = vand.u32 %v1006, 8388607
      %v1008 = vor.u32 %v1007, 8388608
      %v1009 = vsub.s32 0, %v1008
      %v1010 = vadd.s32 %v1005, 1
      %vm1011 = vcmp.gt.s32.totalorder %v1010, 0
      %v1012 = vsel %vm1011, %v1010, 0
      %v1013 = vshrl.u32 %v1012, 5
      %v1014 = vand.u32 %v1012, 31
      %v1015 = vsub.s32 32, %v1014
      %v1016 = vshrl.u32 683565275, %v1015
      %v1017 = vshll.u32 683565275, %v1014
      %v1018 = vshrl.u32 2475754826, %v1015
      %v1019 = vor.u32 %v1017, %v1018
      %v1020 = vshll.u32 2475754826, %v1014
      %v1021 = vshrl.u32 2131351028, %v1015
      %v1022 = vor.u32 %v1020, %v1021
      %v1023 = vshll.u32 2131351028, %v1014
      %v1024 = vshrl.u32 2102212464, %v1015
      %v1025 = vor.u32 %v1023, %v1024
      %v1026 = vshll.u32 2102212464, %v1014
      %v1027 = vshrl.u32 920167782, %v1015
      %v1028 = vor.u32 %v1026, %v1027
      %v1029 = vshll.u32 920167782, %v1014
      %v1030 = vshrl.u32 1326507024, %v1015
      %v1031 = vor.u32 %v1029, %v1030
      %vm1032 = vcmp.lt.s32.totalorder %v1013, 1
      %vm1033 = vcmp.lt.s32.totalorder %v1013, 2
      %vm1034 = vcmp.lt.s32.totalorder %v1013, 3
      %vm1035 = vcmp.lt.s32.totalorder %v1013, 4
      %v1036 = vsel %vm1032, %v1016, %v1019
      %v1037 = vsel %vm1035, %v1025, 2102212464
      %v1038 = vsel %vm1034, %v1022, %v1037
      %v1039 = vsel %vm1033, %v1036, %v1038
      %v1040 = vsel %vm1032, %v1019, %v1022
      %v1041 = vsel %vm1035, %v1028, 920167782
      %v1042 = vsel %vm1034, %v1025, %v1041
      %v1043 = vsel %vm1033, %v1040, %v1042
      %v1044 = vsel %vm1032, %v1022, %v1025
      %v1045 = vsel %vm1035, %v1031, 1326507024
      %v1046 = vsel %vm1034, %v1028, %v1045
      %v1047 = vsel %vm1033, %v1044, %v1046
      %v1048 = vshll.u32 %v1008, 8
      %v1049 = vmul.u32.u64.compose %v1048, %v1047
      %v1050 = vextract.low.u32 %v1049
      %v1051 = vextract.high.u32 %v1049
      %v1052 = vmul.u32.u64.compose %v1048, %v1043
      %v1053 = vextract.low.u32 %v1052
      %v1054 = vextract.high.u32 %v1052
      %v1055 = vmul.u32 %v1048, %v1039
      %v1056 = vadd.s32 %v1051, %v1053
      %vm1057 = vc.u32 %v1051, %v1053
      %v1058 = vadd.s32 %v1054, 1
      %v1059 = vsel %vm1057, %v1058, %v1054
      %v1060 = vadd.s32 %v1055, %v1059
      %v1061 = vadd.s32 %v1060, 536870912
      %v1062 = vshrl.u32 %v1061, 30
      %v1063 = vshll.u32 %v1062, 30
      %v1064 = vsub.s32 %v1060, %v1063
      %vm1065 = vcmp.lt.s32.totalorder %v1064, 0
      %v1066 = vsub.s32 0, %v1064
      %v1067 = vsel %vm1065, %v1066, %v1064
      %v1068 = vclz %v1067
      %v1069 = vsub.s32 %v1068, 2
      %vm1070 = vcmp.gt.s32.totalorder 0, %v1069
      %v1071 = vsel %vm1070, 0, %v1069
      %v1072 = vsub.s32 32, %v1071
      %v1073 = vshll.u32 %v1064, %v1071
      %v1074 = vshrl.u32 %v1056, %v1072
      %v1075 = vor.u32 %v1073, %v1074
      %v1076 = vsub.s32 4294967266, %v1071
      %v1077 = vadd.s32 %v1076, 127
      %v1078 = vshll.u32 %v1077, 23
      %v1079 = vor.u32 4788187, %v1078
      %v1080 = vand.u32 2147483647, %v1079
      %v1082 = vcvt.s32.f32 %v1075
      %v1083 = vmul.f32 %v1082, %v1080
      %v1084 = vxor.u32 %v1083, 2147483648
      %v1085 = vsel %vm1002, %v1084, %v1083
      %v1086 = vsub.s32 4, %v1062
      %v1087 = vsel %vm1002, %v1086, %v1062
      %v1088 = vsel %vm1001, %v271, %v1085
      %v1089 = vsel %vm1001, 0, %v1087
      %v1090 = vcosq.f32.pop %v1088
      %v1091 = vsinq.f32.pop %v1088
      %vm1092 = vweird.f32 %v271
      %v1093 = vadd.s32 %v1089, 3
      %v1094 = vand.u32 %v1093, 3
      %vm1095 = vcmp.lt.s32.totalorder %v1094, 2
      %vm1096 = vcmp.eq.s32.totalorder %v1094, 0
      %v1097 = vxor.u32 %v1091, 2147483648
      %v1098 = vsel %vm1096, %v1090, %v1097
      %vm1099 = vcmp.eq.s32.totalorder %v1094, 2
      %v1100 = vxor.u32 %v1090, 2147483648
      %v1101 = vsel %vm1099, %v1100, %v1091
      %v1102 = vsel %vm1095, %v1098, %v1101
      %v1103 = vsel %vm1092, nan, %v1102
      %v1104 = vand.u32 2147483647, %v263
      %vm1105 = vcmp.le.f32.partialorder %v1104, 0.7853982
      %vm1106 = vcmp.lt.s32.totalorder %v263, 0
      %v1107 = vand.u32 %v263, 2139095040
      %v1108 = vshrl.u32 %v1107, 23
      %v1109 = vsub.s32 %v1108, 127
      %v1110 = vand.u32 2147483647, %v263
      %v1111 = vand.u32 %v1110, 8388607
      %v1112 = vor.u32 %v1111, 8388608
      %v1113 = vsub.s32 0, %v1112
      %v1114 = vadd.s32 %v1109, 1
      %vm1115 = vcmp.gt.s32.totalorder %v1114, 0
      %v1116 = vsel %vm1115, %v1114, 0
      %v1117 = vshrl.u32 %v1116, 5
      %v1118 = vand.u32 %v1116, 31
      %v1119 = vsub.s32 32, %v1118
      %v1120 = vshrl.u32 683565275, %v1119
      %v1121 = vshll.u32 683565275, %v1118
      %v1122 = vshrl.u32 2475754826, %v1119
      %v1123 = vor.u32 %v1121, %v1122
      %v1124 = vshll.u32 2475754826, %v1118
      %v1125 = vshrl.u32 2131351028, %v1119
      %v1126 = vor.u32 %v1124, %v1125
      %v1127 = vshll.u32 2131351028, %v1118
      %v1128 = vshrl.u32 2102212464, %v1119
      %v1129 = vor.u32 %v1127, %v1128
      %v1130 = vshll.u32 2102212464, %v1118
      %v1131 = vshrl.u32 920167782, %v1119
      %v1132 = vor.u32 %v1130, %v1131
      %v1133 = vshll.u32 920167782, %v1118
      %v1134 = vshrl.u32 1326507024, %v1119
      %v1135 = vor.u32 %v1133, %v1134
      %vm1136 = vcmp.lt.s32.totalorder %v1117, 1
      %vm1137 = vcmp.lt.s32.totalorder %v1117, 2
      %vm1138 = vcmp.lt.s32.totalorder %v1117, 3
      %vm1139 = vcmp.lt.s32.totalorder %v1117, 4
      %v1140 = vsel %vm1136, %v1120, %v1123
      %v1141 = vsel %vm1139, %v1129, 2102212464
      %v1142 = vsel %vm1138, %v1126, %v1141
      %v1143 = vsel %vm1137, %v1140, %v1142
      %v1144 = vsel %vm1136, %v1123, %v1126
      %v1145 = vsel %vm1139, %v1132, 920167782
      %v1146 = vsel %vm1138, %v1129, %v1145
      %v1147 = vsel %vm1137, %v1144, %v1146
      %v1148 = vsel %vm1136, %v1126, %v1129
      %v1149 = vsel %vm1139, %v1135, 1326507024
      %v1150 = vsel %vm1138, %v1132, %v1149
      %v1151 = vsel %vm1137, %v1148, %v1150
      %v1152 = vshll.u32 %v1112, 8
      %v1153 = vmul.u32.u64.compose %v1152, %v1151
      %v1154 = vextract.low.u32 %v1153
      %v1155 = vextract.high.u32 %v1153
      %v1156 = vmul.u32.u64.compose %v1152, %v1147
      %v1157 = vextract.low.u32 %v1156
      %v1158 = vextract.high.u32 %v1156
      %v1159 = vmul.u32 %v1152, %v1143
      %v1160 = vadd.s32 %v1155, %v1157
      %vm1161 = vc.u32 %v1155, %v1157
      %v1162 = vadd.s32 %v1158, 1
      %v1163 = vsel %vm1161, %v1162, %v1158
      %v1164 = vadd.s32 %v1159, %v1163
      %v1165 = vadd.s32 %v1164, 536870912
      %v1166 = vshrl.u32 %v1165, 30
      %v1167 = vshll.u32 %v1166, 30
      %v1168 = vsub.s32 %v1164, %v1167
      %vm1169 = vcmp.lt.s32.totalorder %v1168, 0
      %v1170 = vsub.s32 0, %v1168
      %v1171 = vsel %vm1169, %v1170, %v1168
      %v1172 = vclz %v1171
      %v1173 = vsub.s32 %v1172, 2
      %vm1174 = vcmp.gt.s32.totalorder 0, %v1173
      %v1175 = vsel %vm1174, 0, %v1173
      %v1176 = vsub.s32 32, %v1175
      %v1177 = vshll.u32 %v1168, %v1175
      %v1178 = vshrl.u32 %v1160, %v1176
      %v1179 = vor.u32 %v1177, %v1178
      %v1180 = vsub.s32 4294967266, %v1175
      %v1181 = vadd.s32 %v1180, 127
      %v1182 = vshll.u32 %v1181, 23
      %v1183 = vor.u32 4788187, %v1182
      %v1184 = vand.u32 2147483647, %v1183
      %v1186 = vcvt.s32.f32 %v1179
      %v1187 = vmul.f32 %v1186, %v1184
      %v1188 = vxor.u32 %v1187, 2147483648
      %v1189 = vsel %vm1106, %v1188, %v1187
      %v1190 = vsub.s32 4, %v1166
      %v1191 = vsel %vm1106, %v1190, %v1166
      %v1192 = vsel %vm1105, %v263, %v1189
      %v1193 = vsel %vm1105, 0, %v1191
      %v1194 = vcosq.f32.pop %v1192
      %v1195 = vsinq.f32.pop %v1192
      %vm1196 = vweird.f32 %v263
      %v1197 = vand.u32 %v1193, 3
      %vm1198 = vcmp.lt.s32.totalorder %v1197, 2
      %vm1199 = vcmp.eq.s32.totalorder %v1197, 0
      %v1200 = vxor.u32 %v1195, 2147483648
      %v1201 = vsel %vm1199, %v1194, %v1200
      %vm1202 = vcmp.eq.s32.totalorder %v1197, 2
      %v1203 = vxor.u32 %v1194, 2147483648
      %v1204 = vsel %vm1202, %v1203, %v1195
      %v1205 = vsel %vm1198, %v1201, %v1204
      %v1206 = vsel %vm1196, nan, %v1205
      %v1207 = vand.u32 2147483647, %v264
      %vm1208 = vcmp.le.f32.partialorder %v1207, 0.7853982
      %vm1209 = vcmp.lt.s32.totalorder %v264, 0
      %v1210 = vand.u32 %v264, 2139095040
      %v1211 = vshrl.u32 %v1210, 23
      %v1212 = vsub.s32 %v1211, 127
      %v1213 = vand.u32 2147483647, %v264
      %v1214 = vand.u32 %v1213, 8388607
      %v1215 = vor.u32 %v1214, 8388608
      %v1216 = vsub.s32 0, %v1215
      %v1217 = vadd.s32 %v1212, 1
      %vm1218 = vcmp.gt.s32.totalorder %v1217, 0
      %v1219 = vsel %vm1218, %v1217, 0
      %v1220 = vshrl.u32 %v1219, 5
      %v1221 = vand.u32 %v1219, 31
      %v1222 = vsub.s32 32, %v1221
      %v1223 = vshrl.u32 683565275, %v1222
      %v1224 = vshll.u32 683565275, %v1221
      %v1225 = vshrl.u32 2475754826, %v1222
      %v1226 = vor.u32 %v1224, %v1225
      %v1227 = vshll.u32 2475754826, %v1221
      %v1228 = vshrl.u32 2131351028, %v1222
      %v1229 = vor.u32 %v1227, %v1228
      %v1230 = vshll.u32 2131351028, %v1221
      %v1231 = vshrl.u32 2102212464, %v1222
      %v1232 = vor.u32 %v1230, %v1231
      %v1233 = vshll.u32 2102212464, %v1221
      %v1234 = vshrl.u32 920167782, %v1222
      %v1235 = vor.u32 %v1233, %v1234
      %v1236 = vshll.u32 920167782, %v1221
      %v1237 = vshrl.u32 1326507024, %v1222
      %v1238 = vor.u32 %v1236, %v1237
      %vm1239 = vcmp.lt.s32.totalorder %v1220, 1
      %vm1240 = vcmp.lt.s32.totalorder %v1220, 2
      %vm1241 = vcmp.lt.s32.totalorder %v1220, 3
      %vm1242 = vcmp.lt.s32.totalorder %v1220, 4
      %v1243 = vsel %vm1239, %v1223, %v1226
      %v1244 = vsel %vm1242, %v1232, 2102212464
      %v1245 = vsel %vm1241, %v1229, %v1244
      %v1246 = vsel %vm1240, %v1243, %v1245
      %v1247 = vsel %vm1239, %v1226, %v1229
      %v1248 = vsel %vm1242, %v1235, 920167782
      %v1249 = vsel %vm1241, %v1232, %v1248
      %v1250 = vsel %vm1240, %v1247, %v1249
      %v1251 = vsel %vm1239, %v1229, %v1232
      %v1252 = vsel %vm1242, %v1238, 1326507024
      %v1253 = vsel %vm1241, %v1235, %v1252
      %v1254 = vsel %vm1240, %v1251, %v1253
      %v1255 = vshll.u32 %v1215, 8
      %v1256 = vmul.u32.u64.compose %v1255, %v1254
      %v1257 = vextract.low.u32 %v1256
      %v1258 = vextract.high.u32 %v1256
      %v1259 = vmul.u32.u64.compose %v1255, %v1250
      %v1260 = vextract.low.u32 %v1259
      %v1261 = vextract.high.u32 %v1259
      %v1262 = vmul.u32 %v1255, %v1246
      %v1263 = vadd.s32 %v1258, %v1260
      %vm1264 = vc.u32 %v1258, %v1260
      %v1265 = vadd.s32 %v1261, 1
      %v1266 = vsel %vm1264, %v1265, %v1261
      %v1267 = vadd.s32 %v1262, %v1266
      %v1268 = vadd.s32 %v1267, 536870912
      %v1269 = vshrl.u32 %v1268, 30
      %v1270 = vshll.u32 %v1269, 30
      %v1271 = vsub.s32 %v1267, %v1270
      %vm1272 = vcmp.lt.s32.totalorder %v1271, 0
      %v1273 = vsub.s32 0, %v1271
      %v1274 = vsel %vm1272, %v1273, %v1271
      %v1275 = vclz %v1274
      %v1276 = vsub.s32 %v1275, 2
      %vm1277 = vcmp.gt.s32.totalorder 0, %v1276
      %v1278 = vsel %vm1277, 0, %v1276
      %v1279 = vsub.s32 32, %v1278
      %v1280 = vshll.u32 %v1271, %v1278
      %v1281 = vshrl.u32 %v1263, %v1279
      %v1282 = vor.u32 %v1280, %v1281
      %v1283 = vsub.s32 4294967266, %v1278
      %v1284 = vadd.s32 %v1283, 127
      %v1285 = vshll.u32 %v1284, 23
      %v1286 = vor.u32 4788187, %v1285
      %v1287 = vand.u32 2147483647, %v1286
      %v1289 = vcvt.s32.f32 %v1282
      %v1290 = vmul.f32 %v1289, %v1287
      %v1291 = vxor.u32 %v1290, 2147483648
      %v1292 = vsel %vm1209, %v1291, %v1290
      %v1293 = vsub.s32 4, %v1269
      %v1294 = vsel %vm1209, %v1293, %v1269
      %v1295 = vsel %vm1208, %v264, %v1292
      %v1296 = vsel %vm1208, 0, %v1294
      %v1297 = vcosq.f32.pop %v1295
      %v1298 = vsinq.f32.pop %v1295
      %vm1299 = vweird.f32 %v264
      %v1300 = vand.u32 %v1296, 3
      %vm1301 = vcmp.lt.s32.totalorder %v1300, 2
      %vm1302 = vcmp.eq.s32.totalorder %v1300, 0
      %v1303 = vxor.u32 %v1298, 2147483648
      %v1304 = vsel %vm1302, %v1297, %v1303
      %vm1305 = vcmp.eq.s32.totalorder %v1300, 2
      %v1306 = vxor.u32 %v1297, 2147483648
      %v1307 = vsel %vm1305, %v1306, %v1298
      %v1308 = vsel %vm1301, %v1304, %v1307
      %v1309 = vsel %vm1299, nan, %v1308
      %v1310 = vand.u32 2147483647, %v265
      %vm1311 = vcmp.le.f32.partialorder %v1310, 0.7853982
      %vm1312 = vcmp.lt.s32.totalorder %v265, 0
      %v1313 = vand.u32 %v265, 2139095040
      %v1314 = vshrl.u32 %v1313, 23
      %v1315 = vsub.s32 %v1314, 127
      %v1316 = vand.u32 2147483647, %v265
      %v1317 = vand.u32 %v1316, 8388607
      %v1318 = vor.u32 %v1317, 8388608
      %v1319 = vsub.s32 0, %v1318
      %v1320 = vadd.s32 %v1315, 1
      %vm1321 = vcmp.gt.s32.totalorder %v1320, 0
      %v1322 = vsel %vm1321, %v1320, 0
      %v1323 = vshrl.u32 %v1322, 5
      %v1324 = vand.u32 %v1322, 31
      %v1325 = vsub.s32 32, %v1324
      %v1326 = vshrl.u32 683565275, %v1325
      %v1327 = vshll.u32 683565275, %v1324
      %v1328 = vshrl.u32 2475754826, %v1325
      %v1329 = vor.u32 %v1327, %v1328
      %v1330 = vshll.u32 2475754826, %v1324
      %v1331 = vshrl.u32 2131351028, %v1325
      %v1332 = vor.u32 %v1330, %v1331
      %v1333 = vshll.u32 2131351028, %v1324
      %v1334 = vshrl.u32 2102212464, %v1325
      %v1335 = vor.u32 %v1333, %v1334
      %v1336 = vshll.u32 2102212464, %v1324
      %v1337 = vshrl.u32 920167782, %v1325
      %v1338 = vor.u32 %v1336, %v1337
      %v1339 = vshll.u32 920167782, %v1324
      %v1340 = vshrl.u32 1326507024, %v1325
      %v1341 = vor.u32 %v1339, %v1340
      %vm1342 = vcmp.lt.s32.totalorder %v1323, 1
      %vm1343 = vcmp.lt.s32.totalorder %v1323, 2
      %vm1344 = vcmp.lt.s32.totalorder %v1323, 3
      %vm1345 = vcmp.lt.s32.totalorder %v1323, 4
      %v1346 = vsel %vm1342, %v1326, %v1329
      %v1347 = vsel %vm1345, %v1335, 2102212464
      %v1348 = vsel %vm1344, %v1332, %v1347
      %v1349 = vsel %vm1343, %v1346, %v1348
      %v1350 = vsel %vm1342, %v1329, %v1332
      %v1351 = vsel %vm1345, %v1338, 920167782
      %v1352 = vsel %vm1344, %v1335, %v1351
      %v1353 = vsel %vm1343, %v1350, %v1352
      %v1354 = vsel %vm1342, %v1332, %v1335
      %v1355 = vsel %vm1345, %v1341, 1326507024
      %v1356 = vsel %vm1344, %v1338, %v1355
      %v1357 = vsel %vm1343, %v1354, %v1356
      %v1358 = vshll.u32 %v1318, 8
      %v1359 = vmul.u32.u64.compose %v1358, %v1357
      %v1360 = vextract.low.u32 %v1359
      %v1361 = vextract.high.u32 %v1359
      %v1362 = vmul.u32.u64.compose %v1358, %v1353
      %v1363 = vextract.low.u32 %v1362
      %v1364 = vextract.high.u32 %v1362
      %v1365 = vmul.u32 %v1358, %v1349
      %v1366 = vadd.s32 %v1361, %v1363
      %vm1367 = vc.u32 %v1361, %v1363
      %v1368 = vadd.s32 %v1364, 1
      %v1369 = vsel %vm1367, %v1368, %v1364
      %v1370 = vadd.s32 %v1365, %v1369
      %v1371 = vadd.s32 %v1370, 536870912
      %v1372 = vshrl.u32 %v1371, 30
      %v1373 = vshll.u32 %v1372, 30
      %v1374 = vsub.s32 %v1370, %v1373
      %vm1375 = vcmp.lt.s32.totalorder %v1374, 0
      %v1376 = vsub.s32 0, %v1374
      %v1377 = vsel %vm1375, %v1376, %v1374
      %v1378 = vclz %v1377
      %v1379 = vsub.s32 %v1378, 2
      %vm1380 = vcmp.gt.s32.totalorder 0, %v1379
      %v1381 = vsel %vm1380, 0, %v1379
      %v1382 = vsub.s32 32, %v1381
      %v1383 = vshll.u32 %v1374, %v1381
      %v1384 = vshrl.u32 %v1366, %v1382
      %v1385 = vor.u32 %v1383, %v1384
      %v1386 = vsub.s32 4294967266, %v1381
      %v1387 = vadd.s32 %v1386, 127
      %v1388 = vshll.u32 %v1387, 23
      %v1389 = vor.u32 4788187, %v1388
      %v1390 = vand.u32 2147483647, %v1389
      %v1392 = vcvt.s32.f32 %v1385
      %v1393 = vmul.f32 %v1392, %v1390
      %v1394 = vxor.u32 %v1393, 2147483648
      %v1395 = vsel %vm1312, %v1394, %v1393
      %v1396 = vsub.s32 4, %v1372
      %v1397 = vsel %vm1312, %v1396, %v1372
      %v1398 = vsel %vm1311, %v265, %v1395
      %v1399 = vsel %vm1311, 0, %v1397
      %v1400 = vcosq.f32.pop %v1398
      %v1401 = vsinq.f32.pop %v1398
      %vm1402 = vweird.f32 %v265
      %v1403 = vand.u32 %v1399, 3
      %vm1404 = vcmp.lt.s32.totalorder %v1403, 2
      %vm1405 = vcmp.eq.s32.totalorder %v1403, 0
      %v1406 = vxor.u32 %v1401, 2147483648
      %v1407 = vsel %vm1405, %v1400, %v1406
      %vm1408 = vcmp.eq.s32.totalorder %v1403, 2
      %v1409 = vxor.u32 %v1400, 2147483648
      %v1410 = vsel %vm1408, %v1409, %v1401
      %v1411 = vsel %vm1404, %v1407, %v1410
      %v1412 = vsel %vm1402, nan, %v1411
      %v1413 = vand.u32 2147483647, %v266
      %vm1414 = vcmp.le.f32.partialorder %v1413, 0.7853982
      %vm1415 = vcmp.lt.s32.totalorder %v266, 0
      %v1416 = vand.u32 %v266, 2139095040
      %v1417 = vshrl.u32 %v1416, 23
      %v1418 = vsub.s32 %v1417, 127
      %v1419 = vand.u32 2147483647, %v266
      %v1420 = vand.u32 %v1419, 8388607
      %v1421 = vor.u32 %v1420, 8388608
      %v1422 = vsub.s32 0, %v1421
      %v1423 = vadd.s32 %v1418, 1
      %vm1424 = vcmp.gt.s32.totalorder %v1423, 0
      %v1425 = vsel %vm1424, %v1423, 0
      %v1426 = vshrl.u32 %v1425, 5
      %v1427 = vand.u32 %v1425, 31
      %v1428 = vsub.s32 32, %v1427
      %v1429 = vshrl.u32 683565275, %v1428
      %v1430 = vshll.u32 683565275, %v1427
      %v1431 = vshrl.u32 2475754826, %v1428
      %v1432 = vor.u32 %v1430, %v1431
      %v1433 = vshll.u32 2475754826, %v1427
      %v1434 = vshrl.u32 2131351028, %v1428
      %v1435 = vor.u32 %v1433, %v1434
      %v1436 = vshll.u32 2131351028, %v1427
      %v1437 = vshrl.u32 2102212464, %v1428
      %v1438 = vor.u32 %v1436, %v1437
      %v1439 = vshll.u32 2102212464, %v1427
      %v1440 = vshrl.u32 920167782, %v1428
      %v1441 = vor.u32 %v1439, %v1440
      %v1442 = vshll.u32 920167782, %v1427
      %v1443 = vshrl.u32 1326507024, %v1428
      %v1444 = vor.u32 %v1442, %v1443
      %vm1445 = vcmp.lt.s32.totalorder %v1426, 1
      %vm1446 = vcmp.lt.s32.totalorder %v1426, 2
      %vm1447 = vcmp.lt.s32.totalorder %v1426, 3
      %vm1448 = vcmp.lt.s32.totalorder %v1426, 4
      %v1449 = vsel %vm1445, %v1429, %v1432
      %v1450 = vsel %vm1448, %v1438, 2102212464
      %v1451 = vsel %vm1447, %v1435, %v1450
      %v1452 = vsel %vm1446, %v1449, %v1451
      %v1453 = vsel %vm1445, %v1432, %v1435
      %v1454 = vsel %vm1448, %v1441, 920167782
      %v1455 = vsel %vm1447, %v1438, %v1454
      %v1456 = vsel %vm1446, %v1453, %v1455
      %v1457 = vsel %vm1445, %v1435, %v1438
      %v1458 = vsel %vm1448, %v1444, 1326507024
      %v1459 = vsel %vm1447, %v1441, %v1458
      %v1460 = vsel %vm1446, %v1457, %v1459
      %v1461 = vshll.u32 %v1421, 8
      %v1462 = vmul.u32.u64.compose %v1461, %v1460
      %v1463 = vextract.low.u32 %v1462
      %v1464 = vextract.high.u32 %v1462
      %v1465 = vmul.u32.u64.compose %v1461, %v1456
      %v1466 = vextract.low.u32 %v1465
      %v1467 = vextract.high.u32 %v1465
      %v1468 = vmul.u32 %v1461, %v1452
      %v1469 = vadd.s32 %v1464, %v1466
      %vm1470 = vc.u32 %v1464, %v1466
      %v1471 = vadd.s32 %v1467, 1
      %v1472 = vsel %vm1470, %v1471, %v1467
      %v1473 = vadd.s32 %v1468, %v1472
      %v1474 = vadd.s32 %v1473, 536870912
      %v1475 = vshrl.u32 %v1474, 30
      %v1476 = vshll.u32 %v1475, 30
      %v1477 = vsub.s32 %v1473, %v1476
      %vm1478 = vcmp.lt.s32.totalorder %v1477, 0
      %v1479 = vsub.s32 0, %v1477
      %v1480 = vsel %vm1478, %v1479, %v1477
      %v1481 = vclz %v1480
      %v1482 = vsub.s32 %v1481, 2
      %vm1483 = vcmp.gt.s32.totalorder 0, %v1482
      %v1484 = vsel %vm1483, 0, %v1482
      %v1485 = vsub.s32 32, %v1484
      %v1486 = vshll.u32 %v1477, %v1484
      %v1487 = vshrl.u32 %v1469, %v1485
      %v1488 = vor.u32 %v1486, %v1487
      %v1489 = vsub.s32 4294967266, %v1484
      %v1490 = vadd.s32 %v1489, 127
      %v1491 = vshll.u32 %v1490, 23
      %v1492 = vor.u32 4788187, %v1491
      %v1493 = vand.u32 2147483647, %v1492
      %v1495 = vcvt.s32.f32 %v1488
      %v1496 = vmul.f32 %v1495, %v1493
      %v1497 = vxor.u32 %v1496, 2147483648
      %v1498 = vsel %vm1415, %v1497, %v1496
      %v1499 = vsub.s32 4, %v1475
      %v1500 = vsel %vm1415, %v1499, %v1475
      %v1501 = vsel %vm1414, %v266, %v1498
      %v1502 = vsel %vm1414, 0, %v1500
      %v1503 = vcosq.f32.pop %v1501
      %v1504 = vsinq.f32.pop %v1501
      %vm1505 = vweird.f32 %v266
      %v1506 = vand.u32 %v1502, 3
      %vm1507 = vcmp.lt.s32.totalorder %v1506, 2
      %vm1508 = vcmp.eq.s32.totalorder %v1506, 0
      %v1509 = vxor.u32 %v1504, 2147483648
      %v1510 = vsel %vm1508, %v1503, %v1509
      %vm1511 = vcmp.eq.s32.totalorder %v1506, 2
      %v1512 = vxor.u32 %v1503, 2147483648
      %v1513 = vsel %vm1511, %v1512, %v1504
      %v1514 = vsel %vm1507, %v1510, %v1513
      %v1515 = vsel %vm1505, nan, %v1514
      %v1516 = vand.u32 2147483647, %v268
      %vm1517 = vcmp.le.f32.partialorder %v1516, 0.7853982
      %vm1518 = vcmp.lt.s32.totalorder %v268, 0
      %v1519 = vand.u32 %v268, 2139095040
      %v1520 = vshrl.u32 %v1519, 23
      %v1521 = vsub.s32 %v1520, 127
      %v1522 = vand.u32 2147483647, %v268
      %v1523 = vand.u32 %v1522, 8388607
      %v1524 = vor.u32 %v1523, 8388608
      %v1525 = vsub.s32 0, %v1524
      %v1526 = vadd.s32 %v1521, 1
      %vm1527 = vcmp.gt.s32.totalorder %v1526, 0
      %v1528 = vsel %vm1527, %v1526, 0
      %v1529 = vshrl.u32 %v1528, 5
      %v1530 = vand.u32 %v1528, 31
      %v1531 = vsub.s32 32, %v1530
      %v1532 = vshrl.u32 683565275, %v1531
      %v1533 = vshll.u32 683565275, %v1530
      %v1534 = vshrl.u32 2475754826, %v1531
      %v1535 = vor.u32 %v1533, %v1534
      %v1536 = vshll.u32 2475754826, %v1530
      %v1537 = vshrl.u32 2131351028, %v1531
      %v1538 = vor.u32 %v1536, %v1537
      %v1539 = vshll.u32 2131351028, %v1530
      %v1540 = vshrl.u32 2102212464, %v1531
      %v1541 = vor.u32 %v1539, %v1540
      %v1542 = vshll.u32 2102212464, %v1530
      %v1543 = vshrl.u32 920167782, %v1531
      %v1544 = vor.u32 %v1542, %v1543
      %v1545 = vshll.u32 920167782, %v1530
      %v1546 = vshrl.u32 1326507024, %v1531
      %v1547 = vor.u32 %v1545, %v1546
      %vm1548 = vcmp.lt.s32.totalorder %v1529, 1
      %vm1549 = vcmp.lt.s32.totalorder %v1529, 2
      %vm1550 = vcmp.lt.s32.totalorder %v1529, 3
      %vm1551 = vcmp.lt.s32.totalorder %v1529, 4
      %v1552 = vsel %vm1548, %v1532, %v1535
      %v1553 = vsel %vm1551, %v1541, 2102212464
      %v1554 = vsel %vm1550, %v1538, %v1553
      %v1555 = vsel %vm1549, %v1552, %v1554
      %v1556 = vsel %vm1548, %v1535, %v1538
      %v1557 = vsel %vm1551, %v1544, 920167782
      %v1558 = vsel %vm1550, %v1541, %v1557
      %v1559 = vsel %vm1549, %v1556, %v1558
      %v1560 = vsel %vm1548, %v1538, %v1541
      %v1561 = vsel %vm1551, %v1547, 1326507024
      %v1562 = vsel %vm1550, %v1544, %v1561
      %v1563 = vsel %vm1549, %v1560, %v1562
      %v1564 = vshll.u32 %v1524, 8
      %v1565 = vmul.u32.u64.compose %v1564, %v1563
      %v1566 = vextract.low.u32 %v1565
      %v1567 = vextract.high.u32 %v1565
      %v1568 = vmul.u32.u64.compose %v1564, %v1559
      %v1569 = vextract.low.u32 %v1568
      %v1570 = vextract.high.u32 %v1568
      %v1571 = vmul.u32 %v1564, %v1555
      %v1572 = vadd.s32 %v1567, %v1569
      %vm1573 = vc.u32 %v1567, %v1569
      %v1574 = vadd.s32 %v1570, 1
      %v1575 = vsel %vm1573, %v1574, %v1570
      %v1576 = vadd.s32 %v1571, %v1575
      %v1577 = vadd.s32 %v1576, 536870912
      %v1578 = vshrl.u32 %v1577, 30
      %v1579 = vshll.u32 %v1578, 30
      %v1580 = vsub.s32 %v1576, %v1579
      %vm1581 = vcmp.lt.s32.totalorder %v1580, 0
      %v1582 = vsub.s32 0, %v1580
      %v1583 = vsel %vm1581, %v1582, %v1580
      %v1584 = vclz %v1583
      %v1585 = vsub.s32 %v1584, 2
      %vm1586 = vcmp.gt.s32.totalorder 0, %v1585
      %v1587 = vsel %vm1586, 0, %v1585
      %v1588 = vsub.s32 32, %v1587
      %v1589 = vshll.u32 %v1580, %v1587
      %v1590 = vshrl.u32 %v1572, %v1588
      %v1591 = vor.u32 %v1589, %v1590
      %v1592 = vsub.s32 4294967266, %v1587
      %v1593 = vadd.s32 %v1592, 127
      %v1594 = vshll.u32 %v1593, 23
      %v1595 = vor.u32 4788187, %v1594
      %v1596 = vand.u32 2147483647, %v1595
      %v1598 = vcvt.s32.f32 %v1591
      %v1599 = vmul.f32 %v1598, %v1596
      %v1600 = vxor.u32 %v1599, 2147483648
      %v1601 = vsel %vm1518, %v1600, %v1599
      %v1602 = vsub.s32 4, %v1578
      %v1603 = vsel %vm1518, %v1602, %v1578
      %v1604 = vsel %vm1517, %v268, %v1601
      %v1605 = vsel %vm1517, 0, %v1603
      %v1606 = vcosq.f32.pop %v1604
      %v1607 = vsinq.f32.pop %v1604
      %vm1608 = vweird.f32 %v268
      %v1609 = vand.u32 %v1605, 3
      %vm1610 = vcmp.lt.s32.totalorder %v1609, 2
      %vm1611 = vcmp.eq.s32.totalorder %v1609, 0
      %v1612 = vxor.u32 %v1607, 2147483648
      %v1613 = vsel %vm1611, %v1606, %v1612
      %vm1614 = vcmp.eq.s32.totalorder %v1609, 2
      %v1615 = vxor.u32 %v1606, 2147483648
      %v1616 = vsel %vm1614, %v1615, %v1607
      %v1617 = vsel %vm1610, %v1613, %v1616
      %v1618 = vsel %vm1608, nan, %v1617
      %v1619 = vand.u32 2147483647, %v269
      %vm1620 = vcmp.le.f32.partialorder %v1619, 0.7853982
      %vm1621 = vcmp.lt.s32.totalorder %v269, 0
      %v1622 = vand.u32 %v269, 2139095040
      %v1623 = vshrl.u32 %v1622, 23
      %v1624 = vsub.s32 %v1623, 127
      %v1625 = vand.u32 2147483647, %v269
      %v1626 = vand.u32 %v1625, 8388607
      %v1627 = vor.u32 %v1626, 8388608
      %v1628 = vsub.s32 0, %v1627
      %v1629 = vadd.s32 %v1624, 1
      %vm1630 = vcmp.gt.s32.totalorder %v1629, 0
      %v1631 = vsel %vm1630, %v1629, 0
      %v1632 = vshrl.u32 %v1631, 5
      %v1633 = vand.u32 %v1631, 31
      %v1634 = vsub.s32 32, %v1633
      %v1635 = vshrl.u32 683565275, %v1634
      %v1636 = vshll.u32 683565275, %v1633
      %v1637 = vshrl.u32 2475754826, %v1634
      %v1638 = vor.u32 %v1636, %v1637
      %v1639 = vshll.u32 2475754826, %v1633
      %v1640 = vshrl.u32 2131351028, %v1634
      %v1641 = vor.u32 %v1639, %v1640
      %v1642 = vshll.u32 2131351028, %v1633
      %v1643 = vshrl.u32 2102212464, %v1634
      %v1644 = vor.u32 %v1642, %v1643
      %v1645 = vshll.u32 2102212464, %v1633
      %v1646 = vshrl.u32 920167782, %v1634
      %v1647 = vor.u32 %v1645, %v1646
      %v1648 = vshll.u32 920167782, %v1633
      %v1649 = vshrl.u32 1326507024, %v1634
      %v1650 = vor.u32 %v1648, %v1649
      %vm1651 = vcmp.lt.s32.totalorder %v1632, 1
      %vm1652 = vcmp.lt.s32.totalorder %v1632, 2
      %vm1653 = vcmp.lt.s32.totalorder %v1632, 3
      %vm1654 = vcmp.lt.s32.totalorder %v1632, 4
      %v1655 = vsel %vm1651, %v1635, %v1638
      %v1656 = vsel %vm1654, %v1644, 2102212464
      %v1657 = vsel %vm1653, %v1641, %v1656
      %v1658 = vsel %vm1652, %v1655, %v1657
      %v1659 = vsel %vm1651, %v1638, %v1641
      %v1660 = vsel %vm1654, %v1647, 920167782
      %v1661 = vsel %vm1653, %v1644, %v1660
      %v1662 = vsel %vm1652, %v1659, %v1661
      %v1663 = vsel %vm1651, %v1641, %v1644
      %v1664 = vsel %vm1654, %v1650, 1326507024
      %v1665 = vsel %vm1653, %v1647, %v1664
      %v1666 = vsel %vm1652, %v1663, %v1665
      %v1667 = vshll.u32 %v1627, 8
      %v1668 = vmul.u32.u64.compose %v1667, %v1666
      %v1669 = vextract.low.u32 %v1668
      %v1670 = vextract.high.u32 %v1668
      %v1671 = vmul.u32.u64.compose %v1667, %v1662
      %v1672 = vextract.low.u32 %v1671
      %v1673 = vextract.high.u32 %v1671
      %v1674 = vmul.u32 %v1667, %v1658
      %v1675 = vadd.s32 %v1670, %v1672
      %vm1676 = vc.u32 %v1670, %v1672
      %v1677 = vadd.s32 %v1673, 1
      %v1678 = vsel %vm1676, %v1677, %v1673
      %v1679 = vadd.s32 %v1674, %v1678
      %v1680 = vadd.s32 %v1679, 536870912
      %v1681 = vshrl.u32 %v1680, 30
      %v1682 = vshll.u32 %v1681, 30
      %v1683 = vsub.s32 %v1679, %v1682
      %vm1684 = vcmp.lt.s32.totalorder %v1683, 0
      %v1685 = vsub.s32 0, %v1683
      %v1686 = vsel %vm1684, %v1685, %v1683
      %v1687 = vclz %v1686
      %v1688 = vsub.s32 %v1687, 2
      %vm1689 = vcmp.gt.s32.totalorder 0, %v1688
      %v1690 = vsel %vm1689, 0, %v1688
      %v1691 = vsub.s32 32, %v1690
      %v1692 = vshll.u32 %v1683, %v1690
      %v1693 = vshrl.u32 %v1675, %v1691
      %v1694 = vor.u32 %v1692, %v1693
      %v1695 = vsub.s32 4294967266, %v1690
      %v1696 = vadd.s32 %v1695, 127
      %v1697 = vshll.u32 %v1696, 23
      %v1698 = vor.u32 4788187, %v1697
      %v1699 = vand.u32 2147483647, %v1698
      %v1701 = vcvt.s32.f32 %v1694
      %v1702 = vmul.f32 %v1701, %v1699
      %v1703 = vxor.u32 %v1702, 2147483648
      %v1704 = vsel %vm1621, %v1703, %v1702
      %v1705 = vsub.s32 4, %v1681
      %v1706 = vsel %vm1621, %v1705, %v1681
      %v1707 = vsel %vm1620, %v269, %v1704
      %v1708 = vsel %vm1620, 0, %v1706
      %v1709 = vcosq.f32.pop %v1707
      %v1710 = vsinq.f32.pop %v1707
      %vm1711 = vweird.f32 %v269
      %v1712 = vand.u32 %v1708, 3
      %vm1713 = vcmp.lt.s32.totalorder %v1712, 2
      %vm1714 = vcmp.eq.s32.totalorder %v1712, 0
      %v1715 = vxor.u32 %v1710, 2147483648
      %v1716 = vsel %vm1714, %v1709, %v1715
      %vm1717 = vcmp.eq.s32.totalorder %v1712, 2
      %v1718 = vxor.u32 %v1709, 2147483648
      %v1719 = vsel %vm1717, %v1718, %v1710
      %v1720 = vsel %vm1713, %v1716, %v1719
      %v1721 = vsel %vm1711, nan, %v1720
      %v1722 = vand.u32 2147483647, %v270
      %vm1723 = vcmp.le.f32.partialorder %v1722, 0.7853982
      %vm1724 = vcmp.lt.s32.totalorder %v270, 0
      %v1725 = vand.u32 %v270, 2139095040
      %v1726 = vshrl.u32 %v1725, 23
      %v1727 = vsub.s32 %v1726, 127
      %v1728 = vand.u32 2147483647, %v270
      %v1729 = vand.u32 %v1728, 8388607
      %v1730 = vor.u32 %v1729, 8388608
      %v1731 = vsub.s32 0, %v1730
      %v1732 = vadd.s32 %v1727, 1
      %vm1733 = vcmp.gt.s32.totalorder %v1732, 0
      %v1734 = vsel %vm1733, %v1732, 0
      %v1735 = vshrl.u32 %v1734, 5
      %v1736 = vand.u32 %v1734, 31
      %v1737 = vsub.s32 32, %v1736
      %v1738 = vshrl.u32 683565275, %v1737
      %v1739 = vshll.u32 683565275, %v1736
      %v1740 = vshrl.u32 2475754826, %v1737
      %v1741 = vor.u32 %v1739, %v1740
      %v1742 = vshll.u32 2475754826, %v1736
      %v1743 = vshrl.u32 2131351028, %v1737
      %v1744 = vor.u32 %v1742, %v1743
      %v1745 = vshll.u32 2131351028, %v1736
      %v1746 = vshrl.u32 2102212464, %v1737
      %v1747 = vor.u32 %v1745, %v1746
      %v1748 = vshll.u32 2102212464, %v1736
      %v1749 = vshrl.u32 920167782, %v1737
      %v1750 = vor.u32 %v1748, %v1749
      %v1751 = vshll.u32 920167782, %v1736
      %v1752 = vshrl.u32 1326507024, %v1737
      %v1753 = vor.u32 %v1751, %v1752
      %vm1754 = vcmp.lt.s32.totalorder %v1735, 1
      %vm1755 = vcmp.lt.s32.totalorder %v1735, 2
      %vm1756 = vcmp.lt.s32.totalorder %v1735, 3
      %vm1757 = vcmp.lt.s32.totalorder %v1735, 4
      %v1758 = vsel %vm1754, %v1738, %v1741
      %v1759 = vsel %vm1757, %v1747, 2102212464
      %v1760 = vsel %vm1756, %v1744, %v1759
      %v1761 = vsel %vm1755, %v1758, %v1760
      %v1762 = vsel %vm1754, %v1741, %v1744
      %v1763 = vsel %vm1757, %v1750, 920167782
      %v1764 = vsel %vm1756, %v1747, %v1763
      %v1765 = vsel %vm1755, %v1762, %v1764
      %v1766 = vsel %vm1754, %v1744, %v1747
      %v1767 = vsel %vm1757, %v1753, 1326507024
      %v1768 = vsel %vm1756, %v1750, %v1767
      %v1769 = vsel %vm1755, %v1766, %v1768
      %v1770 = vshll.u32 %v1730, 8
      %v1771 = vmul.u32.u64.compose %v1770, %v1769
      %v1772 = vextract.low.u32 %v1771
      %v1773 = vextract.high.u32 %v1771
      %v1774 = vmul.u32.u64.compose %v1770, %v1765
      %v1775 = vextract.low.u32 %v1774
      %v1776 = vextract.high.u32 %v1774
      %v1777 = vmul.u32 %v1770, %v1761
      %v1778 = vadd.s32 %v1773, %v1775
      %vm1779 = vc.u32 %v1773, %v1775
      %v1780 = vadd.s32 %v1776, 1
      %v1781 = vsel %vm1779, %v1780, %v1776
      %v1782 = vadd.s32 %v1777, %v1781
      %v1783 = vadd.s32 %v1782, 536870912
      %v1784 = vshrl.u32 %v1783, 30
      %v1785 = vshll.u32 %v1784, 30
      %v1786 = vsub.s32 %v1782, %v1785
      %vm1787 = vcmp.lt.s32.totalorder %v1786, 0
      %v1788 = vsub.s32 0, %v1786
      %v1789 = vsel %vm1787, %v1788, %v1786
      %v1790 = vclz %v1789
      %v1791 = vsub.s32 %v1790, 2
      %vm1792 = vcmp.gt.s32.totalorder 0, %v1791
      %v1793 = vsel %vm1792, 0, %v1791
      %v1794 = vsub.s32 32, %v1793
      %v1795 = vshll.u32 %v1786, %v1793
      %v1796 = vshrl.u32 %v1778, %v1794
      %v1797 = vor.u32 %v1795, %v1796
      %v1798 = vsub.s32 4294967266, %v1793
      %v1799 = vadd.s32 %v1798, 127
      %v1800 = vshll.u32 %v1799, 23
      %v1801 = vor.u32 4788187, %v1800
      %v1802 = vand.u32 2147483647, %v1801
      %v1804 = vcvt.s32.f32 %v1797
      %v1805 = vmul.f32 %v1804, %v1802
      %v1806 = vxor.u32 %v1805, 2147483648
      %v1807 = vsel %vm1724, %v1806, %v1805
      %v1808 = vsub.s32 4, %v1784
      %v1809 = vsel %vm1724, %v1808, %v1784
      %v1810 = vsel %vm1723, %v270, %v1807
      %v1811 = vsel %vm1723, 0, %v1809
      %v1812 = vcosq.f32.pop %v1810
      %v1813 = vsinq.f32.pop %v1810
      %vm1814 = vweird.f32 %v270
      %v1815 = vand.u32 %v1811, 3
      %vm1816 = vcmp.lt.s32.totalorder %v1815, 2
      %vm1817 = vcmp.eq.s32.totalorder %v1815, 0
      %v1818 = vxor.u32 %v1813, 2147483648
      %v1819 = vsel %vm1817, %v1812, %v1818
      %vm1820 = vcmp.eq.s32.totalorder %v1815, 2
      %v1821 = vxor.u32 %v1812, 2147483648
      %v1822 = vsel %vm1820, %v1821, %v1813
      %v1823 = vsel %vm1816, %v1819, %v1822
      %v1824 = vsel %vm1814, nan, %v1823
      %v1825 = vand.u32 2147483647, %v271
      %vm1826 = vcmp.le.f32.partialorder %v1825, 0.7853982
      %vm1827 = vcmp.lt.s32.totalorder %v271, 0
      %v1828 = vand.u32 %v271, 2139095040
      %v1829 = vshrl.u32 %v1828, 23
      %v1830 = vsub.s32 %v1829, 127
      %v1831 = vand.u32 2147483647, %v271
      %v1832 = vand.u32 %v1831, 8388607
      %v1833 = vor.u32 %v1832, 8388608
      %v1834 = vsub.s32 0, %v1833
      %v1835 = vadd.s32 %v1830, 1
      %vm1836 = vcmp.gt.s32.totalorder %v1835, 0
      %v1837 = vsel %vm1836, %v1835, 0
      %v1838 = vshrl.u32 %v1837, 5
      %v1839 = vand.u32 %v1837, 31
      %v1840 = vsub.s32 32, %v1839
      %v1841 = vshrl.u32 683565275, %v1840
      %v1842 = vshll.u32 683565275, %v1839
      %v1843 = vshrl.u32 2475754826, %v1840
      %v1844 = vor.u32 %v1842, %v1843
      %v1845 = vshll.u32 2475754826, %v1839
      %v1846 = vshrl.u32 2131351028, %v1840
      %v1847 = vor.u32 %v1845, %v1846
      %v1848 = vshll.u32 2131351028, %v1839
      %v1849 = vshrl.u32 2102212464, %v1840
      %v1850 = vor.u32 %v1848, %v1849
      %v1851 = vshll.u32 2102212464, %v1839
      %v1852 = vshrl.u32 920167782, %v1840
      %v1853 = vor.u32 %v1851, %v1852
      %v1854 = vshll.u32 920167782, %v1839
      %v1855 = vshrl.u32 1326507024, %v1840
      %v1856 = vor.u32 %v1854, %v1855
      %vm1857 = vcmp.lt.s32.totalorder %v1838, 1
      %vm1858 = vcmp.lt.s32.totalorder %v1838, 2
      %vm1859 = vcmp.lt.s32.totalorder %v1838, 3
      %vm1860 = vcmp.lt.s32.totalorder %v1838, 4
      %v1861 = vsel %vm1857, %v1841, %v1844
      %v1862 = vsel %vm1860, %v1850, 2102212464
      %v1863 = vsel %vm1859, %v1847, %v1862
      %v1864 = vsel %vm1858, %v1861, %v1863
      %v1865 = vsel %vm1857, %v1844, %v1847
      %v1866 = vsel %vm1860, %v1853, 920167782
      %v1867 = vsel %vm1859, %v1850, %v1866
      %v1868 = vsel %vm1858, %v1865, %v1867
      %v1869 = vsel %vm1857, %v1847, %v1850
      %v1870 = vsel %vm1860, %v1856, 1326507024
      %v1871 = vsel %vm1859, %v1853, %v1870
      %v1872 = vsel %vm1858, %v1869, %v1871
      %v1873 = vshll.u32 %v1833, 8
      %v1874 = vmul.u32.u64.compose %v1873, %v1872
      %v1875 = vextract.low.u32 %v1874
      %v1876 = vextract.high.u32 %v1874
      %v1877 = vmul.u32.u64.compose %v1873, %v1868
      %v1878 = vextract.low.u32 %v1877
      %v1879 = vextract.high.u32 %v1877
      %v1880 = vmul.u32 %v1873, %v1864
      %v1881 = vadd.s32 %v1876, %v1878
      %vm1882 = vc.u32 %v1876, %v1878
      %v1883 = vadd.s32 %v1879, 1
      %v1884 = vsel %vm1882, %v1883, %v1879
      %v1885 = vadd.s32 %v1880, %v1884
      %v1886 = vadd.s32 %v1885, 536870912
      %v1887 = vshrl.u32 %v1886, 30
      %v1888 = vshll.u32 %v1887, 30
      %v1889 = vsub.s32 %v1885, %v1888
      %vm1890 = vcmp.lt.s32.totalorder %v1889, 0
      %v1891 = vsub.s32 0, %v1889
      %v1892 = vsel %vm1890, %v1891, %v1889
      %v1893 = vclz %v1892
      %v1894 = vsub.s32 %v1893, 2
      %vm1895 = vcmp.gt.s32.totalorder 0, %v1894
      %v1896 = vsel %vm1895, 0, %v1894
      %v1897 = vsub.s32 32, %v1896
      %v1898 = vshll.u32 %v1889, %v1896
      %v1899 = vshrl.u32 %v1881, %v1897
      %v1900 = vor.u32 %v1898, %v1899
      %v1901 = vsub.s32 4294967266, %v1896
      %v1902 = vadd.s32 %v1901, 127
      %v1903 = vshll.u32 %v1902, 23
      %v1904 = vor.u32 4788187, %v1903
      %v1905 = vand.u32 2147483647, %v1904
      %v1907 = vcvt.s32.f32 %v1900
      %v1908 = vmul.f32 %v1907, %v1905
      %v1909 = vxor.u32 %v1908, 2147483648
      %v1910 = vsel %vm1827, %v1909, %v1908
      %v1911 = vsub.s32 4, %v1887
      %v1912 = vsel %vm1827, %v1911, %v1887
      %v1913 = vsel %vm1826, %v271, %v1910
      %v1914 = vsel %vm1826, 0, %v1912
      %v1915 = vcosq.f32.pop %v1913
      %v1916 = vsinq.f32.pop %v1913
      %vm1917 = vweird.f32 %v271
      %v1918 = vand.u32 %v1914, 3
      %vm1919 = vcmp.lt.s32.totalorder %v1918, 2
      %vm1920 = vcmp.eq.s32.totalorder %v1918, 0
      %v1921 = vxor.u32 %v1916, 2147483648
      %v1922 = vsel %vm1920, %v1915, %v1921
      %vm1923 = vcmp.eq.s32.totalorder %v1918, 2
      %v1924 = vxor.u32 %v1915, 2147483648
      %v1925 = vsel %vm1923, %v1924, %v1916
      %v1926 = vsel %vm1919, %v1922, %v1925
      %v1927 = vsel %vm1917, nan, %v1926
      %v1936 = vrot.slane %v375, 5
      %v1937 = vrot.slane %v479, 5
      %v1938 = vrot.slane %v583, 5
      %v1939 = vrot.slane %v687, 5
      %v1940 = vrot.slane %v791, 5
      %v1941 = vsel %vm257, %v1936, %v1940
      %v1942 = vrot.slane %v895, 5
      %v1943 = vsel %vm257, %v1937, %v1942
      %v1944 = vrot.slane %v999, 5
      %v1945 = vsel %vm257, %v1938, %v1944
      %v1946 = vrot.slane %v1103, 5
      %v1947 = vsel %vm257, %v1939, %v1946
      %vm1964 = vcmask 1046528
      %v1965 = vrot.slane %v1206, 1
      %v1966 = vrot.slane %v1309, 1
      %v1967 = vrot.slane %v1412, 1
      %v1968 = vrot.slane %v1515, 1
      %v1969 = vrot.slane %v1618, 1
      %v1970 = vsel %vm1964, %v1965, %v1969
      %v1971 = vrot.slane %v1721, 1
      %v1972 = vsel %vm1964, %v1966, %v1971
      %v1973 = vrot.slane %v1824, 1
      %v1974 = vsel %vm1964, %v1967, %v1973
      %v1975 = vrot.slane %v1927, 1
      %v1976 = vsel %vm1964, %v1968, %v1975
      %v1989 = vsel %vm257, %v205, %v1936
      %v1990 = vsel %vm257, %v206, %v1937
      %v1991 = vsel %vm257, %v207, %v1938
      %v1992 = vsel %vm257, %v208, %v1939
      %v1993 = vsel %vm1964, %v1941, %v1965
      %v1994 = vsel %vm1964, %v1943, %v1966
      %v1995 = vsel %vm1964, %v1945, %v1967
      %v1996 = vsel %vm1964, %v1947, %v1968
      %v1997 = vpack.c.bf16 %v1993, %v1989
      %v1998 = vpack.c.bf16 %v1994, %v1990
      %v1999 = vpack.c.bf16 %v1995, %v1991
      %v2000 = vpack.c.bf16 %v1996, %v1992
      %v2001 = vpack.c.bf16 %v1969, %v1970
      %v2002 = vpack.c.bf16 %v1971, %v1972
      %v2003 = vpack.c.bf16 %v1973, %v1974
      %v2004 = vpack.c.bf16 %v1975, %v1976
      %v2009 = vrot.slane %v205, 3
      %v2010 = vrot.slane %v206, 3
      %v2011 = vrot.slane %v207, 3
      %v2012 = vrot.slane %v208, 3
      %v2017 = vsel %vm257, %v2009, %v209
      %v2018 = vsel %vm257, %v2010, %v210
      %v2019 = vsel %vm257, %v2011, %v211
      %v2020 = vsel %vm257, %v2012, %v212
      %v2021 = vand.u32 2147483647, %v2017
      %vm2022 = vcmp.le.f32.partialorder %v2021, 0.7853982
      %vm2023 = vcmp.lt.s32.totalorder %v2017, 0
      %v2024 = vand.u32 %v2017, 2139095040
      %v2025 = vshrl.u32 %v2024, 23
      %v2026 = vsub.s32 %v2025, 127
      %v2027 = vand.u32 2147483647, %v2017
      %v2028 = vand.u32 %v2027, 8388607
      %v2029 = vor.u32 %v2028, 8388608
      %v2030 = vsub.s32 0, %v2029
      %v2031 = vadd.s32 %v2026, 1
      %vm2032 = vcmp.gt.s32.totalorder %v2031, 0
      %v2033 = vsel %vm2032, %v2031, 0
      %v2034 = vshrl.u32 %v2033, 5
      %v2035 = vand.u32 %v2033, 31
      %v2036 = vsub.s32 32, %v2035
      %v2037 = vshrl.u32 683565275, %v2036
      %v2038 = vshll.u32 683565275, %v2035
      %v2039 = vshrl.u32 2475754826, %v2036
      %v2040 = vor.u32 %v2038, %v2039
      %v2041 = vshll.u32 2475754826, %v2035
      %v2042 = vshrl.u32 2131351028, %v2036
      %v2043 = vor.u32 %v2041, %v2042
      %v2044 = vshll.u32 2131351028, %v2035
      %v2045 = vshrl.u32 2102212464, %v2036
      %v2046 = vor.u32 %v2044, %v2045
      %v2047 = vshll.u32 2102212464, %v2035
      %v2048 = vshrl.u32 920167782, %v2036
      %v2049 = vor.u32 %v2047, %v2048
      %v2050 = vshll.u32 920167782, %v2035
      %v2051 = vshrl.u32 1326507024, %v2036
      %v2052 = vor.u32 %v2050, %v2051
      %vm2053 = vcmp.lt.s32.totalorder %v2034, 1
      %vm2054 = vcmp.lt.s32.totalorder %v2034, 2
      %vm2055 = vcmp.lt.s32.totalorder %v2034, 3
      %vm2056 = vcmp.lt.s32.totalorder %v2034, 4
      %v2057 = vsel %vm2053, %v2037, %v2040
      %v2058 = vsel %vm2056, %v2046, 2102212464
      %v2059 = vsel %vm2055, %v2043, %v2058
      %v2060 = vsel %vm2054, %v2057, %v2059
      %v2061 = vsel %vm2053, %v2040, %v2043
      %v2062 = vsel %vm2056, %v2049, 920167782
      %v2063 = vsel %vm2055, %v2046, %v2062
      %v2064 = vsel %vm2054, %v2061, %v2063
      %v2065 = vsel %vm2053, %v2043, %v2046
      %v2066 = vsel %vm2056, %v2052, 1326507024
      %v2067 = vsel %vm2055, %v2049, %v2066
      %v2068 = vsel %vm2054, %v2065, %v2067
      %v2069 = vshll.u32 %v2029, 8
      %v2070 = vmul.u32.u64.compose %v2069, %v2068
      %v2071 = vextract.low.u32 %v2070
      %v2072 = vextract.high.u32 %v2070
      %v2073 = vmul.u32.u64.compose %v2069, %v2064
      %v2074 = vextract.low.u32 %v2073
      %v2075 = vextract.high.u32 %v2073
      %v2076 = vmul.u32 %v2069, %v2060
      %v2077 = vadd.s32 %v2072, %v2074
      %vm2078 = vc.u32 %v2072, %v2074
      %v2079 = vadd.s32 %v2075, 1
      %v2080 = vsel %vm2078, %v2079, %v2075
      %v2081 = vadd.s32 %v2076, %v2080
      %v2082 = vadd.s32 %v2081, 536870912
      %v2083 = vshrl.u32 %v2082, 30
      %v2084 = vshll.u32 %v2083, 30
      %v2085 = vsub.s32 %v2081, %v2084
      %vm2086 = vcmp.lt.s32.totalorder %v2085, 0
      %v2087 = vsub.s32 0, %v2085
      %v2088 = vsel %vm2086, %v2087, %v2085
      %v2089 = vclz %v2088
      %v2090 = vsub.s32 %v2089, 2
      %vm2091 = vcmp.gt.s32.totalorder 0, %v2090
      %v2092 = vsel %vm2091, 0, %v2090
      %v2093 = vsub.s32 32, %v2092
      %v2094 = vshll.u32 %v2085, %v2092
      %v2095 = vshrl.u32 %v2077, %v2093
      %v2096 = vor.u32 %v2094, %v2095
      %v2097 = vsub.s32 4294967266, %v2092
      %v2098 = vadd.s32 %v2097, 127
      %v2099 = vshll.u32 %v2098, 23
      %v2100 = vor.u32 4788187, %v2099
      %v2101 = vand.u32 2147483647, %v2100
      %v2103 = vcvt.s32.f32 %v2096
      %v2104 = vmul.f32 %v2103, %v2101
      %v2105 = vxor.u32 %v2104, 2147483648
      %v2106 = vsel %vm2023, %v2105, %v2104
      %v2107 = vsub.s32 4, %v2083
      %v2108 = vsel %vm2023, %v2107, %v2083
      %v2109 = vsel %vm2022, %v2017, %v2106
      %v2110 = vsel %vm2022, 0, %v2108
      %v2111 = vcosq.f32.pop %v2109
      %v2112 = vsinq.f32.pop %v2109
      %vm2113 = vweird.f32 %v2017
      %v2114 = vadd.s32 %v2110, 3
      %v2115 = vand.u32 %v2114, 3
      %vm2116 = vcmp.lt.s32.totalorder %v2115, 2
      %vm2117 = vcmp.eq.s32.totalorder %v2115, 0
      %v2118 = vxor.u32 %v2112, 2147483648
      %v2119 = vsel %vm2117, %v2111, %v2118
      %vm2120 = vcmp.eq.s32.totalorder %v2115, 2
      %v2121 = vxor.u32 %v2111, 2147483648
      %v2122 = vsel %vm2120, %v2121, %v2112
      %v2123 = vsel %vm2116, %v2119, %v2122
      %v2124 = vsel %vm2113, nan, %v2123
      %v2125 = vand.u32 2147483647, %v2018
      %vm2126 = vcmp.le.f32.partialorder %v2125, 0.7853982
      %vm2127 = vcmp.lt.s32.totalorder %v2018, 0
      %v2128 = vand.u32 %v2018, 2139095040
      %v2129 = vshrl.u32 %v2128, 23
      %v2130 = vsub.s32 %v2129, 127
      %v2131 = vand.u32 2147483647, %v2018
      %v2132 = vand.u32 %v2131, 8388607
      %v2133 = vor.u32 %v2132, 8388608
      %v2134 = vsub.s32 0, %v2133
      %v2135 = vadd.s32 %v2130, 1
      %vm2136 = vcmp.gt.s32.totalorder %v2135, 0
      %v2137 = vsel %vm2136, %v2135, 0
      %v2138 = vshrl.u32 %v2137, 5
      %v2139 = vand.u32 %v2137, 31
      %v2140 = vsub.s32 32, %v2139
      %v2141 = vshrl.u32 683565275, %v2140
      %v2142 = vshll.u32 683565275, %v2139
      %v2143 = vshrl.u32 2475754826, %v2140
      %v2144 = vor.u32 %v2142, %v2143
      %v2145 = vshll.u32 2475754826, %v2139
      %v2146 = vshrl.u32 2131351028, %v2140
      %v2147 = vor.u32 %v2145, %v2146
      %v2148 = vshll.u32 2131351028, %v2139
      %v2149 = vshrl.u32 2102212464, %v2140
      %v2150 = vor.u32 %v2148, %v2149
      %v2151 = vshll.u32 2102212464, %v2139
      %v2152 = vshrl.u32 920167782, %v2140
      %v2153 = vor.u32 %v2151, %v2152
      %v2154 = vshll.u32 920167782, %v2139
      %v2155 = vshrl.u32 1326507024, %v2140
      %v2156 = vor.u32 %v2154, %v2155
      %vm2157 = vcmp.lt.s32.totalorder %v2138, 1
      %vm2158 = vcmp.lt.s32.totalorder %v2138, 2
      %vm2159 = vcmp.lt.s32.totalorder %v2138, 3
      %vm2160 = vcmp.lt.s32.totalorder %v2138, 4
      %v2161 = vsel %vm2157, %v2141, %v2144
      %v2162 = vsel %vm2160, %v2150, 2102212464
      %v2163 = vsel %vm2159, %v2147, %v2162
      %v2164 = vsel %vm2158, %v2161, %v2163
      %v2165 = vsel %vm2157, %v2144, %v2147
      %v2166 = vsel %vm2160, %v2153, 920167782
      %v2167 = vsel %vm2159, %v2150, %v2166
      %v2168 = vsel %vm2158, %v2165, %v2167
      %v2169 = vsel %vm2157, %v2147, %v2150
      %v2170 = vsel %vm2160, %v2156, 1326507024
      %v2171 = vsel %vm2159, %v2153, %v2170
      %v2172 = vsel %vm2158, %v2169, %v2171
      %v2173 = vshll.u32 %v2133, 8
      %v2174 = vmul.u32.u64.compose %v2173, %v2172
      %v2175 = vextract.low.u32 %v2174
      %v2176 = vextract.high.u32 %v2174
      %v2177 = vmul.u32.u64.compose %v2173, %v2168
      %v2178 = vextract.low.u32 %v2177
      %v2179 = vextract.high.u32 %v2177
      %v2180 = vmul.u32 %v2173, %v2164
      %v2181 = vadd.s32 %v2176, %v2178
      %vm2182 = vc.u32 %v2176, %v2178
      %v2183 = vadd.s32 %v2179, 1
      %v2184 = vsel %vm2182, %v2183, %v2179
      %v2185 = vadd.s32 %v2180, %v2184
      %v2186 = vadd.s32 %v2185, 536870912
      %v2187 = vshrl.u32 %v2186, 30
      %v2188 = vshll.u32 %v2187, 30
      %v2189 = vsub.s32 %v2185, %v2188
      %vm2190 = vcmp.lt.s32.totalorder %v2189, 0
      %v2191 = vsub.s32 0, %v2189
      %v2192 = vsel %vm2190, %v2191, %v2189
      %v2193 = vclz %v2192
      %v2194 = vsub.s32 %v2193, 2
      %vm2195 = vcmp.gt.s32.totalorder 0, %v2194
      %v2196 = vsel %vm2195, 0, %v2194
      %v2197 = vsub.s32 32, %v2196
      %v2198 = vshll.u32 %v2189, %v2196
      %v2199 = vshrl.u32 %v2181, %v2197
      %v2200 = vor.u32 %v2198, %v2199
      %v2201 = vsub.s32 4294967266, %v2196
      %v2202 = vadd.s32 %v2201, 127
      %v2203 = vshll.u32 %v2202, 23
      %v2204 = vor.u32 4788187, %v2203
      %v2205 = vand.u32 2147483647, %v2204
      %v2207 = vcvt.s32.f32 %v2200
      %v2208 = vmul.f32 %v2207, %v2205
      %v2209 = vxor.u32 %v2208, 2147483648
      %v2210 = vsel %vm2127, %v2209, %v2208
      %v2211 = vsub.s32 4, %v2187
      %v2212 = vsel %vm2127, %v2211, %v2187
      %v2213 = vsel %vm2126, %v2018, %v2210
      %v2214 = vsel %vm2126, 0, %v2212
      %v2215 = vcosq.f32.pop %v2213
      %v2216 = vsinq.f32.pop %v2213
      %vm2217 = vweird.f32 %v2018
      %v2218 = vadd.s32 %v2214, 3
      %v2219 = vand.u32 %v2218, 3
      %vm2220 = vcmp.lt.s32.totalorder %v2219, 2
      %vm2221 = vcmp.eq.s32.totalorder %v2219, 0
      %v2222 = vxor.u32 %v2216, 2147483648
      %v2223 = vsel %vm2221, %v2215, %v2222
      %vm2224 = vcmp.eq.s32.totalorder %v2219, 2
      %v2225 = vxor.u32 %v2215, 2147483648
      %v2226 = vsel %vm2224, %v2225, %v2216
      %v2227 = vsel %vm2220, %v2223, %v2226
      %v2228 = vsel %vm2217, nan, %v2227
      %v2229 = vand.u32 2147483647, %v2019
      %vm2230 = vcmp.le.f32.partialorder %v2229, 0.7853982
      %vm2231 = vcmp.lt.s32.totalorder %v2019, 0
      %v2232 = vand.u32 %v2019, 2139095040
      %v2233 = vshrl.u32 %v2232, 23
      %v2234 = vsub.s32 %v2233, 127
      %v2235 = vand.u32 2147483647, %v2019
      %v2236 = vand.u32 %v2235, 8388607
      %v2237 = vor.u32 %v2236, 8388608
      %v2238 = vsub.s32 0, %v2237
      %v2239 = vadd.s32 %v2234, 1
      %vm2240 = vcmp.gt.s32.totalorder %v2239, 0
      %v2241 = vsel %vm2240, %v2239, 0
      %v2242 = vshrl.u32 %v2241, 5
      %v2243 = vand.u32 %v2241, 31
      %v2244 = vsub.s32 32, %v2243
      %v2245 = vshrl.u32 683565275, %v2244
      %v2246 = vshll.u32 683565275, %v2243
      %v2247 = vshrl.u32 2475754826, %v2244
      %v2248 = vor.u32 %v2246, %v2247
      %v2249 = vshll.u32 2475754826, %v2243
      %v2250 = vshrl.u32 2131351028, %v2244
      %v2251 = vor.u32 %v2249, %v2250
      %v2252 = vshll.u32 2131351028, %v2243
      %v2253 = vshrl.u32 2102212464, %v2244
      %v2254 = vor.u32 %v2252, %v2253
      %v2255 = vshll.u32 2102212464, %v2243
      %v2256 = vshrl.u32 920167782, %v2244
      %v2257 = vor.u32 %v2255, %v2256
      %v2258 = vshll.u32 920167782, %v2243
      %v2259 = vshrl.u32 1326507024, %v2244
      %v2260 = vor.u32 %v2258, %v2259
      %vm2261 = vcmp.lt.s32.totalorder %v2242, 1
      %vm2262 = vcmp.lt.s32.totalorder %v2242, 2
      %vm2263 = vcmp.lt.s32.totalorder %v2242, 3
      %vm2264 = vcmp.lt.s32.totalorder %v2242, 4
      %v2265 = vsel %vm2261, %v2245, %v2248
      %v2266 = vsel %vm2264, %v2254, 2102212464
      %v2267 = vsel %vm2263, %v2251, %v2266
      %v2268 = vsel %vm2262, %v2265, %v2267
      %v2269 = vsel %vm2261, %v2248, %v2251
      %v2270 = vsel %vm2264, %v2257, 920167782
      %v2271 = vsel %vm2263, %v2254, %v2270
      %v2272 = vsel %vm2262, %v2269, %v2271
      %v2273 = vsel %vm2261, %v2251, %v2254
      %v2274 = vsel %vm2264, %v2260, 1326507024
      %v2275 = vsel %vm2263, %v2257, %v2274
      %v2276 = vsel %vm2262, %v2273, %v2275
      %v2277 = vshll.u32 %v2237, 8
      %v2278 = vmul.u32.u64.compose %v2277, %v2276
      %v2279 = vextract.low.u32 %v2278
      %v2280 = vextract.high.u32 %v2278
      %v2281 = vmul.u32.u64.compose %v2277, %v2272
      %v2282 = vextract.low.u32 %v2281
      %v2283 = vextract.high.u32 %v2281
      %v2284 = vmul.u32 %v2277, %v2268
      %v2285 = vadd.s32 %v2280, %v2282
      %vm2286 = vc.u32 %v2280, %v2282
      %v2287 = vadd.s32 %v2283, 1
      %v2288 = vsel %vm2286, %v2287, %v2283
      %v2289 = vadd.s32 %v2284, %v2288
      %v2290 = vadd.s32 %v2289, 536870912
      %v2291 = vshrl.u32 %v2290, 30
      %v2292 = vshll.u32 %v2291, 30
      %v2293 = vsub.s32 %v2289, %v2292
      %vm2294 = vcmp.lt.s32.totalorder %v2293, 0
      %v2295 = vsub.s32 0, %v2293
      %v2296 = vsel %vm2294, %v2295, %v2293
      %v2297 = vclz %v2296
      %v2298 = vsub.s32 %v2297, 2
      %vm2299 = vcmp.gt.s32.totalorder 0, %v2298
      %v2300 = vsel %vm2299, 0, %v2298
      %v2301 = vsub.s32 32, %v2300
      %v2302 = vshll.u32 %v2293, %v2300
      %v2303 = vshrl.u32 %v2285, %v2301
      %v2304 = vor.u32 %v2302, %v2303
      %v2305 = vsub.s32 4294967266, %v2300
      %v2306 = vadd.s32 %v2305, 127
      %v2307 = vshll.u32 %v2306, 23
      %v2308 = vor.u32 4788187, %v2307
      %v2309 = vand.u32 2147483647, %v2308
      %v2311 = vcvt.s32.f32 %v2304
      %v2312 = vmul.f32 %v2311, %v2309
      %v2313 = vxor.u32 %v2312, 2147483648
      %v2314 = vsel %vm2231, %v2313, %v2312
      %v2315 = vsub.s32 4, %v2291
      %v2316 = vsel %vm2231, %v2315, %v2291
      %v2317 = vsel %vm2230, %v2019, %v2314
      %v2318 = vsel %vm2230, 0, %v2316
      %v2319 = vcosq.f32.pop %v2317
      %v2320 = vsinq.f32.pop %v2317
      %vm2321 = vweird.f32 %v2019
      %v2322 = vadd.s32 %v2318, 3
      %v2323 = vand.u32 %v2322, 3
      %vm2324 = vcmp.lt.s32.totalorder %v2323, 2
      %vm2325 = vcmp.eq.s32.totalorder %v2323, 0
      %v2326 = vxor.u32 %v2320, 2147483648
      %v2327 = vsel %vm2325, %v2319, %v2326
      %vm2328 = vcmp.eq.s32.totalorder %v2323, 2
      %v2329 = vxor.u32 %v2319, 2147483648
      %v2330 = vsel %vm2328, %v2329, %v2320
      %v2331 = vsel %vm2324, %v2327, %v2330
      %v2332 = vsel %vm2321, nan, %v2331
      %v2333 = vand.u32 2147483647, %v2020
      %vm2334 = vcmp.le.f32.partialorder %v2333, 0.7853982
      %vm2335 = vcmp.lt.s32.totalorder %v2020, 0
      %v2336 = vand.u32 %v2020, 2139095040
      %v2337 = vshrl.u32 %v2336, 23
      %v2338 = vsub.s32 %v2337, 127
      %v2339 = vand.u32 2147483647, %v2020
      %v2340 = vand.u32 %v2339, 8388607
      %v2341 = vor.u32 %v2340, 8388608
      %v2342 = vsub.s32 0, %v2341
      %v2343 = vadd.s32 %v2338, 1
      %vm2344 = vcmp.gt.s32.totalorder %v2343, 0
      %v2345 = vsel %vm2344, %v2343, 0
      %v2346 = vshrl.u32 %v2345, 5
      %v2347 = vand.u32 %v2345, 31
      %v2348 = vsub.s32 32, %v2347
      %v2349 = vshrl.u32 683565275, %v2348
      %v2350 = vshll.u32 683565275, %v2347
      %v2351 = vshrl.u32 2475754826, %v2348
      %v2352 = vor.u32 %v2350, %v2351
      %v2353 = vshll.u32 2475754826, %v2347
      %v2354 = vshrl.u32 2131351028, %v2348
      %v2355 = vor.u32 %v2353, %v2354
      %v2356 = vshll.u32 2131351028, %v2347
      %v2357 = vshrl.u32 2102212464, %v2348
      %v2358 = vor.u32 %v2356, %v2357
      %v2359 = vshll.u32 2102212464, %v2347
      %v2360 = vshrl.u32 920167782, %v2348
      %v2361 = vor.u32 %v2359, %v2360
      %v2362 = vshll.u32 920167782, %v2347
      %v2363 = vshrl.u32 1326507024, %v2348
      %v2364 = vor.u32 %v2362, %v2363
      %vm2365 = vcmp.lt.s32.totalorder %v2346, 1
      %vm2366 = vcmp.lt.s32.totalorder %v2346, 2
      %vm2367 = vcmp.lt.s32.totalorder %v2346, 3
      %vm2368 = vcmp.lt.s32.totalorder %v2346, 4
      %v2369 = vsel %vm2365, %v2349, %v2352
      %v2370 = vsel %vm2368, %v2358, 2102212464
      %v2371 = vsel %vm2367, %v2355, %v2370
      %v2372 = vsel %vm2366, %v2369, %v2371
      %v2373 = vsel %vm2365, %v2352, %v2355
      %v2374 = vsel %vm2368, %v2361, 920167782
      %v2375 = vsel %vm2367, %v2358, %v2374
      %v2376 = vsel %vm2366, %v2373, %v2375
      %v2377 = vsel %vm2365, %v2355, %v2358
      %v2378 = vsel %vm2368, %v2364, 1326507024
      %v2379 = vsel %vm2367, %v2361, %v2378
      %v2380 = vsel %vm2366, %v2377, %v2379
      %v2381 = vshll.u32 %v2341, 8
      %v2382 = vmul.u32.u64.compose %v2381, %v2380
      %v2383 = vextract.low.u32 %v2382
      %v2384 = vextract.high.u32 %v2382
      %v2385 = vmul.u32.u64.compose %v2381, %v2376
      %v2386 = vextract.low.u32 %v2385
      %v2387 = vextract.high.u32 %v2385
      %v2388 = vmul.u32 %v2381, %v2372
      %v2389 = vadd.s32 %v2384, %v2386
      %vm2390 = vc.u32 %v2384, %v2386
      %v2391 = vadd.s32 %v2387, 1
      %v2392 = vsel %vm2390, %v2391, %v2387
      %v2393 = vadd.s32 %v2388, %v2392
      %v2394 = vadd.s32 %v2393, 536870912
      %v2395 = vshrl.u32 %v2394, 30
      %v2396 = vshll.u32 %v2395, 30
      %v2397 = vsub.s32 %v2393, %v2396
      %vm2398 = vcmp.lt.s32.totalorder %v2397, 0
      %v2399 = vsub.s32 0, %v2397
      %v2400 = vsel %vm2398, %v2399, %v2397
      %v2401 = vclz %v2400
      %v2402 = vsub.s32 %v2401, 2
      %vm2403 = vcmp.gt.s32.totalorder 0, %v2402
      %v2404 = vsel %vm2403, 0, %v2402
      %v2405 = vsub.s32 32, %v2404
      %v2406 = vshll.u32 %v2397, %v2404
      %v2407 = vshrl.u32 %v2389, %v2405
      %v2408 = vor.u32 %v2406, %v2407
      %v2409 = vsub.s32 4294967266, %v2404
      %v2410 = vadd.s32 %v2409, 127
      %v2411 = vshll.u32 %v2410, 23
      %v2412 = vor.u32 4788187, %v2411
      %v2413 = vand.u32 2147483647, %v2412
      %v2415 = vcvt.s32.f32 %v2408
      %v2416 = vmul.f32 %v2415, %v2413
      %v2417 = vxor.u32 %v2416, 2147483648
      %v2418 = vsel %vm2335, %v2417, %v2416
      %v2419 = vsub.s32 4, %v2395
      %v2420 = vsel %vm2335, %v2419, %v2395
      %v2421 = vsel %vm2334, %v2020, %v2418
      %v2422 = vsel %vm2334, 0, %v2420
      %v2423 = vcosq.f32.pop %v2421
      %v2424 = vsinq.f32.pop %v2421
      %vm2425 = vweird.f32 %v2020
      %v2426 = vadd.s32 %v2422, 3
      %v2427 = vand.u32 %v2426, 3
      %vm2428 = vcmp.lt.s32.totalorder %v2427, 2
      %vm2429 = vcmp.eq.s32.totalorder %v2427, 0
      %v2430 = vxor.u32 %v2424, 2147483648
      %v2431 = vsel %vm2429, %v2423, %v2430
      %vm2432 = vcmp.eq.s32.totalorder %v2427, 2
      %v2433 = vxor.u32 %v2423, 2147483648
      %v2434 = vsel %vm2432, %v2433, %v2424
      %v2435 = vsel %vm2428, %v2431, %v2434
      %v2436 = vsel %vm2425, nan, %v2435
      %v2437 = vand.u32 2147483647, %v2017
      %vm2438 = vcmp.le.f32.partialorder %v2437, 0.7853982
      %vm2439 = vcmp.lt.s32.totalorder %v2017, 0
      %v2440 = vand.u32 %v2017, 2139095040
      %v2441 = vshrl.u32 %v2440, 23
      %v2442 = vsub.s32 %v2441, 127
      %v2443 = vand.u32 2147483647, %v2017
      %v2444 = vand.u32 %v2443, 8388607
      %v2445 = vor.u32 %v2444, 8388608
      %v2446 = vsub.s32 0, %v2445
      %v2447 = vadd.s32 %v2442, 1
      %vm2448 = vcmp.gt.s32.totalorder %v2447, 0
      %v2449 = vsel %vm2448, %v2447, 0
      %v2450 = vshrl.u32 %v2449, 5
      %v2451 = vand.u32 %v2449, 31
      %v2452 = vsub.s32 32, %v2451
      %v2453 = vshrl.u32 683565275, %v2452
      %v2454 = vshll.u32 683565275, %v2451
      %v2455 = vshrl.u32 2475754826, %v2452
      %v2456 = vor.u32 %v2454, %v2455
      %v2457 = vshll.u32 2475754826, %v2451
      %v2458 = vshrl.u32 2131351028, %v2452
      %v2459 = vor.u32 %v2457, %v2458
      %v2460 = vshll.u32 2131351028, %v2451
      %v2461 = vshrl.u32 2102212464, %v2452
      %v2462 = vor.u32 %v2460, %v2461
      %v2463 = vshll.u32 2102212464, %v2451
      %v2464 = vshrl.u32 920167782, %v2452
      %v2465 = vor.u32 %v2463, %v2464
      %v2466 = vshll.u32 920167782, %v2451
      %v2467 = vshrl.u32 1326507024, %v2452
      %v2468 = vor.u32 %v2466, %v2467
      %vm2469 = vcmp.lt.s32.totalorder %v2450, 1
      %vm2470 = vcmp.lt.s32.totalorder %v2450, 2
      %vm2471 = vcmp.lt.s32.totalorder %v2450, 3
      %vm2472 = vcmp.lt.s32.totalorder %v2450, 4
      %v2473 = vsel %vm2469, %v2453, %v2456
      %v2474 = vsel %vm2472, %v2462, 2102212464
      %v2475 = vsel %vm2471, %v2459, %v2474
      %v2476 = vsel %vm2470, %v2473, %v2475
      %v2477 = vsel %vm2469, %v2456, %v2459
      %v2478 = vsel %vm2472, %v2465, 920167782
      %v2479 = vsel %vm2471, %v2462, %v2478
      %v2480 = vsel %vm2470, %v2477, %v2479
      %v2481 = vsel %vm2469, %v2459, %v2462
      %v2482 = vsel %vm2472, %v2468, 1326507024
      %v2483 = vsel %vm2471, %v2465, %v2482
      %v2484 = vsel %vm2470, %v2481, %v2483
      %v2485 = vshll.u32 %v2445, 8
      %v2486 = vmul.u32.u64.compose %v2485, %v2484
      %v2487 = vextract.low.u32 %v2486
      %v2488 = vextract.high.u32 %v2486
      %v2489 = vmul.u32.u64.compose %v2485, %v2480
      %v2490 = vextract.low.u32 %v2489
      %v2491 = vextract.high.u32 %v2489
      %v2492 = vmul.u32 %v2485, %v2476
      %v2493 = vadd.s32 %v2488, %v2490
      %vm2494 = vc.u32 %v2488, %v2490
      %v2495 = vadd.s32 %v2491, 1
      %v2496 = vsel %vm2494, %v2495, %v2491
      %v2497 = vadd.s32 %v2492, %v2496
      %v2498 = vadd.s32 %v2497, 536870912
      %v2499 = vshrl.u32 %v2498, 30
      %v2500 = vshll.u32 %v2499, 30
      %v2501 = vsub.s32 %v2497, %v2500
      %vm2502 = vcmp.lt.s32.totalorder %v2501, 0
      %v2503 = vsub.s32 0, %v2501
      %v2504 = vsel %vm2502, %v2503, %v2501
      %v2505 = vclz %v2504
      %v2506 = vsub.s32 %v2505, 2
      %vm2507 = vcmp.gt.s32.totalorder 0, %v2506
      %v2508 = vsel %vm2507, 0, %v2506
      %v2509 = vsub.s32 32, %v2508
      %v2510 = vshll.u32 %v2501, %v2508
      %v2511 = vshrl.u32 %v2493, %v2509
      %v2512 = vor.u32 %v2510, %v2511
      %v2513 = vsub.s32 4294967266, %v2508
      %v2514 = vadd.s32 %v2513, 127
      %v2515 = vshll.u32 %v2514, 23
      %v2516 = vor.u32 4788187, %v2515
      %v2517 = vand.u32 2147483647, %v2516
      %v2519 = vcvt.s32.f32 %v2512
      %v2520 = vmul.f32 %v2519, %v2517
      %v2521 = vxor.u32 %v2520, 2147483648
      %v2522 = vsel %vm2439, %v2521, %v2520
      %v2523 = vsub.s32 4, %v2499
      %v2524 = vsel %vm2439, %v2523, %v2499
      %v2525 = vsel %vm2438, %v2017, %v2522
      %v2526 = vsel %vm2438, 0, %v2524
      %v2527 = vcosq.f32.pop %v2525
      %v2528 = vsinq.f32.pop %v2525
      %vm2529 = vweird.f32 %v2017
      %v2530 = vand.u32 %v2526, 3
      %vm2531 = vcmp.lt.s32.totalorder %v2530, 2
      %vm2532 = vcmp.eq.s32.totalorder %v2530, 0
      %v2533 = vxor.u32 %v2528, 2147483648
      %v2534 = vsel %vm2532, %v2527, %v2533
      %vm2535 = vcmp.eq.s32.totalorder %v2530, 2
      %v2536 = vxor.u32 %v2527, 2147483648
      %v2537 = vsel %vm2535, %v2536, %v2528
      %v2538 = vsel %vm2531, %v2534, %v2537
      %v2539 = vsel %vm2529, nan, %v2538
      %v2540 = vand.u32 2147483647, %v2018
      %vm2541 = vcmp.le.f32.partialorder %v2540, 0.7853982
      %vm2542 = vcmp.lt.s32.totalorder %v2018, 0
      %v2543 = vand.u32 %v2018, 2139095040
      %v2544 = vshrl.u32 %v2543, 23
      %v2545 = vsub.s32 %v2544, 127
      %v2546 = vand.u32 2147483647, %v2018
      %v2547 = vand.u32 %v2546, 8388607
      %v2548 = vor.u32 %v2547, 8388608
      %v2549 = vsub.s32 0, %v2548
      %v2550 = vadd.s32 %v2545, 1
      %vm2551 = vcmp.gt.s32.totalorder %v2550, 0
      %v2552 = vsel %vm2551, %v2550, 0
      %v2553 = vshrl.u32 %v2552, 5
      %v2554 = vand.u32 %v2552, 31
      %v2555 = vsub.s32 32, %v2554
      %v2556 = vshrl.u32 683565275, %v2555
      %v2557 = vshll.u32 683565275, %v2554
      %v2558 = vshrl.u32 2475754826, %v2555
      %v2559 = vor.u32 %v2557, %v2558
      %v2560 = vshll.u32 2475754826, %v2554
      %v2561 = vshrl.u32 2131351028, %v2555
      %v2562 = vor.u32 %v2560, %v2561
      %v2563 = vshll.u32 2131351028, %v2554
      %v2564 = vshrl.u32 2102212464, %v2555
      %v2565 = vor.u32 %v2563, %v2564
      %v2566 = vshll.u32 2102212464, %v2554
      %v2567 = vshrl.u32 920167782, %v2555
      %v2568 = vor.u32 %v2566, %v2567
      %v2569 = vshll.u32 920167782, %v2554
      %v2570 = vshrl.u32 1326507024, %v2555
      %v2571 = vor.u32 %v2569, %v2570
      %vm2572 = vcmp.lt.s32.totalorder %v2553, 1
      %vm2573 = vcmp.lt.s32.totalorder %v2553, 2
      %vm2574 = vcmp.lt.s32.totalorder %v2553, 3
      %vm2575 = vcmp.lt.s32.totalorder %v2553, 4
      %v2576 = vsel %vm2572, %v2556, %v2559
      %v2577 = vsel %vm2575, %v2565, 2102212464
      %v2578 = vsel %vm2574, %v2562, %v2577
      %v2579 = vsel %vm2573, %v2576, %v2578
      %v2580 = vsel %vm2572, %v2559, %v2562
      %v2581 = vsel %vm2575, %v2568, 920167782
      %v2582 = vsel %vm2574, %v2565, %v2581
      %v2583 = vsel %vm2573, %v2580, %v2582
      %v2584 = vsel %vm2572, %v2562, %v2565
      %v2585 = vsel %vm2575, %v2571, 1326507024
      %v2586 = vsel %vm2574, %v2568, %v2585
      %v2587 = vsel %vm2573, %v2584, %v2586
      %v2588 = vshll.u32 %v2548, 8
      %v2589 = vmul.u32.u64.compose %v2588, %v2587
      %v2590 = vextract.low.u32 %v2589
      %v2591 = vextract.high.u32 %v2589
      %v2592 = vmul.u32.u64.compose %v2588, %v2583
      %v2593 = vextract.low.u32 %v2592
      %v2594 = vextract.high.u32 %v2592
      %v2595 = vmul.u32 %v2588, %v2579
      %v2596 = vadd.s32 %v2591, %v2593
      %vm2597 = vc.u32 %v2591, %v2593
      %v2598 = vadd.s32 %v2594, 1
      %v2599 = vsel %vm2597, %v2598, %v2594
      %v2600 = vadd.s32 %v2595, %v2599
      %v2601 = vadd.s32 %v2600, 536870912
      %v2602 = vshrl.u32 %v2601, 30
      %v2603 = vshll.u32 %v2602, 30
      %v2604 = vsub.s32 %v2600, %v2603
      %vm2605 = vcmp.lt.s32.totalorder %v2604, 0
      %v2606 = vsub.s32 0, %v2604
      %v2607 = vsel %vm2605, %v2606, %v2604
      %v2608 = vclz %v2607
      %v2609 = vsub.s32 %v2608, 2
      %vm2610 = vcmp.gt.s32.totalorder 0, %v2609
      %v2611 = vsel %vm2610, 0, %v2609
      %v2612 = vsub.s32 32, %v2611
      %v2613 = vshll.u32 %v2604, %v2611
      %v2614 = vshrl.u32 %v2596, %v2612
      %v2615 = vor.u32 %v2613, %v2614
      %v2616 = vsub.s32 4294967266, %v2611
      %v2617 = vadd.s32 %v2616, 127
      %v2618 = vshll.u32 %v2617, 23
      %v2619 = vor.u32 4788187, %v2618
      %v2620 = vand.u32 2147483647, %v2619
      %v2622 = vcvt.s32.f32 %v2615
      %v2623 = vmul.f32 %v2622, %v2620
      %v2624 = vxor.u32 %v2623, 2147483648
      %v2625 = vsel %vm2542, %v2624, %v2623
      %v2626 = vsub.s32 4, %v2602
      %v2627 = vsel %vm2542, %v2626, %v2602
      %v2628 = vsel %vm2541, %v2018, %v2625
      %v2629 = vsel %vm2541, 0, %v2627
      %v2630 = vcosq.f32.pop %v2628
      %v2631 = vsinq.f32.pop %v2628
      %vm2632 = vweird.f32 %v2018
      %v2633 = vand.u32 %v2629, 3
      %vm2634 = vcmp.lt.s32.totalorder %v2633, 2
      %vm2635 = vcmp.eq.s32.totalorder %v2633, 0
      %v2636 = vxor.u32 %v2631, 2147483648
      %v2637 = vsel %vm2635, %v2630, %v2636
      %vm2638 = vcmp.eq.s32.totalorder %v2633, 2
      %v2639 = vxor.u32 %v2630, 2147483648
      %v2640 = vsel %vm2638, %v2639, %v2631
      %v2641 = vsel %vm2634, %v2637, %v2640
      %v2642 = vsel %vm2632, nan, %v2641
      %v2643 = vand.u32 2147483647, %v2019
      %vm2644 = vcmp.le.f32.partialorder %v2643, 0.7853982
      %vm2645 = vcmp.lt.s32.totalorder %v2019, 0
      %v2646 = vand.u32 %v2019, 2139095040
      %v2647 = vshrl.u32 %v2646, 23
      %v2648 = vsub.s32 %v2647, 127
      %v2649 = vand.u32 2147483647, %v2019
      %v2650 = vand.u32 %v2649, 8388607
      %v2651 = vor.u32 %v2650, 8388608
      %v2652 = vsub.s32 0, %v2651
      %v2653 = vadd.s32 %v2648, 1
      %vm2654 = vcmp.gt.s32.totalorder %v2653, 0
      %v2655 = vsel %vm2654, %v2653, 0
      %v2656 = vshrl.u32 %v2655, 5
      %v2657 = vand.u32 %v2655, 31
      %v2658 = vsub.s32 32, %v2657
      %v2659 = vshrl.u32 683565275, %v2658
      %v2660 = vshll.u32 683565275, %v2657
      %v2661 = vshrl.u32 2475754826, %v2658
      %v2662 = vor.u32 %v2660, %v2661
      %v2663 = vshll.u32 2475754826, %v2657
      %v2664 = vshrl.u32 2131351028, %v2658
      %v2665 = vor.u32 %v2663, %v2664
      %v2666 = vshll.u32 2131351028, %v2657
      %v2667 = vshrl.u32 2102212464, %v2658
      %v2668 = vor.u32 %v2666, %v2667
      %v2669 = vshll.u32 2102212464, %v2657
      %v2670 = vshrl.u32 920167782, %v2658
      %v2671 = vor.u32 %v2669, %v2670
      %v2672 = vshll.u32 920167782, %v2657
      %v2673 = vshrl.u32 1326507024, %v2658
      %v2674 = vor.u32 %v2672, %v2673
      %vm2675 = vcmp.lt.s32.totalorder %v2656, 1
      %vm2676 = vcmp.lt.s32.totalorder %v2656, 2
      %vm2677 = vcmp.lt.s32.totalorder %v2656, 3
      %vm2678 = vcmp.lt.s32.totalorder %v2656, 4
      %v2679 = vsel %vm2675, %v2659, %v2662
      %v2680 = vsel %vm2678, %v2668, 2102212464
      %v2681 = vsel %vm2677, %v2665, %v2680
      %v2682 = vsel %vm2676, %v2679, %v2681
      %v2683 = vsel %vm2675, %v2662, %v2665
      %v2684 = vsel %vm2678, %v2671, 920167782
      %v2685 = vsel %vm2677, %v2668, %v2684
      %v2686 = vsel %vm2676, %v2683, %v2685
      %v2687 = vsel %vm2675, %v2665, %v2668
      %v2688 = vsel %vm2678, %v2674, 1326507024
      %v2689 = vsel %vm2677, %v2671, %v2688
      %v2690 = vsel %vm2676, %v2687, %v2689
      %v2691 = vshll.u32 %v2651, 8
      %v2692 = vmul.u32.u64.compose %v2691, %v2690
      %v2693 = vextract.low.u32 %v2692
      %v2694 = vextract.high.u32 %v2692
      %v2695 = vmul.u32.u64.compose %v2691, %v2686
      %v2696 = vextract.low.u32 %v2695
      %v2697 = vextract.high.u32 %v2695
      %v2698 = vmul.u32 %v2691, %v2682
      %v2699 = vadd.s32 %v2694, %v2696
      %vm2700 = vc.u32 %v2694, %v2696
      %v2701 = vadd.s32 %v2697, 1
      %v2702 = vsel %vm2700, %v2701, %v2697
      %v2703 = vadd.s32 %v2698, %v2702
      %v2704 = vadd.s32 %v2703, 536870912
      %v2705 = vshrl.u32 %v2704, 30
      %v2706 = vshll.u32 %v2705, 30
      %v2707 = vsub.s32 %v2703, %v2706
      %vm2708 = vcmp.lt.s32.totalorder %v2707, 0
      %v2709 = vsub.s32 0, %v2707
      %v2710 = vsel %vm2708, %v2709, %v2707
      %v2711 = vclz %v2710
      %v2712 = vsub.s32 %v2711, 2
      %vm2713 = vcmp.gt.s32.totalorder 0, %v2712
      %v2714 = vsel %vm2713, 0, %v2712
      %v2715 = vsub.s32 32, %v2714
      %v2716 = vshll.u32 %v2707, %v2714
      %v2717 = vshrl.u32 %v2699, %v2715
      %v2718 = vor.u32 %v2716, %v2717
      %v2719 = vsub.s32 4294967266, %v2714
      %v2720 = vadd.s32 %v2719, 127
      %v2721 = vshll.u32 %v2720, 23
      %v2722 = vor.u32 4788187, %v2721
      %v2723 = vand.u32 2147483647, %v2722
      %v2725 = vcvt.s32.f32 %v2718
      %v2726 = vmul.f32 %v2725, %v2723
      %v2727 = vxor.u32 %v2726, 2147483648
      %v2728 = vsel %vm2645, %v2727, %v2726
      %v2729 = vsub.s32 4, %v2705
      %v2730 = vsel %vm2645, %v2729, %v2705
      %v2731 = vsel %vm2644, %v2019, %v2728
      %v2732 = vsel %vm2644, 0, %v2730
      %v2733 = vcosq.f32.pop %v2731
      %v2734 = vsinq.f32.pop %v2731
      %vm2735 = vweird.f32 %v2019
      %v2736 = vand.u32 %v2732, 3
      %vm2737 = vcmp.lt.s32.totalorder %v2736, 2
      %vm2738 = vcmp.eq.s32.totalorder %v2736, 0
      %v2739 = vxor.u32 %v2734, 2147483648
      %v2740 = vsel %vm2738, %v2733, %v2739
      %vm2741 = vcmp.eq.s32.totalorder %v2736, 2
      %v2742 = vxor.u32 %v2733, 2147483648
      %v2743 = vsel %vm2741, %v2742, %v2734
      %v2744 = vsel %vm2737, %v2740, %v2743
      %v2745 = vsel %vm2735, nan, %v2744
      %v2746 = vand.u32 2147483647, %v2020
      %vm2747 = vcmp.le.f32.partialorder %v2746, 0.7853982
      %vm2748 = vcmp.lt.s32.totalorder %v2020, 0
      %v2749 = vand.u32 %v2020, 2139095040
      %v2750 = vshrl.u32 %v2749, 23
      %v2751 = vsub.s32 %v2750, 127
      %v2752 = vand.u32 2147483647, %v2020
      %v2753 = vand.u32 %v2752, 8388607
      %v2754 = vor.u32 %v2753, 8388608
      %v2755 = vsub.s32 0, %v2754
      %v2756 = vadd.s32 %v2751, 1
      %vm2757 = vcmp.gt.s32.totalorder %v2756, 0
      %v2758 = vsel %vm2757, %v2756, 0
      %v2759 = vshrl.u32 %v2758, 5
      %v2760 = vand.u32 %v2758, 31
      %v2761 = vsub.s32 32, %v2760
      %v2762 = vshrl.u32 683565275, %v2761
      %v2763 = vshll.u32 683565275, %v2760
      %v2764 = vshrl.u32 2475754826, %v2761
      %v2765 = vor.u32 %v2763, %v2764
      %v2766 = vshll.u32 2475754826, %v2760
      %v2767 = vshrl.u32 2131351028, %v2761
      %v2768 = vor.u32 %v2766, %v2767
      %v2769 = vshll.u32 2131351028, %v2760
      %v2770 = vshrl.u32 2102212464, %v2761
      %v2771 = vor.u32 %v2769, %v2770
      %v2772 = vshll.u32 2102212464, %v2760
      %v2773 = vshrl.u32 920167782, %v2761
      %v2774 = vor.u32 %v2772, %v2773
      %v2775 = vshll.u32 920167782, %v2760
      %v2776 = vshrl.u32 1326507024, %v2761
      %v2777 = vor.u32 %v2775, %v2776
      %vm2778 = vcmp.lt.s32.totalorder %v2759, 1
      %vm2779 = vcmp.lt.s32.totalorder %v2759, 2
      %vm2780 = vcmp.lt.s32.totalorder %v2759, 3
      %vm2781 = vcmp.lt.s32.totalorder %v2759, 4
      %v2782 = vsel %vm2778, %v2762, %v2765
      %v2783 = vsel %vm2781, %v2771, 2102212464
      %v2784 = vsel %vm2780, %v2768, %v2783
      %v2785 = vsel %vm2779, %v2782, %v2784
      %v2786 = vsel %vm2778, %v2765, %v2768
      %v2787 = vsel %vm2781, %v2774, 920167782
      %v2788 = vsel %vm2780, %v2771, %v2787
      %v2789 = vsel %vm2779, %v2786, %v2788
      %v2790 = vsel %vm2778, %v2768, %v2771
      %v2791 = vsel %vm2781, %v2777, 1326507024
      %v2792 = vsel %vm2780, %v2774, %v2791
      %v2793 = vsel %vm2779, %v2790, %v2792
      %v2794 = vshll.u32 %v2754, 8
      %v2795 = vmul.u32.u64.compose %v2794, %v2793
      %v2796 = vextract.low.u32 %v2795
      %v2797 = vextract.high.u32 %v2795
      %v2798 = vmul.u32.u64.compose %v2794, %v2789
      %v2799 = vextract.low.u32 %v2798
      %v2800 = vextract.high.u32 %v2798
      %v2801 = vmul.u32 %v2794, %v2785
      %v2802 = vadd.s32 %v2797, %v2799
      %vm2803 = vc.u32 %v2797, %v2799
      %v2804 = vadd.s32 %v2800, 1
      %v2805 = vsel %vm2803, %v2804, %v2800
      %v2806 = vadd.s32 %v2801, %v2805
      %v2807 = vadd.s32 %v2806, 536870912
      %v2808 = vshrl.u32 %v2807, 30
      %v2809 = vshll.u32 %v2808, 30
      %v2810 = vsub.s32 %v2806, %v2809
      %vm2811 = vcmp.lt.s32.totalorder %v2810, 0
      %v2812 = vsub.s32 0, %v2810
      %v2813 = vsel %vm2811, %v2812, %v2810
      %v2814 = vclz %v2813
      %v2815 = vsub.s32 %v2814, 2
      %vm2816 = vcmp.gt.s32.totalorder 0, %v2815
      %v2817 = vsel %vm2816, 0, %v2815
      %v2818 = vsub.s32 32, %v2817
      %v2819 = vshll.u32 %v2810, %v2817
      %v2820 = vshrl.u32 %v2802, %v2818
      %v2821 = vor.u32 %v2819, %v2820
      %v2822 = vsub.s32 4294967266, %v2817
      %v2823 = vadd.s32 %v2822, 127
      %v2824 = vshll.u32 %v2823, 23
      %v2825 = vor.u32 4788187, %v2824
      %v2826 = vand.u32 2147483647, %v2825
      %v2828 = vcvt.s32.f32 %v2821
      %v2829 = vmul.f32 %v2828, %v2826
      %v2830 = vxor.u32 %v2829, 2147483648
      %v2831 = vsel %vm2748, %v2830, %v2829
      %v2832 = vsub.s32 4, %v2808
      %v2833 = vsel %vm2748, %v2832, %v2808
      %v2834 = vsel %vm2747, %v2020, %v2831
      %v2835 = vsel %vm2747, 0, %v2833
      %v2836 = vcosq.f32.pop %v2834
      %v2837 = vsinq.f32.pop %v2834
      %vm2838 = vweird.f32 %v2020
      %v2839 = vand.u32 %v2835, 3
      %vm2840 = vcmp.lt.s32.totalorder %v2839, 2
      %vm2841 = vcmp.eq.s32.totalorder %v2839, 0
      %v2842 = vxor.u32 %v2837, 2147483648
      %v2843 = vsel %vm2841, %v2836, %v2842
      %vm2844 = vcmp.eq.s32.totalorder %v2839, 2
      %v2845 = vxor.u32 %v2836, 2147483648
      %v2846 = vsel %vm2844, %v2845, %v2837
      %v2847 = vsel %vm2840, %v2843, %v2846
      %v2848 = vsel %vm2838, nan, %v2847
      %v2853 = vrot.slane %v2124, 5
      %v2854 = vrot.slane %v2228, 5
      %v2855 = vrot.slane %v2332, 5
      %v2856 = vrot.slane %v2436, 5
      %v2865 = vrot.slane %v2539, 7
      %v2866 = vrot.slane %v2642, 7
      %v2867 = vrot.slane %v2745, 7
      %v2868 = vrot.slane %v2848, 7
      %v2873 = vsel %vm257, %v2009, %v2853
      %v2874 = vsel %vm257, %v2010, %v2854
      %v2875 = vsel %vm257, %v2011, %v2855
      %v2876 = vsel %vm257, %v2012, %v2856
      %v2877 = vsel %vm267, %v2853, %v2865
      %v2878 = vsel %vm267, %v2854, %v2866
      %v2879 = vsel %vm267, %v2855, %v2867
      %v2880 = vsel %vm267, %v2856, %v2868
      %v2881 = vpack.c.bf16 %v2877, %v2873
      %v2882 = vpack.c.bf16 %v2878, %v2874
      %v2883 = vpack.c.bf16 %v2879, %v2875
      %v2884 = vpack.c.bf16 %v2880, %v2876
      %2886 = vset.pattern.permute.xlu0 0
      %2887 = vperm.xlu0 %2886, %v196
      %v2888 = vpop.permute.xlu0 %2887
      %2891 = vset.pattern.permute.xlu0 0
      %2892 = vperm.xlu0 %2891, %v197
      %v2893 = vpop.permute.xlu0 %2892
      %2896 = vset.pattern.permute.xlu0 0
      %2897 = vperm.xlu0 %2896, %v198
      %v2898 = vpop.permute.xlu0 %2897
      %2901 = vset.pattern.permute.xlu0 0
      %2902 = vperm.xlu0 %2901, %v199
      %v2903 = vpop.permute.xlu0 %2902
      %2906 = vset.pattern.permute.xlu0 0
      %2907 = vperm.xlu0 %2906, %v200
      %v2908 = vpop.permute.xlu0 %2907
      %2911 = vset.pattern.permute.xlu0 0
      %2912 = vperm.xlu0 %2911, %v201
      %v2913 = vpop.permute.xlu0 %2912
      %2916 = vset.pattern.permute.xlu0 0
      %2917 = vperm.xlu0 %2916, %v202
      %v2918 = vpop.permute.xlu0 %2917
      %2921 = vset.pattern.permute.xlu0 0
      %2922 = vperm.xlu0 %2921, %v203
      %v2923 = vpop.permute.xlu0 %2922
      %v2933 = vunpack.c.l.b16 %v175
      %v2934 = vunpack.c.l.b16 %v178
      %v2935 = vunpack.c.l.b16 %v181
      %v2936 = vunpack.c.l.b16 %v184
      %v2937 = vunpack.c.l.b16 %v187
      %v2938 = vunpack.c.l.b16 %v189
      %v2939 = vunpack.c.l.b16 %v191
      %v2940 = vunpack.c.l.b16 %v193
      %v2941 = vpack.c.b16 %v2934, %v2933
      %v2942 = vpack.c.b16 %v2936, %v2935
      %v2943 = vpack.c.b16 %v2938, %v2937
      %v2944 = vpack.c.b16 %v2940, %v2939
      %vm2945 = vcmask 220160
      %v2947 = vsel %vm2945, %v2941, 0
      %v2950 = vsel %vm2945, %v2942, 0
      %v2953 = vsel %vm2945, %v2943, 0
      %v2956 = vsel %vm2945, %v2944, 0
      %vm2958 = vcmask 1044480
      %v2959 = vsel %vm2958, 4294967295, 65535
      %v2960 = vsel %vm262, %v2959, 0
      %v2962 = vand.u32 %v2001, %v2960
      %v2965 = vand.u32 %v2002, %v2960
      %v2968 = vand.u32 %v2003, %v2960
      %v2971 = vand.u32 %v2004, %v2960
      %2973 = vmatprep.subr.bf16.mxu0 %v1998
      %2974 = vmatpush1.bf16.msra.mxu0 %v1997
      %2975 = vmatprep.subr.bf16.mxu0 %v2965
      %2976 = vmatpush1.bf16.msra.mxu0 %v2962
      %2977 = vmatprep.subr.bf16.mxu0 0
      %2978 = vmatpush1.bf16.msra.mxu0 0
      %2979 = vmatprep.subr.bf16.mxu0 0
      %2980 = vmatpush1.bf16.msra.mxu0 0
      %2981 = vmatprep.subr.bf16.mxu0 0
      %2982 = vmatpush1.bf16.msra.mxu0 0
      %2983 = vmatprep.subr.bf16.mxu0 0
      %2984 = vmatpush1.bf16.msra.mxu0 0
      %2985 = vmatprep.subr.bf16.mxu0 0
      %2986 = vmatpush1.bf16.msra.mxu0 0
      %2987 = vmatprep.subr.bf16.mxu0 0
      %2988 = vmatpush1.bf16.msra.mxu0 0
      %2989 = vmatprep.subr.bf16.mxu0 0
      %2990 = vmatpush1.bf16.msra.mxu0 0
      %2991 = vmatprep.subr.bf16.mxu0 0
      %2992 = vmatpush1.bf16.msra.mxu0 0
      %2993 = vmatprep.subr.bf16.mxu0 0
      %2994 = vmatpush1.bf16.msra.mxu0 0
      %2995 = vmatprep.subr.bf16.mxu0 0
      %2996 = vmatpush1.bf16.msra.mxu0 0
      %2997 = vmatprep.subr.bf16.mxu0 0
      %2998 = vmatpush1.bf16.msra.mxu0 0
      %2999 = vmatprep.subr.bf16.mxu0 0
      %3000 = vmatpush1.bf16.msra.mxu0 0
      %3001 = vmatprep.subr.bf16.mxu0 0
      %3002 = vmatpush1.bf16.msra.mxu0 0
      %3003 = vmatprep.subr.bf16.mxu0 0
      %3004 = vmatpush1.bf16.msra.mxu0 0
      %3005 = vmatprep.mubr.bf16.mxu0 0
      %3006 = vmatmul.mubr.bf16.gmra.mrb[0].mxu0 %v2947
      %v3007 = vpop.f32.mrb[0].mxu0
      %v3008 = vadd.f32 %v2888, %v3007
      %v3009 = vpop.f32.mrb[0].mxu0
      %v3010 = vadd.f32 %v2888, %v3009
      %v3011 = vpop.f32.mrb[0].mxu0
      %v3012 = vadd.f32 %v2893, %v3011
      %v3013 = vpop.f32.mrb[0].mxu0
      %v3014 = vadd.f32 %v2893, %v3013
      %3015 = vmatprep.mubr.bf16.mxu0 0
      %3016 = vmatmul.mubr.bf16.gmra.mrb[0].mxu0 %v2950
      %v3017 = vpop.f32.mrb[0].mxu0
      %v3018 = vadd.f32 %v2898, %v3017
      %v3019 = vpop.f32.mrb[0].mxu0
      %v3020 = vadd.f32 %v2898, %v3019
      %v3021 = vpop.f32.mrb[0].mxu0
      %v3022 = vadd.f32 %v2903, %v3021
      %v3023 = vpop.f32.mrb[0].mxu0
      %v3024 = vadd.f32 %v2903, %v3023
      %3025 = vmatprep.mubr.bf16.mxu0 0
      %3026 = vmatmul.mubr.bf16.gmra.mrb[0].mxu0 %v2953
      %v3027 = vpop.f32.mrb[0].mxu0
      %v3028 = vadd.f32 %v2908, %v3027
      %v3029 = vpop.f32.mrb[0].mxu0
      %v3030 = vadd.f32 %v2908, %v3029
      %v3031 = vpop.f32.mrb[0].mxu0
      %v3032 = vadd.f32 %v2913, %v3031
      %v3033 = vpop.f32.mrb[0].mxu0
      %v3034 = vadd.f32 %v2913, %v3033
      %3035 = vmatprep.mubr.bf16.mxu0 0
      %3036 = vmatmul.mubr.bf16.gmra.mrb[0].mxu0 %v2956
      %v3037 = vpop.f32.mrb[0].mxu0
      %v3038 = vadd.f32 %v2918, %v3037
      %v3039 = vpop.f32.mrb[0].mxu0
      %v3040 = vadd.f32 %v2918, %v3039
      %v3041 = vpop.f32.mrb[0].mxu0
      %v3042 = vadd.f32 %v2923, %v3041
      %v3043 = vpop.f32.mrb[0].mxu0
      %v3044 = vadd.f32 %v2923, %v3043
      %3045 = vdwg.mxu0
      %3046 = vmatprep.subr.bf16.mxu0 %v2000
      %3047 = vmatpush1.bf16.msra.mxu0 %v1999
      %3048 = vmatprep.subr.bf16.mxu0 %v2971
      %3049 = vmatpush1.bf16.msra.mxu0 %v2968
      %3050 = vmatprep.subr.bf16.mxu0 0
      %3051 = vmatpush1.bf16.msra.mxu0 0
      %3052 = vmatprep.subr.bf16.mxu0 0
      %3053 = vmatpush1.bf16.msra.mxu0 0
      %3054 = vmatprep.subr.bf16.mxu0 0
      %3055 = vmatpush1.bf16.msra.mxu0 0
      %3056 = vmatprep.subr.bf16.mxu0 0
      %3057 = vmatpush1.bf16.msra.mxu0 0
      %3058 = vmatprep.subr.bf16.mxu0 0
      %3059 = vmatpush1.bf16.msra.mxu0 0
      %3060 = vmatprep.subr.bf16.mxu0 0
      %3061 = vmatpush1.bf16.msra.mxu0 0
      %3062 = vmatprep.subr.bf16.mxu0 0
      %3063 = vmatpush1.bf16.msra.mxu0 0
      %3064 = vmatprep.subr.bf16.mxu0 0
      %3065 = vmatpush1.bf16.msra.mxu0 0
      %3066 = vmatprep.subr.bf16.mxu0 0
      %3067 = vmatpush1.bf16.msra.mxu0 0
      %3068 = vmatprep.subr.bf16.mxu0 0
      %3069 = vmatpush1.bf16.msra.mxu0 0
      %3070 = vmatprep.subr.bf16.mxu0 0
      %3071 = vmatpush1.bf16.msra.mxu0 0
      %3072 = vmatprep.subr.bf16.mxu0 0
      %3073 = vmatpush1.bf16.msra.mxu0 0
      %3074 = vmatprep.subr.bf16.mxu0 0
      %3075 = vmatpush1.bf16.msra.mxu0 0
      %3076 = vmatprep.subr.bf16.mxu0 0
      %3077 = vmatpush1.bf16.msra.mxu0 0
      %3078 = vmatprep.mubr.bf16.mxu0 0
      %3079 = vmatmul.mubr.bf16.gmra.mrb[0].mxu0 %v2947
      %v3080 = vpop.f32.mrb[0].mxu0
      %v3081 = vadd.f32 %v2888, %v3080
      %v3082 = vpop.f32.mrb[0].mxu0
      %v3083 = vadd.f32 %v2888, %v3082
      %v3084 = vpop.f32.mrb[0].mxu0
      %v3085 = vadd.f32 %v2893, %v3084
      %v3086 = vpop.f32.mrb[0].mxu0
      %v3087 = vadd.f32 %v2893, %v3086
      %3088 = vmatprep.mubr.bf16.mxu0 0
      %3089 = vmatmul.mubr.bf16.gmra.mrb[0].mxu0 %v2950
      %v3090 = vpop.f32.mrb[0].mxu0
      %v3091 = vadd.f32 %v2898, %v3090
      %v3092 = vpop.f32.mrb[0].mxu0
      %v3093 = vadd.f32 %v2898, %v3092
      %v3094 = vpop.f32.mrb[0].mxu0
      %v3095 = vadd.f32 %v2903, %v3094
      %v3096 = vpop.f32.mrb[0].mxu0
      %v3097 = vadd.f32 %v2903, %v3096
      %3098 = vmatprep.mubr.bf16.mxu0 0
      %3099 = vmatmul.mubr.bf16.gmra.mrb[0].mxu0 %v2953
      %v3100 = vpop.f32.mrb[0].mxu0
      %v3101 = vadd.f32 %v2908, %v3100
      %v3102 = vpop.f32.mrb[0].mxu0
      %v3103 = vadd.f32 %v2908, %v3102
      %v3104 = vpop.f32.mrb[0].mxu0
      %v3105 = vadd.f32 %v2913, %v3104
      %v3106 = vpop.f32.mrb[0].mxu0
      %v3107 = vadd.f32 %v2913, %v3106
      %3108 = vmatprep.mubr.bf16.mxu0 0
      %3109 = vmatmul.mubr.bf16.gmra.mrb[0].mxu0 %v2956
      %v3110 = vpop.f32.mrb[0].mxu0
      %v3111 = vadd.f32 %v2918, %v3110
      %v3112 = vpop.f32.mrb[0].mxu0
      %v3113 = vadd.f32 %v2918, %v3112
      %v3114 = vpop.f32.mrb[0].mxu0
      %v3115 = vadd.f32 %v2923, %v3114
      %v3116 = vpop.f32.mrb[0].mxu0
      %v3117 = vadd.f32 %v2923, %v3116
      %3118 = vdwg.mxu0
      %v3119 = vmax.f32 %v3008, 0.0
      %v3120 = vmax.f32 %v3010, 0.0
      %v3121 = vmax.f32 %v3081, 0.0
      %v3122 = vmax.f32 %v3083, 0.0
      %v3123 = vmax.f32 %v3012, 0.0
      %v3124 = vmax.f32 %v3014, 0.0
      %v3125 = vmax.f32 %v3085, 0.0
      %v3126 = vmax.f32 %v3087, 0.0
      %v3127 = vmax.f32 %v3018, 0.0
      %v3128 = vmax.f32 %v3020, 0.0
      %v3129 = vmax.f32 %v3091, 0.0
      %v3130 = vmax.f32 %v3093, 0.0
      %v3131 = vmax.f32 %v3022, 0.0
      %v3132 = vmax.f32 %v3024, 0.0
      %v3133 = vmax.f32 %v3095, 0.0
      %v3134 = vmax.f32 %v3097, 0.0
      %v3135 = vmax.f32 %v3028, 0.0
      %v3136 = vmax.f32 %v3030, 0.0
      %v3137 = vmax.f32 %v3101, 0.0
      %v3138 = vmax.f32 %v3103, 0.0
      %v3139 = vmax.f32 %v3032, 0.0
      %v3140 = vmax.f32 %v3034, 0.0
      %v3141 = vmax.f32 %v3105, 0.0
      %v3142 = vmax.f32 %v3107, 0.0
      %v3143 = vmax.f32 %v3038, 0.0
      %v3144 = vmax.f32 %v3040, 0.0
      %v3145 = vmax.f32 %v3111, 0.0
      %v3146 = vmax.f32 %v3113, 0.0
      %v3147 = vmax.f32 %v3042, 0.0
      %v3148 = vmax.f32 %v3044, 0.0
      %v3149 = vmax.f32 %v3115, 0.0
      %v3150 = vmax.f32 %v3117, 0.0
      %v3151 = vpack.c.bf16 %v3123, %v3119
      %v3152 = vpack.c.bf16 %v3124, %v3120
      %v3153 = vpack.c.bf16 %v3125, %v3121
      %v3154 = vpack.c.bf16 %v3126, %v3122
      %v3155 = vpack.c.bf16 %v3131, %v3127
      %v3156 = vpack.c.bf16 %v3132, %v3128
      %v3157 = vpack.c.bf16 %v3133, %v3129
      %v3158 = vpack.c.bf16 %v3134, %v3130
      %v3159 = vpack.c.bf16 %v3139, %v3135
      %v3160 = vpack.c.bf16 %v3140, %v3136
      %v3161 = vpack.c.bf16 %v3141, %v3137
      %v3162 = vpack.c.bf16 %v3142, %v3138
      %v3163 = vpack.c.bf16 %v3147, %v3143
      %v3164 = vpack.c.bf16 %v3148, %v3144
      %v3165 = vpack.c.bf16 %v3149, %v3145
      %v3166 = vpack.c.bf16 %v3150, %v3146
      %3167 = vset.pattern.permute.xlu0 1
      %3168 = vperm.xlu0 %3167, %v196
      %v3169 = vpop.permute.xlu0 %3168
      %3171 = vset.pattern.permute.xlu0 1
      %3172 = vperm.xlu0 %3171, %v197
      %v3173 = vpop.permute.xlu0 %3172
      %3175 = vset.pattern.permute.xlu0 1
      %3176 = vperm.xlu0 %3175, %v198
      %v3177 = vpop.permute.xlu0 %3176
      %3179 = vset.pattern.permute.xlu0 1
      %3180 = vperm.xlu0 %3179, %v199
      %v3181 = vpop.permute.xlu0 %3180
      %3183 = vset.pattern.permute.xlu0 1
      %3184 = vperm.xlu0 %3183, %v200
      %v3185 = vpop.permute.xlu0 %3184
      %3187 = vset.pattern.permute.xlu0 1
      %3188 = vperm.xlu0 %3187, %v201
      %v3189 = vpop.permute.xlu0 %3188
      %3191 = vset.pattern.permute.xlu0 1
      %3192 = vperm.xlu0 %3191, %v202
      %v3193 = vpop.permute.xlu0 %3192
      %3195 = vset.pattern.permute.xlu0 1
      %3196 = vperm.xlu0 %3195, %v203
      %v3197 = vpop.permute.xlu0 %3196
      %3199 = vrot.lane.b32.xlu0 %v2941, 101
      %v3200 = vpop.permute.xlu0 %3199
      %3201 = vrot.lane.b32.xlu0 %v2942, 101
      %v3202 = vpop.permute.xlu0 %3201
      %3203 = vrot.lane.b32.xlu0 %v2943, 101
      %v3204 = vpop.permute.xlu0 %3203
      %3205 = vrot.lane.b32.xlu0 %v2944, 101
      %v3206 = vpop.permute.xlu0 %3205
      %vm3207 = vcmask 523264
      %v3209 = vsel %vm3207, %v3200, 0
      %v3212 = vsel %vm3207, %v3202, 0
      %v3215 = vsel %vm3207, %v3204, 0
      %v3218 = vsel %vm3207, %v3206, 0
      %3220 = vmatprep.subr.bf16.mxu0 %v3152
      %3221 = vmatpush1.bf16.msra.mxu0 %v3151
      %3222 = vmatprep.subr.bf16.mxu0 %v3156
      %3223 = vmatpush1.bf16.msra.mxu0 %v3155
      %3224 = vmatprep.subr.bf16.mxu0 %v3160
      %3225 = vmatpush1.bf16.msra.mxu0 %v3159
      %3226 = vmatprep.subr.bf16.mxu0 %v3164
      %3227 = vmatpush1.bf16.msra.mxu0 %v3163
      %3228 = vmatprep.subr.bf16.mxu0 0
      %3229 = vmatpush1.bf16.msra.mxu0 0
      %3230 = vmatprep.subr.bf16.mxu0 0
      %3231 = vmatpush1.bf16.msra.mxu0 0
      %3232 = vmatprep.subr.bf16.mxu0 0
      %3233 = vmatpush1.bf16.msra.mxu0 0
      %3234 = vmatprep.subr.bf16.mxu0 0
      %3235 = vmatpush1.bf16.msra.mxu0 0
      %3236 = vmatprep.subr.bf16.mxu0 0
      %3237 = vmatpush1.bf16.msra.mxu0 0
      %3238 = vmatprep.subr.bf16.mxu0 0
      %3239 = vmatpush1.bf16.msra.mxu0 0
      %3240 = vmatprep.subr.bf16.mxu0 0
      %3241 = vmatpush1.bf16.msra.mxu0 0
      %3242 = vmatprep.subr.bf16.mxu0 0
      %3243 = vmatpush1.bf16.msra.mxu0 0
      %3244 = vmatprep.subr.bf16.mxu0 0
      %3245 = vmatpush1.bf16.msra.mxu0 0
      %3246 = vmatprep.subr.bf16.mxu0 0
      %3247 = vmatpush1.bf16.msra.mxu0 0
      %3248 = vmatprep.subr.bf16.mxu0 0
      %3249 = vmatpush1.bf16.msra.mxu0 0
      %3250 = vmatprep.subr.bf16.mxu0 0
      %3251 = vmatpush1.bf16.msra.mxu0 0
      %3252 = vmatprep.mubr.bf16.mxu0 0
      %3253 = vmatmul.mubr.bf16.gmra.mrb[0].mxu0 %v3209
      %v3254 = vpop.f32.mrb[0].mxu0
      %v3255 = vadd.f32 %v3169, %v3254
      %v3256 = vpop.f32.mrb[0].mxu0
      %v3257 = vadd.f32 %v3169, %v3256
      %v3258 = vpop.f32.mrb[0].mxu0
      %v3259 = vadd.f32 %v3173, %v3258
      %v3260 = vpop.f32.mrb[0].mxu0
      %v3261 = vadd.f32 %v3173, %v3260
      %3262 = vmatprep.mubr.bf16.mxu0 0
      %3263 = vmatmul.mubr.bf16.gmra.mrb[0].mxu0 %v3212
      %v3264 = vpop.f32.mrb[0].mxu0
      %v3265 = vadd.f32 %v3177, %v3264
      %v3266 = vpop.f32.mrb[0].mxu0
      %v3267 = vadd.f32 %v3177, %v3266
      %v3268 = vpop.f32.mrb[0].mxu0
      %v3269 = vadd.f32 %v3181, %v3268
      %v3270 = vpop.f32.mrb[0].mxu0
      %v3271 = vadd.f32 %v3181, %v3270
      %3272 = vmatprep.mubr.bf16.mxu0 0
      %3273 = vmatmul.mubr.bf16.gmra.mrb[0].mxu0 %v3215
      %v3274 = vpop.f32.mrb[0].mxu0
      %v3275 = vadd.f32 %v3185, %v3274
      %v3276 = vpop.f32.mrb[0].mxu0
      %v3277 = vadd.f32 %v3185, %v3276
      %v3278 = vpop.f32.mrb[0].mxu0
      %v3279 = vadd.f32 %v3189, %v3278
      %v3280 = vpop.f32.mrb[0].mxu0
      %v3281 = vadd.f32 %v3189, %v3280
      %3282 = vmatprep.mubr.bf16.mxu0 0
      %3283 = vmatmul.mubr.bf16.gmra.mrb[0].mxu0 %v3218
      %v3284 = vpop.f32.mrb[0].mxu0
      %v3285 = vadd.f32 %v3193, %v3284
      %v3286 = vpop.f32.mrb[0].mxu0
      %v3287 = vadd.f32 %v3193, %v3286
      %v3288 = vpop.f32.mrb[0].mxu0
      %v3289 = vadd.f32 %v3197, %v3288
      %v3290 = vpop.f32.mrb[0].mxu0
      %v3291 = vadd.f32 %v3197, %v3290
      %3292 = vdwg.mxu0
      %3293 = vmatprep.subr.bf16.mxu0 %v3154
      %3294 = vmatpush1.bf16.msra.mxu0 %v3153
      %3295 = vmatprep.subr.bf16.mxu0 %v3158
      %3296 = vmatpush1.bf16.msra.mxu0 %v3157
      %3297 = vmatprep.subr.bf16.mxu0 %v3162
      %3298 = vmatpush1.bf16.msra.mxu0 %v3161
      %3299 = vmatprep.subr.bf16.mxu0 %v3166
      %3300 = vmatpush1.bf16.msra.mxu0 %v3165
      %3301 = vmatprep.subr.bf16.mxu0 0
      %3302 = vmatpush1.bf16.msra.mxu0 0
      %3303 = vmatprep.subr.bf16.mxu0 0
      %3304 = vmatpush1.bf16.msra.mxu0 0
      %3305 = vmatprep.subr.bf16.mxu0 0
      %3306 = vmatpush1.bf16.msra.mxu0 0
      %3307 = vmatprep.subr.bf16.mxu0 0
      %3308 = vmatpush1.bf16.msra.mxu0 0
      %3309 = vmatprep.subr.bf16.mxu0 0
      %3310 = vmatpush1.bf16.msra.mxu0 0
      %3311 = vmatprep.subr.bf16.mxu0 0
      %3312 = vmatpush1.bf16.msra.mxu0 0
      %3313 = vmatprep.subr.bf16.mxu0 0
      %3314 = vmatpush1.bf16.msra.mxu0 0
      %3315 = vmatprep.subr.bf16.mxu0 0
      %3316 = vmatpush1.bf16.msra.mxu0 0
      %3317 = vmatprep.subr.bf16.mxu0 0
      %3318 = vmatpush1.bf16.msra.mxu0 0
      %3319 = vmatprep.subr.bf16.mxu0 0
      %3320 = vmatpush1.bf16.msra.mxu0 0
      %3321 = vmatprep.subr.bf16.mxu0 0
      %3322 = vmatpush1.bf16.msra.mxu0 0
      %3323 = vmatprep.subr.bf16.mxu0 0
      %3324 = vmatpush1.bf16.msra.mxu0 0
      %3325 = vmatprep.mubr.bf16.mxu0 0
      %3326 = vmatmul.mubr.bf16.gmra.mrb[0].mxu0 %v3209
      %v3327 = vpop.f32.mrb[0].mxu0
      %v3328 = vadd.f32 %v3169, %v3327
      %v3329 = vpop.f32.mrb[0].mxu0
      %v3330 = vadd.f32 %v3169, %v3329
      %v3331 = vpop.f32.mrb[0].mxu0
      %v3332 = vadd.f32 %v3173, %v3331
      %v3333 = vpop.f32.mrb[0].mxu0
      %v3334 = vadd.f32 %v3173, %v3333
      %3335 = vmatprep.mubr.bf16.mxu0 0
      %3336 = vmatmul.mubr.bf16.gmra.mrb[0].mxu0 %v3212
      %v3337 = vpop.f32.mrb[0].mxu0
      %v3338 = vadd.f32 %v3177, %v3337
      %v3339 = vpop.f32.mrb[0].mxu0
      %v3340 = vadd.f32 %v3177, %v3339
      %v3341 = vpop.f32.mrb[0].mxu0
      %v3342 = vadd.f32 %v3181, %v3341
      %v3343 = vpop.f32.mrb[0].mxu0
      %v3344 = vadd.f32 %v3181, %v3343
      %3345 = vmatprep.mubr.bf16.mxu0 0
      %3346 = vmatmul.mubr.bf16.gmra.mrb[0].mxu0 %v3215
      %v3347 = vpop.f32.mrb[0].mxu0
      %v3348 = vadd.f32 %v3185, %v3347
      %v3349 = vpop.f32.mrb[0].mxu0
      %v3350 = vadd.f32 %v3185, %v3349
      %v3351 = vpop.f32.mrb[0].mxu0
      %v3352 = vadd.f32 %v3189, %v3351
      %v3353 = vpop.f32.mrb[0].mxu0
      %v3354 = vadd.f32 %v3189, %v3353
      %3355 = vmatprep.mubr.bf16.mxu0 0
      %3356 = vmatmul.mubr.bf16.gmra.mrb[0].mxu0 %v3218
      %v3357 = vpop.f32.mrb[0].mxu0
      %v3358 = vadd.f32 %v3193, %v3357
      %v3359 = vpop.f32.mrb[0].mxu0
      %v3360 = vadd.f32 %v3193, %v3359
      %v3361 = vpop.f32.mrb[0].mxu0
      %v3362 = vadd.f32 %v3197, %v3361
      %v3363 = vpop.f32.mrb[0].mxu0
      %v3364 = vadd.f32 %v3197, %v3363
      %3365 = vdwg.mxu0
      %v3366 = vmax.f32 %v3255, 0.0
      %v3367 = vmax.f32 %v3257, 0.0
      %v3368 = vmax.f32 %v3328, 0.0
      %v3369 = vmax.f32 %v3330, 0.0
      %v3370 = vmax.f32 %v3259, 0.0
      %v3371 = vmax.f32 %v3261, 0.0
      %v3372 = vmax.f32 %v3332, 0.0
      %v3373 = vmax.f32 %v3334, 0.0
      %v3374 = vmax.f32 %v3265, 0.0
      %v3375 = vmax.f32 %v3267, 0.0
      %v3376 = vmax.f32 %v3338, 0.0
      %v3377 = vmax.f32 %v3340, 0.0
      %v3378 = vmax.f32 %v3269, 0.0
      %v3379 = vmax.f32 %v3271, 0.0
      %v3380 = vmax.f32 %v3342, 0.0
      %v3381 = vmax.f32 %v3344, 0.0
      %v3382 = vmax.f32 %v3275, 0.0
      %v3383 = vmax.f32 %v3277, 0.0
      %v3384 = vmax.f32 %v3348, 0.0
      %v3385 = vmax.f32 %v3350, 0.0
      %v3386 = vmax.f32 %v3279, 0.0
      %v3387 = vmax.f32 %v3281, 0.0
      %v3388 = vmax.f32 %v3352, 0.0
      %v3389 = vmax.f32 %v3354, 0.0
      %v3390 = vmax.f32 %v3285, 0.0
      %v3391 = vmax.f32 %v3287, 0.0
      %v3392 = vmax.f32 %v3358, 0.0
      %v3393 = vmax.f32 %v3360, 0.0
      %v3394 = vmax.f32 %v3289, 0.0
      %v3395 = vmax.f32 %v3291, 0.0
      %v3396 = vmax.f32 %v3362, 0.0
      %v3397 = vmax.f32 %v3364, 0.0
      %v3398 = vpack.c.bf16 %v3370, %v3366
      %v3399 = vpack.c.bf16 %v3371, %v3367
      %v3400 = vpack.c.bf16 %v3372, %v3368
      %v3401 = vpack.c.bf16 %v3373, %v3369
      %v3402 = vpack.c.bf16 %v3378, %v3374
      %v3403 = vpack.c.bf16 %v3379, %v3375
      %v3404 = vpack.c.bf16 %v3380, %v3376
      %v3405 = vpack.c.bf16 %v3381, %v3377
      %v3406 = vpack.c.bf16 %v3386, %v3382
      %v3407 = vpack.c.bf16 %v3387, %v3383
      %v3408 = vpack.c.bf16 %v3388, %v3384
      %v3409 = vpack.c.bf16 %v3389, %v3385
      %v3410 = vpack.c.bf16 %v3394, %v3390
      %v3411 = vpack.c.bf16 %v3395, %v3391
      %v3412 = vpack.c.bf16 %v3396, %v3392
      %v3413 = vpack.c.bf16 %v3397, %v3393
      %3414 = vset.pattern.permute.xlu0 2
      %3415 = vperm.xlu0 %3414, %v196
      %v3416 = vpop.permute.xlu0 %3415
      %3418 = vset.pattern.permute.xlu0 2
      %3419 = vperm.xlu0 %3418, %v197
      %v3420 = vpop.permute.xlu0 %3419
      %3422 = vset.pattern.permute.xlu0 2
      %3423 = vperm.xlu0 %3422, %v198
      %v3424 = vpop.permute.xlu0 %3423
      %3426 = vset.pattern.permute.xlu0 2
      %3427 = vperm.xlu0 %3426, %v199
      %v3428 = vpop.permute.xlu0 %3427
      %3430 = vset.pattern.permute.xlu0 2
      %3431 = vperm.xlu0 %3430, %v200
      %v3432 = vpop.permute.xlu0 %3431
      %3434 = vset.pattern.permute.xlu0 2
      %3435 = vperm.xlu0 %3434, %v201
      %v3436 = vpop.permute.xlu0 %3435
      %3438 = vset.pattern.permute.xlu0 2
      %3439 = vperm.xlu0 %3438, %v202
      %v3440 = vpop.permute.xlu0 %3439
      %3442 = vset.pattern.permute.xlu0 2
      %3443 = vperm.xlu0 %3442, %v203
      %v3444 = vpop.permute.xlu0 %3443
      %v3446 = vunpack.c.h.b16 %v175
      %v3447 = vunpack.c.h.b16 %v178
      %v3448 = vunpack.c.h.b16 %v181
      %v3449 = vunpack.c.h.b16 %v184
      %v3450 = vunpack.c.h.b16 %v187
      %v3451 = vunpack.c.h.b16 %v189
      %v3452 = vunpack.c.h.b16 %v191
      %v3453 = vunpack.c.h.b16 %v193
      %v3454 = vpack.c.b16 %v3447, %v3446
      %v3455 = vpack.c.b16 %v3449, %v3448
      %v3456 = vpack.c.b16 %v3451, %v3450
      %v3457 = vpack.c.b16 %v3453, %v3452
      %3458 = vrot.lane.b32.xlu0 %v2941, 37
      %v3459 = vpop.permute.xlu0 %3458
      %3460 = vrot.lane.b32.xlu0 %v3454, 37
      %v3461 = vpop.permute.xlu0 %3460
      %3462 = vrot.lane.b32.xlu0 %v2942, 37
      %v3463 = vpop.permute.xlu0 %3462
      %3464 = vrot.lane.b32.xlu0 %v3455, 37
      %v3465 = vpop.permute.xlu0 %3464
      %3466 = vrot.lane.b32.xlu0 %v2943, 37
      %v3467 = vpop.permute.xlu0 %3466
      %3468 = vrot.lane.b32.xlu0 %v3456, 37
      %v3469 = vpop.permute.xlu0 %3468
      %3470 = vrot.lane.b32.xlu0 %v2944, 37
      %v3471 = vpop.permute.xlu0 %3470
      %3472 = vrot.lane.b32.xlu0 %v3457, 37
      %v3473 = vpop.permute.xlu0 %3472
      %vm3474 = vcmask 302080
      %v3475 = vsel %vm3474, %v3459, %v3461
      %v3476 = vsel %vm3474, %v3463, %v3465
      %v3477 = vsel %vm3474, %v3467, %v3469
      %v3478 = vsel %vm3474, %v3471, %v3473
      %v3480 = vsel %vm3207, %v3475, 0
      %v3483 = vsel %vm3207, %v3476, 0
      %v3486 = vsel %vm3207, %v3477, 0
      %v3489 = vsel %vm3207, %v3478, 0
      %3491 = vmatprep.subr.bf16.mxu0 %v3399
      %3492 = vmatpush1.bf16.msra.mxu0 %v3398
      %3493 = vmatprep.subr.bf16.mxu0 %v3403
      %3494 = vmatpush1.bf16.msra.mxu0 %v3402
      %3495 = vmatprep.subr.bf16.mxu0 %v3407
      %3496 = vmatpush1.bf16.msra.mxu0 %v3406
      %3497 = vmatprep.subr.bf16.mxu0 %v3411
      %3498 = vmatpush1.bf16.msra.mxu0 %v3410
      %3499 = vmatprep.subr.bf16.mxu0 0
      %3500 = vmatpush1.bf16.msra.mxu0 0
      %3501 = vmatprep.subr.bf16.mxu0 0
      %3502 = vmatpush1.bf16.msra.mxu0 0
      %3503 = vmatprep.subr.bf16.mxu0 0
      %3504 = vmatpush1.bf16.msra.mxu0 0
      %3505 = vmatprep.subr.bf16.mxu0 0
      %3506 = vmatpush1.bf16.msra.mxu0 0
      %3507 = vmatprep.subr.bf16.mxu0 0
      %3508 = vmatpush1.bf16.msra.mxu0 0
      %3509 = vmatprep.subr.bf16.mxu0 0
      %3510 = vmatpush1.bf16.msra.mxu0 0
      %3511 = vmatprep.subr.bf16.mxu0 0
      %3512 = vmatpush1.bf16.msra.mxu0 0
      %3513 = vmatprep.subr.bf16.mxu0 0
      %3514 = vmatpush1.bf16.msra.mxu0 0
      %3515 = vmatprep.subr.bf16.mxu0 0
      %3516 = vmatpush1.bf16.msra.mxu0 0
      %3517 = vmatprep.subr.bf16.mxu0 0
      %3518 = vmatpush1.bf16.msra.mxu0 0
      %3519 = vmatprep.subr.bf16.mxu0 0
      %3520 = vmatpush1.bf16.msra.mxu0 0
      %3521 = vmatprep.subr.bf16.mxu0 0
      %3522 = vmatpush1.bf16.msra.mxu0 0
      %3523 = vmatprep.mubr.bf16.mxu0 0
      %3524 = vmatmul.mubr.bf16.gmra.mrb[0].mxu0 %v3480
      %v3525 = vpop.f32.mrb[0].mxu0
      %v3526 = vadd.f32 %v3416, %v3525
      %v3527 = vpop.f32.mrb[0].mxu0
      %v3528 = vadd.f32 %v3416, %v3527
      %v3529 = vpop.f32.mrb[0].mxu0
      %v3530 = vadd.f32 %v3420, %v3529
      %v3531 = vpop.f32.mrb[0].mxu0
      %v3532 = vadd.f32 %v3420, %v3531
      %3533 = vmatprep.mubr.bf16.mxu0 0
      %3534 = vmatmul.mubr.bf16.gmra.mrb[0].mxu0 %v3483
      %v3535 = vpop.f32.mrb[0].mxu0
      %v3536 = vadd.f32 %v3424, %v3535
      %v3537 = vpop.f32.mrb[0].mxu0
      %v3538 = vadd.f32 %v3424, %v3537
      %v3539 = vpop.f32.mrb[0].mxu0
      %v3540 = vadd.f32 %v3428, %v3539
      %v3541 = vpop.f32.mrb[0].mxu0
      %v3542 = vadd.f32 %v3428, %v3541
      %3543 = vmatprep.mubr.bf16.mxu0 0
      %3544 = vmatmul.mubr.bf16.gmra.mrb[0].mxu0 %v3486
      %v3545 = vpop.f32.mrb[0].mxu0
      %v3546 = vadd.f32 %v3432, %v3545
      %v3547 = vpop.f32.mrb[0].mxu0
      %v3548 = vadd.f32 %v3432, %v3547
      %v3549 = vpop.f32.mrb[0].mxu0
      %v3550 = vadd.f32 %v3436, %v3549
      %v3551 = vpop.f32.mrb[0].mxu0
      %v3552 = vadd.f32 %v3436, %v3551
      %3553 = vmatprep.mubr.bf16.mxu0 0
      %3554 = vmatmul.mubr.bf16.gmra.mrb[0].mxu0 %v3489
      %v3555 = vpop.f32.mrb[0].mxu0
      %v3556 = vadd.f32 %v3440, %v3555
      %v3557 = vpop.f32.mrb[0].mxu0
      %v3558 = vadd.f32 %v3440, %v3557
      %v3559 = vpop.f32.mrb[0].mxu0
      %v3560 = vadd.f32 %v3444, %v3559
      %v3561 = vpop.f32.mrb[0].mxu0
      %v3562 = vadd.f32 %v3444, %v3561
      %3563 = vdwg.mxu0
      %3564 = vmatprep.subr.bf16.mxu0 %v3401
      %3565 = vmatpush1.bf16.msra.mxu0 %v3400
      %3566 = vmatprep.subr.bf16.mxu0 %v3405
      %3567 = vmatpush1.bf16.msra.mxu0 %v3404
      %3568 = vmatprep.subr.bf16.mxu0 %v3409
      %3569 = vmatpush1.bf16.msra.mxu0 %v3408
      %3570 = vmatprep.subr.bf16.mxu0 %v3413
      %3571 = vmatpush1.bf16.msra.mxu0 %v3412
      %3572 = vmatprep.subr.bf16.mxu0 0
      %3573 = vmatpush1.bf16.msra.mxu0 0
      %3574 = vmatprep.subr.bf16.mxu0 0
      %3575 = vmatpush1.bf16.msra.mxu0 0
      %3576 = vmatprep.subr.bf16.mxu0 0
      %3577 = vmatpush1.bf16.msra.mxu0 0
      %3578 = vmatprep.subr.bf16.mxu0 0
      %3579 = vmatpush1.bf16.msra.mxu0 0
      %3580 = vmatprep.subr.bf16.mxu0 0
      %3581 = vmatpush1.bf16.msra.mxu0 0
      %3582 = vmatprep.subr.bf16.mxu0 0
      %3583 = vmatpush1.bf16.msra.mxu0 0
      %3584 = vmatprep.subr.bf16.mxu0 0
      %3585 = vmatpush1.bf16.msra.mxu0 0
      %3586 = vmatprep.subr.bf16.mxu0 0
      %3587 = vmatpush1.bf16.msra.mxu0 0
      %3588 = vmatprep.subr.bf16.mxu0 0
      %3589 = vmatpush1.bf16.msra.mxu0 0
      %3590 = vmatprep.subr.bf16.mxu0 0
      %3591 = vmatpush1.bf16.msra.mxu0 0
      %3592 = vmatprep.subr.bf16.mxu0 0
      %3593 = vmatpush1.bf16.msra.mxu0 0
      %3594 = vmatprep.subr.bf16.mxu0 0
      %3595 = vmatpush1.bf16.msra.mxu0 0
      %3596 = vmatprep.mubr.bf16.mxu0 0
      %3597 = vmatmul.mubr.bf16.gmra.mrb[0].mxu0 %v3480
      %v3598 = vpop.f32.mrb[0].mxu0
      %v3599 = vadd.f32 %v3416, %v3598
      %v3600 = vpop.f32.mrb[0].mxu0
      %v3601 = vadd.f32 %v3416, %v3600
      %v3602 = vpop.f32.mrb[0].mxu0
      %v3603 = vadd.f32 %v3420, %v3602
      %v3604 = vpop.f32.mrb[0].mxu0
      %v3605 = vadd.f32 %v3420, %v3604
      %3606 = vmatprep.mubr.bf16.mxu0 0
      %3607 = vmatmul.mubr.bf16.gmra.mrb[0].mxu0 %v3483
      %v3608 = vpop.f32.mrb[0].mxu0
      %v3609 = vadd.f32 %v3424, %v3608
      %v3610 = vpop.f32.mrb[0].mxu0
      %v3611 = vadd.f32 %v3424, %v3610
      %v3612 = vpop.f32.mrb[0].mxu0
      %v3613 = vadd.f32 %v3428, %v3612
      %v3614 = vpop.f32.mrb[0].mxu0
      %v3615 = vadd.f32 %v3428, %v3614
      %3616 = vmatprep.mubr.bf16.mxu0 0
      %3617 = vmatmul.mubr.bf16.gmra.mrb[0].mxu0 %v3486
      %v3618 = vpop.f32.mrb[0].mxu0
      %v3619 = vadd.f32 %v3432, %v3618
      %v3620 = vpop.f32.mrb[0].mxu0
      %v3621 = vadd.f32 %v3432, %v3620
      %v3622 = vpop.f32.mrb[0].mxu0
      %v3623 = vadd.f32 %v3436, %v3622
      %v3624 = vpop.f32.mrb[0].mxu0
      %v3625 = vadd.f32 %v3436, %v3624
      %3626 = vmatprep.mubr.bf16.mxu0 0
      %3627 = vmatmul.mubr.bf16.gmra.mrb[0].mxu0 %v3489
      %v3628 = vpop.f32.mrb[0].mxu0
      %v3629 = vadd.f32 %v3440, %v3628
      %v3630 = vpop.f32.mrb[0].mxu0
      %v3631 = vadd.f32 %v3440, %v3630
      %v3632 = vpop.f32.mrb[0].mxu0
      %v3633 = vadd.f32 %v3444, %v3632
      %v3634 = vpop.f32.mrb[0].mxu0
      %v3635 = vadd.f32 %v3444, %v3634
      %3636 = vdwg.mxu0
      %v3637 = vmax.f32 %v3526, 0.0
      %v3638 = vmax.f32 %v3528, 0.0
      %v3639 = vmax.f32 %v3599, 0.0
      %v3640 = vmax.f32 %v3601, 0.0
      %v3641 = vmax.f32 %v3530, 0.0
      %v3642 = vmax.f32 %v3532, 0.0
      %v3643 = vmax.f32 %v3603, 0.0
      %v3644 = vmax.f32 %v3605, 0.0
      %v3645 = vmax.f32 %v3536, 0.0
      %v3646 = vmax.f32 %v3538, 0.0
      %v3647 = vmax.f32 %v3609, 0.0
      %v3648 = vmax.f32 %v3611, 0.0
      %v3649 = vmax.f32 %v3540, 0.0
      %v3650 = vmax.f32 %v3542, 0.0
      %v3651 = vmax.f32 %v3613, 0.0
      %v3652 = vmax.f32 %v3615, 0.0
      %v3653 = vmax.f32 %v3546, 0.0
      %v3654 = vmax.f32 %v3548, 0.0
      %v3655 = vmax.f32 %v3619, 0.0
      %v3656 = vmax.f32 %v3621, 0.0
      %v3657 = vmax.f32 %v3550, 0.0
      %v3658 = vmax.f32 %v3552, 0.0
      %v3659 = vmax.f32 %v3623, 0.0
      %v3660 = vmax.f32 %v3625, 0.0
      %v3661 = vmax.f32 %v3556, 0.0
      %v3662 = vmax.f32 %v3558, 0.0
      %v3663 = vmax.f32 %v3629, 0.0
      %v3664 = vmax.f32 %v3631, 0.0
      %v3665 = vmax.f32 %v3560, 0.0
      %v3666 = vmax.f32 %v3562, 0.0
      %v3667 = vmax.f32 %v3633, 0.0
      %v3668 = vmax.f32 %v3635, 0.0
      %v3669 = vpack.c.bf16 %v3641, %v3637
      %v3670 = vpack.c.bf16 %v3642, %v3638
      %v3671 = vpack.c.bf16 %v3643, %v3639
      %v3672 = vpack.c.bf16 %v3644, %v3640
      %v3673 = vpack.c.bf16 %v3649, %v3645
      %v3674 = vpack.c.bf16 %v3650, %v3646
      %v3675 = vpack.c.bf16 %v3651, %v3647
      %v3676 = vpack.c.bf16 %v3652, %v3648
      %v3677 = vpack.c.bf16 %v3657, %v3653
      %v3678 = vpack.c.bf16 %v3658, %v3654
      %v3679 = vpack.c.bf16 %v3659, %v3655
      %v3680 = vpack.c.bf16 %v3660, %v3656
      %v3681 = vpack.c.bf16 %v3665, %v3661
      %v3682 = vpack.c.bf16 %v3666, %v3662
      %v3683 = vpack.c.bf16 %v3667, %v3663
      %v3684 = vpack.c.bf16 %v3668, %v3664
      %3685 = vset.pattern.permute.xlu0 3
      %3686 = vperm.xlu0 %3685, %v196
      %v3687 = vpop.permute.xlu0 %3686
      %3689 = vset.pattern.permute.xlu0 3
      %3690 = vperm.xlu0 %3689, %v197
      %v3691 = vpop.permute.xlu0 %3690
      %3693 = vset.pattern.permute.xlu0 3
      %3694 = vperm.xlu0 %3693, %v198
      %v3695 = vpop.permute.xlu0 %3694
      %3697 = vset.pattern.permute.xlu0 3
      %3698 = vperm.xlu0 %3697, %v199
      %v3699 = vpop.permute.xlu0 %3698
      %3701 = vset.pattern.permute.xlu0 3
      %3702 = vperm.xlu0 %3701, %v200
      %v3703 = vpop.permute.xlu0 %3702
      %3705 = vset.pattern.permute.xlu0 3
      %3706 = vperm.xlu0 %3705, %v201
      %v3707 = vpop.permute.xlu0 %3706
      %3709 = vset.pattern.permute.xlu0 3
      %3710 = vperm.xlu0 %3709, %v202
      %v3711 = vpop.permute.xlu0 %3710
      %3713 = vset.pattern.permute.xlu0 3
      %3714 = vperm.xlu0 %3713, %v203
      %v3715 = vpop.permute.xlu0 %3714
      %3717 = vrot.lane.b32.xlu0 %v3454, 101
      %v3718 = vpop.permute.xlu0 %3717
      %3719 = vrot.lane.b32.xlu0 %v3455, 101
      %v3720 = vpop.permute.xlu0 %3719
      %3721 = vrot.lane.b32.xlu0 %v3456, 101
      %v3722 = vpop.permute.xlu0 %3721
      %3723 = vrot.lane.b32.xlu0 %v3457, 101
      %v3724 = vpop.permute.xlu0 %3723
      %v3726 = vsel %vm3207, %v3718, 0
      %v3729 = vsel %vm3207, %v3720, 0
      %v3732 = vsel %vm3207, %v3722, 0
      %v3735 = vsel %vm3207, %v3724, 0
      %3737 = vmatprep.subr.bf16.mxu0 %v3670
      %3738 = vmatpush1.bf16.msra.mxu0 %v3669
      %3739 = vmatprep.subr.bf16.mxu0 %v3674
      %3740 = vmatpush1.bf16.msra.mxu0 %v3673
      %3741 = vmatprep.subr.bf16.mxu0 %v3678
      %3742 = vmatpush1.bf16.msra.mxu0 %v3677
      %3743 = vmatprep.subr.bf16.mxu0 %v3682
      %3744 = vmatpush1.bf16.msra.mxu0 %v3681
      %3745 = vmatprep.subr.bf16.mxu0 0
      %3746 = vmatpush1.bf16.msra.mxu0 0
      %3747 = vmatprep.subr.bf16.mxu0 0
      %3748 = vmatpush1.bf16.msra.mxu0 0
      %3749 = vmatprep.subr.bf16.mxu0 0
      %3750 = vmatpush1.bf16.msra.mxu0 0
      %3751 = vmatprep.subr.bf16.mxu0 0
      %3752 = vmatpush1.bf16.msra.mxu0 0
      %3753 = vmatprep.subr.bf16.mxu0 0
      %3754 = vmatpush1.bf16.msra.mxu0 0
      %3755 = vmatprep.subr.bf16.mxu0 0
      %3756 = vmatpush1.bf16.msra.mxu0 0
      %3757 = vmatprep.subr.bf16.mxu0 0
      %3758 = vmatpush1.bf16.msra.mxu0 0
      %3759 = vmatprep.subr.bf16.mxu0 0
      %3760 = vmatpush1.bf16.msra.mxu0 0
      %3761 = vmatprep.subr.bf16.mxu0 0
      %3762 = vmatpush1.bf16.msra.mxu0 0
      %3763 = vmatprep.subr.bf16.mxu0 0
      %3764 = vmatpush1.bf16.msra.mxu0 0
      %3765 = vmatprep.subr.bf16.mxu0 0
      %3766 = vmatpush1.bf16.msra.mxu0 0
      %3767 = vmatprep.subr.bf16.mxu0 0
      %3768 = vmatpush1.bf16.msra.mxu0 0
      %3769 = vmatprep.mubr.bf16.mxu0 0
      %3770 = vmatmul.mubr.bf16.gmra.mrb[0].mxu0 %v3726
      %v3771 = vpop.f32.mrb[0].mxu0
      %v3772 = vadd.f32 %v3687, %v3771
      %v3773 = vpop.f32.mrb[0].mxu0
      %v3774 = vadd.f32 %v3687, %v3773
      %v3775 = vpop.f32.mrb[0].mxu0
      %v3776 = vadd.f32 %v3691, %v3775
      %v3777 = vpop.f32.mrb[0].mxu0
      %v3778 = vadd.f32 %v3691, %v3777
      %3779 = vmatprep.mubr.bf16.mxu0 0
      %3780 = vmatmul.mubr.bf16.gmra.mrb[0].mxu0 %v3729
      %v3781 = vpop.f32.mrb[0].mxu0
      %v3782 = vadd.f32 %v3695, %v3781
      %v3783 = vpop.f32.mrb[0].mxu0
      %v3784 = vadd.f32 %v3695, %v3783
      %v3785 = vpop.f32.mrb[0].mxu0
      %v3786 = vadd.f32 %v3699, %v3785
      %v3787 = vpop.f32.mrb[0].mxu0
      %v3788 = vadd.f32 %v3699, %v3787
      %3789 = vmatprep.mubr.bf16.mxu0 0
      %3790 = vmatmul.mubr.bf16.gmra.mrb[0].mxu0 %v3732
      %v3791 = vpop.f32.mrb[0].mxu0
      %v3792 = vadd.f32 %v3703, %v3791
      %v3793 = vpop.f32.mrb[0].mxu0
      %v3794 = vadd.f32 %v3703, %v3793
      %v3795 = vpop.f32.mrb[0].mxu0
      %v3796 = vadd.f32 %v3707, %v3795
      %v3797 = vpop.f32.mrb[0].mxu0
      %v3798 = vadd.f32 %v3707, %v3797
      %3799 = vmatprep.mubr.bf16.mxu0 0
      %3800 = vmatmul.mubr.bf16.gmra.mrb[0].mxu0 %v3735
      %v3801 = vpop.f32.mrb[0].mxu0
      %v3802 = vadd.f32 %v3711, %v3801
      %v3803 = vpop.f32.mrb[0].mxu0
      %v3804 = vadd.f32 %v3711, %v3803
      %v3805 = vpop.f32.mrb[0].mxu0
      %v3806 = vadd.f32 %v3715, %v3805
      %v3807 = vpop.f32.mrb[0].mxu0
      %v3808 = vadd.f32 %v3715, %v3807
      %3809 = vdwg.mxu0
      %3810 = vmatprep.subr.bf16.mxu0 %v3672
      %3811 = vmatpush1.bf16.msra.mxu0 %v3671
      %3812 = vmatprep.subr.bf16.mxu0 %v3676
      %3813 = vmatpush1.bf16.msra.mxu0 %v3675
      %3814 = vmatprep.subr.bf16.mxu0 %v3680
      %3815 = vmatpush1.bf16.msra.mxu0 %v3679
      %3816 = vmatprep.subr.bf16.mxu0 %v3684
      %3817 = vmatpush1.bf16.msra.mxu0 %v3683
      %3818 = vmatprep.subr.bf16.mxu0 0
      %3819 = vmatpush1.bf16.msra.mxu0 0
      %3820 = vmatprep.subr.bf16.mxu0 0
      %3821 = vmatpush1.bf16.msra.mxu0 0
      %3822 = vmatprep.subr.bf16.mxu0 0
      %3823 = vmatpush1.bf16.msra.mxu0 0
      %3824 = vmatprep.subr.bf16.mxu0 0
      %3825 = vmatpush1.bf16.msra.mxu0 0
      %3826 = vmatprep.subr.bf16.mxu0 0
      %3827 = vmatpush1.bf16.msra.mxu0 0
      %3828 = vmatprep.subr.bf16.mxu0 0
      %3829 = vmatpush1.bf16.msra.mxu0 0
      %3830 = vmatprep.subr.bf16.mxu0 0
      %3831 = vmatpush1.bf16.msra.mxu0 0
      %3832 = vmatprep.subr.bf16.mxu0 0
      %3833 = vmatpush1.bf16.msra.mxu0 0
      %3834 = vmatprep.subr.bf16.mxu0 0
      %3835 = vmatpush1.bf16.msra.mxu0 0
      %3836 = vmatprep.subr.bf16.mxu0 0
      %3837 = vmatpush1.bf16.msra.mxu0 0
      %3838 = vmatprep.subr.bf16.mxu0 0
      %3839 = vmatpush1.bf16.msra.mxu0 0
      %3840 = vmatprep.subr.bf16.mxu0 0
      %3841 = vmatpush1.bf16.msra.mxu0 0
      %3842 = vmatprep.mubr.bf16.mxu0 0
      %3843 = vmatmul.mubr.bf16.gmra.mrb[0].mxu0 %v3726
      %v3844 = vpop.f32.mrb[0].mxu0
      %v3845 = vadd.f32 %v3687, %v3844
      %v3846 = vpop.f32.mrb[0].mxu0
      %v3847 = vadd.f32 %v3687, %v3846
      %v3848 = vpop.f32.mrb[0].mxu0
      %v3849 = vadd.f32 %v3691, %v3848
      %v3850 = vpop.f32.mrb[0].mxu0
      %v3851 = vadd.f32 %v3691, %v3850
      %3852 = vmatprep.mubr.bf16.mxu0 0
      %3853 = vmatmul.mubr.bf16.gmra.mrb[0].mxu0 %v3729
      %v3854 = vpop.f32.mrb[0].mxu0
      %v3855 = vadd.f32 %v3695, %v3854
      %v3856 = vpop.f32.mrb[0].mxu0
      %v3857 = vadd.f32 %v3695, %v3856
      %v3858 = vpop.f32.mrb[0].mxu0
      %v3859 = vadd.f32 %v3699, %v3858
      %v3860 = vpop.f32.mrb[0].mxu0
      %v3861 = vadd.f32 %v3699, %v3860
      %3862 = vmatprep.mubr.bf16.mxu0 0
      %3863 = vmatmul.mubr.bf16.gmra.mrb[0].mxu0 %v3732
      %v3864 = vpop.f32.mrb[0].mxu0
      %v3865 = vadd.f32 %v3703, %v3864
      %v3866 = vpop.f32.mrb[0].mxu0
      %v3867 = vadd.f32 %v3703, %v3866
      %v3868 = vpop.f32.mrb[0].mxu0
      %v3869 = vadd.f32 %v3707, %v3868
      %v3870 = vpop.f32.mrb[0].mxu0
      %v3871 = vadd.f32 %v3707, %v3870
      %3872 = vmatprep.mubr.bf16.mxu0 0
      %3873 = vmatmul.mubr.bf16.gmra.mrb[0].mxu0 %v3735
      %v3874 = vpop.f32.mrb[0].mxu0
      %v3875 = vadd.f32 %v3711, %v3874
      %v3876 = vpop.f32.mrb[0].mxu0
      %v3877 = vadd.f32 %v3711, %v3876
      %v3878 = vpop.f32.mrb[0].mxu0
      %v3879 = vadd.f32 %v3715, %v3878
      %v3880 = vpop.f32.mrb[0].mxu0
      %v3881 = vadd.f32 %v3715, %v3880
      %3882 = vdwg.mxu0
      %v3883 = vmax.f32 %v3772, 0.0
      %v3884 = vmax.f32 %v3774, 0.0
      %v3885 = vmax.f32 %v3845, 0.0
      %v3886 = vmax.f32 %v3847, 0.0
      %v3887 = vmax.f32 %v3776, 0.0
      %v3888 = vmax.f32 %v3778, 0.0
      %v3889 = vmax.f32 %v3849, 0.0
      %v3890 = vmax.f32 %v3851, 0.0
      %v3891 = vmax.f32 %v3782, 0.0
      %v3892 = vmax.f32 %v3784, 0.0
      %v3893 = vmax.f32 %v3855, 0.0
      %v3894 = vmax.f32 %v3857, 0.0
      %v3895 = vmax.f32 %v3786, 0.0
      %v3896 = vmax.f32 %v3788, 0.0
      %v3897 = vmax.f32 %v3859, 0.0
      %v3898 = vmax.f32 %v3861, 0.0
      %v3899 = vmax.f32 %v3792, 0.0
      %v3900 = vmax.f32 %v3794, 0.0
      %v3901 = vmax.f32 %v3865, 0.0
      %v3902 = vmax.f32 %v3867, 0.0
      %v3903 = vmax.f32 %v3796, 0.0
      %v3904 = vmax.f32 %v3798, 0.0
      %v3905 = vmax.f32 %v3869, 0.0
      %v3906 = vmax.f32 %v3871, 0.0
      %v3907 = vmax.f32 %v3802, 0.0
      %v3908 = vmax.f32 %v3804, 0.0
      %v3909 = vmax.f32 %v3875, 0.0
      %v3910 = vmax.f32 %v3877, 0.0
      %v3911 = vmax.f32 %v3806, 0.0
      %v3912 = vmax.f32 %v3808, 0.0
      %v3913 = vmax.f32 %v3879, 0.0
      %v3914 = vmax.f32 %v3881, 0.0
      %v3915 = vpack.c.bf16 %v3887, %v3883
      %v3916 = vpack.c.bf16 %v3888, %v3884
      %v3917 = vpack.c.bf16 %v3889, %v3885
      %v3918 = vpack.c.bf16 %v3890, %v3886
      %v3919 = vpack.c.bf16 %v3895, %v3891
      %v3920 = vpack.c.bf16 %v3896, %v3892
      %v3921 = vpack.c.bf16 %v3897, %v3893
      %v3922 = vpack.c.bf16 %v3898, %v3894
      %v3923 = vpack.c.bf16 %v3903, %v3899
      %v3924 = vpack.c.bf16 %v3904, %v3900
      %v3925 = vpack.c.bf16 %v3905, %v3901
      %v3926 = vpack.c.bf16 %v3906, %v3902
      %v3927 = vpack.c.bf16 %v3911, %v3907
      %v3928 = vpack.c.bf16 %v3912, %v3908
      %v3929 = vpack.c.bf16 %v3913, %v3909
      %v3930 = vpack.c.bf16 %v3914, %v3910
      %3931 = vset.pattern.permute.xlu0 4
      %3932 = vperm.xlu0 %3931, %v196
      %v3933 = vpop.permute.xlu0 %3932
      %3935 = vset.pattern.permute.xlu0 4
      %3936 = vperm.xlu0 %3935, %v197
      %v3937 = vpop.permute.xlu0 %3936
      %3939 = vset.pattern.permute.xlu0 4
      %3940 = vperm.xlu0 %3939, %v198
      %v3941 = vpop.permute.xlu0 %3940
      %3943 = vset.pattern.permute.xlu0 4
      %3944 = vperm.xlu0 %3943, %v199
      %v3945 = vpop.permute.xlu0 %3944
      %3947 = vset.pattern.permute.xlu0 4
      %3948 = vperm.xlu0 %3947, %v200
      %v3949 = vpop.permute.xlu0 %3948
      %3951 = vset.pattern.permute.xlu0 4
      %3952 = vperm.xlu0 %3951, %v201
      %v3953 = vpop.permute.xlu0 %3952
      %3955 = vset.pattern.permute.xlu0 4
      %3956 = vperm.xlu0 %3955, %v202
      %v3957 = vpop.permute.xlu0 %3956
      %3959 = vset.pattern.permute.xlu0 4
      %3960 = vperm.xlu0 %3959, %v203
      %v3961 = vpop.permute.xlu0 %3960
      %v3971 = vunpack.c.l.b16 %v176
      %v3972 = vunpack.c.l.b16 %v179
      %v3973 = vunpack.c.l.b16 %v182
      %v3974 = vunpack.c.l.b16 %v185
      %v3975 = vunpack.c.l.b16 %v188
      %v3976 = vunpack.c.l.b16 %v190
      %v3977 = vunpack.c.l.b16 %v192
      %v3978 = vunpack.c.l.b16 %v194
      %v3979 = vpack.c.b16 %v3972, %v3971
      %v3980 = vpack.c.b16 %v3974, %v3973
      %v3981 = vpack.c.b16 %v3976, %v3975
      %v3982 = vpack.c.b16 %v3978, %v3977
      %3983 = vrot.lane.b32.xlu0 %v3979, 37
      %v3984 = vpop.permute.xlu0 %3983
      %3985 = vrot.lane.b32.xlu0 %v3980, 37
      %v3986 = vpop.permute.xlu0 %3985
      %3987 = vrot.lane.b32.xlu0 %v3981, 37
      %v3988 = vpop.permute.xlu0 %3987
      %3989 = vrot.lane.b32.xlu0 %v3982, 37
      %v3990 = vpop.permute.xlu0 %3989
      %v3991 = vsel %vm3474, %v3461, %v3984
      %v3992 = vsel %vm3474, %v3465, %v3986
      %v3993 = vsel %vm3474, %v3469, %v3988
      %v3994 = vsel %vm3474, %v3473, %v3990
      %v3996 = vsel %vm3207, %v3991, 0
      %v3999 = vsel %vm3207, %v3992, 0
      %v4002 = vsel %vm3207, %v3993, 0
      %v4005 = vsel %vm3207, %v3994, 0
      %4007 = vmatprep.subr.bf16.mxu0 %v3916
      %4008 = vmatpush1.bf16.msra.mxu0 %v3915
      %4009 = vmatprep.subr.bf16.mxu0 %v3920
      %4010 = vmatpush1.bf16.msra.mxu0 %v3919
      %4011 = vmatprep.subr.bf16.mxu0 %v3924
      %4012 = vmatpush1.bf16.msra.mxu0 %v3923
      %4013 = vmatprep.subr.bf16.mxu0 %v3928
      %4014 = vmatpush1.bf16.msra.mxu0 %v3927
      %4015 = vmatprep.subr.bf16.mxu0 0
      %4016 = vmatpush1.bf16.msra.mxu0 0
      %4017 = vmatprep.subr.bf16.mxu0 0
      %4018 = vmatpush1.bf16.msra.mxu0 0
      %4019 = vmatprep.subr.bf16.mxu0 0
      %4020 = vmatpush1.bf16.msra.mxu0 0
      %4021 = vmatprep.subr.bf16.mxu0 0
      %4022 = vmatpush1.bf16.msra.mxu0 0
      %4023 = vmatprep.subr.bf16.mxu0 0
      %4024 = vmatpush1.bf16.msra.mxu0 0
      %4025 = vmatprep.subr.bf16.mxu0 0
      %4026 = vmatpush1.bf16.msra.mxu0 0
      %4027 = vmatprep.subr.bf16.mxu0 0
      %4028 = vmatpush1.bf16.msra.mxu0 0
      %4029 = vmatprep.subr.bf16.mxu0 0
      %4030 = vmatpush1.bf16.msra.mxu0 0
      %4031 = vmatprep.subr.bf16.mxu0 0
      %4032 = vmatpush1.bf16.msra.mxu0 0
      %4033 = vmatprep.subr.bf16.mxu0 0
      %4034 = vmatpush1.bf16.msra.mxu0 0
      %4035 = vmatprep.subr.bf16.mxu0 0
      %4036 = vmatpush1.bf16.msra.mxu0 0
      %4037 = vmatprep.subr.bf16.mxu0 0
      %4038 = vmatpush1.bf16.msra.mxu0 0
      %4039 = vmatprep.mubr.bf16.mxu0 0
      %4040 = vmatmul.mubr.bf16.gmra.mrb[0].mxu0 %v3996
      %v4041 = vpop.f32.mrb[0].mxu0
      %v4042 = vadd.f32 %v3933, %v4041
      %v4043 = vpop.f32.mrb[0].mxu0
      %v4044 = vadd.f32 %v3933, %v4043
      %v4045 = vpop.f32.mrb[0].mxu0
      %v4046 = vadd.f32 %v3937, %v4045
      %v4047 = vpop.f32.mrb[0].mxu0
      %v4048 = vadd.f32 %v3937, %v4047
      %4049 = vmatprep.mubr.bf16.mxu0 0
      %4050 = vmatmul.mubr.bf16.gmra.mrb[0].mxu0 %v3999
      %v4051 = vpop.f32.mrb[0].mxu0
      %v4052 = vadd.f32 %v3941, %v4051
      %v4053 = vpop.f32.mrb[0].mxu0
      %v4054 = vadd.f32 %v3941, %v4053
      %v4055 = vpop.f32.mrb[0].mxu0
      %v4056 = vadd.f32 %v3945, %v4055
      %v4057 = vpop.f32.mrb[0].mxu0
      %v4058 = vadd.f32 %v3945, %v4057
      %4059 = vmatprep.mubr.bf16.mxu0 0
      %4060 = vmatmul.mubr.bf16.gmra.mrb[0].mxu0 %v4002
      %v4061 = vpop.f32.mrb[0].mxu0
      %v4062 = vadd.f32 %v3949, %v4061
      %v4063 = vpop.f32.mrb[0].mxu0
      %v4064 = vadd.f32 %v3949, %v4063
      %v4065 = vpop.f32.mrb[0].mxu0
      %v4066 = vadd.f32 %v3953, %v4065
      %v4067 = vpop.f32.mrb[0].mxu0
      %v4068 = vadd.f32 %v3953, %v4067
      %4069 = vmatprep.mubr.bf16.mxu0 0
      %4070 = vmatmul.mubr.bf16.gmra.mrb[0].mxu0 %v4005
      %v4071 = vpop.f32.mrb[0].mxu0
      %v4072 = vadd.f32 %v3957, %v4071
      %v4073 = vpop.f32.mrb[0].mxu0
      %v4074 = vadd.f32 %v3957, %v4073
      %v4075 = vpop.f32.mrb[0].mxu0
      %v4076 = vadd.f32 %v3961, %v4075
      %v4077 = vpop.f32.mrb[0].mxu0
      %v4078 = vadd.f32 %v3961, %v4077
      %4079 = vdwg.mxu0
      %4080 = vmatprep.subr.bf16.mxu0 %v3918
      %4081 = vmatpush1.bf16.msra.mxu0 %v3917
      %4082 = vmatprep.subr.bf16.mxu0 %v3922
      %4083 = vmatpush1.bf16.msra.mxu0 %v3921
      %4084 = vmatprep.subr.bf16.mxu0 %v3926
      %4085 = vmatpush1.bf16.msra.mxu0 %v3925
      %4086 = vmatprep.subr.bf16.mxu0 %v3930
      %4087 = vmatpush1.bf16.msra.mxu0 %v3929
      %4088 = vmatprep.subr.bf16.mxu0 0
      %4089 = vmatpush1.bf16.msra.mxu0 0
      %4090 = vmatprep.subr.bf16.mxu0 0
      %4091 = vmatpush1.bf16.msra.mxu0 0
      %4092 = vmatprep.subr.bf16.mxu0 0
      %4093 = vmatpush1.bf16.msra.mxu0 0
      %4094 = vmatprep.subr.bf16.mxu0 0
      %4095 = vmatpush1.bf16.msra.mxu0 0
      %4096 = vmatprep.subr.bf16.mxu0 0
      %4097 = vmatpush1.bf16.msra.mxu0 0
      %4098 = vmatprep.subr.bf16.mxu0 0
      %4099 = vmatpush1.bf16.msra.mxu0 0
      %4100 = vmatprep.subr.bf16.mxu0 0
      %4101 = vmatpush1.bf16.msra.mxu0 0
      %4102 = vmatprep.subr.bf16.mxu0 0
      %4103 = vmatpush1.bf16.msra.mxu0 0
      %4104 = vmatprep.subr.bf16.mxu0 0
      %4105 = vmatpush1.bf16.msra.mxu0 0
      %4106 = vmatprep.subr.bf16.mxu0 0
      %4107 = vmatpush1.bf16.msra.mxu0 0
      %4108 = vmatprep.subr.bf16.mxu0 0
      %4109 = vmatpush1.bf16.msra.mxu0 0
      %4110 = vmatprep.subr.bf16.mxu0 0
      %4111 = vmatpush1.bf16.msra.mxu0 0
      %4112 = vmatprep.mubr.bf16.mxu0 0
      %4113 = vmatmul.mubr.bf16.gmra.mrb[0].mxu0 %v3996
      %v4114 = vpop.f32.mrb[0].mxu0
      %v4115 = vadd.f32 %v3933, %v4114
      %v4116 = vpop.f32.mrb[0].mxu0
      %v4117 = vadd.f32 %v3933, %v4116
      %v4118 = vpop.f32.mrb[0].mxu0
      %v4119 = vadd.f32 %v3937, %v4118
      %v4120 = vpop.f32.mrb[0].mxu0
      %v4121 = vadd.f32 %v3937, %v4120
      %4122 = vmatprep.mubr.bf16.mxu0 0
      %4123 = vmatmul.mubr.bf16.gmra.mrb[0].mxu0 %v3999
      %v4124 = vpop.f32.mrb[0].mxu0
      %v4125 = vadd.f32 %v3941, %v4124
      %v4126 = vpop.f32.mrb[0].mxu0
      %v4127 = vadd.f32 %v3941, %v4126
      %v4128 = vpop.f32.mrb[0].mxu0
      %v4129 = vadd.f32 %v3945, %v4128
      %v4130 = vpop.f32.mrb[0].mxu0
      %v4131 = vadd.f32 %v3945, %v4130
      %4132 = vmatprep.mubr.bf16.mxu0 0
      %4133 = vmatmul.mubr.bf16.gmra.mrb[0].mxu0 %v4002
      %v4134 = vpop.f32.mrb[0].mxu0
      %v4135 = vadd.f32 %v3949, %v4134
      %v4136 = vpop.f32.mrb[0].mxu0
      %v4137 = vadd.f32 %v3949, %v4136
      %v4138 = vpop.f32.mrb[0].mxu0
      %v4139 = vadd.f32 %v3953, %v4138
      %v4140 = vpop.f32.mrb[0].mxu0
      %v4141 = vadd.f32 %v3953, %v4140
      %4142 = vmatprep.mubr.bf16.mxu0 0
      %4143 = vmatmul.mubr.bf16.gmra.mrb[0].mxu0 %v4005
      %v4144 = vpop.f32.mrb[0].mxu0
      %v4145 = vadd.f32 %v3957, %v4144
      %v4146 = vpop.f32.mrb[0].mxu0
      %v4147 = vadd.f32 %v3957, %v4146
      %v4148 = vpop.f32.mrb[0].mxu0
      %v4149 = vadd.f32 %v3961, %v4148
      %v4150 = vpop.f32.mrb[0].mxu0
      %v4151 = vadd.f32 %v3961, %v4150
      %4152 = vdwg.mxu0
      %v4153 = vmax.f32 %v4042, 0.0
      %v4154 = vmax.f32 %v4044, 0.0
      %v4155 = vmax.f32 %v4115, 0.0
      %v4156 = vmax.f32 %v4117, 0.0
      %v4157 = vmax.f32 %v4046, 0.0
      %v4158 = vmax.f32 %v4048, 0.0
      %v4159 = vmax.f32 %v4119, 0.0
      %v4160 = vmax.f32 %v4121, 0.0
      %v4161 = vmax.f32 %v4052, 0.0
      %v4162 = vmax.f32 %v4054, 0.0
      %v4163 = vmax.f32 %v4125, 0.0
      %v4164 = vmax.f32 %v4127, 0.0
      %v4165 = vmax.f32 %v4056, 0.0
      %v4166 = vmax.f32 %v4058, 0.0
      %v4167 = vmax.f32 %v4129, 0.0
      %v4168 = vmax.f32 %v4131, 0.0
      %v4169 = vmax.f32 %v4062, 0.0
      %v4170 = vmax.f32 %v4064, 0.0
      %v4171 = vmax.f32 %v4135, 0.0
      %v4172 = vmax.f32 %v4137, 0.0
      %v4173 = vmax.f32 %v4066, 0.0
      %v4174 = vmax.f32 %v4068, 0.0
      %v4175 = vmax.f32 %v4139, 0.0
      %v4176 = vmax.f32 %v4141, 0.0
      %v4177 = vmax.f32 %v4072, 0.0
      %v4178 = vmax.f32 %v4074, 0.0
      %v4179 = vmax.f32 %v4145, 0.0
      %v4180 = vmax.f32 %v4147, 0.0
      %v4181 = vmax.f32 %v4076, 0.0
      %v4182 = vmax.f32 %v4078, 0.0
      %v4183 = vmax.f32 %v4149, 0.0
      %v4184 = vmax.f32 %v4151, 0.0
      %v4185 = vpack.c.bf16 %v4157, %v4153
      %v4186 = vpack.c.bf16 %v4158, %v4154
      %v4187 = vpack.c.bf16 %v4159, %v4155
      %v4188 = vpack.c.bf16 %v4160, %v4156
      %v4189 = vpack.c.bf16 %v4165, %v4161
      %v4190 = vpack.c.bf16 %v4166, %v4162
      %v4191 = vpack.c.bf16 %v4167, %v4163
      %v4192 = vpack.c.bf16 %v4168, %v4164
      %v4193 = vpack.c.bf16 %v4173, %v4169
      %v4194 = vpack.c.bf16 %v4174, %v4170
      %v4195 = vpack.c.bf16 %v4175, %v4171
      %v4196 = vpack.c.bf16 %v4176, %v4172
      %v4197 = vpack.c.bf16 %v4181, %v4177
      %v4198 = vpack.c.bf16 %v4182, %v4178
      %v4199 = vpack.c.bf16 %v4183, %v4179
      %v4200 = vpack.c.bf16 %v4184, %v4180
      %v4202 = vsel %vm2945, %v3984, 0
      %v4205 = vsel %vm2945, %v3986, 0
      %v4208 = vsel %vm2945, %v3988, 0
      %v4211 = vsel %vm2945, %v3990, 0
      %4213 = vmatprep.subr.bf16.mxu0 %v1998
      %4214 = vmatpush1.bf16.msra.mxu0 %v1997
      %4215 = vmatprep.subr.bf16.mxu0 %v2965
      %4216 = vmatpush1.bf16.msra.mxu0 %v2962
      %4217 = vmatprep.subr.bf16.mxu0 0
      %4218 = vmatpush1.bf16.msra.mxu0 0
      %4219 = vmatprep.subr.bf16.mxu0 0
      %4220 = vmatpush1.bf16.msra.mxu0 0
      %4221 = vmatprep.subr.bf16.mxu0 0
      %4222 = vmatpush1.bf16.msra.mxu0 0
      %4223 = vmatprep.subr.bf16.mxu0 0
      %4224 = vmatpush1.bf16.msra.mxu0 0
      %4225 = vmatprep.subr.bf16.mxu0 0
      %4226 = vmatpush1.bf16.msra.mxu0 0
      %4227 = vmatprep.subr.bf16.mxu0 0
      %4228 = vmatpush1.bf16.msra.mxu0 0
      %4229 = vmatprep.subr.bf16.mxu0 0
      %4230 = vmatpush1.bf16.msra.mxu0 0
      %4231 = vmatprep.subr.bf16.mxu0 0
      %4232 = vmatpush1.bf16.msra.mxu0 0
      %4233 = vmatprep.subr.bf16.mxu0 0
      %4234 = vmatpush1.bf16.msra.mxu0 0
      %4235 = vmatprep.subr.bf16.mxu0 0
      %4236 = vmatpush1.bf16.msra.mxu0 0
      %4237 = vmatprep.subr.bf16.mxu0 0
      %4238 = vmatpush1.bf16.msra.mxu0 0
      %4239 = vmatprep.subr.bf16.mxu0 0
      %4240 = vmatpush1.bf16.msra.mxu0 0
      %4241 = vmatprep.subr.bf16.mxu0 0
      %4242 = vmatpush1.bf16.msra.mxu0 0
      %4243 = vmatprep.subr.bf16.mxu0 0
      %4244 = vmatpush1.bf16.msra.mxu0 0
      %4245 = vmatprep.mubr.bf16.mxu0 0
      %4246 = vmatmul.mubr.bf16.gmra.mrb[0].mxu0 %v4202
      %v4247 = vpop.f32.mrb[0].mxu0
      %v4248 = vadd.f32 0.0, %v4247
      %v4249 = vpop.f32.mrb[0].mxu0
      %v4250 = vadd.f32 0.0, %v4249
      %v4251 = vpop.f32.mrb[0].mxu0
      %v4252 = vadd.f32 0.0, %v4251
      %v4253 = vpop.f32.mrb[0].mxu0
      %v4254 = vadd.f32 0.0, %v4253
      %4255 = vmatprep.mubr.bf16.mxu0 0
      %4256 = vmatmul.mubr.bf16.gmra.mrb[0].mxu0 %v4205
      %v4257 = vpop.f32.mrb[0].mxu0
      %v4258 = vadd.f32 0.0, %v4257
      %v4259 = vpop.f32.mrb[0].mxu0
      %v4260 = vadd.f32 0.0, %v4259
      %v4261 = vpop.f32.mrb[0].mxu0
      %v4262 = vadd.f32 0.0, %v4261
      %v4263 = vpop.f32.mrb[0].mxu0
      %v4264 = vadd.f32 0.0, %v4263
      %4265 = vmatprep.mubr.bf16.mxu0 0
      %4266 = vmatmul.mubr.bf16.gmra.mrb[0].mxu0 %v4208
      %v4267 = vpop.f32.mrb[0].mxu0
      %v4268 = vadd.f32 0.0, %v4267
      %v4269 = vpop.f32.mrb[0].mxu0
      %v4270 = vadd.f32 0.0, %v4269
      %v4271 = vpop.f32.mrb[0].mxu0
      %v4272 = vadd.f32 0.0, %v4271
      %v4273 = vpop.f32.mrb[0].mxu0
      %v4274 = vadd.f32 0.0, %v4273
      %4275 = vmatprep.mubr.bf16.mxu0 0
      %4276 = vmatmul.mubr.bf16.gmra.mrb[0].mxu0 %v4211
      %v4277 = vpop.f32.mrb[0].mxu0
      %v4278 = vadd.f32 0.0, %v4277
      %v4279 = vpop.f32.mrb[0].mxu0
      %v4280 = vadd.f32 0.0, %v4279
      %v4281 = vpop.f32.mrb[0].mxu0
      %v4282 = vadd.f32 0.0, %v4281
      %v4283 = vpop.f32.mrb[0].mxu0
      %v4284 = vadd.f32 0.0, %v4283
      %4285 = vdwg.mxu0
      %4286 = vmatprep.subr.bf16.mxu0 %v2000
      %4287 = vmatpush1.bf16.msra.mxu0 %v1999
      %4288 = vmatprep.subr.bf16.mxu0 %v2971
      %4289 = vmatpush1.bf16.msra.mxu0 %v2968
      %4290 = vmatprep.subr.bf16.mxu0 0
      %4291 = vmatpush1.bf16.msra.mxu0 0
      %4292 = vmatprep.subr.bf16.mxu0 0
      %4293 = vmatpush1.bf16.msra.mxu0 0
      %4294 = vmatprep.subr.bf16.mxu0 0
      %4295 = vmatpush1.bf16.msra.mxu0 0
      %4296 = vmatprep.subr.bf16.mxu0 0
      %4297 = vmatpush1.bf16.msra.mxu0 0
      %4298 = vmatprep.subr.bf16.mxu0 0
      %4299 = vmatpush1.bf16.msra.mxu0 0
      %4300 = vmatprep.subr.bf16.mxu0 0
      %4301 = vmatpush1.bf16.msra.mxu0 0
      %4302 = vmatprep.subr.bf16.mxu0 0
      %4303 = vmatpush1.bf16.msra.mxu0 0
      %4304 = vmatprep.subr.bf16.mxu0 0
      %4305 = vmatpush1.bf16.msra.mxu0 0
      %4306 = vmatprep.subr.bf16.mxu0 0
      %4307 = vmatpush1.bf16.msra.mxu0 0
      %4308 = vmatprep.subr.bf16.mxu0 0
      %4309 = vmatpush1.bf16.msra.mxu0 0
      %4310 = vmatprep.subr.bf16.mxu0 0
      %4311 = vmatpush1.bf16.msra.mxu0 0
      %4312 = vmatprep.subr.bf16.mxu0 0
      %4313 = vmatpush1.bf16.msra.mxu0 0
      %4314 = vmatprep.subr.bf16.mxu0 0
      %4315 = vmatpush1.bf16.msra.mxu0 0
      %4316 = vmatprep.subr.bf16.mxu0 0
      %4317 = vmatpush1.bf16.msra.mxu0 0
      %4318 = vmatprep.mubr.bf16.mxu0 0
      %4319 = vmatmul.mubr.bf16.gmra.mrb[0].mxu0 %v4202
      %v4320 = vpop.f32.mrb[0].mxu0
      %v4321 = vadd.f32 0.0, %v4320
      %v4322 = vpop.f32.mrb[0].mxu0
      %v4323 = vadd.f32 0.0, %v4322
      %v4324 = vpop.f32.mrb[0].mxu0
      %v4325 = vadd.f32 0.0, %v4324
      %v4326 = vpop.f32.mrb[0].mxu0
      %v4327 = vadd.f32 0.0, %v4326
      %4328 = vmatprep.mubr.bf16.mxu0 0
      %4329 = vmatmul.mubr.bf16.gmra.mrb[0].mxu0 %v4205
      %v4330 = vpop.f32.mrb[0].mxu0
      %v4331 = vadd.f32 0.0, %v4330
      %v4332 = vpop.f32.mrb[0].mxu0
      %v4333 = vadd.f32 0.0, %v4332
      %v4334 = vpop.f32.mrb[0].mxu0
      %v4335 = vadd.f32 0.0, %v4334
      %v4336 = vpop.f32.mrb[0].mxu0
      %v4337 = vadd.f32 0.0, %v4336
      %4338 = vmatprep.mubr.bf16.mxu0 0
      %4339 = vmatmul.mubr.bf16.gmra.mrb[0].mxu0 %v4208
      %v4340 = vpop.f32.mrb[0].mxu0
      %v4341 = vadd.f32 0.0, %v4340
      %v4342 = vpop.f32.mrb[0].mxu0
      %v4343 = vadd.f32 0.0, %v4342
      %v4344 = vpop.f32.mrb[0].mxu0
      %v4345 = vadd.f32 0.0, %v4344
      %v4346 = vpop.f32.mrb[0].mxu0
      %v4347 = vadd.f32 0.0, %v4346
      %4348 = vmatprep.mubr.bf16.mxu0 0
      %4349 = vmatmul.mubr.bf16.gmra.mrb[0].mxu0 %v4211
      %v4350 = vpop.f32.mrb[0].mxu0
      %v4351 = vadd.f32 0.0, %v4350
      %v4352 = vpop.f32.mrb[0].mxu0
      %v4353 = vadd.f32 0.0, %v4352
      %v4354 = vpop.f32.mrb[0].mxu0
      %v4355 = vadd.f32 0.0, %v4354
      %v4356 = vpop.f32.mrb[0].mxu0
      %v4357 = vadd.f32 0.0, %v4356
      %4358 = vdwg.mxu0
      %4359 = vrot.lane.b32.xlu0 %v3979, 101
      %v4360 = vpop.permute.xlu0 %4359
      %4361 = vrot.lane.b32.xlu0 %v3980, 101
      %v4362 = vpop.permute.xlu0 %4361
      %4363 = vrot.lane.b32.xlu0 %v3981, 101
      %v4364 = vpop.permute.xlu0 %4363
      %4365 = vrot.lane.b32.xlu0 %v3982, 101
      %v4366 = vpop.permute.xlu0 %4365
      %v4368 = vsel %vm3207, %v4360, 0
      %v4371 = vsel %vm3207, %v4362, 0
      %v4374 = vsel %vm3207, %v4364, 0
      %v4377 = vsel %vm3207, %v4366, 0
      %4379 = vmatprep.subr.bf16.mxu0 %v4186
      %4380 = vmatpush1.bf16.msra.mxu0 %v4185
      %4381 = vmatprep.subr.bf16.mxu0 %v4190
      %4382 = vmatpush1.bf16.msra.mxu0 %v4189
      %4383 = vmatprep.subr.bf16.mxu0 %v4194
      %4384 = vmatpush1.bf16.msra.mxu0 %v4193
      %4385 = vmatprep.subr.bf16.mxu0 %v4198
      %4386 = vmatpush1.bf16.msra.mxu0 %v4197
      %4387 = vmatprep.subr.bf16.mxu0 0
      %4388 = vmatpush1.bf16.msra.mxu0 0
      %4389 = vmatprep.subr.bf16.mxu0 0
      %4390 = vmatpush1.bf16.msra.mxu0 0
      %4391 = vmatprep.subr.bf16.mxu0 0
      %4392 = vmatpush1.bf16.msra.mxu0 0
      %4393 = vmatprep.subr.bf16.mxu0 0
      %4394 = vmatpush1.bf16.msra.mxu0 0
      %4395 = vmatprep.subr.bf16.mxu0 0
      %4396 = vmatpush1.bf16.msra.mxu0 0
      %4397 = vmatprep.subr.bf16.mxu0 0
      %4398 = vmatpush1.bf16.msra.mxu0 0
      %4399 = vmatprep.subr.bf16.mxu0 0
      %4400 = vmatpush1.bf16.msra.mxu0 0
      %4401 = vmatprep.subr.bf16.mxu0 0
      %4402 = vmatpush1.bf16.msra.mxu0 0
      %4403 = vmatprep.subr.bf16.mxu0 0
      %4404 = vmatpush1.bf16.msra.mxu0 0
      %4405 = vmatprep.subr.bf16.mxu0 0
      %4406 = vmatpush1.bf16.msra.mxu0 0
      %4407 = vmatprep.subr.bf16.mxu0 0
      %4408 = vmatpush1.bf16.msra.mxu0 0
      %4409 = vmatprep.subr.bf16.mxu0 0
      %4410 = vmatpush1.bf16.msra.mxu0 0
      %4411 = vmatprep.mubr.bf16.mxu0 0
      %4412 = vmatmul.mubr.bf16.gmra.mrb[0].mxu0 %v4368
      %v4413 = vpop.f32.mrb[0].mxu0
      %v4414 = vadd.f32 %v4248, %v4413
      %v4415 = vpop.f32.mrb[0].mxu0
      %v4416 = vadd.f32 %v4250, %v4415
      %v4417 = vpop.f32.mrb[0].mxu0
      %v4418 = vadd.f32 %v4252, %v4417
      %v4419 = vpop.f32.mrb[0].mxu0
      %v4420 = vadd.f32 %v4254, %v4419
      %4421 = vmatprep.mubr.bf16.mxu0 0
      %4422 = vmatmul.mubr.bf16.gmra.mrb[0].mxu0 %v4371
      %v4423 = vpop.f32.mrb[0].mxu0
      %v4424 = vadd.f32 %v4258, %v4423
      %v4425 = vpop.f32.mrb[0].mxu0
      %v4426 = vadd.f32 %v4260, %v4425
      %v4427 = vpop.f32.mrb[0].mxu0
      %v4428 = vadd.f32 %v4262, %v4427
      %v4429 = vpop.f32.mrb[0].mxu0
      %v4430 = vadd.f32 %v4264, %v4429
      %4431 = vmatprep.mubr.bf16.mxu0 0
      %4432 = vmatmul.mubr.bf16.gmra.mrb[0].mxu0 %v4374
      %v4433 = vpop.f32.mrb[0].mxu0
      %v4434 = vadd.f32 %v4268, %v4433
      %v4435 = vpop.f32.mrb[0].mxu0
      %v4436 = vadd.f32 %v4270, %v4435
      %v4437 = vpop.f32.mrb[0].mxu0
      %v4438 = vadd.f32 %v4272, %v4437
      %v4439 = vpop.f32.mrb[0].mxu0
      %v4440 = vadd.f32 %v4274, %v4439
      %4441 = vmatprep.mubr.bf16.mxu0 0
      %4442 = vmatmul.mubr.bf16.gmra.mrb[0].mxu0 %v4377
      %v4443 = vpop.f32.mrb[0].mxu0
      %v4444 = vadd.f32 %v4278, %v4443
      %v4445 = vpop.f32.mrb[0].mxu0
      %v4446 = vadd.f32 %v4280, %v4445
      %v4447 = vpop.f32.mrb[0].mxu0
      %v4448 = vadd.f32 %v4282, %v4447
      %v4449 = vpop.f32.mrb[0].mxu0
      %v4450 = vadd.f32 %v4284, %v4449
      %4451 = vdwg.mxu0
      %4452 = vmatprep.subr.bf16.mxu0 %v4188
      %4453 = vmatpush1.bf16.msra.mxu0 %v4187
      %4454 = vmatprep.subr.bf16.mxu0 %v4192
      %4455 = vmatpush1.bf16.msra.mxu0 %v4191
      %4456 = vmatprep.subr.bf16.mxu0 %v4196
      %4457 = vmatpush1.bf16.msra.mxu0 %v4195
      %4458 = vmatprep.subr.bf16.mxu0 %v4200
      %4459 = vmatpush1.bf16.msra.mxu0 %v4199
      %4460 = vmatprep.subr.bf16.mxu0 0
      %4461 = vmatpush1.bf16.msra.mxu0 0
      %4462 = vmatprep.subr.bf16.mxu0 0
      %4463 = vmatpush1.bf16.msra.mxu0 0
      %4464 = vmatprep.subr.bf16.mxu0 0
      %4465 = vmatpush1.bf16.msra.mxu0 0
      %4466 = vmatprep.subr.bf16.mxu0 0
      %4467 = vmatpush1.bf16.msra.mxu0 0
      %4468 = vmatprep.subr.bf16.mxu0 0
      %4469 = vmatpush1.bf16.msra.mxu0 0
      %4470 = vmatprep.subr.bf16.mxu0 0
      %4471 = vmatpush1.bf16.msra.mxu0 0
      %4472 = vmatprep.subr.bf16.mxu0 0
      %4473 = vmatpush1.bf16.msra.mxu0 0
      %4474 = vmatprep.subr.bf16.mxu0 0
      %4475 = vmatpush1.bf16.msra.mxu0 0
      %4476 = vmatprep.subr.bf16.mxu0 0
      %4477 = vmatpush1.bf16.msra.mxu0 0
      %4478 = vmatprep.subr.bf16.mxu0 0
      %4479 = vmatpush1.bf16.msra.mxu0 0
      %4480 = vmatprep.subr.bf16.mxu0 0
      %4481 = vmatpush1.bf16.msra.mxu0 0
      %4482 = vmatprep.subr.bf16.mxu0 0
      %4483 = vmatpush1.bf16.msra.mxu0 0
      %4484 = vmatprep.mubr.bf16.mxu0 0
      %4485 = vmatmul.mubr.bf16.gmra.mrb[0].mxu0 %v4368
      %v4486 = vpop.f32.mrb[0].mxu0
      %v4487 = vadd.f32 %v4321, %v4486
      %v4488 = vpop.f32.mrb[0].mxu0
      %v4489 = vadd.f32 %v4323, %v4488
      %v4490 = vpop.f32.mrb[0].mxu0
      %v4491 = vadd.f32 %v4325, %v4490
      %v4492 = vpop.f32.mrb[0].mxu0
      %v4493 = vadd.f32 %v4327, %v4492
      %4494 = vmatprep.mubr.bf16.mxu0 0
      %4495 = vmatmul.mubr.bf16.gmra.mrb[0].mxu0 %v4371
      %v4496 = vpop.f32.mrb[0].mxu0
      %v4497 = vadd.f32 %v4331, %v4496
      %v4498 = vpop.f32.mrb[0].mxu0
      %v4499 = vadd.f32 %v4333, %v4498
      %v4500 = vpop.f32.mrb[0].mxu0
      %v4501 = vadd.f32 %v4335, %v4500
      %v4502 = vpop.f32.mrb[0].mxu0
      %v4503 = vadd.f32 %v4337, %v4502
      %4504 = vmatprep.mubr.bf16.mxu0 0
      %4505 = vmatmul.mubr.bf16.gmra.mrb[0].mxu0 %v4374
      %v4506 = vpop.f32.mrb[0].mxu0
      %v4507 = vadd.f32 %v4341, %v4506
      %v4508 = vpop.f32.mrb[0].mxu0
      %v4509 = vadd.f32 %v4343, %v4508
      %v4510 = vpop.f32.mrb[0].mxu0
      %v4511 = vadd.f32 %v4345, %v4510
      %v4512 = vpop.f32.mrb[0].mxu0
      %v4513 = vadd.f32 %v4347, %v4512
      %4514 = vmatprep.mubr.bf16.mxu0 0
      %4515 = vmatmul.mubr.bf16.gmra.mrb[0].mxu0 %v4377
      %v4516 = vpop.f32.mrb[0].mxu0
      %v4517 = vadd.f32 %v4351, %v4516
      %v4518 = vpop.f32.mrb[0].mxu0
      %v4519 = vadd.f32 %v4353, %v4518
      %v4520 = vpop.f32.mrb[0].mxu0
      %v4521 = vadd.f32 %v4355, %v4520
      %v4522 = vpop.f32.mrb[0].mxu0
      %v4523 = vadd.f32 %v4357, %v4522
      %4524 = vdwg.mxu0
      %4525 = vset.pattern.permute.xlu0 5
      %4526 = vperm.xlu0 %4525, %v196
      %v4527 = vpop.permute.xlu0 %4526
      %4529 = vset.pattern.permute.xlu0 5
      %4530 = vperm.xlu0 %4529, %v197
      %v4531 = vpop.permute.xlu0 %4530
      %4533 = vset.pattern.permute.xlu0 5
      %4534 = vperm.xlu0 %4533, %v198
      %v4535 = vpop.permute.xlu0 %4534
      %4537 = vset.pattern.permute.xlu0 5
      %4538 = vperm.xlu0 %4537, %v199
      %v4539 = vpop.permute.xlu0 %4538
      %4541 = vset.pattern.permute.xlu0 5
      %4542 = vperm.xlu0 %4541, %v200
      %v4543 = vpop.permute.xlu0 %4542
      %4545 = vset.pattern.permute.xlu0 5
      %4546 = vperm.xlu0 %4545, %v201
      %v4547 = vpop.permute.xlu0 %4546
      %4549 = vset.pattern.permute.xlu0 5
      %4550 = vperm.xlu0 %4549, %v202
      %v4551 = vpop.permute.xlu0 %4550
      %4553 = vset.pattern.permute.xlu0 5
      %4554 = vperm.xlu0 %4553, %v203
      %v4555 = vpop.permute.xlu0 %4554
      %v4557 = vadd.f32 %v4414, %v4527
      %v4558 = vadd.f32 %v4416, %v4527
      %v4559 = vadd.f32 %v4487, %v4527
      %v4560 = vadd.f32 %v4489, %v4527
      %v4561 = vadd.f32 %v4418, %v4531
      %v4562 = vadd.f32 %v4420, %v4531
      %v4563 = vadd.f32 %v4491, %v4531
      %v4564 = vadd.f32 %v4493, %v4531
      %v4565 = vadd.f32 %v4424, %v4535
      %v4566 = vadd.f32 %v4426, %v4535
      %v4567 = vadd.f32 %v4497, %v4535
      %v4568 = vadd.f32 %v4499, %v4535
      %v4569 = vadd.f32 %v4428, %v4539
      %v4570 = vadd.f32 %v4430, %v4539
      %v4571 = vadd.f32 %v4501, %v4539
      %v4572 = vadd.f32 %v4503, %v4539
      %v4573 = vadd.f32 %v4434, %v4543
      %v4574 = vadd.f32 %v4436, %v4543
      %v4575 = vadd.f32 %v4507, %v4543
      %v4576 = vadd.f32 %v4509, %v4543
      %v4577 = vadd.f32 %v4438, %v4547
      %v4578 = vadd.f32 %v4440, %v4547
      %v4579 = vadd.f32 %v4511, %v4547
      %v4580 = vadd.f32 %v4513, %v4547
      %v4581 = vadd.f32 %v4444, %v4551
      %v4582 = vadd.f32 %v4446, %v4551
      %v4583 = vadd.f32 %v4517, %v4551
      %v4584 = vadd.f32 %v4519, %v4551
      %v4585 = vadd.f32 %v4448, %v4555
      %v4586 = vadd.f32 %v4450, %v4555
      %v4587 = vadd.f32 %v4521, %v4555
      %v4588 = vadd.f32 %v4523, %v4555
      %v4589 = vmax.f32 %v4557, 0.0
      %v4590 = vmax.f32 %v4558, 0.0
      %v4591 = vmax.f32 %v4559, 0.0
      %v4592 = vmax.f32 %v4560, 0.0
      %v4593 = vmax.f32 %v4561, 0.0
      %v4594 = vmax.f32 %v4562, 0.0
      %v4595 = vmax.f32 %v4563, 0.0
      %v4596 = vmax.f32 %v4564, 0.0
      %v4597 = vmax.f32 %v4565, 0.0
      %v4598 = vmax.f32 %v4566, 0.0
      %v4599 = vmax.f32 %v4567, 0.0
      %v4600 = vmax.f32 %v4568, 0.0
      %v4601 = vmax.f32 %v4569, 0.0
      %v4602 = vmax.f32 %v4570, 0.0
      %v4603 = vmax.f32 %v4571, 0.0
      %v4604 = vmax.f32 %v4572, 0.0
      %v4605 = vmax.f32 %v4573, 0.0
      %v4606 = vmax.f32 %v4574, 0.0
      %v4607 = vmax.f32 %v4575, 0.0
      %v4608 = vmax.f32 %v4576, 0.0
      %v4609 = vmax.f32 %v4577, 0.0
      %v4610 = vmax.f32 %v4578, 0.0
      %v4611 = vmax.f32 %v4579, 0.0
      %v4612 = vmax.f32 %v4580, 0.0
      %v4613 = vmax.f32 %v4581, 0.0
      %v4614 = vmax.f32 %v4582, 0.0
      %v4615 = vmax.f32 %v4583, 0.0
      %v4616 = vmax.f32 %v4584, 0.0
      %v4617 = vmax.f32 %v4585, 0.0
      %v4618 = vmax.f32 %v4586, 0.0
      %v4619 = vmax.f32 %v4587, 0.0
      %v4620 = vmax.f32 %v4588, 0.0
      %v4621 = vpack.c.bf16 %v4593, %v4589
      %v4622 = vpack.c.bf16 %v4594, %v4590
      %v4623 = vpack.c.bf16 %v4595, %v4591
      %v4624 = vpack.c.bf16 %v4596, %v4592
      %v4625 = vpack.c.bf16 %v4601, %v4597
      %v4626 = vpack.c.bf16 %v4602, %v4598
      %v4627 = vpack.c.bf16 %v4603, %v4599
      %v4628 = vpack.c.bf16 %v4604, %v4600
      %v4629 = vpack.c.bf16 %v4609, %v4605
      %v4630 = vpack.c.bf16 %v4610, %v4606
      %v4631 = vpack.c.bf16 %v4611, %v4607
      %v4632 = vpack.c.bf16 %v4612, %v4608
      %v4633 = vpack.c.bf16 %v4617, %v4613
      %v4634 = vpack.c.bf16 %v4618, %v4614
      %v4635 = vpack.c.bf16 %v4619, %v4615
      %v4636 = vpack.c.bf16 %v4620, %v4616
      %4637 = vset.pattern.permute.xlu0 6
      %4638 = vperm.xlu0 %4637, %v196
      %v4639 = vpop.permute.xlu0 %4638
      %4641 = vset.pattern.permute.xlu0 6
      %4642 = vperm.xlu0 %4641, %v197
      %v4643 = vpop.permute.xlu0 %4642
      %4645 = vset.pattern.permute.xlu0 6
      %4646 = vperm.xlu0 %4645, %v198
      %v4647 = vpop.permute.xlu0 %4646
      %4649 = vset.pattern.permute.xlu0 6
      %4650 = vperm.xlu0 %4649, %v199
      %v4651 = vpop.permute.xlu0 %4650
      %4653 = vset.pattern.permute.xlu0 6
      %4654 = vperm.xlu0 %4653, %v200
      %v4655 = vpop.permute.xlu0 %4654
      %4657 = vset.pattern.permute.xlu0 6
      %4658 = vperm.xlu0 %4657, %v201
      %v4659 = vpop.permute.xlu0 %4658
      %4661 = vset.pattern.permute.xlu0 6
      %4662 = vperm.xlu0 %4661, %v202
      %v4663 = vpop.permute.xlu0 %4662
      %4665 = vset.pattern.permute.xlu0 6
      %4666 = vperm.xlu0 %4665, %v203
      %v4667 = vpop.permute.xlu0 %4666
      %4670 = vset.pattern.permute.xlu0 6
      %4671 = vperm.xlu0 %4670, %v204
      %v4672 = vpop.permute.xlu0 %4671
      %v4675 = vunpack.c.h.b16 %v176
      %v4676 = vunpack.c.h.b16 %v179
      %v4677 = vunpack.c.h.b16 %v182
      %v4678 = vunpack.c.h.b16 %v185
      %v4679 = vunpack.c.h.b16 %v188
      %v4680 = vunpack.c.h.b16 %v190
      %v4681 = vunpack.c.h.b16 %v192
      %v4682 = vunpack.c.h.b16 %v194
      %v4683 = vunpack.c.l.b16 %v195
      %v4684 = vunpack.c.h.b16 %v195
      %v4685 = vpack.c.b16 %v4676, %v4675
      %v4686 = vpack.c.b16 %v4678, %v4677
      %v4687 = vpack.c.b16 %v4680, %v4679
      %v4688 = vpack.c.b16 %v4682, %v4681
      %v4689 = vpack.c.b16 %v4683, %v4683
      %v4690 = vpack.c.b16 %v4684, %v4684
      %4691 = vrot.lane.b32.xlu0 %v3979, 10
      %v4692 = vpop.permute.xlu0 %4691
      %4693 = vrot.lane.b32.xlu0 %v4685, 10
      %v4694 = vpop.permute.xlu0 %4693
      %4695 = vrot.lane.b32.xlu0 %v3980, 10
      %v4696 = vpop.permute.xlu0 %4695
      %4697 = vrot.lane.b32.xlu0 %v4686, 10
      %v4698 = vpop.permute.xlu0 %4697
      %4699 = vrot.lane.b32.xlu0 %v3981, 10
      %v4700 = vpop.permute.xlu0 %4699
      %4701 = vrot.lane.b32.xlu0 %v4687, 10
      %v4702 = vpop.permute.xlu0 %4701
      %4703 = vrot.lane.b32.xlu0 %v3982, 10
      %v4704 = vpop.permute.xlu0 %4703
      %4705 = vrot.lane.b32.xlu0 %v4688, 10
      %v4706 = vpop.permute.xlu0 %4705
      %4707 = vrot.lane.b32.xlu0 %v4689, 10
      %v4708 = vpop.permute.xlu0 %4707
      %4709 = vrot.lane.b32.xlu0 %v4690, 10
      %v4710 = vpop.permute.xlu0 %4709
      %vm4711 = vcmask 80896
      %v4712 = vsel %vm4711, %v4692, %v4694
      %v4713 = vsel %vm4711, %v4696, %v4698
      %v4714 = vsel %vm4711, %v4700, %v4702
      %v4715 = vsel %vm4711, %v4704, %v4706
      %v4716 = vsel %vm4711, %v4708, %v4710
      %v4718 = vsel %vm3207, %v4712, 0
      %v4721 = vsel %vm3207, %v4713, 0
      %v4724 = vsel %vm3207, %v4714, 0
      %v4727 = vsel %vm3207, %v4715, 0
      %v4730 = vsel %vm3207, %v4716, 0
      %4732 = vmatprep.subr.bf16.mxu0 %v4622
      %4733 = vmatpush1.bf16.msra.mxu0 %v4621
      %4734 = vmatprep.subr.bf16.mxu0 %v4626
      %4735 = vmatpush1.bf16.msra.mxu0 %v4625
      %4736 = vmatprep.subr.bf16.mxu0 %v4630
      %4737 = vmatpush1.bf16.msra.mxu0 %v4629
      %4738 = vmatprep.subr.bf16.mxu0 %v4634
      %4739 = vmatpush1.bf16.msra.mxu0 %v4633
      %4740 = vmatprep.subr.bf16.mxu0 0
      %4741 = vmatpush1.bf16.msra.mxu0 0
      %4742 = vmatprep.subr.bf16.mxu0 0
      %4743 = vmatpush1.bf16.msra.mxu0 0
      %4744 = vmatprep.subr.bf16.mxu0 0
      %4745 = vmatpush1.bf16.msra.mxu0 0
      %4746 = vmatprep.subr.bf16.mxu0 0
      %4747 = vmatpush1.bf16.msra.mxu0 0
      %4748 = vmatprep.subr.bf16.mxu0 0
      %4749 = vmatpush1.bf16.msra.mxu0 0
      %4750 = vmatprep.subr.bf16.mxu0 0
      %4751 = vmatpush1.bf16.msra.mxu0 0
      %4752 = vmatprep.subr.bf16.mxu0 0
      %4753 = vmatpush1.bf16.msra.mxu0 0
      %4754 = vmatprep.subr.bf16.mxu0 0
      %4755 = vmatpush1.bf16.msra.mxu0 0
      %4756 = vmatprep.subr.bf16.mxu0 0
      %4757 = vmatpush1.bf16.msra.mxu0 0
      %4758 = vmatprep.subr.bf16.mxu0 0
      %4759 = vmatpush1.bf16.msra.mxu0 0
      %4760 = vmatprep.subr.bf16.mxu0 0
      %4761 = vmatpush1.bf16.msra.mxu0 0
      %4762 = vmatprep.subr.bf16.mxu0 0
      %4763 = vmatpush1.bf16.msra.mxu0 0
      %4764 = vmatprep.mubr.bf16.mxu0 0
      %4765 = vmatmul.mubr.bf16.gmra.mrb[0].mxu0 %v4718
      %v4766 = vpop.f32.mrb[0].mxu0
      %v4767 = vadd.f32 %v4639, %v4766
      %v4768 = vpop.f32.mrb[0].mxu0
      %v4769 = vadd.f32 %v4639, %v4768
      %v4770 = vpop.f32.mrb[0].mxu0
      %v4771 = vadd.f32 %v4643, %v4770
      %v4772 = vpop.f32.mrb[0].mxu0
      %v4773 = vadd.f32 %v4643, %v4772
      %4774 = vmatprep.mubr.bf16.mxu0 0
      %4775 = vmatmul.mubr.bf16.gmra.mrb[0].mxu0 %v4721
      %v4776 = vpop.f32.mrb[0].mxu0
      %v4777 = vadd.f32 %v4647, %v4776
      %v4778 = vpop.f32.mrb[0].mxu0
      %v4779 = vadd.f32 %v4647, %v4778
      %v4780 = vpop.f32.mrb[0].mxu0
      %v4781 = vadd.f32 %v4651, %v4780
      %v4782 = vpop.f32.mrb[0].mxu0
      %v4783 = vadd.f32 %v4651, %v4782
      %4784 = vmatprep.mubr.bf16.mxu0 0
      %4785 = vmatmul.mubr.bf16.gmra.mrb[0].mxu0 %v4724
      %v4786 = vpop.f32.mrb[0].mxu0
      %v4787 = vadd.f32 %v4655, %v4786
      %v4788 = vpop.f32.mrb[0].mxu0
      %v4789 = vadd.f32 %v4655, %v4788
      %v4790 = vpop.f32.mrb[0].mxu0
      %v4791 = vadd.f32 %v4659, %v4790
      %v4792 = vpop.f32.mrb[0].mxu0
      %v4793 = vadd.f32 %v4659, %v4792
      %4794 = vmatprep.mubr.bf16.mxu0 0
      %4795 = vmatmul.mubr.bf16.gmra.mrb[0].mxu0 %v4727
      %v4796 = vpop.f32.mrb[0].mxu0
      %v4797 = vadd.f32 %v4663, %v4796
      %v4798 = vpop.f32.mrb[0].mxu0
      %v4799 = vadd.f32 %v4663, %v4798
      %v4800 = vpop.f32.mrb[0].mxu0
      %v4801 = vadd.f32 %v4667, %v4800
      %v4802 = vpop.f32.mrb[0].mxu0
      %v4803 = vadd.f32 %v4667, %v4802
      %4804 = vmatprep.mubr.bf16.mxu0 0
      %4805 = vmatmul.mubr.bf16.gmra.mrb[0].mxu0 %v4730
      %v4806 = vpop.f32.mrb[0].mxu0
      %v4807 = vadd.f32 %v4672, %v4806
      %v4808 = vpop.f32.mrb[0].mxu0
      %v4809 = vadd.f32 %v4672, %v4808
      %v4810 = vpop.f32.mrb[0].mxu0
      %v4811 = vpop.f32.mrb[0].mxu0
      %4812 = vdwg.mxu0
      %4813 = vmatprep.subr.bf16.mxu0 %v4624
      %4814 = vmatpush1.bf16.msra.mxu0 %v4623
      %4815 = vmatprep.subr.bf16.mxu0 %v4628
      %4816 = vmatpush1.bf16.msra.mxu0 %v4627
      %4817 = vmatprep.subr.bf16.mxu0 %v4632
      %4818 = vmatpush1.bf16.msra.mxu0 %v4631
      %4819 = vmatprep.subr.bf16.mxu0 %v4636
      %4820 = vmatpush1.bf16.msra.mxu0 %v4635
      %4821 = vmatprep.subr.bf16.mxu0 0
      %4822 = vmatpush1.bf16.msra.mxu0 0
      %4823 = vmatprep.subr.bf16.mxu0 0
      %4824 = vmatpush1.bf16.msra.mxu0 0
      %4825 = vmatprep.subr.bf16.mxu0 0
      %4826 = vmatpush1.bf16.msra.mxu0 0
      %4827 = vmatprep.subr.bf16.mxu0 0
      %4828 = vmatpush1.bf16.msra.mxu0 0
      %4829 = vmatprep.subr.bf16.mxu0 0
      %4830 = vmatpush1.bf16.msra.mxu0 0
      %4831 = vmatprep.subr.bf16.mxu0 0
      %4832 = vmatpush1.bf16.msra.mxu0 0
      %4833 = vmatprep.subr.bf16.mxu0 0
      %4834 = vmatpush1.bf16.msra.mxu0 0
      %4835 = vmatprep.subr.bf16.mxu0 0
      %4836 = vmatpush1.bf16.msra.mxu0 0
      %4837 = vmatprep.subr.bf16.mxu0 0
      %4838 = vmatpush1.bf16.msra.mxu0 0
      %4839 = vmatprep.subr.bf16.mxu0 0
      %4840 = vmatpush1.bf16.msra.mxu0 0
      %4841 = vmatprep.subr.bf16.mxu0 0
      %4842 = vmatpush1.bf16.msra.mxu0 0
      %4843 = vmatprep.subr.bf16.mxu0 0
      %4844 = vmatpush1.bf16.msra.mxu0 0
      %4845 = vmatprep.mubr.bf16.mxu0 0
      %4846 = vmatmul.mubr.bf16.gmra.mrb[0].mxu0 %v4718
      %v4847 = vpop.f32.mrb[0].mxu0
      %v4848 = vadd.f32 %v4639, %v4847
      %v4849 = vpop.f32.mrb[0].mxu0
      %v4850 = vadd.f32 %v4639, %v4849
      %v4851 = vpop.f32.mrb[0].mxu0
      %v4852 = vadd.f32 %v4643, %v4851
      %v4853 = vpop.f32.mrb[0].mxu0
      %v4854 = vadd.f32 %v4643, %v4853
      %4855 = vmatprep.mubr.bf16.mxu0 0
      %4856 = vmatmul.mubr.bf16.gmra.mrb[0].mxu0 %v4721
      %v4857 = vpop.f32.mrb[0].mxu0
      %v4858 = vadd.f32 %v4647, %v4857
      %v4859 = vpop.f32.mrb[0].mxu0
      %v4860 = vadd.f32 %v4647, %v4859
      %v4861 = vpop.f32.mrb[0].mxu0
      %v4862 = vadd.f32 %v4651, %v4861
      %v4863 = vpop.f32.mrb[0].mxu0
      %v4864 = vadd.f32 %v4651, %v4863
      %4865 = vmatprep.mubr.bf16.mxu0 0
      %4866 = vmatmul.mubr.bf16.gmra.mrb[0].mxu0 %v4724
      %v4867 = vpop.f32.mrb[0].mxu0
      %v4868 = vadd.f32 %v4655, %v4867
      %v4869 = vpop.f32.mrb[0].mxu0
      %v4870 = vadd.f32 %v4655, %v4869
      %v4871 = vpop.f32.mrb[0].mxu0
      %v4872 = vadd.f32 %v4659, %v4871
      %v4873 = vpop.f32.mrb[0].mxu0
      %v4874 = vadd.f32 %v4659, %v4873
      %4875 = vmatprep.mubr.bf16.mxu0 0
      %4876 = vmatmul.mubr.bf16.gmra.mrb[0].mxu0 %v4727
      %v4877 = vpop.f32.mrb[0].mxu0
      %v4878 = vadd.f32 %v4663, %v4877
      %v4879 = vpop.f32.mrb[0].mxu0
      %v4880 = vadd.f32 %v4663, %v4879
      %v4881 = vpop.f32.mrb[0].mxu0
      %v4882 = vadd.f32 %v4667, %v4881
      %v4883 = vpop.f32.mrb[0].mxu0
      %v4884 = vadd.f32 %v4667, %v4883
      %4885 = vmatprep.mubr.bf16.mxu0 0
      %4886 = vmatmul.mubr.bf16.gmra.mrb[0].mxu0 %v4730
      %v4887 = vpop.f32.mrb[0].mxu0
      %v4888 = vadd.f32 %v4672, %v4887
      %v4889 = vpop.f32.mrb[0].mxu0
      %v4890 = vadd.f32 %v4672, %v4889
      %v4891 = vpop.f32.mrb[0].mxu0
      %v4892 = vpop.f32.mrb[0].mxu0
      %4893 = vdwg.mxu0
      %v4894 = vpack.c.bf16 %v4771, %v4767
      %v4895 = vpack.c.bf16 %v4773, %v4769
      %v4896 = vpack.c.bf16 %v4852, %v4848
      %v4897 = vpack.c.bf16 %v4854, %v4850
      %v4898 = vpack.c.bf16 %v4781, %v4777
      %v4899 = vpack.c.bf16 %v4783, %v4779
      %v4900 = vpack.c.bf16 %v4862, %v4858
      %v4901 = vpack.c.bf16 %v4864, %v4860
      %v4902 = vpack.c.bf16 %v4791, %v4787
      %v4903 = vpack.c.bf16 %v4793, %v4789
      %v4904 = vpack.c.bf16 %v4872, %v4868
      %v4905 = vpack.c.bf16 %v4874, %v4870
      %v4906 = vpack.c.bf16 %v4801, %v4797
      %v4907 = vpack.c.bf16 %v4803, %v4799
      %v4908 = vpack.c.bf16 %v4882, %v4878
      %v4909 = vpack.c.bf16 %v4884, %v4880
      %v4914 = vunpack.c.l.b16 %v177
      %v4915 = vunpack.c.l.b16 %v180
      %v4916 = vunpack.c.l.b16 %v183
      %v4917 = vunpack.c.l.b16 %v186
      %v4918 = vpack.c.b16 %v4915, %v4914
      %v4919 = vpack.c.b16 %v4917, %v4916
      %4920 = vrot.lane.b32.xlu0 %v4918, 10
      %v4921 = vpop.permute.xlu0 %4920
      %4922 = vrot.lane.b32.xlu0 %v4919, 10
      %v4923 = vpop.permute.xlu0 %4922
      %v4924 = vsel %vm4711, %v4694, %v4921
      %v4925 = vsel %vm4711, %v4698, %v4923
      %vm4926 = vcmask 121856
      %v4928 = vsel %vm4926, %v4924, 0
      %v4931 = vsel %vm4926, %v4925, 0
      %vm4933 = vcmask 1047552
      %v4934 = vsel %vm1964, 4294967295, 65535
      %v4935 = vsel %vm4933, %v4934, 0
      %v4937 = vand.u32 %v2881, %v4935
      %v4940 = vand.u32 %v2882, %v4935
      %v4943 = vand.u32 %v2883, %v4935
      %v4946 = vand.u32 %v2884, %v4935
      %4948 = vmatprep.subr.bf16.mxu0 %v4940
      %4949 = vmatpush1.bf16.msra.mxu0 %v4937
      %4950 = vmatprep.subr.bf16.mxu0 0
      %4951 = vmatpush1.bf16.msra.mxu0 0
      %4952 = vmatprep.subr.bf16.mxu0 0
      %4953 = vmatpush1.bf16.msra.mxu0 0
      %4954 = vmatprep.subr.bf16.mxu0 0
      %4955 = vmatpush1.bf16.msra.mxu0 0
      %4956 = vmatprep.subr.bf16.mxu0 0
      %4957 = vmatpush1.bf16.msra.mxu0 0
      %4958 = vmatprep.subr.bf16.mxu0 0
      %4959 = vmatpush1.bf16.msra.mxu0 0
      %4960 = vmatprep.subr.bf16.mxu0 0
      %4961 = vmatpush1.bf16.msra.mxu0 0
      %4962 = vmatprep.subr.bf16.mxu0 0
      %4963 = vmatpush1.bf16.msra.mxu0 0
      %4964 = vmatprep.subr.bf16.mxu0 0
      %4965 = vmatpush1.bf16.msra.mxu0 0
      %4966 = vmatprep.subr.bf16.mxu0 0
      %4967 = vmatpush1.bf16.msra.mxu0 0
      %4968 = vmatprep.subr.bf16.mxu0 0
      %4969 = vmatpush1.bf16.msra.mxu0 0
      %4970 = vmatprep.subr.bf16.mxu0 0
      %4971 = vmatpush1.bf16.msra.mxu0 0
      %4972 = vmatprep.subr.bf16.mxu0 0
      %4973 = vmatpush1.bf16.msra.mxu0 0
      %4974 = vmatprep.subr.bf16.mxu0 0
      %4975 = vmatpush1.bf16.msra.mxu0 0
      %4976 = vmatprep.subr.bf16.mxu0 0
      %4977 = vmatpush1.bf16.msra.mxu0 0
      %4978 = vmatprep.subr.bf16.mxu0 0
      %4979 = vmatpush1.bf16.msra.mxu0 0
      %4980 = vmatprep.mubr.bf16.mxu0 0
      %4981 = vmatmul.mubr.bf16.gmra.mrb[0].mxu0 %v4928
      %v4982 = vpop.f32.mrb[0].mxu0
      %v4983 = vadd.f32 0.0, %v4982
      %v4984 = vpop.f32.mrb[0].mxu0
      %v4985 = vadd.f32 0.0, %v4984
      %v4986 = vpop.f32.mrb[0].mxu0
      %v4987 = vadd.f32 0.0, %v4986
      %v4988 = vpop.f32.mrb[0].mxu0
      %v4989 = vadd.f32 0.0, %v4988
      %4990 = vmatprep.mubr.bf16.mxu0 0
      %4991 = vmatmul.mubr.bf16.gmra.mrb[0].mxu0 %v4931
      %v4992 = vpop.f32.mrb[0].mxu0
      %v4993 = vadd.f32 0.0, %v4992
      %v4994 = vpop.f32.mrb[0].mxu0
      %v4995 = vadd.f32 0.0, %v4994
      %v4996 = vpop.f32.mrb[0].mxu0
      %v4997 = vadd.f32 0.0, %v4996
      %v4998 = vpop.f32.mrb[0].mxu0
      %v4999 = vadd.f32 0.0, %v4998
      %5000 = vdwg.mxu0
      %5001 = vmatprep.subr.bf16.mxu0 %v4946
      %5002 = vmatpush1.bf16.msra.mxu0 %v4943
      %5003 = vmatprep.subr.bf16.mxu0 0
      %5004 = vmatpush1.bf16.msra.mxu0 0
      %5005 = vmatprep.subr.bf16.mxu0 0
      %5006 = vmatpush1.bf16.msra.mxu0 0
      %5007 = vmatprep.subr.bf16.mxu0 0
      %5008 = vmatpush1.bf16.msra.mxu0 0
      %5009 = vmatprep.subr.bf16.mxu0 0
      %5010 = vmatpush1.bf16.msra.mxu0 0
      %5011 = vmatprep.subr.bf16.mxu0 0
      %5012 = vmatpush1.bf16.msra.mxu0 0
      %5013 = vmatprep.subr.bf16.mxu0 0
      %5014 = vmatpush1.bf16.msra.mxu0 0
      %5015 = vmatprep.subr.bf16.mxu0 0
      %5016 = vmatpush1.bf16.msra.mxu0 0
      %5017 = vmatprep.subr.bf16.mxu0 0
      %5018 = vmatpush1.bf16.msra.mxu0 0
      %5019 = vmatprep.subr.bf16.mxu0 0
      %5020 = vmatpush1.bf16.msra.mxu0 0
      %5021 = vmatprep.subr.bf16.mxu0 0
      %5022 = vmatpush1.bf16.msra.mxu0 0
      %5023 = vmatprep.subr.bf16.mxu0 0
      %5024 = vmatpush1.bf16.msra.mxu0 0
      %5025 = vmatprep.subr.bf16.mxu0 0
      %5026 = vmatpush1.bf16.msra.mxu0 0
      %5027 = vmatprep.subr.bf16.mxu0 0
      %5028 = vmatpush1.bf16.msra.mxu0 0
      %5029 = vmatprep.subr.bf16.mxu0 0
      %5030 = vmatpush1.bf16.msra.mxu0 0
      %5031 = vmatprep.subr.bf16.mxu0 0
      %5032 = vmatpush1.bf16.msra.mxu0 0
      %5033 = vmatprep.mubr.bf16.mxu0 0
      %5034 = vmatmul.mubr.bf16.gmra.mrb[0].mxu0 %v4928
      %v5035 = vpop.f32.mrb[0].mxu0
      %v5036 = vadd.f32 0.0, %v5035
      %v5037 = vpop.f32.mrb[0].mxu0
      %v5038 = vadd.f32 0.0, %v5037
      %v5039 = vpop.f32.mrb[0].mxu0
      %v5040 = vadd.f32 0.0, %v5039
      %v5041 = vpop.f32.mrb[0].mxu0
      %v5042 = vadd.f32 0.0, %v5041
      %5043 = vmatprep.mubr.bf16.mxu0 0
      %5044 = vmatmul.mubr.bf16.gmra.mrb[0].mxu0 %v4931
      %v5045 = vpop.f32.mrb[0].mxu0
      %v5046 = vadd.f32 0.0, %v5045
      %v5047 = vpop.f32.mrb[0].mxu0
      %v5048 = vadd.f32 0.0, %v5047
      %v5049 = vpop.f32.mrb[0].mxu0
      %v5050 = vadd.f32 0.0, %v5049
      %v5051 = vpop.f32.mrb[0].mxu0
      %v5052 = vadd.f32 0.0, %v5051
      %5053 = vdwg.mxu0
      %5054 = vrot.lane.b32.xlu0 %v4685, 74
      %v5055 = vpop.permute.xlu0 %5054
      %5056 = vrot.lane.b32.xlu0 %v4686, 74
      %v5057 = vpop.permute.xlu0 %5056
      %v5059 = vsel %vm3207, %v5055, 0
      %v5062 = vsel %vm3207, %v5057, 0
      %5064 = vmatprep.subr.bf16.mxu0 %v4895
      %5065 = vmatpush1.bf16.msra.mxu0 %v4894
      %5066 = vmatprep.subr.bf16.mxu0 %v4899
      %5067 = vmatpush1.bf16.msra.mxu0 %v4898
      %5068 = vmatprep.subr.bf16.mxu0 %v4903
      %5069 = vmatpush1.bf16.msra.mxu0 %v4902
      %5070 = vmatprep.subr.bf16.mxu0 %v4907
      %5071 = vmatpush1.bf16.msra.mxu0 %v4906
      %5072 = vmatprep.subr.bf16.mxu0 0
      %5073 = vmatpush1.bf16.msra.mxu0 0
      %5074 = vmatprep.subr.bf16.mxu0 0
      %5075 = vmatpush1.bf16.msra.mxu0 0
      %5076 = vmatprep.subr.bf16.mxu0 0
      %5077 = vmatpush1.bf16.msra.mxu0 0
      %5078 = vmatprep.subr.bf16.mxu0 0
      %5079 = vmatpush1.bf16.msra.mxu0 0
      %5080 = vmatprep.subr.bf16.mxu0 0
      %5081 = vmatpush1.bf16.msra.mxu0 0
      %5082 = vmatprep.subr.bf16.mxu0 0
      %5083 = vmatpush1.bf16.msra.mxu0 0
      %5084 = vmatprep.subr.bf16.mxu0 0
      %5085 = vmatpush1.bf16.msra.mxu0 0
      %5086 = vmatprep.subr.bf16.mxu0 0
      %5087 = vmatpush1.bf16.msra.mxu0 0
      %5088 = vmatprep.subr.bf16.mxu0 0
      %5089 = vmatpush1.bf16.msra.mxu0 0
      %5090 = vmatprep.subr.bf16.mxu0 0
      %5091 = vmatpush1.bf16.msra.mxu0 0
      %5092 = vmatprep.subr.bf16.mxu0 0
      %5093 = vmatpush1.bf16.msra.mxu0 0
      %5094 = vmatprep.subr.bf16.mxu0 0
      %5095 = vmatpush1.bf16.msra.mxu0 0
      %5096 = vmatprep.mubr.bf16.mxu0 0
      %5097 = vmatmul.mubr.bf16.gmra.mrb[0].mxu0 %v5059
      %v5098 = vpop.f32.mrb[0].mxu0
      %v5099 = vadd.f32 %v4983, %v5098
      %v5100 = vpop.f32.mrb[0].mxu0
      %v5101 = vadd.f32 %v4985, %v5100
      %v5102 = vpop.f32.mrb[0].mxu0
      %v5103 = vadd.f32 %v4987, %v5102
      %v5104 = vpop.f32.mrb[0].mxu0
      %v5105 = vadd.f32 %v4989, %v5104
      %5106 = vmatprep.mubr.bf16.mxu0 0
      %5107 = vmatmul.mubr.bf16.gmra.mrb[0].mxu0 %v5062
      %v5108 = vpop.f32.mrb[0].mxu0
      %v5109 = vadd.f32 %v4993, %v5108
      %v5110 = vpop.f32.mrb[0].mxu0
      %v5111 = vadd.f32 %v4995, %v5110
      %v5112 = vpop.f32.mrb[0].mxu0
      %v5113 = vadd.f32 %v4997, %v5112
      %v5114 = vpop.f32.mrb[0].mxu0
      %v5115 = vadd.f32 %v4999, %v5114
      %5116 = vdwg.mxu0
      %5117 = vmatprep.subr.bf16.mxu0 %v4897
      %5118 = vmatpush1.bf16.msra.mxu0 %v4896
      %5119 = vmatprep.subr.bf16.mxu0 %v4901
      %5120 = vmatpush1.bf16.msra.mxu0 %v4900
      %5121 = vmatprep.subr.bf16.mxu0 %v4905
      %5122 = vmatpush1.bf16.msra.mxu0 %v4904
      %5123 = vmatprep.subr.bf16.mxu0 %v4909
      %5124 = vmatpush1.bf16.msra.mxu0 %v4908
      %5125 = vmatprep.subr.bf16.mxu0 0
      %5126 = vmatpush1.bf16.msra.mxu0 0
      %5127 = vmatprep.subr.bf16.mxu0 0
      %5128 = vmatpush1.bf16.msra.mxu0 0
      %5129 = vmatprep.subr.bf16.mxu0 0
      %5130 = vmatpush1.bf16.msra.mxu0 0
      %5131 = vmatprep.subr.bf16.mxu0 0
      %5132 = vmatpush1.bf16.msra.mxu0 0
      %5133 = vmatprep.subr.bf16.mxu0 0
      %5134 = vmatpush1.bf16.msra.mxu0 0
      %5135 = vmatprep.subr.bf16.mxu0 0
      %5136 = vmatpush1.bf16.msra.mxu0 0
      %5137 = vmatprep.subr.bf16.mxu0 0
      %5138 = vmatpush1.bf16.msra.mxu0 0
      %5139 = vmatprep.subr.bf16.mxu0 0
      %5140 = vmatpush1.bf16.msra.mxu0 0
      %5141 = vmatprep.subr.bf16.mxu0 0
      %5142 = vmatpush1.bf16.msra.mxu0 0
      %5143 = vmatprep.subr.bf16.mxu0 0
      %5144 = vmatpush1.bf16.msra.mxu0 0
      %5145 = vmatprep.subr.bf16.mxu0 0
      %5146 = vmatpush1.bf16.msra.mxu0 0
      %5147 = vmatprep.subr.bf16.mxu0 0
      %5148 = vmatpush1.bf16.msra.mxu0 0
      %5149 = vmatprep.mubr.bf16.mxu0 0
      %5150 = vmatmul.mubr.bf16.gmra.mrb[0].mxu0 %v5059
      %v5151 = vpop.f32.mrb[0].mxu0
      %v5152 = vadd.f32 %v5036, %v5151
      %v5153 = vpop.f32.mrb[0].mxu0
      %v5154 = vadd.f32 %v5038, %v5153
      %v5155 = vpop.f32.mrb[0].mxu0
      %v5156 = vadd.f32 %v5040, %v5155
      %v5157 = vpop.f32.mrb[0].mxu0
      %v5158 = vadd.f32 %v5042, %v5157
      %5159 = vmatprep.mubr.bf16.mxu0 0
      %5160 = vmatmul.mubr.bf16.gmra.mrb[0].mxu0 %v5062
      %v5161 = vpop.f32.mrb[0].mxu0
      %v5162 = vadd.f32 %v5046, %v5161
      %v5163 = vpop.f32.mrb[0].mxu0
      %v5164 = vadd.f32 %v5048, %v5163
      %v5165 = vpop.f32.mrb[0].mxu0
      %v5166 = vadd.f32 %v5050, %v5165
      %v5167 = vpop.f32.mrb[0].mxu0
      %v5168 = vadd.f32 %v5052, %v5167
      %5169 = vdwg.mxu0
      %5170 = vset.pattern.permute.xlu0 7
      %5171 = vperm.xlu0 %5170, %v196
      %v5172 = vpop.permute.xlu0 %5171
      %5174 = vset.pattern.permute.xlu0 7
      %5175 = vperm.xlu0 %5174, %v197
      %v5176 = vpop.permute.xlu0 %5175
      %5178 = vset.pattern.permute.xlu0 7
      %5179 = vperm.xlu0 %5178, %v198
      %v5180 = vpop.permute.xlu0 %5179
      %5182 = vset.pattern.permute.xlu0 7
      %5183 = vperm.xlu0 %5182, %v199
      %v5184 = vpop.permute.xlu0 %5183
      %v5186 = vadd.f32 %v5099, %v5172
      %v5187 = vadd.f32 %v5101, %v5172
      %v5188 = vadd.f32 %v5152, %v5172
      %v5189 = vadd.f32 %v5154, %v5172
      %v5190 = vadd.f32 %v5103, %v5176
      %v5191 = vadd.f32 %v5105, %v5176
      %v5192 = vadd.f32 %v5156, %v5176
      %v5193 = vadd.f32 %v5158, %v5176
      %v5194 = vadd.f32 %v5109, %v5180
      %v5195 = vadd.f32 %v5111, %v5180
      %v5196 = vadd.f32 %v5162, %v5180
      %v5197 = vadd.f32 %v5164, %v5180
      %v5198 = vadd.f32 %v5113, %v5184
      %v5199 = vadd.f32 %v5115, %v5184
      %v5200 = vadd.f32 %v5166, %v5184
      %v5201 = vadd.f32 %v5168, %v5184
      %v5202 = vmax.f32 %v5186, 0.0
      %v5203 = vmax.f32 %v5187, 0.0
      %v5204 = vmax.f32 %v5188, 0.0
      %v5205 = vmax.f32 %v5189, 0.0
      %v5206 = vmax.f32 %v5190, 0.0
      %v5207 = vmax.f32 %v5191, 0.0
      %v5208 = vmax.f32 %v5192, 0.0
      %v5209 = vmax.f32 %v5193, 0.0
      %v5210 = vmax.f32 %v5194, 0.0
      %v5211 = vmax.f32 %v5195, 0.0
      %v5212 = vmax.f32 %v5196, 0.0
      %v5213 = vmax.f32 %v5197, 0.0
      %v5214 = vmax.f32 %v5198, 0.0
      %v5215 = vmax.f32 %v5199, 0.0
      %v5216 = vmax.f32 %v5200, 0.0
      %v5217 = vmax.f32 %v5201, 0.0
      %v5218 = vpack.c.bf16 %v5206, %v5202
      %v5219 = vpack.c.bf16 %v5207, %v5203
      %v5220 = vpack.c.bf16 %v5208, %v5204
      %v5221 = vpack.c.bf16 %v5209, %v5205
      %v5222 = vpack.c.bf16 %v5214, %v5210
      %v5223 = vpack.c.bf16 %v5215, %v5211
      %v5224 = vpack.c.bf16 %v5216, %v5212
      %v5225 = vpack.c.bf16 %v5217, %v5213
      %5226 = vset.pattern.permute.xlu0 8
      %5227 = vperm.xlu0 %5226, %v196
      %v5228 = vpop.permute.xlu0 %5227
      %v5230 = vpack.c.b16 %v4914, %v4914
      %5231 = vrot.lane.b32.xlu0 %v5230, 123
      %v5232 = vpop.permute.xlu0 %5231
      %vm5233 = vcmask 261120
      %v5235 = vsel %vm5233, %v5232, 0
      %5237 = vmatprep.subr.bf16.mxu0 %v5219
      %5238 = vmatpush1.bf16.msra.mxu0 %v5218
      %5239 = vmatprep.subr.bf16.mxu0 %v5223
      %5240 = vmatpush1.bf16.msra.mxu0 %v5222
      %5241 = vmatprep.subr.bf16.mxu0 0
      %5242 = vmatpush1.bf16.msra.mxu0 0
      %5243 = vmatprep.subr.bf16.mxu0 0
      %5244 = vmatpush1.bf16.msra.mxu0 0
      %5245 = vmatprep.subr.bf16.mxu0 0
      %5246 = vmatpush1.bf16.msra.mxu0 0
      %5247 = vmatprep.subr.bf16.mxu0 0
      %5248 = vmatpush1.bf16.msra.mxu0 0
      %5249 = vmatprep.subr.bf16.mxu0 0
      %5250 = vmatpush1.bf16.msra.mxu0 0
      %5251 = vmatprep.subr.bf16.mxu0 0
      %5252 = vmatpush1.bf16.msra.mxu0 0
      %5253 = vmatprep.subr.bf16.mxu0 0
      %5254 = vmatpush1.bf16.msra.mxu0 0
      %5255 = vmatprep.subr.bf16.mxu0 0
      %5256 = vmatpush1.bf16.msra.mxu0 0
      %5257 = vmatprep.subr.bf16.mxu0 0
      %5258 = vmatpush1.bf16.msra.mxu0 0
      %5259 = vmatprep.subr.bf16.mxu0 0
      %5260 = vmatpush1.bf16.msra.mxu0 0
      %5261 = vmatprep.subr.bf16.mxu0 0
      %5262 = vmatpush1.bf16.msra.mxu0 0
      %5263 = vmatprep.subr.bf16.mxu0 0
      %5264 = vmatpush1.bf16.msra.mxu0 0
      %5265 = vmatprep.subr.bf16.mxu0 0
      %5266 = vmatpush1.bf16.msra.mxu0 0
      %5267 = vmatprep.subr.bf16.mxu0 0
      %5268 = vmatpush1.bf16.msra.mxu0 0
      %5269 = vmatprep.mubr.bf16.mxu0 0
      %5270 = vmatmul.mubr.bf16.gmra.mrb[0].mxu0 %v5235
      %v5271 = vpop.f32.mrb[0].mxu0
      %v5272 = vadd.f32 %v5228, %v5271
      %v5273 = vpop.f32.mrb[0].mxu0
      %v5274 = vadd.f32 %v5228, %v5273
      %v5275 = vpop.f32.mrb[0].mxu0
      %v5276 = vpop.f32.mrb[0].mxu0
      %5277 = vdwg.mxu0
      %5278 = vmatprep.subr.bf16.mxu0 %v5221
      %5279 = vmatpush1.bf16.msra.mxu0 %v5220
      %5280 = vmatprep.subr.bf16.mxu0 %v5225
      %5281 = vmatpush1.bf16.msra.mxu0 %v5224
      %5282 = vmatprep.subr.bf16.mxu0 0
      %5283 = vmatpush1.bf16.msra.mxu0 0
      %5284 = vmatprep.subr.bf16.mxu0 0
      %5285 = vmatpush1.bf16.msra.mxu0 0
      %5286 = vmatprep.subr.bf16.mxu0 0
      %5287 = vmatpush1.bf16.msra.mxu0 0
      %5288 = vmatprep.subr.bf16.mxu0 0
      %5289 = vmatpush1.bf16.msra.mxu0 0
      %5290 = vmatprep.subr.bf16.mxu0 0
      %5291 = vmatpush1.bf16.msra.mxu0 0
      %5292 = vmatprep.subr.bf16.mxu0 0
      %5293 = vmatpush1.bf16.msra.mxu0 0
      %5294 = vmatprep.subr.bf16.mxu0 0
      %5295 = vmatpush1.bf16.msra.mxu0 0
      %5296 = vmatprep.subr.bf16.mxu0 0
      %5297 = vmatpush1.bf16.msra.mxu0 0
      %5298 = vmatprep.subr.bf16.mxu0 0
      %5299 = vmatpush1.bf16.msra.mxu0 0
      %5300 = vmatprep.subr.bf16.mxu0 0
      %5301 = vmatpush1.bf16.msra.mxu0 0
      %5302 = vmatprep.subr.bf16.mxu0 0
      %5303 = vmatpush1.bf16.msra.mxu0 0
      %5304 = vmatprep.subr.bf16.mxu0 0
      %5305 = vmatpush1.bf16.msra.mxu0 0
      %5306 = vmatprep.subr.bf16.mxu0 0
      %5307 = vmatpush1.bf16.msra.mxu0 0
      %5308 = vmatprep.subr.bf16.mxu0 0
      %5309 = vmatpush1.bf16.msra.mxu0 0
      %5310 = vmatprep.mubr.bf16.mxu0 0
      %5311 = vmatmul.mubr.bf16.gmra.mrb[0].mxu0 %v5235
      %v5312 = vpop.f32.mrb[0].mxu0
      %v5313 = vadd.f32 %v5228, %v5312
      %v5314 = vpop.f32.mrb[0].mxu0
      %v5315 = vadd.f32 %v5228, %v5314
      %v5316 = vpop.f32.mrb[0].mxu0
      %v5317 = vpop.f32.mrb[0].mxu0
      %5318 = vdwg.mxu0
      %v5323 = vrot.slane %v4807, 5
      %v5324 = vrot.slane %v4809, 5
      %v5325 = vrot.slane %v4888, 5
      %v5326 = vrot.slane %v4890, 5
      %v5331 = vsel %vm257, %v5272, %v5323
      %v5332 = vsel %vm257, %v5274, %v5324
      %v5333 = vsel %vm257, %v5313, %v5325
      %v5334 = vsel %vm257, %v5315, %v5326
      %vm5335 = vcmask 1043456
      %v5336 = vsel %vm5335, %v5331, 0.0
      %v5337 = vsel %vm5335, %v5332, 0.0
      %v5338 = vsel %vm5335, %v5333, 0.0
      %v5339 = vsel %vm5335, %v5334, 0.0
      %5340 = vst [vmem:[%s172] sm:$0xff] %v5336
      %5341 = vst [vmem:[%s172 + $0x8] sm:$0xff] %v5337
      %5342 = vst [vmem:[%s172 + $0x10] sm:$0xff] %v5338
      %5343 = vst [vmem:[%s172 + $0x18] sm:$0xff] %v5339
      %s5344 = smul.u32 4, %s14
      %p5345 = scmp.lt.s32.totalorder %s5344, 7
      %s5346 = scalar_select %p5345, %s5344, 7
      %s5347 = smul.addr %s5346, 8
      %s5348 = scalar_lea.vmem %s3, %s5347
      // Predicated region
      $region33: #{_pipeline.12} parent=31 // pred_check
        %p5349 = pneg %p100
      $region34: #{_pipeline.12} parent=31 // pred_check_branch
        %5351 = sbr.rel (%p5349) target = $region36
      $region35: #{_pipeline.12} parent=31 // pred_region
        %s5352 = smul.u32 4, %s14
      $region36: #{_pipeline.12} parent=31 // pred_fallthru
        _
    $region32: #{_pipeline.12} parent=5 // pred_fallthru
      _
    %p5353 = scmp.le.s32.totalorder 2, %s9
    // Predicated region
    $region37: #{_pipeline.12} parent=5 // pred_check
      %p5354 = pneg %p5353
    $region38: #{_pipeline.12} parent=5 // pred_check_branch
      %5356 = sbr.rel (%p5354) target = $region40
    $region39: #{_pipeline.12} parent=5 // pred_region
      %s5357 = ssub.s32 %s9, 2
      // Predicated region
      $region41: #{_pipeline.12} parent=39 // pred_check
        %p5358 = pneg %p106
      $region42: #{_pipeline.12} parent=39 // pred_check_branch
        %5360 = sbr.rel (%p5358) target = $region44
      $region43: #{_pipeline.12} parent=39 // pred_region
        %s5361 = smul.u32 4, %s15
        %p5362 = scmp.lt.s32.totalorder %s5361, 7
        %s5363 = scalar_select %p5362, %s5361, 7
        %s5364 = smul.addr %s5363, 8
        %s5365 = scalar_lea.vmem %s3, %s5364
      $region44: #{_pipeline.12} parent=39 // pred_fallthru
        _
    $region40: #{_pipeline.12} parent=5 // pred_fallthru
      _
  $region6: #{_pipeline.12} parent=0 // loop_footer
    %s13 = sadd.s32 1, %s9
  $region7: #{_pipeline.12} parent=0 // loop_footer_branch
    %8 = sbr.rel target = $region3
  $region8: #{_pipeline.12} parent=0 // loop_exit
    _

// kernel: _pipeline.9
$region0: #{_pipeline.9}
  #allocation0 [shape = 'u32[]', space=smem, size = 0x4, offset = 0x4, fixed_abs, tag = 'smem constant byte address 0x4 - core index']
  #allocation1 [shape = 'u32[144,128]{1,0:T(1,128)}', space=vmem, size = 0x12000, scoped, tag = 'internal scratch']
  %s0 = inlined_call_operand.vmem [shape: bf16[256,35], index: 0, kind: input, shape index: {}]
  %s1 = inlined_call_operand.vmem [shape: bf16[35,128], index: 1, kind: input, shape index: {}]
  %s2 = inlined_call_operand.vmem [shape: f32[1,128], index: 2, kind: input, shape index: {}]
  %s3 = inlined_call_operand.hbm [shape: f32[256,128], index: 3, kind: output, shape index: {}]
  %s4 = sld [smem:[#allocation0]]
  $region45: #{_pipeline.9} parent=0
    _
  %s6 = ssub.s32 1, %s4
  %s7 = scalar_select 0, %s6, %s4
  $region1: #{_pipeline.9} parent=0
    #allocation2 [shape = 'u8[131072]{0}', space=vmem, size = 0x20000, scoped, tag = 'output window, operand 0']
    #allocation3 [shape = 's32[2]{0}', space=sflag, size = 0x8, scoped, tag = 'scoped memory for _pipeline.9']
    %8 = vsyncpa [#allocation3], 0
    %s9 = scalar_lea.sflag [#allocation3], 1
    %10 = vsyncpa %s9, 0
    loop: start=0, step=1, limit=4
    $region2: #{_pipeline.9} parent=1 // loop_pre_header
      _
    $region3: #{_pipeline.9} parent=1 // loop_header
      %s12 = sphi 0, %s16
      %p13 = scmp.ge.s32.totalorder %s12, 4
      %s22 = sphi 0, %s24
      %s25 = sphi 0, %s22
      %s26 = sphi 0, %s25
      %s42 = sphi 0, %s26
      %s46 = sphi 0, %s46
      %s48 = sphi 0, %s46
      %s49 = sphi 0, %s48
      %s63 = sphi 0, %s49
      %s67 = sphi 0, %s67
      %s69 = sphi 0, %s67
      %s70 = sphi 0, %s69
      %s84 = sphi 0, %s70
      %s90 = sphi 0, %s92
      %s93 = sphi 0, %s90
      %s94 = sphi 0, %s93
      %s110 = sphi 0, %s94
    $region4: #{_pipeline.9} parent=1 // loop_header_branch
      %15 = sbr.rel (%p13) target = $region8
    $region5: #{_pipeline.9} parent=1 // loop_body
      %s17 = ssub.s32 %s12, 1
      %s18 = ssub.s32 %s12, 2
      %s19 = sadd.s32 %s12, 1
      %s20 = ssub.s32 %s12, %s19
      %p21 = scmp.eq.s32.totalorder %s20, 0
      %s23 = sadd.s32 %s22, 1
      %s24 = scalar_select %p21, %s22, %s23
      %p27 = pneg %p21
      %p28 = scmp.eq.s32.totalorder %s12, 1
      %p29 = por %p27, %p28
      %p30 = scmp.ne.s32.totalorder %s22, %s25
      %p31 = scmp.eq.s32.totalorder %s12, 0
      %p32 = por %p30, %p31
      %p33 = scmp.ne.s32.totalorder %s22, %s25
      %p34 = scmp.eq.s32.totalorder %s17, 1
      %p35 = por %p33, %p34
      %p36 = scmp.ne.s32.totalorder %s25, %s26
      %p37 = scmp.eq.s32.totalorder %s17, 0
      %p38 = por %p36, %p37
      %p39 = scmp.ne.s32.totalorder %s25, %s26
      %p40 = scmp.eq.s32.totalorder %s18, 1
      %p41 = por %p39, %p40
      %p43 = scmp.ne.s32.totalorder %s26, %s42
      %p44 = scmp.eq.s32.totalorder %s18, 0
      %p45 = por %p43, %p44
      %s47 = sadd.s32 %s46, 1
      %p50 = scmp.eq.s32.totalorder %s12, 1
      %p51 = scmp.ne.s32.totalorder %s46, %s48
      %p52 = scmp.eq.s32.totalorder %s12, 0
      %p53 = por %p51, %p52
      %p54 = scmp.ne.s32.totalorder %s46, %s48
      %p55 = scmp.eq.s32.totalorder %s17, 1
      %p56 = por %p54, %p55
      %p57 = scmp.ne.s32.totalorder %s48, %s49
      %p58 = scmp.eq.s32.totalorder %s17, 0
      %p59 = por %p57, %p58
      %p60 = scmp.ne.s32.totalorder %s48, %s49
      %p61 = scmp.eq.s32.totalorder %s18, 1
      %p62 = por %p60, %p61
      %p64 = scmp.ne.s32.totalorder %s49, %s63
      %p65 = scmp.eq.s32.totalorder %s18, 0
      %p66 = por %p64, %p65
      %s68 = sadd.s32 %s67, 1
      %p71 = scmp.eq.s32.totalorder %s12, 1
      %p72 = scmp.ne.s32.totalorder %s67, %s69
      %p73 = scmp.eq.s32.totalorder %s12, 0
      %p74 = por %p72, %p73
      %p75 = scmp.ne.s32.totalorder %s67, %s69
      %p76 = scmp.eq.s32.totalorder %s17, 1
      %p77 = por %p75, %p76
      %p78 = scmp.ne.s32.totalorder %s69, %s70
      %p79 = scmp.eq.s32.totalorder %s17, 0
      %p80 = por %p78, %p79
      %p81 = scmp.ne.s32.totalorder %s69, %s70
      %p82 = scmp.eq.s32.totalorder %s18, 1
      %p83 = por %p81, %p82
      %p85 = scmp.ne.s32.totalorder %s70, %s84
      %p86 = scmp.eq.s32.totalorder %s18, 0
      %p87 = por %p85, %p86
      %s88 = ssub.s32 %s12, %s19
      %p89 = scmp.eq.s32.totalorder %s88, 0
      %s91 = sadd.s32 %s90, 1
      %s92 = scalar_select %p89, %s90, %s91
      %p95 = pneg %p89
      %p96 = scmp.eq.s32.totalorder %s12, 1
      %p97 = por %p95, %p96
      %p98 = scmp.ne.s32.totalorder %s90, %s93
      %p99 = scmp.eq.s32.totalorder %s12, 0
      %p100 = por %p98, %p99
      %p101 = scmp.ne.s32.totalorder %s90, %s93
      %p102 = scmp.eq.s32.totalorder %s17, 1
      %p103 = por %p101, %p102
      %p104 = scmp.ne.s32.totalorder %s93, %s94
      %p105 = scmp.eq.s32.totalorder %s17, 0
      %p106 = por %p104, %p105
      %p107 = scmp.ne.s32.totalorder %s93, %s94
      %p108 = scmp.eq.s32.totalorder %s18, 1
      %p109 = por %p107, %p108
      %p111 = scmp.ne.s32.totalorder %s94, %s110
      %p112 = scmp.eq.s32.totalorder %s18, 0
      %p113 = por %p111, %p112
      %p114 = scmp.le.s32.totalorder 1, %s12
      %p115 = scmp.lt.s32.totalorder %s12, 3
      %p116 = pnand %p114, %p115
      %p117 = pneg %p116
      // Predicated region
      $region9: #{_pipeline.9} parent=5 // pred_check
        _
      $region10: #{_pipeline.9} parent=5 // pred_check_branch
        %119 = sbr.rel (%p116) target = $region12
      $region11: #{_pipeline.9} parent=5 // pred_region
        %s120 = ssub.s32 %s12, 1
        // Predicated region
        $region13: #{_pipeline.9} parent=11 // pred_check
          %p121 = pneg %p59
        $region14: #{_pipeline.9} parent=11 // pred_check_branch
          %123 = sbr.rel (%p121) target = $region16
        $region15: #{_pipeline.9} parent=11 // pred_region
          _
        $region16: #{_pipeline.9} parent=11 // pred_fallthru
          _
        // Predicated region
        $region17: #{_pipeline.9} parent=11 // pred_check
          %p124 = pneg %p80
        $region18: #{_pipeline.9} parent=11 // pred_check_branch
          %126 = sbr.rel (%p124) target = $region20
        $region19: #{_pipeline.9} parent=11 // pred_region
          _
        $region20: #{_pipeline.9} parent=11 // pred_fallthru
          _
      $region12: #{_pipeline.9} parent=5 // pred_fallthru
        _
      %p127 = scmp.lt.s32.totalorder %s12, 2
      // Predicated region
      $region21: #{_pipeline.9} parent=5 // pred_check
        %p128 = pneg %p127
      $region22: #{_pipeline.9} parent=5 // pred_check_branch
        %130 = sbr.rel (%p128) target = $region24
      $region23: #{_pipeline.9} parent=5 // pred_region
        // Predicated region
        $region25: #{_pipeline.9} parent=23 // pred_check
          %p131 = pneg %p32
        $region26: #{_pipeline.9} parent=23 // pred_check_branch
          %133 = sbr.rel (%p131) target = $region28
        $region27: #{_pipeline.9} parent=23 // pred_region
          %s134 = smul.u32 16, %s12
          %p135 = scmp.lt.s32.totalorder %s134, 31
          %s136 = scalar_select %p135, %s134, 31
          %s137 = smul.addr %s136, 4
          %s138 = scalar_lea.vmem %s0, %s137
          %s139 = smul.u32 16, %s12
        $region28: #{_pipeline.9} parent=23 // pred_fallthru
          _
      $region24: #{_pipeline.9} parent=5 // pred_fallthru
        _
      %p140 = scmp.le.s32.totalorder 1, %s12
      %p141 = scmp.lt.s32.totalorder %s12, 3
      %p142 = pnand %p140, %p141
      %p143 = pneg %p142
      // Predicated region
      $region29: #{_pipeline.9} parent=5 // pred_check
        _
      $region30: #{_pipeline.9} parent=5 // pred_check_branch
        %145 = sbr.rel (%p142) target = $region32
      $region31: #{_pipeline.9} parent=5 // pred_region
        %s146 = ssub.s32 %s12, 1
        %s147 = smul.u32 16, %s17
        %p148 = scmp.lt.s32.totalorder %s147, 31
        %s149 = scalar_select %p148, %s147, 31
        %s150 = smul.addr %s149, 4
        %s151 = scalar_lea.vmem %s0, %s150
        %p152 = pneg %p38
        %p153 = pneg %p35
        %p154 = pneg %p59
        %p155 = pneg %p56
        %p156 = pneg %p80
        %p157 = pneg %p77
        %p158 = pneg %p106
        %p159 = pneg %p103
        %s160 = sand.u32 %s93, 1
        %s161 = scalar_lea.sflag [#allocation3], %s160
        %s162 = sand.u32 %s93, 1
        %s163 = smul.addr %s162, 128
        %s164 = scalar_lea.vmem [#allocation2], %s163
        %s165 = smul.u32 16, %s17
        %p166 = scmp.lt.s32.totalorder %s165, 31
        %s167 = scalar_select %p166, %s165, 31
        %s168 = smul.addr %s167, 4
        %s169 = scalar_lea.vmem %s0, %s168
        %s170 = smul.u32 16, %s17
        %s171 = smul.u32 16, %s17
        %v173 = vld [vmem:[%s169] sm:$0xf]
        %v174 = vld [vmem:[%s169 + $0x4] sm:$0xf]
        %v175 = vld [vmem:[%s169 + $0x8] sm:$0xf]
        %v176 = vld [vmem:[%s169 + $0xc] sm:$0xf]
        %v177 = vld [vmem:[%s169 + $0x10] sm:$0xf]
        %v178 = vld [vmem:[%s169 + $0x14] sm:$0xf]
        %v179 = vld [vmem:[%s169 + $0x18] sm:$0xf]
        %v180 = vld [vmem:[%s169 + $0x1c] sm:$0xf]
        %v181 = vld [vmem:[%s169 + $0x20] sm:$0xf]
        %v182 = vld [vmem:[%s169 + $0x24] sm:$0xf]
        %v183 = vld [vmem:[%s169 + $0x28] sm:$0xf]
        %v184 = vld [vmem:[%s169 + $0x2c] sm:$0xf]
        %v185 = vld [vmem:[%s169 + $0x30] sm:$0xf]
        %v186 = vld [vmem:[%s169 + $0x34] sm:$0xf]
        %v187 = vld [vmem:[%s169 + $0x38] sm:$0xf]
        %v188 = vld [vmem:[%s169 + $0x3c] sm:$0xf]
        %v189 = vld [vmem:[%s1] sm:$0xf]
        %v190 = vld [vmem:[%s1 + $0x4] sm:$0xf]
        %v191 = vld [vmem:[%s1 + $0x8] sm:$0xf]
        %v192 = vld [vmem:[%s1 + $0xc] sm:$0xf]
        %v193 = vld [vmem:[%s1 + $0x10] sm:$0x3]
        %v194 = vld [vmem:[%s2] sm:$0x1]
        %v196 = vlaneseq
        %v197 = vshrl.u32 %v196, 7
        %v198 = vsub.s32 0, %v197
        %v199 = vrot.slane %v194, %v198
        %v217 = vunpack.c.l.b16 %v173
        %v218 = vunpack.c.l.b16 %v174
        %v219 = vunpack.c.l.b16 %v175
        %v220 = vunpack.c.l.b16 %v176
        %v221 = vunpack.c.l.b16 %v177
        %v222 = vunpack.c.l.b16 %v178
        %v223 = vunpack.c.l.b16 %v179
        %v224 = vunpack.c.l.b16 %v180
        %v225 = vunpack.c.l.b16 %v181
        %v226 = vunpack.c.l.b16 %v182
        %v227 = vunpack.c.l.b16 %v183
        %v228 = vunpack.c.l.b16 %v184
        %v229 = vunpack.c.l.b16 %v185
        %v230 = vunpack.c.l.b16 %v186
        %v231 = vunpack.c.l.b16 %v187
        %v232 = vunpack.c.l.b16 %v188
        %v233 = vpack.c.b16 %v218, %v217
        %v234 = vpack.c.b16 %v220, %v219
        %v235 = vpack.c.b16 %v222, %v221
        %v236 = vpack.c.b16 %v224, %v223
        %v237 = vpack.c.b16 %v226, %v225
        %v238 = vpack.c.b16 %v228, %v227
        %v239 = vpack.c.b16 %v230, %v229
        %v240 = vpack.c.b16 %v232, %v231
        %v246 = vunpack.c.l.b16 %v189
        %v247 = vunpack.c.l.b16 %v190
        %v248 = vunpack.c.l.b16 %v191
        %v249 = vunpack.c.l.b16 %v192
        %v250 = vunpack.c.l.b16 %v193
        %v251 = vpack.c.b16 %v247, %v246
        %v252 = vpack.c.b16 %v249, %v248
        %v253 = vpack.c.b16 %v250, %v250
        %vm256 = vcmask 285696
        %v258 = vsel %vm256, %v233, 0
        %v261 = vsel %vm256, %v234, 0
        %v264 = vsel %vm256, %v235, 0
        %v267 = vsel %vm256, %v236, 0
        %v270 = vsel %vm256, %v237, 0
        %v273 = vsel %vm256, %v238, 0
        %v276 = vsel %vm256, %v239, 0
        %v279 = vsel %vm256, %v240, 0
        %vm281 = vcmask 1040384
        %vm282 = vcmask 1041408
        %v283 = vsel %vm281, 4294967295, 65535
        %v284 = vsel %vm282, %v283, 0
        %v286 = vand.u32 %v253, %v284
        %288 = vmatprep.subr.bf16.mxu0 0
        %289 = vmatpush1.bf16.msra.mxu0 %v251
        %290 = vmatprep.subr.bf16.mxu0 0
        %291 = vmatpush1.bf16.msra.mxu0 %v252
        %292 = vmatprep.subr.bf16.mxu0 0
        %293 = vmatpush1.bf16.msra.mxu0 %v286
        %294 = vmatprep.subr.bf16.mxu0 0
        %295 = vmatpush1.bf16.msra.mxu0 0
        %296 = vmatprep.subr.bf16.mxu0 0
        %297 = vmatpush1.bf16.msra.mxu0 0
        %298 = vmatprep.subr.bf16.mxu0 0
        %299 = vmatpush1.bf16.msra.mxu0 0
        %300 = vmatprep.subr.bf16.mxu0 0
        %301 = vmatpush1.bf16.msra.mxu0 0
        %302 = vmatprep.subr.bf16.mxu0 0
        %303 = vmatpush1.bf16.msra.mxu0 0
        %304 = vmatprep.subr.bf16.mxu0 0
        %305 = vmatpush1.bf16.msra.mxu0 0
        %306 = vmatprep.subr.bf16.mxu0 0
        %307 = vmatpush1.bf16.msra.mxu0 0
        %308 = vmatprep.subr.bf16.mxu0 0
        %309 = vmatpush1.bf16.msra.mxu0 0
        %310 = vmatprep.subr.bf16.mxu0 0
        %311 = vmatpush1.bf16.msra.mxu0 0
        %312 = vmatprep.subr.bf16.mxu0 0
        %313 = vmatpush1.bf16.msra.mxu0 0
        %314 = vmatprep.subr.bf16.mxu0 0
        %315 = vmatpush1.bf16.msra.mxu0 0
        %316 = vmatprep.subr.bf16.mxu0 0
        %317 = vmatpush1.bf16.msra.mxu0 0
        %318 = vmatprep.subr.bf16.mxu0 0
        %319 = vmatpush1.bf16.msra.mxu0 0
        %320 = vmatprep.mubr.bf16.mxu0 0
        %321 = vmatmul.mubr.bf16.gmra.mrb[0].mxu0 %v258
        %v322 = vpop.f32.mrb[0].mxu0
        %v323 = vadd.f32 %v199, %v322
        %v324 = vpop.f32.mrb[0].mxu0
        %v325 = vpop.f32.mrb[0].mxu0
        %v326 = vadd.f32 %v199, %v325
        %v327 = vpop.f32.mrb[0].mxu0
        %328 = vmatprep.mubr.bf16.mxu0 0
        %329 = vmatmul.mubr.bf16.gmra.mrb[0].mxu0 %v261
        %v330 = vpop.f32.mrb[0].mxu0
        %v331 = vadd.f32 %v199, %v330
        %v332 = vpop.f32.mrb[0].mxu0
        %v333 = vpop.f32.mrb[0].mxu0
        %v334 = vadd.f32 %v199, %v333
        %v335 = vpop.f32.mrb[0].mxu0
        %336 = vmatprep.mubr.bf16.mxu0 0
        %337 = vmatmul.mubr.bf16.gmra.mrb[0].mxu0 %v264
        %v338 = vpop.f32.mrb[0].mxu0
        %v339 = vadd.f32 %v199, %v338
        %v340 = vpop.f32.mrb[0].mxu0
        %v341 = vpop.f32.mrb[0].mxu0
        %v342 = vadd.f32 %v199, %v341
        %v343 = vpop.f32.mrb[0].mxu0
        %344 = vmatprep.mubr.bf16.mxu0 0
        %345 = vmatmul.mubr.bf16.gmra.mrb[0].mxu0 %v267
        %v346 = vpop.f32.mrb[0].mxu0
        %v347 = vadd.f32 %v199, %v346
        %v348 = vpop.f32.mrb[0].mxu0
        %v349 = vpop.f32.mrb[0].mxu0
        %v350 = vadd.f32 %v199, %v349
        %v351 = vpop.f32.mrb[0].mxu0
        %352 = vmatprep.mubr.bf16.mxu0 0
        %353 = vmatmul.mubr.bf16.gmra.mrb[0].mxu0 %v270
        %v354 = vpop.f32.mrb[0].mxu0
        %v355 = vadd.f32 %v199, %v354
        %v356 = vpop.f32.mrb[0].mxu0
        %v357 = vpop.f32.mrb[0].mxu0
        %v358 = vadd.f32 %v199, %v357
        %v359 = vpop.f32.mrb[0].mxu0
        %360 = vmatprep.mubr.bf16.mxu0 0
        %361 = vmatmul.mubr.bf16.gmra.mrb[0].mxu0 %v273
        %v362 = vpop.f32.mrb[0].mxu0
        %v363 = vadd.f32 %v199, %v362
        %v364 = vpop.f32.mrb[0].mxu0
        %v365 = vpop.f32.mrb[0].mxu0
        %v366 = vadd.f32 %v199, %v365
        %v367 = vpop.f32.mrb[0].mxu0
        %368 = vmatprep.mubr.bf16.mxu0 0
        %369 = vmatmul.mubr.bf16.gmra.mrb[0].mxu0 %v276
        %v370 = vpop.f32.mrb[0].mxu0
        %v371 = vadd.f32 %v199, %v370
        %v372 = vpop.f32.mrb[0].mxu0
        %v373 = vpop.f32.mrb[0].mxu0
        %v374 = vadd.f32 %v199, %v373
        %v375 = vpop.f32.mrb[0].mxu0
        %376 = vmatprep.mubr.bf16.mxu0 0
        %377 = vmatmul.mubr.bf16.gmra.mrb[0].mxu0 %v279
        %v378 = vpop.f32.mrb[0].mxu0
        %v379 = vadd.f32 %v199, %v378
        %v380 = vpop.f32.mrb[0].mxu0
        %v381 = vpop.f32.mrb[0].mxu0
        %v382 = vadd.f32 %v199, %v381
        %v383 = vpop.f32.mrb[0].mxu0
        %384 = vdwg.mxu0
        %v385 = vmax.f32 %v323, 0.0
        %v386 = vmax.f32 %v326, 0.0
        %v387 = vmax.f32 %v331, 0.0
        %v388 = vmax.f32 %v334, 0.0
        %v389 = vmax.f32 %v339, 0.0
        %v390 = vmax.f32 %v342, 0.0
        %v391 = vmax.f32 %v347, 0.0
        %v392 = vmax.f32 %v350, 0.0
        %v393 = vmax.f32 %v355, 0.0
        %v394 = vmax.f32 %v358, 0.0
        %v395 = vmax.f32 %v363, 0.0
        %v396 = vmax.f32 %v366, 0.0
        %v397 = vmax.f32 %v371, 0.0
        %v398 = vmax.f32 %v374, 0.0
        %v399 = vmax.f32 %v379, 0.0
        %v400 = vmax.f32 %v382, 0.0
        %401 = vst [vmem:[%s164] sm:$0xff] %v385
        %402 = vst [vmem:[%s164 + $0x8] sm:$0xff] %v386
        %403 = vst [vmem:[%s164 + $0x10] sm:$0xff] %v387
        %404 = vst [vmem:[%s164 + $0x18] sm:$0xff] %v388
        %405 = vst [vmem:[%s164 + $0x20] sm:$0xff] %v389
        %406 = vst [vmem:[%s164 + $0x28] sm:$0xff] %v390
        %407 = vst [vmem:[%s164 + $0x30] sm:$0xff] %v391
        %408 = vst [vmem:[%s164 + $0x38] sm:$0xff] %v392
        %409 = vst [vmem:[%s164 + $0x40] sm:$0xff] %v393
        %410 = vst [vmem:[%s164 + $0x48] sm:$0xff] %v394
        %411 = vst [vmem:[%s164 + $0x50] sm:$0xff] %v395
        %412 = vst [vmem:[%s164 + $0x58] sm:$0xff] %v396
        %413 = vst [vmem:[%s164 + $0x60] sm:$0xff] %v397
        %414 = vst [vmem:[%s164 + $0x68] sm:$0xff] %v398
        %415 = vst [vmem:[%s164 + $0x70] sm:$0xff] %v399
        %416 = vst [vmem:[%s164 + $0x78] sm:$0xff] %v400
        %s417 = sand.u32 %s93, 1
        %s418 = scalar_lea.sflag [#allocation3], %s417
        %s419 = sand.u32 %s93, 1
        %s420 = smul.addr %s419, 128
        %s421 = scalar_lea.vmem [#allocation2], %s420
        // Predicated region
        $region33: #{_pipeline.9} parent=31 // pred_check
          %p422 = pneg %p103
        $region34: #{_pipeline.9} parent=31 // pred_check_branch
          %424 = sbr.rel (%p422) target = $region36
        $region35: #{_pipeline.9} parent=31 // pred_region
          %s425 = smul.u32 16, %s17
          %s427 = ssub.s32 2048, 2048
          %428 = vsyncadd %s418, %s427
          %s429 = smul.addr %s425, 128
          %s430 = scalar_lea.hbm %s3, %s429
          %s431 = sshll.u32 %s421, 4
          %s432 = int_to_ptr.vmem [resolvable:$true] %s431
          %437 = dma.vmem_to_hbm [thread:$0]  %s432, 2048, %s430, %s418, 128, 128, 8
        $region36: #{_pipeline.9} parent=31 // pred_fallthru
          _
      $region32: #{_pipeline.9} parent=5 // pred_fallthru
        _
      %p438 = scmp.le.s32.totalorder 2, %s12
      // Predicated region
      $region37: #{_pipeline.9} parent=5 // pred_check
        %p439 = pneg %p438
      $region38: #{_pipeline.9} parent=5 // pred_check_branch
        %441 = sbr.rel (%p439) target = $region40
      $region39: #{_pipeline.9} parent=5 // pred_region
        %s442 = ssub.s32 %s12, 2
        // Predicated region
        $region41: #{_pipeline.9} parent=39 // pred_check
          %p443 = pneg %p109
        $region42: #{_pipeline.9} parent=39 // pred_check_branch
          %445 = sbr.rel (%p443) target = $region44
        $region43: #{_pipeline.9} parent=39 // pred_region
          %s446 = sand.u32 %s94, 1
          %s447 = scalar_lea.sflag [#allocation3], %s446
          %s448 = sand.u32 %s94, 1
          %s449 = smul.addr %s448, 128
          %s450 = scalar_lea.vmem [#allocation2], %s449
          %451 = dma.done %s447, 2048
        $region44: #{_pipeline.9} parent=39 // pred_fallthru
          _
      $region40: #{_pipeline.9} parent=5 // pred_fallthru
        _
    $region6: #{_pipeline.9} parent=1 // loop_footer
      %s16 = sadd.s32 1, %s12
    $region7: #{_pipeline.9} parent=1 // loop_footer_branch
      %11 = sbr.rel target = $region3
    $region8: #{_pipeline.9} parent=1 // loop_exit
      _
    %452 = vsyncpa [#allocation3], 1
    %s453 = scalar_lea.sflag [#allocation3], 1
    %454 = vsyncpa %s453, 1

</llo_original>
